<compile_context>
chip_gen: v6e
topology: v6e:2x2x1
jax: 0.10.0
libtpu: 0.0.40
codegen_flags: <defaults>
</compile_context>

<pallas_src>
import functools

import jax
import jax.numpy as jnp
import numpy as np
from jax.experimental import pallas as pl
from jax.experimental.pallas import tpu as pltpu

EPS = 1e-6
LAYER_SCALE_INIT = 1e-6
_SQRT_2_OVER_PI = 0.7978845608028654   # tanh-approx GELU constant


def _round_up(x, m):
    return (x + m - 1) // m * m


def _tpu_vmem_and_cores():
    """Best-effort query of per-core VMEM bytes and TensorCores per chip."""
    vmem = 128 * 1024 * 1024
    cores = 1
    try:
        info = pltpu.get_tpu_info()
        for name in ("vmem_capacity_bytes", "vmem_bytes", "vmem_size_bytes"):
            v = getattr(info, name, None)
            if v:
                vmem = int(v)
                break
        for name in ("num_cores", "core_count", "num_tensorcores",
                     "tensorcores_per_chip", "cores_per_chip"):
            v = getattr(info, name, None)
            if v:
                cores = int(v)
                break
    except Exception:
        pass
    return int(vmem), max(1, int(cores))


def _pick_tile_h(H, W, cp, hid, vmem_limit):
    """Largest TH dividing H whose VMEM working set fits comfortably.

    Working set: manually double-buffered (TH+6, W+6, Cp) halo window,
    double-buffered (TH, W, Cp) output block, (TH*W, hid) MLP intermediates
    and the weights.  M = TH*W is capped around 2048 rows (MXU is saturated
    well before that; keeps vreg/spill pressure in the 49-tap conv bounded).
    """
    def est(th):
        window = 2 * (th + 6) * (W + 6) * cp * 4
        outblk = 2 * th * W * cp * 4
        interm = th * W * (6 * hid + 16 * cp)
        weights = 2 * 2 * 2 * cp * hid + 8 * (7 * 7 * cp + 6 * cp)
        return window + outblk + interm + weights

    budget = int(vmem_limit * 0.6)
    divisors = [d for d in range(1, H + 1) if H % d == 0]
    cands = [d for d in divisors if est(d) <= budget] or [1]
    capped = [d for d in cands if d * W <= 2048] or [min(cands)]
    return max(capped)


def _pick_outer_tiles(B, n_tiles, num_cores):
    """Outer-H grid factor: only split H across cores when the batch can't."""
    if B >= num_cores:
        return 1
    for d in range(1, n_tiles + 1):
        if n_tiles % d == 0 and B * d >= num_cores:
            return d
    return n_tiles


def _block_kernel(xpad_hbm, dww_ref, dwb_ref, lnw_ref, lnb_ref,
                  w1_ref, b1_ref, w2_ref, b2_ref, gamma_ref,
                  out_ref, win_ref, sem_ref, *, inv_c, true_c):
    # out block : (1, TH, W, Cp)
    # win_ref   : (2, TH+6, W+6, Cp) VMEM scratch, manual double buffer
    th, w, cp = out_ref.shape[1], out_ref.shape[2], out_ref.shape[3]
    b = pl.program_id(0)
    ho = pl.program_id(1)
    hi = pl.program_id(2)
    n_hi = pl.num_programs(2)
    tile = ho * n_hi + hi
    row0 = pl.multiple_of(tile * th, th)
    slot = hi % 2

    def window_copy(row, s):
        return pltpu.make_async_copy(
            xpad_hbm.at[b, pl.ds(row, th + 6)], win_ref.at[s], sem_ref.at[s])

    # Prime the halo-window pipeline at the first H-tile of every (b, ho)
    # block.  The hi axis is "arbitrary", so it always runs 0..n_hi-1
    # sequentially on one core regardless of megacore sharding.
    @pl.when(hi == 0)
    def _():
        window_copy(row0, slot).start()

    window_copy(row0, slot).wait()

    # Prefetch the next tile's halo window behind this tile's compute.
    @pl.when(hi + 1 < n_hi)
    def _():
        window_copy(row0 + th, 1 - slot).start()

    # ---- depthwise 7x7 conv (input zero-padded by 3 on H/W) ----------------
    # dx (the W shift) is the outer loop: one unaligned sublane slice per dx
    # (7 per tile instead of 49); the dy taps are free outer-dim offsets of
    # the loaded window.  Weights are read into a value once.
    dww = dww_ref[...]                                      # (7, 7, Cp)
    acc = jnp.zeros((th, w, cp), jnp.float32)
    res = None
    for dx in range(7):
        shifted = win_ref[slot, :, dx:dx + w, :]            # (TH+6, W, Cp)
        if dx == 3:
            res = shifted[3:3 + th]                         # residual = x interior
        for dy in range(7):
            acc = acc + shifted[dy:dy + th] * dww[dy, dx, :]
    # TODO(synk): on v6e/v7x the taps could run bf16-in / f32-acc for ~2x VALU.
    acc = acc + dwb_ref[...]

    # ---- LayerNorm over the true channel count (two-pass, lane-masked) -----
    y = acc.reshape(th * w, cp)
    # Padded lanes of y are exactly zero (dw_w / dw_b are zero-padded), so the
    # plain lane sum is already the true-C sum.
    mu = jnp.sum(y, axis=-1, keepdims=True) * inv_c
    lane = jax.lax.broadcasted_iota(jnp.int32, (1, cp), 1)
    d = jnp.where(lane < true_c, y - mu, 0.0)               # mask pad out of stats
    var = jnp.sum(d * d, axis=-1, keepdims=True) * inv_c
    yn = d * jax.lax.rsqrt(var + EPS)
    yn = yn * lnw_ref[...] + lnb_ref[...]                   # padded lanes stay 0

    # ---- pwconv1 -> GELU (tanh approx, EUP) -> pwconv2 ; bf16 in / f32 acc --
    h = jnp.dot(yn.astype(jnp.bfloat16), w1_ref[...],
                preferred_element_type=jnp.float32) + b1_ref[...]
    h = 0.5 * h * (1.0 + jnp.tanh(_SQRT_2_OVER_PI * (h + 0.044715 * (h * h * h))))
    z = jnp.dot(h.astype(jnp.bfloat16), w2_ref[...],
                preferred_element_type=jnp.float32) + b2_ref[...]

    # ---- layer scale + residual --------------------------------------------
    z = z * gamma_ref[...]
    out_ref[0] = (res + z.reshape(th, w, cp)).astype(out_ref.dtype)


def convnext_block(x_nchw, params):
    """x_nchw: (B, C, H, W) float32 (PyTorch layout). Returns (B, C, H, W)."""
    B, C, H, W = x_nchw.shape
    cp = _round_up(C, 128)          # lane-dense channel dim
    hid = _round_up(4 * C, 128)     # lane-dense MLP hidden dim

    vmem_bytes, num_cores = _tpu_vmem_and_cores()
    # ~96 MiB limit on 128 MiB parts (v5e/v6e), ~48 MiB on 64 MiB v7x.
    vmem_limit = max(32 << 20, min(vmem_bytes * 3 // 4, 96 << 20))

    th = _pick_tile_h(H, W, cp, hid, vmem_limit)
    n_tiles = H // th
    n_ho = _pick_outer_tiles(B, n_tiles, num_cores)
    n_hi = n_tiles // n_ho

    # NCHW -> NHWC + channel pad once at the module boundary.
    # TODO(synk): in a full network keep activations channel-padded NHWC across
    # blocks so these pad/transpose/slice HBM passes leave the hot path.
    x_nhwc = jnp.transpose(x_nchw, (0, 2, 3, 1))
    x_pad = jnp.pad(x_nhwc, ((0, 0), (3, 3), (3, 3), (0, cp - C)))

    # Parameter padding / bf16 cast (in a real network: done once at init).
    dw_w = jnp.pad(params["dw_w"], ((0, 0), (0, 0), (0, cp - C)))
    dw_b = jnp.pad(params["dw_b"], ((0, 0), (0, cp - C)))
    ln_w = jnp.pad(params["ln_w"], ((0, 0), (0, cp - C)))
    ln_b = jnp.pad(params["ln_b"], ((0, 0), (0, cp - C)))
    w1 = jnp.pad(params["w1"], ((0, cp - C), (0, hid - 4 * C))).astype(jnp.bfloat16)
    b1 = jnp.pad(params["b1"], ((0, 0), (0, hid - 4 * C)))
    w2 = jnp.pad(params["w2"], ((0, hid - 4 * C), (0, cp - C))).astype(jnp.bfloat16)
    b2 = jnp.pad(params["b2"], ((0, 0), (0, cp - C)))
    gamma = jnp.pad(params["gamma"], ((0, 0), (0, cp - C)))

    kernel = functools.partial(_block_kernel, inv_c=1.0 / C, true_c=C)

    # TODO(synk): mark the grid-invariant weight specs pl.Buffered(1) once
    # buffer_count=1 is verified on the target jax build (frees ~1x weight
    # bytes of VMEM; matters for ConvNeXt-B widths on v7x).
    out_nhwc = pl.pallas_call(
        kernel,
        out_shape=jax.ShapeDtypeStruct((B, H, W, cp), x_nchw.dtype),
        grid_spec=pltpu.PrefetchScalarGridSpec(
            num_scalar_prefetch=0,
            grid=(B, n_ho, n_hi),
            in_specs=[
                pl.BlockSpec(memory_space=pl.ANY),                  # x_pad in HBM
                pl.BlockSpec((7, 7, cp), lambda b, o, i: (0, 0, 0)),  # dw_w
                pl.BlockSpec((1, cp), lambda b, o, i: (0, 0)),        # dw_b
                pl.BlockSpec((1, cp), lambda b, o, i: (0, 0)),        # ln_w
                pl.BlockSpec((1, cp), lambda b, o, i: (0, 0)),        # ln_b
                pl.BlockSpec((cp, hid), lambda b, o, i: (0, 0)),      # w1 (bf16)
                pl.BlockSpec((1, hid), lambda b, o, i: (0, 0)),       # b1
                pl.BlockSpec((hid, cp), lambda b, o, i: (0, 0)),      # w2 (bf16)
                pl.BlockSpec((1, cp), lambda b, o, i: (0, 0)),        # b2
                pl.BlockSpec((1, cp), lambda b, o, i: (0, 0)),        # gamma
            ],
            out_specs=pl.BlockSpec(
                (1, th, W, cp), lambda b, o, i: (b, o * n_hi + i, 0, 0)),
            scratch_shapes=[
                pltpu.VMEM((2, th + 6, W + 6, cp), jnp.float32),
                pltpu.SemaphoreType.DMA((2,)),
            ]),
        compiler_params=pltpu.CompilerParams(
            dimension_semantics=("parallel", "parallel", "arbitrary"),
            vmem_limit_bytes=int(vmem_limit)),
    )(x_pad, dw_w, dw_b, ln_w, ln_b, w1, b1, w2, b2, gamma)

    return jnp.transpose(out_nhwc[..., :C], (0, 3, 1, 2))      # back to NCHW


def reference_block(x_nchw, params):
    """Pure-JAX f32 reference mirroring the PyTorch forward (for verification)."""
    B, C, H, W = x_nchw.shape
    w_oihw = jnp.transpose(params["dw_w"], (2, 0, 1))[:, None, :, :]  # (C,1,7,7)
    y = jax.lax.conv_general_dilated(
        x_nchw, w_oihw, window_strides=(1, 1), padding=((3, 3), (3, 3)),
        feature_group_count=C,
        dimension_numbers=("NCHW", "OIHW", "NCHW"))
    y = y + params["dw_b"].reshape(1, C, 1, 1)
    y = jnp.transpose(y, (0, 2, 3, 1))                          # NHWC
    mu = jnp.mean(y, axis=-1, keepdims=True)
    var = jnp.mean((y - mu) ** 2, axis=-1, keepdims=True)
    y = (y - mu) / jnp.sqrt(var + EPS)
    y = y * params["ln_w"].reshape(C) + params["ln_b"].reshape(C)
    y = y @ params["w1"] + params["b1"].reshape(-1)
    y = 0.5 * y * (1.0 + jax.lax.erf(y / np.sqrt(2.0)))          # exact GELU
    y = y @ params["w2"] + params["b2"].reshape(-1)
    y = y * params["gamma"].reshape(C)
    y = jnp.transpose(y, (0, 3, 1, 2))                          # NCHW
    return x_nchw + y


def init_params(key, dim):
    ks = jax.random.split(key, 6)
    return {
        "dw_w": 0.1 * jax.random.normal(ks[0], (7, 7, dim), jnp.float32),
        "dw_b": 0.1 * jax.random.normal(ks[1], (1, dim), jnp.float32),
        "ln_w": jnp.ones((1, dim), jnp.float32),
        "ln_b": jnp.zeros((1, dim), jnp.float32),
        "w1": 0.1 * jax.random.normal(ks[2], (dim, 4 * dim), jnp.float32),
        "b1": 0.1 * jax.random.normal(ks[3], (1, 4 * dim), jnp.float32),
        "w2": 0.1 * jax.random.normal(ks[4], (4 * dim, dim), jnp.float32),
        "b2": 0.1 * jax.random.normal(ks[5], (1, dim), jnp.float32),
        "gamma": LAYER_SCALE_INIT * jnp.ones((1, dim), jnp.float32),
    }


if __name__ == "__main__":
    # drop_path = 0.0 in this config, so DropPath is an identity (nothing to fuse).
    B, C, H, W = 2, 32, 16, 16
    key = jax.random.PRNGKey(0)
    kx, kp = jax.random.split(key)
    x = jax.random.normal(kx, (B, C, H, W), jnp.float32)        # NCHW, like PyTorch
    params = init_params(kp, C)

    out = jax.block_until_ready(convnext_block(x, params))
    ref = jax.block_until_ready(reference_block(x, params))
    np.testing.assert_allclose(np.asarray(out), np.asarray(ref), rtol=1e-4, atol=1e-5)

    print("KERNEL_OK")
</pallas_src>

<mosaic_0001>
module attributes {stable_mosaic.version = 11 : i64} {
  func.func @_block_kernel(%arg0: i32, %arg1: i32, %arg2: i32, %arg3: memref<2x22x22x128xf32, #tpu.memory_space<any>>, %arg4: memref<7x7x128xf32, #tpu.memory_space<vmem>>, %arg5: memref<1x128xf32, #tpu.memory_space<vmem>>, %arg6: memref<1x128xf32, #tpu.memory_space<vmem>>, %arg7: memref<1x128xf32, #tpu.memory_space<vmem>>, %arg8: memref<128x128xbf16, #tpu.memory_space<vmem>>, %arg9: memref<1x128xf32, #tpu.memory_space<vmem>>, %arg10: memref<128x128xbf16, #tpu.memory_space<vmem>>, %arg11: memref<1x128xf32, #tpu.memory_space<vmem>>, %arg12: memref<1x128xf32, #tpu.memory_space<vmem>>, %arg13: memref<1x16x16x128xf32, #tpu.memory_space<vmem>>, %arg14: memref<2x22x22x128xf32, #tpu.memory_space<vmem>>, %arg15: memref<2x!tpu.dma_semaphore, #tpu.memory_space<semaphore_mem>>) attributes {dimension_semantics = [#tpu.dimension_semantics<parallel>, #tpu.dimension_semantics<parallel>, #tpu.dimension_semantics<arbitrary>], iteration_bounds = array<i64: 2, 1, 1>, scalar_prefetch = 0 : i64, scratch_operands = 2 : i64, tpu.core_type = #tpu.core_type<tc>, window_params = [{}, {pipeline_mode = #tpu.pipeline_mode<synchronous>, transform_indices = @transform_1, window_bounds = array<i64: 7, 7, 128>}, {pipeline_mode = #tpu.pipeline_mode<synchronous>, transform_indices = @transform_2, window_bounds = array<i64: 1, 128>}, {pipeline_mode = #tpu.pipeline_mode<synchronous>, transform_indices = @transform_3, window_bounds = array<i64: 1, 128>}, {pipeline_mode = #tpu.pipeline_mode<synchronous>, transform_indices = @transform_4, window_bounds = array<i64: 1, 128>}, {pipeline_mode = #tpu.pipeline_mode<synchronous>, transform_indices = @transform_5, window_bounds = array<i64: 128, 128>}, {pipeline_mode = #tpu.pipeline_mode<synchronous>, transform_indices = @transform_6, window_bounds = array<i64: 1, 128>}, {pipeline_mode = #tpu.pipeline_mode<synchronous>, transform_indices = @transform_7, window_bounds = array<i64: 128, 128>}, {pipeline_mode = #tpu.pipeline_mode<synchronous>, transform_indices = @transform_8, window_bounds = array<i64: 1, 128>}, {pipeline_mode = #tpu.pipeline_mode<synchronous>, transform_indices = @transform_9, window_bounds = array<i64: 1, 128>}, {transform_indices = @transform_10, window_bounds = array<i64: 1, 16, 16, 128>}]} {
    %c1_i32 = arith.constant 1 : i32
    %0 = arith.muli %arg1, %c1_i32 : i32
    %1 = arith.addi %0, %arg2 : i32
    %c16_i32 = arith.constant 16 : i32
    %2 = arith.muli %1, %c16_i32 : i32
    %3 = tpu.assume_multiple %2, 16 : i32
    %c2_i32 = arith.constant 2 : i32
    %c0_i32 = arith.constant 0 : i32
    %4 = arith.cmpi eq, %c2_i32, %c0_i32 : i32
    %c1_i32_0 = arith.constant 1 : i32
    %5 = arith.select %4, %c1_i32_0, %c2_i32 : i32
    %6 = arith.remsi %arg2, %5 : i32
    %c0_i32_1 = arith.constant 0 : i32
    %7 = arith.cmpi ne, %6, %c0_i32_1 : i32
    %c0_i32_2 = arith.constant 0 : i32
    %8 = arith.cmpi slt, %6, %c0_i32_2 : i32
    %c0_i32_3 = arith.constant 0 : i32
    %9 = arith.cmpi slt, %5, %c0_i32_3 : i32
    %10 = arith.xori %8, %9 : i1
    %11 = arith.andi %10, %7 : i1
    %12 = arith.addi %6, %5 : i32
    %13 = arith.select %11, %12, %6 : i32
    %c0_i32_4 = arith.constant 0 : i32
    %14 = arith.cmpi eq, %arg2, %c0_i32_4 : i32
    %15 = arith.extui %14 : i1 to i32
    %c0_i32_5 = arith.constant 0 : i32
    %16 = arith.cmpi ne, %15, %c0_i32_5 : i32
    scf.if %16 {
      %c0_i32_63 = arith.constant 0 : i32
      %c0_i32_64 = arith.constant 0 : i32
      %461 = tpu.memref_slice %arg3[%arg0, %3, %c0_i32_63, %c0_i32_64] : memref<2x22x22x128xf32, #tpu.memory_space<any>> -> memref<1x22x22x128xf32, #tpu.memory_space<any>>
      %462 = tpu.memref_squeeze %461 : memref<1x22x22x128xf32, #tpu.memory_space<any>> -> memref<22x22x128xf32, #tpu.memory_space<any>>
      %c0_i32_65 = arith.constant 0 : i32
      %c0_i32_66 = arith.constant 0 : i32
      %c0_i32_67 = arith.constant 0 : i32
      %463 = tpu.memref_slice %arg14[%13, %c0_i32_65, %c0_i32_66, %c0_i32_67] : memref<2x22x22x128xf32, #tpu.memory_space<vmem>> -> memref<1x22x22x128xf32, #tpu.memory_space<vmem>>
      %464 = tpu.memref_squeeze %463 : memref<1x22x22x128xf32, #tpu.memory_space<vmem>> -> memref<22x22x128xf32, #tpu.memory_space<vmem>>
      %465 = tpu.memref_slice %arg15[%13] : memref<2x!tpu.dma_semaphore, #tpu.memory_space<semaphore_mem>> -> memref<1x!tpu.dma_semaphore, #tpu.memory_space<semaphore_mem>>
      %466 = tpu.memref_squeeze %465 : memref<1x!tpu.dma_semaphore, #tpu.memory_space<semaphore_mem>> -> memref<!tpu.dma_semaphore, #tpu.memory_space<semaphore_mem>>
      tpu.enqueue_dma source(%462 : memref<22x22x128xf32, #tpu.memory_space<any>>) target(%464 : memref<22x22x128xf32, #tpu.memory_space<vmem>>) target_semaphore(%466 : memref<!tpu.dma_semaphore, #tpu.memory_space<semaphore_mem>>)
    } else {
    }
    %c0_i32_6 = arith.constant 0 : i32
    %c0_i32_7 = arith.constant 0 : i32
    %17 = tpu.memref_slice %arg3[%arg0, %3, %c0_i32_6, %c0_i32_7] : memref<2x22x22x128xf32, #tpu.memory_space<any>> -> memref<1x22x22x128xf32, #tpu.memory_space<any>>
    %18 = tpu.memref_squeeze %17 : memref<1x22x22x128xf32, #tpu.memory_space<any>> -> memref<22x22x128xf32, #tpu.memory_space<any>>
    %c0_i32_8 = arith.constant 0 : i32
    %c0_i32_9 = arith.constant 0 : i32
    %c0_i32_10 = arith.constant 0 : i32
    %19 = tpu.memref_slice %arg14[%13, %c0_i32_8, %c0_i32_9, %c0_i32_10] : memref<2x22x22x128xf32, #tpu.memory_space<vmem>> -> memref<1x22x22x128xf32, #tpu.memory_space<vmem>>
    %20 = tpu.memref_squeeze %19 : memref<1x22x22x128xf32, #tpu.memory_space<vmem>> -> memref<22x22x128xf32, #tpu.memory_space<vmem>>
    %21 = tpu.memref_slice %arg15[%13] : memref<2x!tpu.dma_semaphore, #tpu.memory_space<semaphore_mem>> -> memref<1x!tpu.dma_semaphore, #tpu.memory_space<semaphore_mem>>
    %22 = tpu.memref_squeeze %21 : memref<1x!tpu.dma_semaphore, #tpu.memory_space<semaphore_mem>> -> memref<!tpu.dma_semaphore, #tpu.memory_space<semaphore_mem>>
    tpu.wait_dma2 semaphore(%22 : memref<!tpu.dma_semaphore, #tpu.memory_space<semaphore_mem>>) src(%18 : memref<22x22x128xf32, #tpu.memory_space<any>>) dst(%20 : memref<22x22x128xf32, #tpu.memory_space<vmem>>)
    %c1_i32_11 = arith.constant 1 : i32
    %23 = arith.addi %arg2, %c1_i32_11 : i32
    %c1_i32_12 = arith.constant 1 : i32
    %24 = arith.cmpi slt, %23, %c1_i32_12 : i32
    %25 = arith.extui %24 : i1 to i32
    %c0_i32_13 = arith.constant 0 : i32
    %26 = arith.cmpi ne, %25, %c0_i32_13 : i32
    scf.if %26 {
      %c16_i32_63 = arith.constant 16 : i32
      %461 = arith.addi %3, %c16_i32_63 : i32
      %c1_i32_64 = arith.constant 1 : i32
      %462 = arith.subi %c1_i32_64, %13 : i32
      %c0_i32_65 = arith.constant 0 : i32
      %c0_i32_66 = arith.constant 0 : i32
      %463 = tpu.memref_slice %arg3[%arg0, %461, %c0_i32_65, %c0_i32_66] : memref<2x22x22x128xf32, #tpu.memory_space<any>> -> memref<1x22x22x128xf32, #tpu.memory_space<any>>
      %464 = tpu.memref_squeeze %463 : memref<1x22x22x128xf32, #tpu.memory_space<any>> -> memref<22x22x128xf32, #tpu.memory_space<any>>
      %c0_i32_67 = arith.constant 0 : i32
      %c0_i32_68 = arith.constant 0 : i32
      %c0_i32_69 = arith.constant 0 : i32
      %465 = tpu.memref_slice %arg14[%462, %c0_i32_67, %c0_i32_68, %c0_i32_69] : memref<2x22x22x128xf32, #tpu.memory_space<vmem>> -> memref<1x22x22x128xf32, #tpu.memory_space<vmem>>
      %466 = tpu.memref_squeeze %465 : memref<1x22x22x128xf32, #tpu.memory_space<vmem>> -> memref<22x22x128xf32, #tpu.memory_space<vmem>>
      %467 = tpu.memref_slice %arg15[%462] : memref<2x!tpu.dma_semaphore, #tpu.memory_space<semaphore_mem>> -> memref<1x!tpu.dma_semaphore, #tpu.memory_space<semaphore_mem>>
      %468 = tpu.memref_squeeze %467 : memref<1x!tpu.dma_semaphore, #tpu.memory_space<semaphore_mem>> -> memref<!tpu.dma_semaphore, #tpu.memory_space<semaphore_mem>>
      tpu.enqueue_dma source(%464 : memref<22x22x128xf32, #tpu.memory_space<any>>) target(%466 : memref<22x22x128xf32, #tpu.memory_space<vmem>>) target_semaphore(%468 : memref<!tpu.dma_semaphore, #tpu.memory_space<semaphore_mem>>)
    } else {
    }
    %c0 = arith.constant 0 : index
    %c0_14 = arith.constant 0 : index
    %c0_15 = arith.constant 0 : index
    %27 = vector.load %arg4[%c0, %c0_14, %c0_15] : memref<7x7x128xf32, #tpu.memory_space<vmem>>, vector<7x7x128xf32>
    %cst = arith.constant 0.000000e+00 : f32
    %28 = vector.broadcast %cst : f32 to vector<16x16x128xf32>
    %29 = arith.index_cast %13 : i32 to index
    %c0_16 = arith.constant 0 : index
    %c0_17 = arith.constant 0 : index
    %c0_18 = arith.constant 0 : index
    %30 = vector.load %arg14[%29, %c0_16, %c0_17, %c0_18] : memref<2x22x22x128xf32, #tpu.memory_space<vmem>>, vector<1x22x16x128xf32>
    %31 = vector.shape_cast %30 : vector<1x22x16x128xf32> to vector<22x16x128xf32>
    %32 = vector.extract_strided_slice %31 {offsets = [0, 0, 0], sizes = [16, 16, 128], strides = [1, 1, 1]} : vector<22x16x128xf32> to vector<16x16x128xf32>
    %33 = vector.extract_strided_slice %27 {offsets = [0, 0, 0], sizes = [1, 1, 128], strides = [1, 1, 1]} : vector<7x7x128xf32> to vector<1x1x128xf32>
    %34 = vector.shape_cast %33 : vector<1x1x128xf32> to vector<128xf32>
    %35 = vector.shape_cast %34 : vector<128xf32> to vector<1x1x128xf32>
    %36 = vector.broadcast %35 : vector<1x1x128xf32> to vector<16x16x128xf32>
    %37 = arith.mulf %32, %36 : vector<16x16x128xf32>
    %38 = arith.addf %28, %37 : vector<16x16x128xf32>
    %39 = vector.extract_strided_slice %31 {offsets = [1, 0, 0], sizes = [16, 16, 128], strides = [1, 1, 1]} : vector<22x16x128xf32> to vector<16x16x128xf32>
    %40 = vector.extract_strided_slice %27 {offsets = [1, 0, 0], sizes = [1, 1, 128], strides = [1, 1, 1]} : vector<7x7x128xf32> to vector<1x1x128xf32>
    %41 = vector.shape_cast %40 : vector<1x1x128xf32> to vector<128xf32>
    %42 = vector.shape_cast %41 : vector<128xf32> to vector<1x1x128xf32>
    %43 = vector.broadcast %42 : vector<1x1x128xf32> to vector<16x16x128xf32>
    %44 = arith.mulf %39, %43 : vector<16x16x128xf32>
    %45 = arith.addf %38, %44 : vector<16x16x128xf32>
    %46 = vector.extract_strided_slice %31 {offsets = [2, 0, 0], sizes = [16, 16, 128], strides = [1, 1, 1]} : vector<22x16x128xf32> to vector<16x16x128xf32>
    %47 = vector.extract_strided_slice %27 {offsets = [2, 0, 0], sizes = [1, 1, 128], strides = [1, 1, 1]} : vector<7x7x128xf32> to vector<1x1x128xf32>
    %48 = vector.shape_cast %47 : vector<1x1x128xf32> to vector<128xf32>
    %49 = vector.shape_cast %48 : vector<128xf32> to vector<1x1x128xf32>
    %50 = vector.broadcast %49 : vector<1x1x128xf32> to vector<16x16x128xf32>
    %51 = arith.mulf %46, %50 : vector<16x16x128xf32>
    %52 = arith.addf %45, %51 : vector<16x16x128xf32>
    %53 = vector.extract_strided_slice %31 {offsets = [3, 0, 0], sizes = [16, 16, 128], strides = [1, 1, 1]} : vector<22x16x128xf32> to vector<16x16x128xf32>
    %54 = vector.extract_strided_slice %27 {offsets = [3, 0, 0], sizes = [1, 1, 128], strides = [1, 1, 1]} : vector<7x7x128xf32> to vector<1x1x128xf32>
    %55 = vector.shape_cast %54 : vector<1x1x128xf32> to vector<128xf32>
    %56 = vector.shape_cast %55 : vector<128xf32> to vector<1x1x128xf32>
    %57 = vector.broadcast %56 : vector<1x1x128xf32> to vector<16x16x128xf32>
    %58 = arith.mulf %53, %57 : vector<16x16x128xf32>
    %59 = arith.addf %52, %58 : vector<16x16x128xf32>
    %60 = vector.extract_strided_slice %31 {offsets = [4, 0, 0], sizes = [16, 16, 128], strides = [1, 1, 1]} : vector<22x16x128xf32> to vector<16x16x128xf32>
    %61 = vector.extract_strided_slice %27 {offsets = [4, 0, 0], sizes = [1, 1, 128], strides = [1, 1, 1]} : vector<7x7x128xf32> to vector<1x1x128xf32>
    %62 = vector.shape_cast %61 : vector<1x1x128xf32> to vector<128xf32>
    %63 = vector.shape_cast %62 : vector<128xf32> to vector<1x1x128xf32>
    %64 = vector.broadcast %63 : vector<1x1x128xf32> to vector<16x16x128xf32>
    %65 = arith.mulf %60, %64 : vector<16x16x128xf32>
    %66 = arith.addf %59, %65 : vector<16x16x128xf32>
    %67 = vector.extract_strided_slice %31 {offsets = [5, 0, 0], sizes = [16, 16, 128], strides = [1, 1, 1]} : vector<22x16x128xf32> to vector<16x16x128xf32>
    %68 = vector.extract_strided_slice %27 {offsets = [5, 0, 0], sizes = [1, 1, 128], strides = [1, 1, 1]} : vector<7x7x128xf32> to vector<1x1x128xf32>
    %69 = vector.shape_cast %68 : vector<1x1x128xf32> to vector<128xf32>
    %70 = vector.shape_cast %69 : vector<128xf32> to vector<1x1x128xf32>
    %71 = vector.broadcast %70 : vector<1x1x128xf32> to vector<16x16x128xf32>
    %72 = arith.mulf %67, %71 : vector<16x16x128xf32>
    %73 = arith.addf %66, %72 : vector<16x16x128xf32>
    %74 = vector.extract_strided_slice %31 {offsets = [6, 0, 0], sizes = [16, 16, 128], strides = [1, 1, 1]} : vector<22x16x128xf32> to vector<16x16x128xf32>
    %75 = vector.extract_strided_slice %27 {offsets = [6, 0, 0], sizes = [1, 1, 128], strides = [1, 1, 1]} : vector<7x7x128xf32> to vector<1x1x128xf32>
    %76 = vector.shape_cast %75 : vector<1x1x128xf32> to vector<128xf32>
    %77 = vector.shape_cast %76 : vector<128xf32> to vector<1x1x128xf32>
    %78 = vector.broadcast %77 : vector<1x1x128xf32> to vector<16x16x128xf32>
    %79 = arith.mulf %74, %78 : vector<16x16x128xf32>
    %80 = arith.addf %73, %79 : vector<16x16x128xf32>
    %81 = arith.index_cast %13 : i32 to index
    %c0_19 = arith.constant 0 : index
    %c1 = arith.constant 1 : index
    %c0_20 = arith.constant 0 : index
    %82 = vector.load %arg14[%81, %c0_19, %c1, %c0_20] : memref<2x22x22x128xf32, #tpu.memory_space<vmem>>, vector<1x22x16x128xf32>
    %83 = vector.shape_cast %82 : vector<1x22x16x128xf32> to vector<22x16x128xf32>
    %84 = vector.extract_strided_slice %83 {offsets = [0, 0, 0], sizes = [16, 16, 128], strides = [1, 1, 1]} : vector<22x16x128xf32> to vector<16x16x128xf32>
    %85 = vector.extract_strided_slice %27 {offsets = [0, 1, 0], sizes = [1, 1, 128], strides = [1, 1, 1]} : vector<7x7x128xf32> to vector<1x1x128xf32>
    %86 = vector.shape_cast %85 : vector<1x1x128xf32> to vector<128xf32>
    %87 = vector.shape_cast %86 : vector<128xf32> to vector<1x1x128xf32>
    %88 = vector.broadcast %87 : vector<1x1x128xf32> to vector<16x16x128xf32>
    %89 = arith.mulf %84, %88 : vector<16x16x128xf32>
    %90 = arith.addf %80, %89 : vector<16x16x128xf32>
    %91 = vector.extract_strided_slice %83 {offsets = [1, 0, 0], sizes = [16, 16, 128], strides = [1, 1, 1]} : vector<22x16x128xf32> to vector<16x16x128xf32>
    %92 = vector.extract_strided_slice %27 {offsets = [1, 1, 0], sizes = [1, 1, 128], strides = [1, 1, 1]} : vector<7x7x128xf32> to vector<1x1x128xf32>
    %93 = vector.shape_cast %92 : vector<1x1x128xf32> to vector<128xf32>
    %94 = vector.shape_cast %93 : vector<128xf32> to vector<1x1x128xf32>
    %95 = vector.broadcast %94 : vector<1x1x128xf32> to vector<16x16x128xf32>
    %96 = arith.mulf %91, %95 : vector<16x16x128xf32>
    %97 = arith.addf %90, %96 : vector<16x16x128xf32>
    %98 = vector.extract_strided_slice %83 {offsets = [2, 0, 0], sizes = [16, 16, 128], strides = [1, 1, 1]} : vector<22x16x128xf32> to vector<16x16x128xf32>
    %99 = vector.extract_strided_slice %27 {offsets = [2, 1, 0], sizes = [1, 1, 128], strides = [1, 1, 1]} : vector<7x7x128xf32> to vector<1x1x128xf32>
    %100 = vector.shape_cast %99 : vector<1x1x128xf32> to vector<128xf32>
    %101 = vector.shape_cast %100 : vector<128xf32> to vector<1x1x128xf32>
    %102 = vector.broadcast %101 : vector<1x1x128xf32> to vector<16x16x128xf32>
    %103 = arith.mulf %98, %102 : vector<16x16x128xf32>
    %104 = arith.addf %97, %103 : vector<16x16x128xf32>
    %105 = vector.extract_strided_slice %83 {offsets = [3, 0, 0], sizes = [16, 16, 128], strides = [1, 1, 1]} : vector<22x16x128xf32> to vector<16x16x128xf32>
    %106 = vector.extract_strided_slice %27 {offsets = [3, 1, 0], sizes = [1, 1, 128], strides = [1, 1, 1]} : vector<7x7x128xf32> to vector<1x1x128xf32>
    %107 = vector.shape_cast %106 : vector<1x1x128xf32> to vector<128xf32>
    %108 = vector.shape_cast %107 : vector<128xf32> to vector<1x1x128xf32>
    %109 = vector.broadcast %108 : vector<1x1x128xf32> to vector<16x16x128xf32>
    %110 = arith.mulf %105, %109 : vector<16x16x128xf32>
    %111 = arith.addf %104, %110 : vector<16x16x128xf32>
    %112 = vector.extract_strided_slice %83 {offsets = [4, 0, 0], sizes = [16, 16, 128], strides = [1, 1, 1]} : vector<22x16x128xf32> to vector<16x16x128xf32>
    %113 = vector.extract_strided_slice %27 {offsets = [4, 1, 0], sizes = [1, 1, 128], strides = [1, 1, 1]} : vector<7x7x128xf32> to vector<1x1x128xf32>
    %114 = vector.shape_cast %113 : vector<1x1x128xf32> to vector<128xf32>
    %115 = vector.shape_cast %114 : vector<128xf32> to vector<1x1x128xf32>
    %116 = vector.broadcast %115 : vector<1x1x128xf32> to vector<16x16x128xf32>
    %117 = arith.mulf %112, %116 : vector<16x16x128xf32>
    %118 = arith.addf %111, %117 : vector<16x16x128xf32>
    %119 = vector.extract_strided_slice %83 {offsets = [5, 0, 0], sizes = [16, 16, 128], strides = [1, 1, 1]} : vector<22x16x128xf32> to vector<16x16x128xf32>
    %120 = vector.extract_strided_slice %27 {offsets = [5, 1, 0], sizes = [1, 1, 128], strides = [1, 1, 1]} : vector<7x7x128xf32> to vector<1x1x128xf32>
    %121 = vector.shape_cast %120 : vector<1x1x128xf32> to vector<128xf32>
    %122 = vector.shape_cast %121 : vector<128xf32> to vector<1x1x128xf32>
    %123 = vector.broadcast %122 : vector<1x1x128xf32> to vector<16x16x128xf32>
    %124 = arith.mulf %119, %123 : vector<16x16x128xf32>
    %125 = arith.addf %118, %124 : vector<16x16x128xf32>
    %126 = vector.extract_strided_slice %83 {offsets = [6, 0, 0], sizes = [16, 16, 128], strides = [1, 1, 1]} : vector<22x16x128xf32> to vector<16x16x128xf32>
    %127 = vector.extract_strided_slice %27 {offsets = [6, 1, 0], sizes = [1, 1, 128], strides = [1, 1, 1]} : vector<7x7x128xf32> to vector<1x1x128xf32>
    %128 = vector.shape_cast %127 : vector<1x1x128xf32> to vector<128xf32>
    %129 = vector.shape_cast %128 : vector<128xf32> to vector<1x1x128xf32>
    %130 = vector.broadcast %129 : vector<1x1x128xf32> to vector<16x16x128xf32>
    %131 = arith.mulf %126, %130 : vector<16x16x128xf32>
    %132 = arith.addf %125, %131 : vector<16x16x128xf32>
    %133 = arith.index_cast %13 : i32 to index
    %c0_21 = arith.constant 0 : index
    %c2 = arith.constant 2 : index
    %c0_22 = arith.constant 0 : index
    %134 = vector.load %arg14[%133, %c0_21, %c2, %c0_22] : memref<2x22x22x128xf32, #tpu.memory_space<vmem>>, vector<1x22x16x128xf32>
    %135 = vector.shape_cast %134 : vector<1x22x16x128xf32> to vector<22x16x128xf32>
    %136 = vector.extract_strided_slice %135 {offsets = [0, 0, 0], sizes = [16, 16, 128], strides = [1, 1, 1]} : vector<22x16x128xf32> to vector<16x16x128xf32>
    %137 = vector.extract_strided_slice %27 {offsets = [0, 2, 0], sizes = [1, 1, 128], strides = [1, 1, 1]} : vector<7x7x128xf32> to vector<1x1x128xf32>
    %138 = vector.shape_cast %137 : vector<1x1x128xf32> to vector<128xf32>
    %139 = vector.shape_cast %138 : vector<128xf32> to vector<1x1x128xf32>
    %140 = vector.broadcast %139 : vector<1x1x128xf32> to vector<16x16x128xf32>
    %141 = arith.mulf %136, %140 : vector<16x16x128xf32>
    %142 = arith.addf %132, %141 : vector<16x16x128xf32>
    %143 = vector.extract_strided_slice %135 {offsets = [1, 0, 0], sizes = [16, 16, 128], strides = [1, 1, 1]} : vector<22x16x128xf32> to vector<16x16x128xf32>
    %144 = vector.extract_strided_slice %27 {offsets = [1, 2, 0], sizes = [1, 1, 128], strides = [1, 1, 1]} : vector<7x7x128xf32> to vector<1x1x128xf32>
    %145 = vector.shape_cast %144 : vector<1x1x128xf32> to vector<128xf32>
    %146 = vector.shape_cast %145 : vector<128xf32> to vector<1x1x128xf32>
    %147 = vector.broadcast %146 : vector<1x1x128xf32> to vector<16x16x128xf32>
    %148 = arith.mulf %143, %147 : vector<16x16x128xf32>
    %149 = arith.addf %142, %148 : vector<16x16x128xf32>
    %150 = vector.extract_strided_slice %135 {offsets = [2, 0, 0], sizes = [16, 16, 128], strides = [1, 1, 1]} : vector<22x16x128xf32> to vector<16x16x128xf32>
    %151 = vector.extract_strided_slice %27 {offsets = [2, 2, 0], sizes = [1, 1, 128], strides = [1, 1, 1]} : vector<7x7x128xf32> to vector<1x1x128xf32>
    %152 = vector.shape_cast %151 : vector<1x1x128xf32> to vector<128xf32>
    %153 = vector.shape_cast %152 : vector<128xf32> to vector<1x1x128xf32>
    %154 = vector.broadcast %153 : vector<1x1x128xf32> to vector<16x16x128xf32>
    %155 = arith.mulf %150, %154 : vector<16x16x128xf32>
    %156 = arith.addf %149, %155 : vector<16x16x128xf32>
    %157 = vector.extract_strided_slice %135 {offsets = [3, 0, 0], sizes = [16, 16, 128], strides = [1, 1, 1]} : vector<22x16x128xf32> to vector<16x16x128xf32>
    %158 = vector.extract_strided_slice %27 {offsets = [3, 2, 0], sizes = [1, 1, 128], strides = [1, 1, 1]} : vector<7x7x128xf32> to vector<1x1x128xf32>
    %159 = vector.shape_cast %158 : vector<1x1x128xf32> to vector<128xf32>
    %160 = vector.shape_cast %159 : vector<128xf32> to vector<1x1x128xf32>
    %161 = vector.broadcast %160 : vector<1x1x128xf32> to vector<16x16x128xf32>
    %162 = arith.mulf %157, %161 : vector<16x16x128xf32>
    %163 = arith.addf %156, %162 : vector<16x16x128xf32>
    %164 = vector.extract_strided_slice %135 {offsets = [4, 0, 0], sizes = [16, 16, 128], strides = [1, 1, 1]} : vector<22x16x128xf32> to vector<16x16x128xf32>
    %165 = vector.extract_strided_slice %27 {offsets = [4, 2, 0], sizes = [1, 1, 128], strides = [1, 1, 1]} : vector<7x7x128xf32> to vector<1x1x128xf32>
    %166 = vector.shape_cast %165 : vector<1x1x128xf32> to vector<128xf32>
    %167 = vector.shape_cast %166 : vector<128xf32> to vector<1x1x128xf32>
    %168 = vector.broadcast %167 : vector<1x1x128xf32> to vector<16x16x128xf32>
    %169 = arith.mulf %164, %168 : vector<16x16x128xf32>
    %170 = arith.addf %163, %169 : vector<16x16x128xf32>
    %171 = vector.extract_strided_slice %135 {offsets = [5, 0, 0], sizes = [16, 16, 128], strides = [1, 1, 1]} : vector<22x16x128xf32> to vector<16x16x128xf32>
    %172 = vector.extract_strided_slice %27 {offsets = [5, 2, 0], sizes = [1, 1, 128], strides = [1, 1, 1]} : vector<7x7x128xf32> to vector<1x1x128xf32>
    %173 = vector.shape_cast %172 : vector<1x1x128xf32> to vector<128xf32>
    %174 = vector.shape_cast %173 : vector<128xf32> to vector<1x1x128xf32>
    %175 = vector.broadcast %174 : vector<1x1x128xf32> to vector<16x16x128xf32>
    %176 = arith.mulf %171, %175 : vector<16x16x128xf32>
    %177 = arith.addf %170, %176 : vector<16x16x128xf32>
    %178 = vector.extract_strided_slice %135 {offsets = [6, 0, 0], sizes = [16, 16, 128], strides = [1, 1, 1]} : vector<22x16x128xf32> to vector<16x16x128xf32>
    %179 = vector.extract_strided_slice %27 {offsets = [6, 2, 0], sizes = [1, 1, 128], strides = [1, 1, 1]} : vector<7x7x128xf32> to vector<1x1x128xf32>
    %180 = vector.shape_cast %179 : vector<1x1x128xf32> to vector<128xf32>
    %181 = vector.shape_cast %180 : vector<128xf32> to vector<1x1x128xf32>
    %182 = vector.broadcast %181 : vector<1x1x128xf32> to vector<16x16x128xf32>
    %183 = arith.mulf %178, %182 : vector<16x16x128xf32>
    %184 = arith.addf %177, %183 : vector<16x16x128xf32>
    %185 = arith.index_cast %13 : i32 to index
    %c0_23 = arith.constant 0 : index
    %c3 = arith.constant 3 : index
    %c0_24 = arith.constant 0 : index
    %186 = vector.load %arg14[%185, %c0_23, %c3, %c0_24] : memref<2x22x22x128xf32, #tpu.memory_space<vmem>>, vector<1x22x16x128xf32>
    %187 = vector.shape_cast %186 : vector<1x22x16x128xf32> to vector<22x16x128xf32>
    %188 = vector.extract_strided_slice %187 {offsets = [3, 0, 0], sizes = [16, 16, 128], strides = [1, 1, 1]} : vector<22x16x128xf32> to vector<16x16x128xf32>
    %189 = vector.extract_strided_slice %187 {offsets = [0, 0, 0], sizes = [16, 16, 128], strides = [1, 1, 1]} : vector<22x16x128xf32> to vector<16x16x128xf32>
    %190 = vector.extract_strided_slice %27 {offsets = [0, 3, 0], sizes = [1, 1, 128], strides = [1, 1, 1]} : vector<7x7x128xf32> to vector<1x1x128xf32>
    %191 = vector.shape_cast %190 : vector<1x1x128xf32> to vector<128xf32>
    %192 = vector.shape_cast %191 : vector<128xf32> to vector<1x1x128xf32>
    %193 = vector.broadcast %192 : vector<1x1x128xf32> to vector<16x16x128xf32>
    %194 = arith.mulf %189, %193 : vector<16x16x128xf32>
    %195 = arith.addf %184, %194 : vector<16x16x128xf32>
    %196 = vector.extract_strided_slice %187 {offsets = [1, 0, 0], sizes = [16, 16, 128], strides = [1, 1, 1]} : vector<22x16x128xf32> to vector<16x16x128xf32>
    %197 = vector.extract_strided_slice %27 {offsets = [1, 3, 0], sizes = [1, 1, 128], strides = [1, 1, 1]} : vector<7x7x128xf32> to vector<1x1x128xf32>
    %198 = vector.shape_cast %197 : vector<1x1x128xf32> to vector<128xf32>
    %199 = vector.shape_cast %198 : vector<128xf32> to vector<1x1x128xf32>
    %200 = vector.broadcast %199 : vector<1x1x128xf32> to vector<16x16x128xf32>
    %201 = arith.mulf %196, %200 : vector<16x16x128xf32>
    %202 = arith.addf %195, %201 : vector<16x16x128xf32>
    %203 = vector.extract_strided_slice %187 {offsets = [2, 0, 0], sizes = [16, 16, 128], strides = [1, 1, 1]} : vector<22x16x128xf32> to vector<16x16x128xf32>
    %204 = vector.extract_strided_slice %27 {offsets = [2, 3, 0], sizes = [1, 1, 128], strides = [1, 1, 1]} : vector<7x7x128xf32> to vector<1x1x128xf32>
    %205 = vector.shape_cast %204 : vector<1x1x128xf32> to vector<128xf32>
    %206 = vector.shape_cast %205 : vector<128xf32> to vector<1x1x128xf32>
    %207 = vector.broadcast %206 : vector<1x1x128xf32> to vector<16x16x128xf32>
    %208 = arith.mulf %203, %207 : vector<16x16x128xf32>
    %209 = arith.addf %202, %208 : vector<16x16x128xf32>
    %210 = vector.extract_strided_slice %187 {offsets = [3, 0, 0], sizes = [16, 16, 128], strides = [1, 1, 1]} : vector<22x16x128xf32> to vector<16x16x128xf32>
    %211 = vector.extract_strided_slice %27 {offsets = [3, 3, 0], sizes = [1, 1, 128], strides = [1, 1, 1]} : vector<7x7x128xf32> to vector<1x1x128xf32>
    %212 = vector.shape_cast %211 : vector<1x1x128xf32> to vector<128xf32>
    %213 = vector.shape_cast %212 : vector<128xf32> to vector<1x1x128xf32>
    %214 = vector.broadcast %213 : vector<1x1x128xf32> to vector<16x16x128xf32>
    %215 = arith.mulf %210, %214 : vector<16x16x128xf32>
    %216 = arith.addf %209, %215 : vector<16x16x128xf32>
    %217 = vector.extract_strided_slice %187 {offsets = [4, 0, 0], sizes = [16, 16, 128], strides = [1, 1, 1]} : vector<22x16x128xf32> to vector<16x16x128xf32>
    %218 = vector.extract_strided_slice %27 {offsets = [4, 3, 0], sizes = [1, 1, 128], strides = [1, 1, 1]} : vector<7x7x128xf32> to vector<1x1x128xf32>
    %219 = vector.shape_cast %218 : vector<1x1x128xf32> to vector<128xf32>
    %220 = vector.shape_cast %219 : vector<128xf32> to vector<1x1x128xf32>
    %221 = vector.broadcast %220 : vector<1x1x128xf32> to vector<16x16x128xf32>
    %222 = arith.mulf %217, %221 : vector<16x16x128xf32>
    %223 = arith.addf %216, %222 : vector<16x16x128xf32>
    %224 = vector.extract_strided_slice %187 {offsets = [5, 0, 0], sizes = [16, 16, 128], strides = [1, 1, 1]} : vector<22x16x128xf32> to vector<16x16x128xf32>
    %225 = vector.extract_strided_slice %27 {offsets = [5, 3, 0], sizes = [1, 1, 128], strides = [1, 1, 1]} : vector<7x7x128xf32> to vector<1x1x128xf32>
    %226 = vector.shape_cast %225 : vector<1x1x128xf32> to vector<128xf32>
    %227 = vector.shape_cast %226 : vector<128xf32> to vector<1x1x128xf32>
    %228 = vector.broadcast %227 : vector<1x1x128xf32> to vector<16x16x128xf32>
    %229 = arith.mulf %224, %228 : vector<16x16x128xf32>
    %230 = arith.addf %223, %229 : vector<16x16x128xf32>
    %231 = vector.extract_strided_slice %187 {offsets = [6, 0, 0], sizes = [16, 16, 128], strides = [1, 1, 1]} : vector<22x16x128xf32> to vector<16x16x128xf32>
    %232 = vector.extract_strided_slice %27 {offsets = [6, 3, 0], sizes = [1, 1, 128], strides = [1, 1, 1]} : vector<7x7x128xf32> to vector<1x1x128xf32>
    %233 = vector.shape_cast %232 : vector<1x1x128xf32> to vector<128xf32>
    %234 = vector.shape_cast %233 : vector<128xf32> to vector<1x1x128xf32>
    %235 = vector.broadcast %234 : vector<1x1x128xf32> to vector<16x16x128xf32>
    %236 = arith.mulf %231, %235 : vector<16x16x128xf32>
    %237 = arith.addf %230, %236 : vector<16x16x128xf32>
    %238 = arith.index_cast %13 : i32 to index
    %c0_25 = arith.constant 0 : index
    %c4 = arith.constant 4 : index
    %c0_26 = arith.constant 0 : index
    %239 = vector.load %arg14[%238, %c0_25, %c4, %c0_26] : memref<2x22x22x128xf32, #tpu.memory_space<vmem>>, vector<1x22x16x128xf32>
    %240 = vector.shape_cast %239 : vector<1x22x16x128xf32> to vector<22x16x128xf32>
    %241 = vector.extract_strided_slice %240 {offsets = [0, 0, 0], sizes = [16, 16, 128], strides = [1, 1, 1]} : vector<22x16x128xf32> to vector<16x16x128xf32>
    %242 = vector.extract_strided_slice %27 {offsets = [0, 4, 0], sizes = [1, 1, 128], strides = [1, 1, 1]} : vector<7x7x128xf32> to vector<1x1x128xf32>
    %243 = vector.shape_cast %242 : vector<1x1x128xf32> to vector<128xf32>
    %244 = vector.shape_cast %243 : vector<128xf32> to vector<1x1x128xf32>
    %245 = vector.broadcast %244 : vector<1x1x128xf32> to vector<16x16x128xf32>
    %246 = arith.mulf %241, %245 : vector<16x16x128xf32>
    %247 = arith.addf %237, %246 : vector<16x16x128xf32>
    %248 = vector.extract_strided_slice %240 {offsets = [1, 0, 0], sizes = [16, 16, 128], strides = [1, 1, 1]} : vector<22x16x128xf32> to vector<16x16x128xf32>
    %249 = vector.extract_strided_slice %27 {offsets = [1, 4, 0], sizes = [1, 1, 128], strides = [1, 1, 1]} : vector<7x7x128xf32> to vector<1x1x128xf32>
    %250 = vector.shape_cast %249 : vector<1x1x128xf32> to vector<128xf32>
    %251 = vector.shape_cast %250 : vector<128xf32> to vector<1x1x128xf32>
    %252 = vector.broadcast %251 : vector<1x1x128xf32> to vector<16x16x128xf32>
    %253 = arith.mulf %248, %252 : vector<16x16x128xf32>
    %254 = arith.addf %247, %253 : vector<16x16x128xf32>
    %255 = vector.extract_strided_slice %240 {offsets = [2, 0, 0], sizes = [16, 16, 128], strides = [1, 1, 1]} : vector<22x16x128xf32> to vector<16x16x128xf32>
    %256 = vector.extract_strided_slice %27 {offsets = [2, 4, 0], sizes = [1, 1, 128], strides = [1, 1, 1]} : vector<7x7x128xf32> to vector<1x1x128xf32>
    %257 = vector.shape_cast %256 : vector<1x1x128xf32> to vector<128xf32>
    %258 = vector.shape_cast %257 : vector<128xf32> to vector<1x1x128xf32>
    %259 = vector.broadcast %258 : vector<1x1x128xf32> to vector<16x16x128xf32>
    %260 = arith.mulf %255, %259 : vector<16x16x128xf32>
    %261 = arith.addf %254, %260 : vector<16x16x128xf32>
    %262 = vector.extract_strided_slice %240 {offsets = [3, 0, 0], sizes = [16, 16, 128], strides = [1, 1, 1]} : vector<22x16x128xf32> to vector<16x16x128xf32>
    %263 = vector.extract_strided_slice %27 {offsets = [3, 4, 0], sizes = [1, 1, 128], strides = [1, 1, 1]} : vector<7x7x128xf32> to vector<1x1x128xf32>
    %264 = vector.shape_cast %263 : vector<1x1x128xf32> to vector<128xf32>
    %265 = vector.shape_cast %264 : vector<128xf32> to vector<1x1x128xf32>
    %266 = vector.broadcast %265 : vector<1x1x128xf32> to vector<16x16x128xf32>
    %267 = arith.mulf %262, %266 : vector<16x16x128xf32>
    %268 = arith.addf %261, %267 : vector<16x16x128xf32>
    %269 = vector.extract_strided_slice %240 {offsets = [4, 0, 0], sizes = [16, 16, 128], strides = [1, 1, 1]} : vector<22x16x128xf32> to vector<16x16x128xf32>
    %270 = vector.extract_strided_slice %27 {offsets = [4, 4, 0], sizes = [1, 1, 128], strides = [1, 1, 1]} : vector<7x7x128xf32> to vector<1x1x128xf32>
    %271 = vector.shape_cast %270 : vector<1x1x128xf32> to vector<128xf32>
    %272 = vector.shape_cast %271 : vector<128xf32> to vector<1x1x128xf32>
    %273 = vector.broadcast %272 : vector<1x1x128xf32> to vector<16x16x128xf32>
    %274 = arith.mulf %269, %273 : vector<16x16x128xf32>
    %275 = arith.addf %268, %274 : vector<16x16x128xf32>
    %276 = vector.extract_strided_slice %240 {offsets = [5, 0, 0], sizes = [16, 16, 128], strides = [1, 1, 1]} : vector<22x16x128xf32> to vector<16x16x128xf32>
    %277 = vector.extract_strided_slice %27 {offsets = [5, 4, 0], sizes = [1, 1, 128], strides = [1, 1, 1]} : vector<7x7x128xf32> to vector<1x1x128xf32>
    %278 = vector.shape_cast %277 : vector<1x1x128xf32> to vector<128xf32>
    %279 = vector.shape_cast %278 : vector<128xf32> to vector<1x1x128xf32>
    %280 = vector.broadcast %279 : vector<1x1x128xf32> to vector<16x16x128xf32>
    %281 = arith.mulf %276, %280 : vector<16x16x128xf32>
    %282 = arith.addf %275, %281 : vector<16x16x128xf32>
    %283 = vector.extract_strided_slice %240 {offsets = [6, 0, 0], sizes = [16, 16, 128], strides = [1, 1, 1]} : vector<22x16x128xf32> to vector<16x16x128xf32>
    %284 = vector.extract_strided_slice %27 {offsets = [6, 4, 0], sizes = [1, 1, 128], strides = [1, 1, 1]} : vector<7x7x128xf32> to vector<1x1x128xf32>
    %285 = vector.shape_cast %284 : vector<1x1x128xf32> to vector<128xf32>
    %286 = vector.shape_cast %285 : vector<128xf32> to vector<1x1x128xf32>
    %287 = vector.broadcast %286 : vector<1x1x128xf32> to vector<16x16x128xf32>
    %288 = arith.mulf %283, %287 : vector<16x16x128xf32>
    %289 = arith.addf %282, %288 : vector<16x16x128xf32>
    %290 = arith.index_cast %13 : i32 to index
    %c0_27 = arith.constant 0 : index
    %c5 = arith.constant 5 : index
    %c0_28 = arith.constant 0 : index
    %291 = vector.load %arg14[%290, %c0_27, %c5, %c0_28] : memref<2x22x22x128xf32, #tpu.memory_space<vmem>>, vector<1x22x16x128xf32>
    %292 = vector.shape_cast %291 : vector<1x22x16x128xf32> to vector<22x16x128xf32>
    %293 = vector.extract_strided_slice %292 {offsets = [0, 0, 0], sizes = [16, 16, 128], strides = [1, 1, 1]} : vector<22x16x128xf32> to vector<16x16x128xf32>
    %294 = vector.extract_strided_slice %27 {offsets = [0, 5, 0], sizes = [1, 1, 128], strides = [1, 1, 1]} : vector<7x7x128xf32> to vector<1x1x128xf32>
    %295 = vector.shape_cast %294 : vector<1x1x128xf32> to vector<128xf32>
    %296 = vector.shape_cast %295 : vector<128xf32> to vector<1x1x128xf32>
    %297 = vector.broadcast %296 : vector<1x1x128xf32> to vector<16x16x128xf32>
    %298 = arith.mulf %293, %297 : vector<16x16x128xf32>
    %299 = arith.addf %289, %298 : vector<16x16x128xf32>
    %300 = vector.extract_strided_slice %292 {offsets = [1, 0, 0], sizes = [16, 16, 128], strides = [1, 1, 1]} : vector<22x16x128xf32> to vector<16x16x128xf32>
    %301 = vector.extract_strided_slice %27 {offsets = [1, 5, 0], sizes = [1, 1, 128], strides = [1, 1, 1]} : vector<7x7x128xf32> to vector<1x1x128xf32>
    %302 = vector.shape_cast %301 : vector<1x1x128xf32> to vector<128xf32>
    %303 = vector.shape_cast %302 : vector<128xf32> to vector<1x1x128xf32>
    %304 = vector.broadcast %303 : vector<1x1x128xf32> to vector<16x16x128xf32>
    %305 = arith.mulf %300, %304 : vector<16x16x128xf32>
    %306 = arith.addf %299, %305 : vector<16x16x128xf32>
    %307 = vector.extract_strided_slice %292 {offsets = [2, 0, 0], sizes = [16, 16, 128], strides = [1, 1, 1]} : vector<22x16x128xf32> to vector<16x16x128xf32>
    %308 = vector.extract_strided_slice %27 {offsets = [2, 5, 0], sizes = [1, 1, 128], strides = [1, 1, 1]} : vector<7x7x128xf32> to vector<1x1x128xf32>
    %309 = vector.shape_cast %308 : vector<1x1x128xf32> to vector<128xf32>
    %310 = vector.shape_cast %309 : vector<128xf32> to vector<1x1x128xf32>
    %311 = vector.broadcast %310 : vector<1x1x128xf32> to vector<16x16x128xf32>
    %312 = arith.mulf %307, %311 : vector<16x16x128xf32>
    %313 = arith.addf %306, %312 : vector<16x16x128xf32>
    %314 = vector.extract_strided_slice %292 {offsets = [3, 0, 0], sizes = [16, 16, 128], strides = [1, 1, 1]} : vector<22x16x128xf32> to vector<16x16x128xf32>
    %315 = vector.extract_strided_slice %27 {offsets = [3, 5, 0], sizes = [1, 1, 128], strides = [1, 1, 1]} : vector<7x7x128xf32> to vector<1x1x128xf32>
    %316 = vector.shape_cast %315 : vector<1x1x128xf32> to vector<128xf32>
    %317 = vector.shape_cast %316 : vector<128xf32> to vector<1x1x128xf32>
    %318 = vector.broadcast %317 : vector<1x1x128xf32> to vector<16x16x128xf32>
    %319 = arith.mulf %314, %318 : vector<16x16x128xf32>
    %320 = arith.addf %313, %319 : vector<16x16x128xf32>
    %321 = vector.extract_strided_slice %292 {offsets = [4, 0, 0], sizes = [16, 16, 128], strides = [1, 1, 1]} : vector<22x16x128xf32> to vector<16x16x128xf32>
    %322 = vector.extract_strided_slice %27 {offsets = [4, 5, 0], sizes = [1, 1, 128], strides = [1, 1, 1]} : vector<7x7x128xf32> to vector<1x1x128xf32>
    %323 = vector.shape_cast %322 : vector<1x1x128xf32> to vector<128xf32>
    %324 = vector.shape_cast %323 : vector<128xf32> to vector<1x1x128xf32>
    %325 = vector.broadcast %324 : vector<1x1x128xf32> to vector<16x16x128xf32>
    %326 = arith.mulf %321, %325 : vector<16x16x128xf32>
    %327 = arith.addf %320, %326 : vector<16x16x128xf32>
    %328 = vector.extract_strided_slice %292 {offsets = [5, 0, 0], sizes = [16, 16, 128], strides = [1, 1, 1]} : vector<22x16x128xf32> to vector<16x16x128xf32>
    %329 = vector.extract_strided_slice %27 {offsets = [5, 5, 0], sizes = [1, 1, 128], strides = [1, 1, 1]} : vector<7x7x128xf32> to vector<1x1x128xf32>
    %330 = vector.shape_cast %329 : vector<1x1x128xf32> to vector<128xf32>
    %331 = vector.shape_cast %330 : vector<128xf32> to vector<1x1x128xf32>
    %332 = vector.broadcast %331 : vector<1x1x128xf32> to vector<16x16x128xf32>
    %333 = arith.mulf %328, %332 : vector<16x16x128xf32>
    %334 = arith.addf %327, %333 : vector<16x16x128xf32>
    %335 = vector.extract_strided_slice %292 {offsets = [6, 0, 0], sizes = [16, 16, 128], strides = [1, 1, 1]} : vector<22x16x128xf32> to vector<16x16x128xf32>
    %336 = vector.extract_strided_slice %27 {offsets = [6, 5, 0], sizes = [1, 1, 128], strides = [1, 1, 1]} : vector<7x7x128xf32> to vector<1x1x128xf32>
    %337 = vector.shape_cast %336 : vector<1x1x128xf32> to vector<128xf32>
    %338 = vector.shape_cast %337 : vector<128xf32> to vector<1x1x128xf32>
    %339 = vector.broadcast %338 : vector<1x1x128xf32> to vector<16x16x128xf32>
    %340 = arith.mulf %335, %339 : vector<16x16x128xf32>
    %341 = arith.addf %334, %340 : vector<16x16x128xf32>
    %342 = arith.index_cast %13 : i32 to index
    %c0_29 = arith.constant 0 : index
    %c6 = arith.constant 6 : index
    %c0_30 = arith.constant 0 : index
    %343 = vector.load %arg14[%342, %c0_29, %c6, %c0_30] : memref<2x22x22x128xf32, #tpu.memory_space<vmem>>, vector<1x22x16x128xf32>
    %344 = vector.shape_cast %343 : vector<1x22x16x128xf32> to vector<22x16x128xf32>
    %345 = vector.extract_strided_slice %344 {offsets = [0, 0, 0], sizes = [16, 16, 128], strides = [1, 1, 1]} : vector<22x16x128xf32> to vector<16x16x128xf32>
    %346 = vector.extract_strided_slice %27 {offsets = [0, 6, 0], sizes = [1, 1, 128], strides = [1, 1, 1]} : vector<7x7x128xf32> to vector<1x1x128xf32>
    %347 = vector.shape_cast %346 : vector<1x1x128xf32> to vector<128xf32>
    %348 = vector.shape_cast %347 : vector<128xf32> to vector<1x1x128xf32>
    %349 = vector.broadcast %348 : vector<1x1x128xf32> to vector<16x16x128xf32>
    %350 = arith.mulf %345, %349 : vector<16x16x128xf32>
    %351 = arith.addf %341, %350 : vector<16x16x128xf32>
    %352 = vector.extract_strided_slice %344 {offsets = [1, 0, 0], sizes = [16, 16, 128], strides = [1, 1, 1]} : vector<22x16x128xf32> to vector<16x16x128xf32>
    %353 = vector.extract_strided_slice %27 {offsets = [1, 6, 0], sizes = [1, 1, 128], strides = [1, 1, 1]} : vector<7x7x128xf32> to vector<1x1x128xf32>
    %354 = vector.shape_cast %353 : vector<1x1x128xf32> to vector<128xf32>
    %355 = vector.shape_cast %354 : vector<128xf32> to vector<1x1x128xf32>
    %356 = vector.broadcast %355 : vector<1x1x128xf32> to vector<16x16x128xf32>
    %357 = arith.mulf %352, %356 : vector<16x16x128xf32>
    %358 = arith.addf %351, %357 : vector<16x16x128xf32>
    %359 = vector.extract_strided_slice %344 {offsets = [2, 0, 0], sizes = [16, 16, 128], strides = [1, 1, 1]} : vector<22x16x128xf32> to vector<16x16x128xf32>
    %360 = vector.extract_strided_slice %27 {offsets = [2, 6, 0], sizes = [1, 1, 128], strides = [1, 1, 1]} : vector<7x7x128xf32> to vector<1x1x128xf32>
    %361 = vector.shape_cast %360 : vector<1x1x128xf32> to vector<128xf32>
    %362 = vector.shape_cast %361 : vector<128xf32> to vector<1x1x128xf32>
    %363 = vector.broadcast %362 : vector<1x1x128xf32> to vector<16x16x128xf32>
    %364 = arith.mulf %359, %363 : vector<16x16x128xf32>
    %365 = arith.addf %358, %364 : vector<16x16x128xf32>
    %366 = vector.extract_strided_slice %344 {offsets = [3, 0, 0], sizes = [16, 16, 128], strides = [1, 1, 1]} : vector<22x16x128xf32> to vector<16x16x128xf32>
    %367 = vector.extract_strided_slice %27 {offsets = [3, 6, 0], sizes = [1, 1, 128], strides = [1, 1, 1]} : vector<7x7x128xf32> to vector<1x1x128xf32>
    %368 = vector.shape_cast %367 : vector<1x1x128xf32> to vector<128xf32>
    %369 = vector.shape_cast %368 : vector<128xf32> to vector<1x1x128xf32>
    %370 = vector.broadcast %369 : vector<1x1x128xf32> to vector<16x16x128xf32>
    %371 = arith.mulf %366, %370 : vector<16x16x128xf32>
    %372 = arith.addf %365, %371 : vector<16x16x128xf32>
    %373 = vector.extract_strided_slice %344 {offsets = [4, 0, 0], sizes = [16, 16, 128], strides = [1, 1, 1]} : vector<22x16x128xf32> to vector<16x16x128xf32>
    %374 = vector.extract_strided_slice %27 {offsets = [4, 6, 0], sizes = [1, 1, 128], strides = [1, 1, 1]} : vector<7x7x128xf32> to vector<1x1x128xf32>
    %375 = vector.shape_cast %374 : vector<1x1x128xf32> to vector<128xf32>
    %376 = vector.shape_cast %375 : vector<128xf32> to vector<1x1x128xf32>
    %377 = vector.broadcast %376 : vector<1x1x128xf32> to vector<16x16x128xf32>
    %378 = arith.mulf %373, %377 : vector<16x16x128xf32>
    %379 = arith.addf %372, %378 : vector<16x16x128xf32>
    %380 = vector.extract_strided_slice %344 {offsets = [5, 0, 0], sizes = [16, 16, 128], strides = [1, 1, 1]} : vector<22x16x128xf32> to vector<16x16x128xf32>
    %381 = vector.extract_strided_slice %27 {offsets = [5, 6, 0], sizes = [1, 1, 128], strides = [1, 1, 1]} : vector<7x7x128xf32> to vector<1x1x128xf32>
    %382 = vector.shape_cast %381 : vector<1x1x128xf32> to vector<128xf32>
    %383 = vector.shape_cast %382 : vector<128xf32> to vector<1x1x128xf32>
    %384 = vector.broadcast %383 : vector<1x1x128xf32> to vector<16x16x128xf32>
    %385 = arith.mulf %380, %384 : vector<16x16x128xf32>
    %386 = arith.addf %379, %385 : vector<16x16x128xf32>
    %387 = vector.extract_strided_slice %344 {offsets = [6, 0, 0], sizes = [16, 16, 128], strides = [1, 1, 1]} : vector<22x16x128xf32> to vector<16x16x128xf32>
    %388 = vector.extract_strided_slice %27 {offsets = [6, 6, 0], sizes = [1, 1, 128], strides = [1, 1, 1]} : vector<7x7x128xf32> to vector<1x1x128xf32>
    %389 = vector.shape_cast %388 : vector<1x1x128xf32> to vector<128xf32>
    %390 = vector.shape_cast %389 : vector<128xf32> to vector<1x1x128xf32>
    %391 = vector.broadcast %390 : vector<1x1x128xf32> to vector<16x16x128xf32>
    %392 = arith.mulf %387, %391 : vector<16x16x128xf32>
    %393 = arith.addf %386, %392 : vector<16x16x128xf32>
    %c0_31 = arith.constant 0 : index
    %c0_32 = arith.constant 0 : index
    %394 = vector.load %arg5[%c0_31, %c0_32] : memref<1x128xf32, #tpu.memory_space<vmem>>, vector<1x128xf32>
    %395 = vector.shape_cast %394 : vector<1x128xf32> to vector<1x1x128xf32>
    %396 = vector.broadcast %395 : vector<1x1x128xf32> to vector<16x16x128xf32>
    %397 = arith.addf %393, %396 : vector<16x16x128xf32>
    %398 = vector.shape_cast %397 : vector<16x16x128xf32> to vector<256x128xf32>
    %cst_33 = arith.constant dense<0.000000e+00> : vector<256xf32>
    %399 = vector.multi_reduction <add>, %398, %cst_33 [1] : vector<256x128xf32> to vector<256xf32>
    %400 = vector.shape_cast %399 : vector<256xf32> to vector<256x1xf32>
    %cst_34 = arith.constant 3.125000e-02 : f32
    %401 = vector.broadcast %cst_34 : f32 to vector<256x1xf32>
    %402 = arith.mulf %400, %401 : vector<256x1xf32>
    %403 = tpu.iota {dimensions = array<i32: 1>} : vector<1x128xi32>
    %c32_i32 = arith.constant 32 : i32
    %404 = vector.broadcast %c32_i32 : i32 to vector<1x128xi32>
    %405 = arith.cmpi slt, %403, %404 : vector<1x128xi32>
    %406 = vector.broadcast %402 : vector<256x1xf32> to vector<256x128xf32>
    %407 = arith.subf %398, %406 : vector<256x128xf32>
    %cst_35 = arith.constant 0.000000e+00 : f32
    %408 = vector.shape_cast %405 : vector<1x128xi1> to vector<1x128xi1>
    %409 = vector.broadcast %408 : vector<1x128xi1> to vector<256x128xi1>
    %410 = vector.broadcast %cst_35 : f32 to vector<256x128xf32>
    %411 = arith.select %409, %407, %410 : vector<256x128xi1>, vector<256x128xf32>
    %412 = arith.mulf %411, %411 : vector<256x128xf32>
    %cst_36 = arith.constant dense<0.000000e+00> : vector<256xf32>
    %413 = vector.multi_reduction <add>, %412, %cst_36 [1] : vector<256x128xf32> to vector<256xf32>
    %414 = vector.shape_cast %413 : vector<256xf32> to vector<256x1xf32>
    %cst_37 = arith.constant 3.125000e-02 : f32
    %415 = vector.broadcast %cst_37 : f32 to vector<256x1xf32>
    %416 = arith.mulf %414, %415 : vector<256x1xf32>
    %cst_38 = arith.constant 9.99999997E-7 : f32
    %417 = vector.broadcast %cst_38 : f32 to vector<256x1xf32>
    %418 = arith.addf %416, %417 : vector<256x1xf32>
    %419 = math.rsqrt %418 : vector<256x1xf32>
    %420 = vector.broadcast %419 : vector<256x1xf32> to vector<256x128xf32>
    %421 = arith.mulf %411, %420 : vector<256x128xf32>
    %c0_39 = arith.constant 0 : index
    %c0_40 = arith.constant 0 : index
    %422 = vector.load %arg6[%c0_39, %c0_40] : memref<1x128xf32, #tpu.memory_space<vmem>>, vector<1x128xf32>
    %423 = vector.broadcast %422 : vector<1x128xf32> to vector<256x128xf32>
    %424 = arith.mulf %421, %423 : vector<256x128xf32>
    %c0_41 = arith.constant 0 : index
    %c0_42 = arith.constant 0 : index
    %425 = vector.load %arg7[%c0_41, %c0_42] : memref<1x128xf32, #tpu.memory_space<vmem>>, vector<1x128xf32>
    %426 = vector.broadcast %425 : vector<1x128xf32> to vector<256x128xf32>
    %427 = arith.addf %424, %426 : vector<256x128xf32>
    %428 = arith.truncf %427 : vector<256x128xf32> to vector<256x128xbf16>
    %c0_43 = arith.constant 0 : index
    %c0_44 = arith.constant 0 : index
    %429 = vector.load %arg8[%c0_43, %c0_44] : memref<128x128xbf16, #tpu.memory_space<vmem>>, vector<128x128xbf16>
    %cst_45 = arith.constant dense<0.000000e+00> : vector<256x128xf32>
    %430 = tpu.matmul %428, %429, %cst_45 {dimension_numbers = #tpu.dot_dimension_numbers<[1], [0], [0], [1], [0, 0, 1, 1], [], []>} : vector<256x128xbf16>, vector<128x128xbf16>, vector<256x128xf32> -> vector<256x128xf32>
    %c0_46 = arith.constant 0 : index
    %c0_47 = arith.constant 0 : index
    %431 = vector.load %arg9[%c0_46, %c0_47] : memref<1x128xf32, #tpu.memory_space<vmem>>, vector<1x128xf32>
    %432 = vector.broadcast %431 : vector<1x128xf32> to vector<256x128xf32>
    %433 = arith.addf %430, %432 : vector<256x128xf32>
    %cst_48 = arith.constant 5.000000e-01 : f32
    %434 = vector.broadcast %cst_48 : f32 to vector<256x128xf32>
    %435 = arith.mulf %434, %433 : vector<256x128xf32>
    %436 = arith.mulf %433, %433 : vector<256x128xf32>
    %437 = arith.mulf %436, %433 : vector<256x128xf32>
    %cst_49 = arith.constant 4.471500e-02 : f32
    %438 = vector.broadcast %cst_49 : f32 to vector<256x128xf32>
    %439 = arith.mulf %438, %437 : vector<256x128xf32>
    %440 = arith.addf %433, %439 : vector<256x128xf32>
    %cst_50 = arith.constant 0.797884583 : f32
    %441 = vector.broadcast %cst_50 : f32 to vector<256x128xf32>
    %442 = arith.mulf %441, %440 : vector<256x128xf32>
    %443 = math.tanh %442 : vector<256x128xf32>
    %cst_51 = arith.constant 1.000000e+00 : f32
    %444 = vector.broadcast %cst_51 : f32 to vector<256x128xf32>
    %445 = arith.addf %444, %443 : vector<256x128xf32>
    %446 = arith.mulf %435, %445 : vector<256x128xf32>
    %447 = arith.truncf %446 : vector<256x128xf32> to vector<256x128xbf16>
    %c0_52 = arith.constant 0 : index
    %c0_53 = arith.constant 0 : index
    %448 = vector.load %arg10[%c0_52, %c0_53] : memref<128x128xbf16, #tpu.memory_space<vmem>>, vector<128x128xbf16>
    %cst_54 = arith.constant dense<0.000000e+00> : vector<256x128xf32>
    %449 = tpu.matmul %447, %448, %cst_54 {dimension_numbers = #tpu.dot_dimension_numbers<[1], [0], [0], [1], [0, 0, 1, 1], [], []>} : vector<256x128xbf16>, vector<128x128xbf16>, vector<256x128xf32> -> vector<256x128xf32>
    %c0_55 = arith.constant 0 : index
    %c0_56 = arith.constant 0 : index
    %450 = vector.load %arg11[%c0_55, %c0_56] : memref<1x128xf32, #tpu.memory_space<vmem>>, vector<1x128xf32>
    %451 = vector.broadcast %450 : vector<1x128xf32> to vector<256x128xf32>
    %452 = arith.addf %449, %451 : vector<256x128xf32>
    %c0_57 = arith.constant 0 : index
    %c0_58 = arith.constant 0 : index
    %453 = vector.load %arg12[%c0_57, %c0_58] : memref<1x128xf32, #tpu.memory_space<vmem>>, vector<1x128xf32>
    %454 = vector.broadcast %453 : vector<1x128xf32> to vector<256x128xf32>
    %455 = arith.mulf %452, %454 : vector<256x128xf32>
    %456 = vector.shape_cast %455 : vector<256x128xf32> to vector<16x16x128xf32>
    %457 = arith.addf %188, %456 : vector<16x16x128xf32>
    %c0_59 = arith.constant 0 : index
    %c0_60 = arith.constant 0 : index
    %c0_61 = arith.constant 0 : index
    %c0_62 = arith.constant 0 : index
    %458 = vector.load %arg13[%c0_59, %c0_60, %c0_61, %c0_62] : memref<1x16x16x128xf32, #tpu.memory_space<vmem>>, vector<1x16x16x128xf32>
    %459 = vector.shape_cast %458 : vector<1x16x16x128xf32> to vector<16x16x128xf32>
    %460 = vector.shape_cast %457 : vector<16x16x128xf32> to vector<1x16x16x128xf32>
    tpu.vector_store %arg13[%c0_59, %c0_60, %c0_61, %c0_62], %460 {strides = array<i32>} : memref<1x16x16x128xf32, #tpu.memory_space<vmem>>, vector<1x16x16x128xf32>,
    return
  }
  func.func @transform_1(%arg0: i32, %arg1: i32, %arg2: i32) -> (i32, i32, i32) {
    %c0_i32 = arith.constant 0 : i32
    %c0_i32_0 = arith.constant 0 : i32
    %c0_i32_1 = arith.constant 0 : i32
    %c0_i32_2 = arith.constant 0 : i32
    return %c0_i32, %c0_i32_0, %c0_i32_1 : i32, i32, i32
  }
  func.func @transform_2(%arg0: i32, %arg1: i32, %arg2: i32) -> (i32, i32) {
    %c0_i32 = arith.constant 0 : i32
    %c0_i32_0 = arith.constant 0 : i32
    %c0_i32_1 = arith.constant 0 : i32
    return %c0_i32, %c0_i32_0 : i32, i32
  }
  func.func @transform_3(%arg0: i32, %arg1: i32, %arg2: i32) -> (i32, i32) {
    %c0_i32 = arith.constant 0 : i32
    %c0_i32_0 = arith.constant 0 : i32
    %c0_i32_1 = arith.constant 0 : i32
    return %c0_i32, %c0_i32_0 : i32, i32
  }
  func.func @transform_4(%arg0: i32, %arg1: i32, %arg2: i32) -> (i32, i32) {
    %c0_i32 = arith.constant 0 : i32
    %c0_i32_0 = arith.constant 0 : i32
    %c0_i32_1 = arith.constant 0 : i32
    return %c0_i32, %c0_i32_0 : i32, i32
  }
  func.func @transform_5(%arg0: i32, %arg1: i32, %arg2: i32) -> (i32, i32) {
    %c0_i32 = arith.constant 0 : i32
    %c0_i32_0 = arith.constant 0 : i32
    %c0_i32_1 = arith.constant 0 : i32
    return %c0_i32, %c0_i32_0 : i32, i32
  }
  func.func @transform_6(%arg0: i32, %arg1: i32, %arg2: i32) -> (i32, i32) {
    %c0_i32 = arith.constant 0 : i32
    %c0_i32_0 = arith.constant 0 : i32
    %c0_i32_1 = arith.constant 0 : i32
    return %c0_i32, %c0_i32_0 : i32, i32
  }
  func.func @transform_7(%arg0: i32, %arg1: i32, %arg2: i32) -> (i32, i32) {
    %c0_i32 = arith.constant 0 : i32
    %c0_i32_0 = arith.constant 0 : i32
    %c0_i32_1 = arith.constant 0 : i32
    return %c0_i32, %c0_i32_0 : i32, i32
  }
  func.func @transform_8(%arg0: i32, %arg1: i32, %arg2: i32) -> (i32, i32) {
    %c0_i32 = arith.constant 0 : i32
    %c0_i32_0 = arith.constant 0 : i32
    %c0_i32_1 = arith.constant 0 : i32
    return %c0_i32, %c0_i32_0 : i32, i32
  }
  func.func @transform_9(%arg0: i32, %arg1: i32, %arg2: i32) -> (i32, i32) {
    %c0_i32 = arith.constant 0 : i32
    %c0_i32_0 = arith.constant 0 : i32
    %c0_i32_1 = arith.constant 0 : i32
    return %c0_i32, %c0_i32_0 : i32, i32
  }
  func.func @transform_10(%arg0: i32, %arg1: i32, %arg2: i32) -> (i32, i32, i32, i32) {
    %c1_i32 = arith.constant 1 : i32
    %0 = arith.muli %arg1, %c1_i32 : i32
    %1 = arith.addi %0, %arg2 : i32
    %c0_i32 = arith.constant 0 : i32
    %c0_i32_0 = arith.constant 0 : i32
    %c0_i32_1 = arith.constant 0 : i32
    return %arg0, %1, %c0_i32, %c0_i32_0 : i32, i32, i32, i32
  }
}

</mosaic_0001>

<llo_original>
// kernel: tpu_custom_call.1
$region0: #{tpu_custom_call.1}
  #allocation0 [shape = 'u32[]', space=smem, size = 0x4, offset = 0x4, fixed_abs, tag = 'smem constant byte address 0x4 - core index']
  #allocation1 [shape = 'u32[144,128]{1,0:T(1,128)}', space=vmem, size = 0x12000, scoped, tag = 'internal scratch']
  #allocation2 [shape = 'f32[2,22,22,128]{3,2,1,0:T(8,128)}', space=vmem, size = 0x84000, scoped, tag = 'scratch operand']
  #allocation3 [shape = 's32[2]{0}', space=sflag, size = 0x8, scoped, tag = 'scratch operand']
  #allocation6 [shape = 's32[]', space=sflag, size = 0x4, offset = 0, fixed_abs, tag = 'sflag constant byte address 0x0 - dummy sync flag']
  #allocation7 [shape = 's32[]', space=sflag, size = 0x4, offset = 0, fixed_abs, tag = 'sflag constant byte address 0x0 - dummy sync flag']
  %s0 = inlined_call_operand.vmem [shape: f32[2,22,22,128], index: 0, kind: input, shape index: {}]
  %s1 = inlined_call_operand.vmem [shape: f32[7,7,128], index: 1, kind: input, shape index: {}]
  %s2 = inlined_call_operand.vmem [shape: f32[1,128], index: 2, kind: input, shape index: {}]
  %s3 = inlined_call_operand.vmem [shape: f32[1,128], index: 3, kind: input, shape index: {}]
  %s4 = inlined_call_operand.vmem [shape: f32[1,128], index: 4, kind: input, shape index: {}]
  %s5 = inlined_call_operand.vmem [shape: bf16[128,128], index: 5, kind: input, shape index: {}]
  %s6 = inlined_call_operand.vmem [shape: f32[1,128], index: 6, kind: input, shape index: {}]
  %s7 = inlined_call_operand.vmem [shape: bf16[128,128], index: 7, kind: input, shape index: {}]
  %s8 = inlined_call_operand.vmem [shape: f32[1,128], index: 8, kind: input, shape index: {}]
  %s9 = inlined_call_operand.vmem [shape: f32[1,128], index: 9, kind: input, shape index: {}]
  %s10 = inlined_call_operand.hbm [shape: f32[2,16,16,128], index: 10, kind: output, shape index: {}]
  %s11 = sld [smem:[#allocation0]]
  $region151: #{tpu_custom_call.1} parent=0
    _
  %s13 = ssub.s32 1, %s11
  %s14 = scalar_select 0, %s13, %s11
  $region1: #{tpu_custom_call.1} parent=0
    #allocation4 [shape = 'u8[262144]{0}', space=vmem, size = 0x40000, scoped, tag = 'output window, operand 0']
    #allocation5 [shape = 's32[2]{0}', space=sflag, size = 0x8, scoped, tag = 'scoped memory for tpu_custom_call.1']
    %15 = vsyncpa [#allocation5], 0
    %s16 = scalar_lea.sflag [#allocation5], 1
    %17 = vsyncpa %s16, 0
    loop: start=0, step=1, limit=4
    $region2: #{tpu_custom_call.1} parent=1 // loop_pre_header
      _
    $region3: #{tpu_custom_call.1} parent=1 // loop_header
      %s19 = sphi 0, %s23
      %p20 = scmp.ge.s32.totalorder %s19, 4
      %s26 = sphi 0, %s45
      %s27 = sphi 0, %s41
      %s28 = sphi 0, %s37
      %s29 = sphi 0, %s26
      %s30 = sphi 0, %s27
      %s31 = sphi 0, %s28
      %s32 = sphi 0, %s29
      %s33 = sphi 0, %s30
      %s34 = sphi 0, %s31
      %s46 = sphi 0, %s46
      %s48 = sphi 0, %s46
      %s49 = sphi 0, %s48
      %s63 = sphi 0, %s49
      %s67 = sphi 0, %s67
      %s69 = sphi 0, %s67
      %s70 = sphi 0, %s69
      %s84 = sphi 0, %s70
      %s88 = sphi 0, %s88
      %s90 = sphi 0, %s88
      %s91 = sphi 0, %s90
      %s105 = sphi 0, %s91
      %s109 = sphi 0, %s109
      %s111 = sphi 0, %s109
      %s112 = sphi 0, %s111
      %s126 = sphi 0, %s112
      %s130 = sphi 0, %s130
      %s132 = sphi 0, %s130
      %s133 = sphi 0, %s132
      %s147 = sphi 0, %s133
      %s151 = sphi 0, %s151
      %s153 = sphi 0, %s151
      %s154 = sphi 0, %s153
      %s168 = sphi 0, %s154
      %s172 = sphi 0, %s172
      %s174 = sphi 0, %s172
      %s175 = sphi 0, %s174
      %s189 = sphi 0, %s175
      %s193 = sphi 0, %s193
      %s195 = sphi 0, %s193
      %s196 = sphi 0, %s195
      %s210 = sphi 0, %s196
      %s214 = sphi 0, %s214
      %s216 = sphi 0, %s214
      %s217 = sphi 0, %s216
      %s231 = sphi 0, %s217
      %s241 = sphi 0, %s243
      %s244 = sphi 0, %s241
      %s245 = sphi 0, %s244
      %s261 = sphi 0, %s245
    $region4: #{tpu_custom_call.1} parent=1 // loop_header_branch
      %22 = sbr.rel (%p20) target = $region8
    $region5: #{tpu_custom_call.1} parent=1 // loop_body
      %s24 = ssub.s32 %s19, 1
      %s25 = ssub.s32 %s19, 2
      %s35 = sadd.s32 1, %s28
      %p36 = scmp.ge.s32.totalorder %s35, 1
      %s37 = scalar_select %p36, 0, %s35
      %s38 = sadd.s32 1, %s27
      %s39 = scalar_select %p36, %s38, %s27
      %p40 = scmp.ge.s32.totalorder %s39, 1
      %s41 = scalar_select %p40, 0, %s39
      %s42 = sadd.s32 1, %s26
      %s43 = scalar_select %p40, %s42, %s26
      %p44 = scmp.ge.s32.totalorder %s43, 2
      %s45 = scalar_select %p44, 0, %s43
      %s47 = sadd.s32 %s46, 1
      %p50 = scmp.eq.s32.totalorder %s19, 1
      %p51 = scmp.ne.s32.totalorder %s46, %s48
      %p52 = scmp.eq.s32.totalorder %s19, 0
      %p53 = por %p51, %p52
      %p54 = scmp.ne.s32.totalorder %s46, %s48
      %p55 = scmp.eq.s32.totalorder %s24, 1
      %p56 = por %p54, %p55
      %p57 = scmp.ne.s32.totalorder %s48, %s49
      %p58 = scmp.eq.s32.totalorder %s24, 0
      %p59 = por %p57, %p58
      %p60 = scmp.ne.s32.totalorder %s48, %s49
      %p61 = scmp.eq.s32.totalorder %s25, 1
      %p62 = por %p60, %p61
      %p64 = scmp.ne.s32.totalorder %s49, %s63
      %p65 = scmp.eq.s32.totalorder %s25, 0
      %p66 = por %p64, %p65
      %s68 = sadd.s32 %s67, 1
      %p71 = scmp.eq.s32.totalorder %s19, 1
      %p72 = scmp.ne.s32.totalorder %s67, %s69
      %p73 = scmp.eq.s32.totalorder %s19, 0
      %p74 = por %p72, %p73
      %p75 = scmp.ne.s32.totalorder %s67, %s69
      %p76 = scmp.eq.s32.totalorder %s24, 1
      %p77 = por %p75, %p76
      %p78 = scmp.ne.s32.totalorder %s69, %s70
      %p79 = scmp.eq.s32.totalorder %s24, 0
      %p80 = por %p78, %p79
      %p81 = scmp.ne.s32.totalorder %s69, %s70
      %p82 = scmp.eq.s32.totalorder %s25, 1
      %p83 = por %p81, %p82
      %p85 = scmp.ne.s32.totalorder %s70, %s84
      %p86 = scmp.eq.s32.totalorder %s25, 0
      %p87 = por %p85, %p86
      %s89 = sadd.s32 %s88, 1
      %p92 = scmp.eq.s32.totalorder %s19, 1
      %p93 = scmp.ne.s32.totalorder %s88, %s90
      %p94 = scmp.eq.s32.totalorder %s19, 0
      %p95 = por %p93, %p94
      %p96 = scmp.ne.s32.totalorder %s88, %s90
      %p97 = scmp.eq.s32.totalorder %s24, 1
      %p98 = por %p96, %p97
      %p99 = scmp.ne.s32.totalorder %s90, %s91
      %p100 = scmp.eq.s32.totalorder %s24, 0
      %p101 = por %p99, %p100
      %p102 = scmp.ne.s32.totalorder %s90, %s91
      %p103 = scmp.eq.s32.totalorder %s25, 1
      %p104 = por %p102, %p103
      %p106 = scmp.ne.s32.totalorder %s91, %s105
      %p107 = scmp.eq.s32.totalorder %s25, 0
      %p108 = por %p106, %p107
      %s110 = sadd.s32 %s109, 1
      %p113 = scmp.eq.s32.totalorder %s19, 1
      %p114 = scmp.ne.s32.totalorder %s109, %s111
      %p115 = scmp.eq.s32.totalorder %s19, 0
      %p116 = por %p114, %p115
      %p117 = scmp.ne.s32.totalorder %s109, %s111
      %p118 = scmp.eq.s32.totalorder %s24, 1
      %p119 = por %p117, %p118
      %p120 = scmp.ne.s32.totalorder %s111, %s112
      %p121 = scmp.eq.s32.totalorder %s24, 0
      %p122 = por %p120, %p121
      %p123 = scmp.ne.s32.totalorder %s111, %s112
      %p124 = scmp.eq.s32.totalorder %s25, 1
      %p125 = por %p123, %p124
      %p127 = scmp.ne.s32.totalorder %s112, %s126
      %p128 = scmp.eq.s32.totalorder %s25, 0
      %p129 = por %p127, %p128
      %s131 = sadd.s32 %s130, 1
      %p134 = scmp.eq.s32.totalorder %s19, 1
      %p135 = scmp.ne.s32.totalorder %s130, %s132
      %p136 = scmp.eq.s32.totalorder %s19, 0
      %p137 = por %p135, %p136
      %p138 = scmp.ne.s32.totalorder %s130, %s132
      %p139 = scmp.eq.s32.totalorder %s24, 1
      %p140 = por %p138, %p139
      %p141 = scmp.ne.s32.totalorder %s132, %s133
      %p142 = scmp.eq.s32.totalorder %s24, 0
      %p143 = por %p141, %p142
      %p144 = scmp.ne.s32.totalorder %s132, %s133
      %p145 = scmp.eq.s32.totalorder %s25, 1
      %p146 = por %p144, %p145
      %p148 = scmp.ne.s32.totalorder %s133, %s147
      %p149 = scmp.eq.s32.totalorder %s25, 0
      %p150 = por %p148, %p149
      %s152 = sadd.s32 %s151, 1
      %p155 = scmp.eq.s32.totalorder %s19, 1
      %p156 = scmp.ne.s32.totalorder %s151, %s153
      %p157 = scmp.eq.s32.totalorder %s19, 0
      %p158 = por %p156, %p157
      %p159 = scmp.ne.s32.totalorder %s151, %s153
      %p160 = scmp.eq.s32.totalorder %s24, 1
      %p161 = por %p159, %p160
      %p162 = scmp.ne.s32.totalorder %s153, %s154
      %p163 = scmp.eq.s32.totalorder %s24, 0
      %p164 = por %p162, %p163
      %p165 = scmp.ne.s32.totalorder %s153, %s154
      %p166 = scmp.eq.s32.totalorder %s25, 1
      %p167 = por %p165, %p166
      %p169 = scmp.ne.s32.totalorder %s154, %s168
      %p170 = scmp.eq.s32.totalorder %s25, 0
      %p171 = por %p169, %p170
      %s173 = sadd.s32 %s172, 1
      %p176 = scmp.eq.s32.totalorder %s19, 1
      %p177 = scmp.ne.s32.totalorder %s172, %s174
      %p178 = scmp.eq.s32.totalorder %s19, 0
      %p179 = por %p177, %p178
      %p180 = scmp.ne.s32.totalorder %s172, %s174
      %p181 = scmp.eq.s32.totalorder %s24, 1
      %p182 = por %p180, %p181
      %p183 = scmp.ne.s32.totalorder %s174, %s175
      %p184 = scmp.eq.s32.totalorder %s24, 0
      %p185 = por %p183, %p184
      %p186 = scmp.ne.s32.totalorder %s174, %s175
      %p187 = scmp.eq.s32.totalorder %s25, 1
      %p188 = por %p186, %p187
      %p190 = scmp.ne.s32.totalorder %s175, %s189
      %p191 = scmp.eq.s32.totalorder %s25, 0
      %p192 = por %p190, %p191
      %s194 = sadd.s32 %s193, 1
      %p197 = scmp.eq.s32.totalorder %s19, 1
      %p198 = scmp.ne.s32.totalorder %s193, %s195
      %p199 = scmp.eq.s32.totalorder %s19, 0
      %p200 = por %p198, %p199
      %p201 = scmp.ne.s32.totalorder %s193, %s195
      %p202 = scmp.eq.s32.totalorder %s24, 1
      %p203 = por %p201, %p202
      %p204 = scmp.ne.s32.totalorder %s195, %s196
      %p205 = scmp.eq.s32.totalorder %s24, 0
      %p206 = por %p204, %p205
      %p207 = scmp.ne.s32.totalorder %s195, %s196
      %p208 = scmp.eq.s32.totalorder %s25, 1
      %p209 = por %p207, %p208
      %p211 = scmp.ne.s32.totalorder %s196, %s210
      %p212 = scmp.eq.s32.totalorder %s25, 0
      %p213 = por %p211, %p212
      %s215 = sadd.s32 %s214, 1
      %p218 = scmp.eq.s32.totalorder %s19, 1
      %p219 = scmp.ne.s32.totalorder %s214, %s216
      %p220 = scmp.eq.s32.totalorder %s19, 0
      %p221 = por %p219, %p220
      %p222 = scmp.ne.s32.totalorder %s214, %s216
      %p223 = scmp.eq.s32.totalorder %s24, 1
      %p224 = por %p222, %p223
      %p225 = scmp.ne.s32.totalorder %s216, %s217
      %p226 = scmp.eq.s32.totalorder %s24, 0
      %p227 = por %p225, %p226
      %p228 = scmp.ne.s32.totalorder %s216, %s217
      %p229 = scmp.eq.s32.totalorder %s25, 1
      %p230 = por %p228, %p229
      %p232 = scmp.ne.s32.totalorder %s217, %s231
      %p233 = scmp.eq.s32.totalorder %s25, 0
      %p234 = por %p232, %p233
      %s235 = sadd.s32 %s27, %s28
      %s236 = sadd.s32 %s41, %s37
      %s237 = ssub.s32 %s26, %s45
      %s238 = ssub.s32 %s235, %s236
      %s239 = sor.u32 %s237, %s238
      %p240 = scmp.eq.s32.totalorder %s239, 0
      %s242 = sadd.s32 %s241, 1
      %s243 = scalar_select %p240, %s241, %s242
      %p246 = pneg %p240
      %p247 = scmp.eq.s32.totalorder %s19, 1
      %p248 = por %p246, %p247
      %p249 = scmp.ne.s32.totalorder %s241, %s244
      %p250 = scmp.eq.s32.totalorder %s19, 0
      %p251 = por %p249, %p250
      %p252 = scmp.ne.s32.totalorder %s241, %s244
      %p253 = scmp.eq.s32.totalorder %s24, 1
      %p254 = por %p252, %p253
      %p255 = scmp.ne.s32.totalorder %s244, %s245
      %p256 = scmp.eq.s32.totalorder %s24, 0
      %p257 = por %p255, %p256
      %p258 = scmp.ne.s32.totalorder %s244, %s245
      %p259 = scmp.eq.s32.totalorder %s25, 1
      %p260 = por %p258, %p259
      %p262 = scmp.ne.s32.totalorder %s245, %s261
      %p263 = scmp.eq.s32.totalorder %s25, 0
      %p264 = por %p262, %p263
      %p265 = scmp.le.s32.totalorder 1, %s19
      %p266 = scmp.lt.s32.totalorder %s19, 3
      %p267 = pnand %p265, %p266
      %p268 = pneg %p267
      // Predicated region
      $region9: #{tpu_custom_call.1} parent=5 // pred_check
        _
      $region10: #{tpu_custom_call.1} parent=5 // pred_check_branch
        %270 = sbr.rel (%p267) target = $region12
      $region11: #{tpu_custom_call.1} parent=5 // pred_region
        %s271 = ssub.s32 %s19, 1
        // Predicated region
        $region13: #{tpu_custom_call.1} parent=11 // pred_check
          %p272 = pneg %p59
        $region14: #{tpu_custom_call.1} parent=11 // pred_check_branch
          %274 = sbr.rel (%p272) target = $region16
        $region15: #{tpu_custom_call.1} parent=11 // pred_region
          _
        $region16: #{tpu_custom_call.1} parent=11 // pred_fallthru
          _
        // Predicated region
        $region17: #{tpu_custom_call.1} parent=11 // pred_check
          %p275 = pneg %p80
        $region18: #{tpu_custom_call.1} parent=11 // pred_check_branch
          %277 = sbr.rel (%p275) target = $region20
        $region19: #{tpu_custom_call.1} parent=11 // pred_region
          _
        $region20: #{tpu_custom_call.1} parent=11 // pred_fallthru
          _
        // Predicated region
        $region21: #{tpu_custom_call.1} parent=11 // pred_check
          %p278 = pneg %p101
        $region22: #{tpu_custom_call.1} parent=11 // pred_check_branch
          %280 = sbr.rel (%p278) target = $region24
        $region23: #{tpu_custom_call.1} parent=11 // pred_region
          _
        $region24: #{tpu_custom_call.1} parent=11 // pred_fallthru
          _
        // Predicated region
        $region25: #{tpu_custom_call.1} parent=11 // pred_check
          %p281 = pneg %p122
        $region26: #{tpu_custom_call.1} parent=11 // pred_check_branch
          %283 = sbr.rel (%p281) target = $region28
        $region27: #{tpu_custom_call.1} parent=11 // pred_region
          _
        $region28: #{tpu_custom_call.1} parent=11 // pred_fallthru
          _
        // Predicated region
        $region29: #{tpu_custom_call.1} parent=11 // pred_check
          %p284 = pneg %p143
        $region30: #{tpu_custom_call.1} parent=11 // pred_check_branch
          %286 = sbr.rel (%p284) target = $region32
        $region31: #{tpu_custom_call.1} parent=11 // pred_region
          _
        $region32: #{tpu_custom_call.1} parent=11 // pred_fallthru
          _
        // Predicated region
        $region33: #{tpu_custom_call.1} parent=11 // pred_check
          %p287 = pneg %p164
        $region34: #{tpu_custom_call.1} parent=11 // pred_check_branch
          %289 = sbr.rel (%p287) target = $region36
        $region35: #{tpu_custom_call.1} parent=11 // pred_region
          _
        $region36: #{tpu_custom_call.1} parent=11 // pred_fallthru
          _
        // Predicated region
        $region37: #{tpu_custom_call.1} parent=11 // pred_check
          %p290 = pneg %p185
        $region38: #{tpu_custom_call.1} parent=11 // pred_check_branch
          %292 = sbr.rel (%p290) target = $region40
        $region39: #{tpu_custom_call.1} parent=11 // pred_region
          _
        $region40: #{tpu_custom_call.1} parent=11 // pred_fallthru
          _
        // Predicated region
        $region41: #{tpu_custom_call.1} parent=11 // pred_check
          %p293 = pneg %p206
        $region42: #{tpu_custom_call.1} parent=11 // pred_check_branch
          %295 = sbr.rel (%p293) target = $region44
        $region43: #{tpu_custom_call.1} parent=11 // pred_region
          _
        $region44: #{tpu_custom_call.1} parent=11 // pred_fallthru
          _
        // Predicated region
        $region45: #{tpu_custom_call.1} parent=11 // pred_check
          %p296 = pneg %p227
        $region46: #{tpu_custom_call.1} parent=11 // pred_check_branch
          %298 = sbr.rel (%p296) target = $region48
        $region47: #{tpu_custom_call.1} parent=11 // pred_region
          _
        $region48: #{tpu_custom_call.1} parent=11 // pred_fallthru
          _
      $region12: #{tpu_custom_call.1} parent=5 // pred_fallthru
        _
      %p299 = scmp.lt.s32.totalorder %s19, 2
      // Predicated region
      $region49: #{tpu_custom_call.1} parent=5 // pred_check
        %p300 = pneg %p299
      $region50: #{tpu_custom_call.1} parent=5 // pred_check_branch
        %302 = sbr.rel (%p300) target = $region52
      $region51: #{tpu_custom_call.1} parent=5 // pred_region
        _
      $region52: #{tpu_custom_call.1} parent=5 // pred_fallthru
        _
      %p303 = scmp.le.s32.totalorder 1, %s19
      %p304 = scmp.lt.s32.totalorder %s19, 3
      %p305 = pnand %p303, %p304
      %p306 = pneg %p305
      // Predicated region
      $region53: #{tpu_custom_call.1} parent=5 // pred_check
        _
      $region54: #{tpu_custom_call.1} parent=5 // pred_check_branch
        %308 = sbr.rel (%p305) target = $region56
      $region55: #{tpu_custom_call.1} parent=5 // pred_region
        %s309 = ssub.s32 %s19, 1
        %p310 = pneg %p59
        %p311 = pneg %p56
        %p312 = pneg %p80
        %p313 = pneg %p77
        %p314 = pneg %p101
        %p315 = pneg %p98
        %p316 = pneg %p122
        %p317 = pneg %p119
        %p318 = pneg %p143
        %p319 = pneg %p140
        %p320 = pneg %p164
        %p321 = pneg %p161
        %p322 = pneg %p185
        %p323 = pneg %p182
        %p324 = pneg %p206
        %p325 = pneg %p203
        %p326 = pneg %p227
        %p327 = pneg %p224
        %p328 = pneg %p257
        %p329 = pneg %p254
        %s330 = sand.u32 %s244, 1
        %s331 = scalar_lea.sflag [#allocation5], %s330
        %s332 = sand.u32 %s244, 1
        %s333 = smul.addr %s332, 256
        %s334 = scalar_lea.vmem [#allocation4], %s333
        %s335 = sadd.s32 %s30, %s31
        %s336 = smul.u32 16, %s335
        %s338 = sadd.s32 %s30, %s31
        %s339 = smul.u32 %s338, 16
        %p340 = scmp.lt.s32.totalorder %s31, 0
        %s341 = ssub.s32 0, %s31
        %s342 = scalar_select %p340, %s341, %s31
        %s343 = sand.u32 %s342, 1
        %s344 = ssub.s32 0, %s343
        %s345 = scalar_select %p340, %s344, %s343
        %p346 = scmp.ne.s32.totalorder %s345, 0
        %p347 = scmp.lt.s32.totalorder %s345, 0
        %p348 = pnand %p347, %p346
        %p349 = pneg %p348
        %s350 = sadd.s32 %s345, 2
        %s351 = scalar_select %p349, %s350, %s345
        %p352 = scmp.eq.s32.totalorder %s31, 0
        // Predicated region
        $region57: #{tpu_custom_call.1} parent=55 // pred_check
          %p353 = pneg %p352
        $region58: #{tpu_custom_call.1} parent=55 // pred_check_branch
          %355 = sbr.rel (%p353) target = $region60
        $region59: #{tpu_custom_call.1} parent=55 // pred_region
          %s356 = smul.u32 %s339, 24
          %s357 = smul.u32 %s29, 528
          %s358 = sadd.s32 %s356, %s357
          %s359 = scalar_lea.vmem %s0, %s358
          %s360 = smul.u32 %s351, 528
          %s361 = scalar_lea.vmem [#allocation2], %s360
          %s362 = scalar_lea.sflag [#allocation3], %s351
          %p364 = scmp.lt.u32.totalorder 22, 8
          %p365 = pneg %p364
          // Predicated region
          $region61: #{tpu_custom_call.1} parent=59 // pred_check
            _
          $region62: #{tpu_custom_call.1} parent=59 // pred_check_branch
            %367 = sbr.rel (%p364) target = $region64
          $region63: #{tpu_custom_call.1} parent=59 // pred_region
            %s425 = sand.u32 22, 7
            %p426 = scmp.eq.s32.totalorder %s425, 0
            %p427 = pneg %p426
            // Predicated region
            $region76: #{tpu_custom_call.1} parent=63 // pred_check
              _
            $region77: #{tpu_custom_call.1} parent=63 // pred_check_branch
              %429 = sbr.rel (%p426) target = $region79
            $region78: #{tpu_custom_call.1} parent=63 // pred_region
              %s430 = sand.u32 22, 7
              %s431 = ssub.s32 22, %s430
              %s432 = scalar_lea.vmem %s359, %s431
              %s433 = ssub.s32 22, %s430
              %s434 = scalar_lea.vmem %s361, %s433 [#allocation2]
              loop: start=0, step=1, limit=1
              $region80: #{tpu_custom_call.1} parent=78 // loop_pre_header
                _
              $region81: #{tpu_custom_call.1} parent=78 // loop_header
                %s436 = sphi 0, %s440
                %p437 = scmp.ge.s32.totalorder %s436, 1
                %s441 = sphi %s359, %s359
                %s442 = sphi %s361, %s361
              $region82: #{tpu_custom_call.1} parent=78 // loop_header_branch
                %439 = sbr.rel (%p437) target = $region86
              $region83: #{tpu_custom_call.1} parent=78 // loop_body
                %v443 = vld [vmem:[%s441] sm:$0xff]
                %444 = vst [vmem:[%s442] sm:$0xff] %v443
                %v445 = vld [vmem:[%s441 + $0x8] sm:$0xff]
                %446 = vst [vmem:[%s442 + $0x8] sm:$0xff] %v445
                %v447 = vld [vmem:[%s441 + $0x18] sm:$0xff]
                %448 = vst [vmem:[%s442 + $0x18] sm:$0xff] %v447
                %v449 = vld [vmem:[%s441 + $0x20] sm:$0xff]
                %450 = vst [vmem:[%s442 + $0x20] sm:$0xff] %v449
                %v451 = vld [vmem:[%s441 + $0x30] sm:$0xff]
                %452 = vst [vmem:[%s442 + $0x30] sm:$0xff] %v451
                %v453 = vld [vmem:[%s441 + $0x38] sm:$0xff]
                %454 = vst [vmem:[%s442 + $0x38] sm:$0xff] %v453
                %v455 = vld [vmem:[%s441 + $0x48] sm:$0xff]
                %456 = vst [vmem:[%s442 + $0x48] sm:$0xff] %v455
                %v457 = vld [vmem:[%s441 + $0x50] sm:$0xff]
                %458 = vst [vmem:[%s442 + $0x50] sm:$0xff] %v457
                %v459 = vld [vmem:[%s441 + $0x60] sm:$0xff]
                %460 = vst [vmem:[%s442 + $0x60] sm:$0xff] %v459
                %v461 = vld [vmem:[%s441 + $0x68] sm:$0xff]
                %462 = vst [vmem:[%s442 + $0x68] sm:$0xff] %v461
                %v463 = vld [vmem:[%s441 + $0x78] sm:$0xff]
                %464 = vst [vmem:[%s442 + $0x78] sm:$0xff] %v463
                %v465 = vld [vmem:[%s441 + $0x80] sm:$0xff]
                %466 = vst [vmem:[%s442 + $0x80] sm:$0xff] %v465
                %v467 = vld [vmem:[%s441 + $0x90] sm:$0xff]
                %468 = vst [vmem:[%s442 + $0x90] sm:$0xff] %v467
                %v469 = vld [vmem:[%s441 + $0x98] sm:$0xff]
                %470 = vst [vmem:[%s442 + $0x98] sm:$0xff] %v469
                %v471 = vld [vmem:[%s441 + $0xa8] sm:$0xff]
                %472 = vst [vmem:[%s442 + $0xa8] sm:$0xff] %v471
                %v473 = vld [vmem:[%s441 + $0xb0] sm:$0xff]
                %474 = vst [vmem:[%s442 + $0xb0] sm:$0xff] %v473
                %v475 = vld [vmem:[%s441 + $0xc0] sm:$0xff]
                %476 = vst [vmem:[%s442 + $0xc0] sm:$0xff] %v475
                %v477 = vld [vmem:[%s441 + $0xc8] sm:$0xff]
                %478 = vst [vmem:[%s442 + $0xc8] sm:$0xff] %v477
                %v479 = vld [vmem:[%s441 + $0xd8] sm:$0xff]
                %480 = vst [vmem:[%s442 + $0xd8] sm:$0xff] %v479
                %v481 = vld [vmem:[%s441 + $0xe0] sm:$0xff]
                %482 = vst [vmem:[%s442 + $0xe0] sm:$0xff] %v481
                %v483 = vld [vmem:[%s441 + $0xf0] sm:$0xff]
                %484 = vst [vmem:[%s442 + $0xf0] sm:$0xff] %v483
                %v485 = vld [vmem:[%s441 + $0xf8] sm:$0xff]
                %486 = vst [vmem:[%s442 + $0xf8] sm:$0xff] %v485
                %v487 = vld [vmem:[%s441 + $0x108] sm:$0xff]
                %488 = vst [vmem:[%s442 + $0x108] sm:$0xff] %v487
                %v489 = vld [vmem:[%s441 + $0x110] sm:$0xff]
                %490 = vst [vmem:[%s442 + $0x110] sm:$0xff] %v489
                %v491 = vld [vmem:[%s441 + $0x120] sm:$0xff]
                %492 = vst [vmem:[%s442 + $0x120] sm:$0xff] %v491
                %v493 = vld [vmem:[%s441 + $0x128] sm:$0xff]
                %494 = vst [vmem:[%s442 + $0x128] sm:$0xff] %v493
                %v495 = vld [vmem:[%s441 + $0x138] sm:$0xff]
                %496 = vst [vmem:[%s442 + $0x138] sm:$0xff] %v495
                %v497 = vld [vmem:[%s441 + $0x140] sm:$0xff]
                %498 = vst [vmem:[%s442 + $0x140] sm:$0xff] %v497
                %v499 = vld [vmem:[%s441 + $0x150] sm:$0xff]
                %500 = vst [vmem:[%s442 + $0x150] sm:$0xff] %v499
                %v501 = vld [vmem:[%s441 + $0x158] sm:$0xff]
                %502 = vst [vmem:[%s442 + $0x158] sm:$0xff] %v501
                %v503 = vld [vmem:[%s441 + $0x168] sm:$0xff]
                %504 = vst [vmem:[%s442 + $0x168] sm:$0xff] %v503
                %v505 = vld [vmem:[%s441 + $0x170] sm:$0xff]
                %506 = vst [vmem:[%s442 + $0x170] sm:$0xff] %v505
                %v507 = vld [vmem:[%s441 + $0x180] sm:$0xff]
                %508 = vst [vmem:[%s442 + $0x180] sm:$0xff] %v507
                %v509 = vld [vmem:[%s441 + $0x188] sm:$0xff]
                %510 = vst [vmem:[%s442 + $0x188] sm:$0xff] %v509
                %v511 = vld [vmem:[%s441 + $0x198] sm:$0xff]
                %512 = vst [vmem:[%s442 + $0x198] sm:$0xff] %v511
                %v513 = vld [vmem:[%s441 + $0x1a0] sm:$0xff]
                %514 = vst [vmem:[%s442 + $0x1a0] sm:$0xff] %v513
                %v515 = vld [vmem:[%s441 + $0x1b0] sm:$0xff]
                %516 = vst [vmem:[%s442 + $0x1b0] sm:$0xff] %v515
                %v517 = vld [vmem:[%s441 + $0x1b8] sm:$0xff]
                %518 = vst [vmem:[%s442 + $0x1b8] sm:$0xff] %v517
                %v519 = vld [vmem:[%s441 + $0x1c8] sm:$0xff]
                %520 = vst [vmem:[%s442 + $0x1c8] sm:$0xff] %v519
                %v521 = vld [vmem:[%s441 + $0x1d0] sm:$0xff]
                %522 = vst [vmem:[%s442 + $0x1d0] sm:$0xff] %v521
                %v523 = vld [vmem:[%s441 + $0x1e0] sm:$0xff]
                %524 = vst [vmem:[%s442 + $0x1e0] sm:$0xff] %v523
                %v525 = vld [vmem:[%s441 + $0x1e8] sm:$0xff]
                %526 = vst [vmem:[%s442 + $0x1e8] sm:$0xff] %v525
                %v527 = vld [vmem:[%s441 + $0x1f8] sm:$0xff]
                %528 = vst [vmem:[%s442 + $0x1f8] sm:$0xff] %v527
                %v529 = vld [vmem:[%s441 + $0x200] sm:$0xff]
                %530 = vst [vmem:[%s442 + $0x200] sm:$0xff] %v529
              $region84: #{tpu_custom_call.1} parent=78 // loop_footer
                %s440 = sadd.s32 1, %s436
              $region85: #{tpu_custom_call.1} parent=78 // loop_footer_branch
                %435 = sbr.rel target = $region81
              $region86: #{tpu_custom_call.1} parent=78 // loop_exit
                _
              %s531 = sshll.u32 1, %s430
              %s532 = ssub.s32 %s531, 1
              loop: start=0, step=1, limit=1
              $region87: #{tpu_custom_call.1} parent=78 // loop_pre_header
                _
              $region88: #{tpu_custom_call.1} parent=78 // loop_header
                %s534 = sphi 0, %s538
                %p535 = scmp.ge.s32.totalorder %s534, 1
                %s539 = sphi %s432, %s432
                %s540 = sphi %s434, %s434
              $region89: #{tpu_custom_call.1} parent=78 // loop_header_branch
                %537 = sbr.rel (%p535) target = $region93
              $region90: #{tpu_custom_call.1} parent=78 // loop_body
                %v541 = vld [vmem:[%s539] sm:%s532]
                %542 = vst [vmem:[%s540] sm:%s532] %v541
                %v543 = vld [vmem:[%s539 + $0x18] sm:%s532]
                %544 = vst [vmem:[%s540 + $0x18] sm:%s532] %v543
                %v545 = vld [vmem:[%s539 + $0x30] sm:%s532]
                %546 = vst [vmem:[%s540 + $0x30] sm:%s532] %v545
                %v547 = vld [vmem:[%s539 + $0x48] sm:%s532]
                %548 = vst [vmem:[%s540 + $0x48] sm:%s532] %v547
                %v549 = vld [vmem:[%s539 + $0x60] sm:%s532]
                %550 = vst [vmem:[%s540 + $0x60] sm:%s532] %v549
                %v551 = vld [vmem:[%s539 + $0x78] sm:%s532]
                %552 = vst [vmem:[%s540 + $0x78] sm:%s532] %v551
                %v553 = vld [vmem:[%s539 + $0x90] sm:%s532]
                %554 = vst [vmem:[%s540 + $0x90] sm:%s532] %v553
                %v555 = vld [vmem:[%s539 + $0xa8] sm:%s532]
                %556 = vst [vmem:[%s540 + $0xa8] sm:%s532] %v555
                %v557 = vld [vmem:[%s539 + $0xc0] sm:%s532]
                %558 = vst [vmem:[%s540 + $0xc0] sm:%s532] %v557
                %v559 = vld [vmem:[%s539 + $0xd8] sm:%s532]
                %560 = vst [vmem:[%s540 + $0xd8] sm:%s532] %v559
                %v561 = vld [vmem:[%s539 + $0xf0] sm:%s532]
                %562 = vst [vmem:[%s540 + $0xf0] sm:%s532] %v561
                %v563 = vld [vmem:[%s539 + $0x108] sm:%s532]
                %564 = vst [vmem:[%s540 + $0x108] sm:%s532] %v563
                %v565 = vld [vmem:[%s539 + $0x120] sm:%s532]
                %566 = vst [vmem:[%s540 + $0x120] sm:%s532] %v565
                %v567 = vld [vmem:[%s539 + $0x138] sm:%s532]
                %568 = vst [vmem:[%s540 + $0x138] sm:%s532] %v567
                %v569 = vld [vmem:[%s539 + $0x150] sm:%s532]
                %570 = vst [vmem:[%s540 + $0x150] sm:%s532] %v569
                %v571 = vld [vmem:[%s539 + $0x168] sm:%s532]
                %572 = vst [vmem:[%s540 + $0x168] sm:%s532] %v571
                %v573 = vld [vmem:[%s539 + $0x180] sm:%s532]
                %574 = vst [vmem:[%s540 + $0x180] sm:%s532] %v573
                %v575 = vld [vmem:[%s539 + $0x198] sm:%s532]
                %576 = vst [vmem:[%s540 + $0x198] sm:%s532] %v575
                %v577 = vld [vmem:[%s539 + $0x1b0] sm:%s532]
                %578 = vst [vmem:[%s540 + $0x1b0] sm:%s532] %v577
                %v579 = vld [vmem:[%s539 + $0x1c8] sm:%s532]
                %580 = vst [vmem:[%s540 + $0x1c8] sm:%s532] %v579
                %v581 = vld [vmem:[%s539 + $0x1e0] sm:%s532]
                %582 = vst [vmem:[%s540 + $0x1e0] sm:%s532] %v581
                %v583 = vld [vmem:[%s539 + $0x1f8] sm:%s532]
                %584 = vst [vmem:[%s540 + $0x1f8] sm:%s532] %v583
              $region91: #{tpu_custom_call.1} parent=78 // loop_footer
                %s538 = sadd.s32 1, %s534
              $region92: #{tpu_custom_call.1} parent=78 // loop_footer_branch
                %533 = sbr.rel target = $region88
              $region93: #{tpu_custom_call.1} parent=78 // loop_exit
                _
            $region79: #{tpu_custom_call.1} parent=63 // pred_fallthru
              _
          $region64: #{tpu_custom_call.1} parent=59 // pred_fallthru
            _
          // Predicated region
          $region65: #{tpu_custom_call.1} parent=59 // pred_check
            %p368 = pneg %p364
          $region66: #{tpu_custom_call.1} parent=59 // pred_check_branch
            %370 = sbr.rel (%p368) target = $region68
          $region67: #{tpu_custom_call.1} parent=59 // pred_region
            %s371 = sshll.u32 1, 22
            %s372 = ssub.s32 %s371, 1
            loop: start=0, step=1, limit=1
            $region69: #{tpu_custom_call.1} parent=67 // loop_pre_header
              _
            $region70: #{tpu_custom_call.1} parent=67 // loop_header
              %s374 = sphi 0, %s378
              %p375 = scmp.ge.s32.totalorder %s374, 1
              %s379 = sphi %s359, %s359
              %s380 = sphi %s361, %s361
            $region71: #{tpu_custom_call.1} parent=67 // loop_header_branch
              %377 = sbr.rel (%p375) target = $region75
            $region72: #{tpu_custom_call.1} parent=67 // loop_body
              %v381 = vld [vmem:[%s379] sm:%s372]
              %382 = vst [vmem:[%s380] sm:%s372] %v381
              %v383 = vld [vmem:[%s379 + $0x18] sm:%s372]
              %384 = vst [vmem:[%s380 + $0x18] sm:%s372] %v383
              %v385 = vld [vmem:[%s379 + $0x30] sm:%s372]
              %386 = vst [vmem:[%s380 + $0x30] sm:%s372] %v385
              %v387 = vld [vmem:[%s379 + $0x48] sm:%s372]
              %388 = vst [vmem:[%s380 + $0x48] sm:%s372] %v387
              %v389 = vld [vmem:[%s379 + $0x60] sm:%s372]
              %390 = vst [vmem:[%s380 + $0x60] sm:%s372] %v389
              %v391 = vld [vmem:[%s379 + $0x78] sm:%s372]
              %392 = vst [vmem:[%s380 + $0x78] sm:%s372] %v391
              %v393 = vld [vmem:[%s379 + $0x90] sm:%s372]
              %394 = vst [vmem:[%s380 + $0x90] sm:%s372] %v393
              %v395 = vld [vmem:[%s379 + $0xa8] sm:%s372]
              %396 = vst [vmem:[%s380 + $0xa8] sm:%s372] %v395
              %v397 = vld [vmem:[%s379 + $0xc0] sm:%s372]
              %398 = vst [vmem:[%s380 + $0xc0] sm:%s372] %v397
              %v399 = vld [vmem:[%s379 + $0xd8] sm:%s372]
              %400 = vst [vmem:[%s380 + $0xd8] sm:%s372] %v399
              %v401 = vld [vmem:[%s379 + $0xf0] sm:%s372]
              %402 = vst [vmem:[%s380 + $0xf0] sm:%s372] %v401
              %v403 = vld [vmem:[%s379 + $0x108] sm:%s372]
              %404 = vst [vmem:[%s380 + $0x108] sm:%s372] %v403
              %v405 = vld [vmem:[%s379 + $0x120] sm:%s372]
              %406 = vst [vmem:[%s380 + $0x120] sm:%s372] %v405
              %v407 = vld [vmem:[%s379 + $0x138] sm:%s372]
              %408 = vst [vmem:[%s380 + $0x138] sm:%s372] %v407
              %v409 = vld [vmem:[%s379 + $0x150] sm:%s372]
              %410 = vst [vmem:[%s380 + $0x150] sm:%s372] %v409
              %v411 = vld [vmem:[%s379 + $0x168] sm:%s372]
              %412 = vst [vmem:[%s380 + $0x168] sm:%s372] %v411
              %v413 = vld [vmem:[%s379 + $0x180] sm:%s372]
              %414 = vst [vmem:[%s380 + $0x180] sm:%s372] %v413
              %v415 = vld [vmem:[%s379 + $0x198] sm:%s372]
              %416 = vst [vmem:[%s380 + $0x198] sm:%s372] %v415
              %v417 = vld [vmem:[%s379 + $0x1b0] sm:%s372]
              %418 = vst [vmem:[%s380 + $0x1b0] sm:%s372] %v417
              %v419 = vld [vmem:[%s379 + $0x1c8] sm:%s372]
              %420 = vst [vmem:[%s380 + $0x1c8] sm:%s372] %v419
              %v421 = vld [vmem:[%s379 + $0x1e0] sm:%s372]
              %422 = vst [vmem:[%s380 + $0x1e0] sm:%s372] %v421
              %v423 = vld [vmem:[%s379 + $0x1f8] sm:%s372]
              %424 = vst [vmem:[%s380 + $0x1f8] sm:%s372] %v423
            $region73: #{tpu_custom_call.1} parent=67 // loop_footer
              %s378 = sadd.s32 1, %s374
            $region74: #{tpu_custom_call.1} parent=67 // loop_footer_branch
              %373 = sbr.rel target = $region70
            $region75: #{tpu_custom_call.1} parent=67 // loop_exit
              _
          $region68: #{tpu_custom_call.1} parent=59 // pred_fallthru
            _
          // Predicated region
          $region94: #{tpu_custom_call.1} parent=59 // pred_check
            _
          $region95: #{tpu_custom_call.1} parent=59 // pred_check_branch
            %587 = sbr.rel (0) target = $region97
          $region96: #{tpu_custom_call.1} parent=59 // pred_region
            %588 = vsyncadd %s362, 7744
          $region97: #{tpu_custom_call.1} parent=59 // pred_fallthru
            _
        $region60: #{tpu_custom_call.1} parent=55 // pred_fallthru
          _
        %s589 = smul.u32 %s351, 528
        %s590 = scalar_lea.vmem [#allocation2], %s589
        %s591 = scalar_lea.sflag [#allocation3], %s351
        %s592 = smul.u32 22, 22
        %s593 = smul.u32 %s592, 1
        %s594 = sshll.u32 %s593, 4
        %595 = dma.done %s591, %s594
        %s596 = sadd.s32 %s31, 1
        %p597 = scmp.lt.s32.totalorder %s596, 1
        // Predicated region
        $region98: #{tpu_custom_call.1} parent=55 // pred_check
          %p598 = pneg %p597
        $region99: #{tpu_custom_call.1} parent=55 // pred_check_branch
          %600 = sbr.rel (%p598) target = $region101
        $region100: #{tpu_custom_call.1} parent=55 // pred_region
          %s601 = sadd.s32 %s339, 16
          %s602 = ssub.s32 1, %s351
          %s603 = smul.u32 %s601, 24
          %s604 = smul.u32 %s29, 528
          %s605 = sadd.s32 %s603, %s604
          %s606 = scalar_lea.vmem %s0, %s605
          %s607 = smul.u32 %s602, 528
          %s608 = scalar_lea.vmem [#allocation2], %s607
          %s609 = scalar_lea.sflag [#allocation3], %s602
          %p611 = scmp.lt.u32.totalorder 22, 8
          %p612 = pneg %p611
          // Predicated region
          $region102: #{tpu_custom_call.1} parent=100 // pred_check
            _
          $region103: #{tpu_custom_call.1} parent=100 // pred_check_branch
            %614 = sbr.rel (%p611) target = $region105
          $region104: #{tpu_custom_call.1} parent=100 // pred_region
            %s672 = sand.u32 22, 7
            %p673 = scmp.eq.s32.totalorder %s672, 0
            %p674 = pneg %p673
            // Predicated region
            $region117: #{tpu_custom_call.1} parent=104 // pred_check
              _
            $region118: #{tpu_custom_call.1} parent=104 // pred_check_branch
              %676 = sbr.rel (%p673) target = $region120
            $region119: #{tpu_custom_call.1} parent=104 // pred_region
              %s677 = sand.u32 22, 7
              %s678 = ssub.s32 22, %s677
              %s679 = scalar_lea.vmem %s606, %s678
              %s680 = ssub.s32 22, %s677
              %s681 = scalar_lea.vmem %s608, %s680 [#allocation2]
              loop: start=0, step=1, limit=1
              $region121: #{tpu_custom_call.1} parent=119 // loop_pre_header
                _
              $region122: #{tpu_custom_call.1} parent=119 // loop_header
                %s683 = sphi 0, %s687
                %p684 = scmp.ge.s32.totalorder %s683, 1
                %s688 = sphi %s606, %s606
                %s689 = sphi %s608, %s608
              $region123: #{tpu_custom_call.1} parent=119 // loop_header_branch
                %686 = sbr.rel (%p684) target = $region127
              $region124: #{tpu_custom_call.1} parent=119 // loop_body
                %v690 = vld [vmem:[%s688] sm:$0xff]
                %691 = vst [vmem:[%s689] sm:$0xff] %v690
                %v692 = vld [vmem:[%s688 + $0x8] sm:$0xff]
                %693 = vst [vmem:[%s689 + $0x8] sm:$0xff] %v692
                %v694 = vld [vmem:[%s688 + $0x18] sm:$0xff]
                %695 = vst [vmem:[%s689 + $0x18] sm:$0xff] %v694
                %v696 = vld [vmem:[%s688 + $0x20] sm:$0xff]
                %697 = vst [vmem:[%s689 + $0x20] sm:$0xff] %v696
                %v698 = vld [vmem:[%s688 + $0x30] sm:$0xff]
                %699 = vst [vmem:[%s689 + $0x30] sm:$0xff] %v698
                %v700 = vld [vmem:[%s688 + $0x38] sm:$0xff]
                %701 = vst [vmem:[%s689 + $0x38] sm:$0xff] %v700
                %v702 = vld [vmem:[%s688 + $0x48] sm:$0xff]
                %703 = vst [vmem:[%s689 + $0x48] sm:$0xff] %v702
                %v704 = vld [vmem:[%s688 + $0x50] sm:$0xff]
                %705 = vst [vmem:[%s689 + $0x50] sm:$0xff] %v704
                %v706 = vld [vmem:[%s688 + $0x60] sm:$0xff]
                %707 = vst [vmem:[%s689 + $0x60] sm:$0xff] %v706
                %v708 = vld [vmem:[%s688 + $0x68] sm:$0xff]
                %709 = vst [vmem:[%s689 + $0x68] sm:$0xff] %v708
                %v710 = vld [vmem:[%s688 + $0x78] sm:$0xff]
                %711 = vst [vmem:[%s689 + $0x78] sm:$0xff] %v710
                %v712 = vld [vmem:[%s688 + $0x80] sm:$0xff]
                %713 = vst [vmem:[%s689 + $0x80] sm:$0xff] %v712
                %v714 = vld [vmem:[%s688 + $0x90] sm:$0xff]
                %715 = vst [vmem:[%s689 + $0x90] sm:$0xff] %v714
                %v716 = vld [vmem:[%s688 + $0x98] sm:$0xff]
                %717 = vst [vmem:[%s689 + $0x98] sm:$0xff] %v716
                %v718 = vld [vmem:[%s688 + $0xa8] sm:$0xff]
                %719 = vst [vmem:[%s689 + $0xa8] sm:$0xff] %v718
                %v720 = vld [vmem:[%s688 + $0xb0] sm:$0xff]
                %721 = vst [vmem:[%s689 + $0xb0] sm:$0xff] %v720
                %v722 = vld [vmem:[%s688 + $0xc0] sm:$0xff]
                %723 = vst [vmem:[%s689 + $0xc0] sm:$0xff] %v722
                %v724 = vld [vmem:[%s688 + $0xc8] sm:$0xff]
                %725 = vst [vmem:[%s689 + $0xc8] sm:$0xff] %v724
                %v726 = vld [vmem:[%s688 + $0xd8] sm:$0xff]
                %727 = vst [vmem:[%s689 + $0xd8] sm:$0xff] %v726
                %v728 = vld [vmem:[%s688 + $0xe0] sm:$0xff]
                %729 = vst [vmem:[%s689 + $0xe0] sm:$0xff] %v728
                %v730 = vld [vmem:[%s688 + $0xf0] sm:$0xff]
                %731 = vst [vmem:[%s689 + $0xf0] sm:$0xff] %v730
                %v732 = vld [vmem:[%s688 + $0xf8] sm:$0xff]
                %733 = vst [vmem:[%s689 + $0xf8] sm:$0xff] %v732
                %v734 = vld [vmem:[%s688 + $0x108] sm:$0xff]
                %735 = vst [vmem:[%s689 + $0x108] sm:$0xff] %v734
                %v736 = vld [vmem:[%s688 + $0x110] sm:$0xff]
                %737 = vst [vmem:[%s689 + $0x110] sm:$0xff] %v736
                %v738 = vld [vmem:[%s688 + $0x120] sm:$0xff]
                %739 = vst [vmem:[%s689 + $0x120] sm:$0xff] %v738
                %v740 = vld [vmem:[%s688 + $0x128] sm:$0xff]
                %741 = vst [vmem:[%s689 + $0x128] sm:$0xff] %v740
                %v742 = vld [vmem:[%s688 + $0x138] sm:$0xff]
                %743 = vst [vmem:[%s689 + $0x138] sm:$0xff] %v742
                %v744 = vld [vmem:[%s688 + $0x140] sm:$0xff]
                %745 = vst [vmem:[%s689 + $0x140] sm:$0xff] %v744
                %v746 = vld [vmem:[%s688 + $0x150] sm:$0xff]
                %747 = vst [vmem:[%s689 + $0x150] sm:$0xff] %v746
                %v748 = vld [vmem:[%s688 + $0x158] sm:$0xff]
                %749 = vst [vmem:[%s689 + $0x158] sm:$0xff] %v748
                %v750 = vld [vmem:[%s688 + $0x168] sm:$0xff]
                %751 = vst [vmem:[%s689 + $0x168] sm:$0xff] %v750
                %v752 = vld [vmem:[%s688 + $0x170] sm:$0xff]
                %753 = vst [vmem:[%s689 + $0x170] sm:$0xff] %v752
                %v754 = vld [vmem:[%s688 + $0x180] sm:$0xff]
                %755 = vst [vmem:[%s689 + $0x180] sm:$0xff] %v754
                %v756 = vld [vmem:[%s688 + $0x188] sm:$0xff]
                %757 = vst [vmem:[%s689 + $0x188] sm:$0xff] %v756
                %v758 = vld [vmem:[%s688 + $0x198] sm:$0xff]
                %759 = vst [vmem:[%s689 + $0x198] sm:$0xff] %v758
                %v760 = vld [vmem:[%s688 + $0x1a0] sm:$0xff]
                %761 = vst [vmem:[%s689 + $0x1a0] sm:$0xff] %v760
                %v762 = vld [vmem:[%s688 + $0x1b0] sm:$0xff]
                %763 = vst [vmem:[%s689 + $0x1b0] sm:$0xff] %v762
                %v764 = vld [vmem:[%s688 + $0x1b8] sm:$0xff]
                %765 = vst [vmem:[%s689 + $0x1b8] sm:$0xff] %v764
                %v766 = vld [vmem:[%s688 + $0x1c8] sm:$0xff]
                %767 = vst [vmem:[%s689 + $0x1c8] sm:$0xff] %v766
                %v768 = vld [vmem:[%s688 + $0x1d0] sm:$0xff]
                %769 = vst [vmem:[%s689 + $0x1d0] sm:$0xff] %v768
                %v770 = vld [vmem:[%s688 + $0x1e0] sm:$0xff]
                %771 = vst [vmem:[%s689 + $0x1e0] sm:$0xff] %v770
                %v772 = vld [vmem:[%s688 + $0x1e8] sm:$0xff]
                %773 = vst [vmem:[%s689 + $0x1e8] sm:$0xff] %v772
                %v774 = vld [vmem:[%s688 + $0x1f8] sm:$0xff]
                %775 = vst [vmem:[%s689 + $0x1f8] sm:$0xff] %v774
                %v776 = vld [vmem:[%s688 + $0x200] sm:$0xff]
                %777 = vst [vmem:[%s689 + $0x200] sm:$0xff] %v776
              $region125: #{tpu_custom_call.1} parent=119 // loop_footer
                %s687 = sadd.s32 1, %s683
              $region126: #{tpu_custom_call.1} parent=119 // loop_footer_branch
                %682 = sbr.rel target = $region122
              $region127: #{tpu_custom_call.1} parent=119 // loop_exit
                _
              %s778 = sshll.u32 1, %s677
              %s779 = ssub.s32 %s778, 1
              loop: start=0, step=1, limit=1
              $region128: #{tpu_custom_call.1} parent=119 // loop_pre_header
                _
              $region129: #{tpu_custom_call.1} parent=119 // loop_header
                %s781 = sphi 0, %s785
                %p782 = scmp.ge.s32.totalorder %s781, 1
                %s786 = sphi %s679, %s679
                %s787 = sphi %s681, %s681
              $region130: #{tpu_custom_call.1} parent=119 // loop_header_branch
                %784 = sbr.rel (%p782) target = $region134
              $region131: #{tpu_custom_call.1} parent=119 // loop_body
                %v788 = vld [vmem:[%s786] sm:%s779]
                %789 = vst [vmem:[%s787] sm:%s779] %v788
                %v790 = vld [vmem:[%s786 + $0x18] sm:%s779]
                %791 = vst [vmem:[%s787 + $0x18] sm:%s779] %v790
                %v792 = vld [vmem:[%s786 + $0x30] sm:%s779]
                %793 = vst [vmem:[%s787 + $0x30] sm:%s779] %v792
                %v794 = vld [vmem:[%s786 + $0x48] sm:%s779]
                %795 = vst [vmem:[%s787 + $0x48] sm:%s779] %v794
                %v796 = vld [vmem:[%s786 + $0x60] sm:%s779]
                %797 = vst [vmem:[%s787 + $0x60] sm:%s779] %v796
                %v798 = vld [vmem:[%s786 + $0x78] sm:%s779]
                %799 = vst [vmem:[%s787 + $0x78] sm:%s779] %v798
                %v800 = vld [vmem:[%s786 + $0x90] sm:%s779]
                %801 = vst [vmem:[%s787 + $0x90] sm:%s779] %v800
                %v802 = vld [vmem:[%s786 + $0xa8] sm:%s779]
                %803 = vst [vmem:[%s787 + $0xa8] sm:%s779] %v802
                %v804 = vld [vmem:[%s786 + $0xc0] sm:%s779]
                %805 = vst [vmem:[%s787 + $0xc0] sm:%s779] %v804
                %v806 = vld [vmem:[%s786 + $0xd8] sm:%s779]
                %807 = vst [vmem:[%s787 + $0xd8] sm:%s779] %v806
                %v808 = vld [vmem:[%s786 + $0xf0] sm:%s779]
                %809 = vst [vmem:[%s787 + $0xf0] sm:%s779] %v808
                %v810 = vld [vmem:[%s786 + $0x108] sm:%s779]
                %811 = vst [vmem:[%s787 + $0x108] sm:%s779] %v810
                %v812 = vld [vmem:[%s786 + $0x120] sm:%s779]
                %813 = vst [vmem:[%s787 + $0x120] sm:%s779] %v812
                %v814 = vld [vmem:[%s786 + $0x138] sm:%s779]
                %815 = vst [vmem:[%s787 + $0x138] sm:%s779] %v814
                %v816 = vld [vmem:[%s786 + $0x150] sm:%s779]
                %817 = vst [vmem:[%s787 + $0x150] sm:%s779] %v816
                %v818 = vld [vmem:[%s786 + $0x168] sm:%s779]
                %819 = vst [vmem:[%s787 + $0x168] sm:%s779] %v818
                %v820 = vld [vmem:[%s786 + $0x180] sm:%s779]
                %821 = vst [vmem:[%s787 + $0x180] sm:%s779] %v820
                %v822 = vld [vmem:[%s786 + $0x198] sm:%s779]
                %823 = vst [vmem:[%s787 + $0x198] sm:%s779] %v822
                %v824 = vld [vmem:[%s786 + $0x1b0] sm:%s779]
                %825 = vst [vmem:[%s787 + $0x1b0] sm:%s779] %v824
                %v826 = vld [vmem:[%s786 + $0x1c8] sm:%s779]
                %827 = vst [vmem:[%s787 + $0x1c8] sm:%s779] %v826
                %v828 = vld [vmem:[%s786 + $0x1e0] sm:%s779]
                %829 = vst [vmem:[%s787 + $0x1e0] sm:%s779] %v828
                %v830 = vld [vmem:[%s786 + $0x1f8] sm:%s779]
                %831 = vst [vmem:[%s787 + $0x1f8] sm:%s779] %v830
              $region132: #{tpu_custom_call.1} parent=119 // loop_footer
                %s785 = sadd.s32 1, %s781
              $region133: #{tpu_custom_call.1} parent=119 // loop_footer_branch
                %780 = sbr.rel target = $region129
              $region134: #{tpu_custom_call.1} parent=119 // loop_exit
                _
            $region120: #{tpu_custom_call.1} parent=104 // pred_fallthru
              _
          $region105: #{tpu_custom_call.1} parent=100 // pred_fallthru
            _
          // Predicated region
          $region106: #{tpu_custom_call.1} parent=100 // pred_check
            %p615 = pneg %p611
          $region107: #{tpu_custom_call.1} parent=100 // pred_check_branch
            %617 = sbr.rel (%p615) target = $region109
          $region108: #{tpu_custom_call.1} parent=100 // pred_region
            %s618 = sshll.u32 1, 22
            %s619 = ssub.s32 %s618, 1
            loop: start=0, step=1, limit=1
            $region110: #{tpu_custom_call.1} parent=108 // loop_pre_header
              _
            $region111: #{tpu_custom_call.1} parent=108 // loop_header
              %s621 = sphi 0, %s625
              %p622 = scmp.ge.s32.totalorder %s621, 1
              %s626 = sphi %s606, %s606
              %s627 = sphi %s608, %s608
            $region112: #{tpu_custom_call.1} parent=108 // loop_header_branch
              %624 = sbr.rel (%p622) target = $region116
            $region113: #{tpu_custom_call.1} parent=108 // loop_body
              %v628 = vld [vmem:[%s626] sm:%s619]
              %629 = vst [vmem:[%s627] sm:%s619] %v628
              %v630 = vld [vmem:[%s626 + $0x18] sm:%s619]
              %631 = vst [vmem:[%s627 + $0x18] sm:%s619] %v630
              %v632 = vld [vmem:[%s626 + $0x30] sm:%s619]
              %633 = vst [vmem:[%s627 + $0x30] sm:%s619] %v632
              %v634 = vld [vmem:[%s626 + $0x48] sm:%s619]
              %635 = vst [vmem:[%s627 + $0x48] sm:%s619] %v634
              %v636 = vld [vmem:[%s626 + $0x60] sm:%s619]
              %637 = vst [vmem:[%s627 + $0x60] sm:%s619] %v636
              %v638 = vld [vmem:[%s626 + $0x78] sm:%s619]
              %639 = vst [vmem:[%s627 + $0x78] sm:%s619] %v638
              %v640 = vld [vmem:[%s626 + $0x90] sm:%s619]
              %641 = vst [vmem:[%s627 + $0x90] sm:%s619] %v640
              %v642 = vld [vmem:[%s626 + $0xa8] sm:%s619]
              %643 = vst [vmem:[%s627 + $0xa8] sm:%s619] %v642
              %v644 = vld [vmem:[%s626 + $0xc0] sm:%s619]
              %645 = vst [vmem:[%s627 + $0xc0] sm:%s619] %v644
              %v646 = vld [vmem:[%s626 + $0xd8] sm:%s619]
              %647 = vst [vmem:[%s627 + $0xd8] sm:%s619] %v646
              %v648 = vld [vmem:[%s626 + $0xf0] sm:%s619]
              %649 = vst [vmem:[%s627 + $0xf0] sm:%s619] %v648
              %v650 = vld [vmem:[%s626 + $0x108] sm:%s619]
              %651 = vst [vmem:[%s627 + $0x108] sm:%s619] %v650
              %v652 = vld [vmem:[%s626 + $0x120] sm:%s619]
              %653 = vst [vmem:[%s627 + $0x120] sm:%s619] %v652
              %v654 = vld [vmem:[%s626 + $0x138] sm:%s619]
              %655 = vst [vmem:[%s627 + $0x138] sm:%s619] %v654
              %v656 = vld [vmem:[%s626 + $0x150] sm:%s619]
              %657 = vst [vmem:[%s627 + $0x150] sm:%s619] %v656
              %v658 = vld [vmem:[%s626 + $0x168] sm:%s619]
              %659 = vst [vmem:[%s627 + $0x168] sm:%s619] %v658
              %v660 = vld [vmem:[%s626 + $0x180] sm:%s619]
              %661 = vst [vmem:[%s627 + $0x180] sm:%s619] %v660
              %v662 = vld [vmem:[%s626 + $0x198] sm:%s619]
              %663 = vst [vmem:[%s627 + $0x198] sm:%s619] %v662
              %v664 = vld [vmem:[%s626 + $0x1b0] sm:%s619]
              %665 = vst [vmem:[%s627 + $0x1b0] sm:%s619] %v664
              %v666 = vld [vmem:[%s626 + $0x1c8] sm:%s619]
              %667 = vst [vmem:[%s627 + $0x1c8] sm:%s619] %v666
              %v668 = vld [vmem:[%s626 + $0x1e0] sm:%s619]
              %669 = vst [vmem:[%s627 + $0x1e0] sm:%s619] %v668
              %v670 = vld [vmem:[%s626 + $0x1f8] sm:%s619]
              %671 = vst [vmem:[%s627 + $0x1f8] sm:%s619] %v670
            $region114: #{tpu_custom_call.1} parent=108 // loop_footer
              %s625 = sadd.s32 1, %s621
            $region115: #{tpu_custom_call.1} parent=108 // loop_footer_branch
              %620 = sbr.rel target = $region111
            $region116: #{tpu_custom_call.1} parent=108 // loop_exit
              _
          $region109: #{tpu_custom_call.1} parent=100 // pred_fallthru
            _
          // Predicated region
          $region135: #{tpu_custom_call.1} parent=100 // pred_check
            _
          $region136: #{tpu_custom_call.1} parent=100 // pred_check_branch
            %834 = sbr.rel (0) target = $region138
          $region137: #{tpu_custom_call.1} parent=100 // pred_region
            %835 = vsyncadd %s609, 7744
          $region138: #{tpu_custom_call.1} parent=100 // pred_fallthru
            _
        $region101: #{tpu_custom_call.1} parent=55 // pred_fallthru
          _
        %v836 = vld [vmem:[%s1] sm:$0x7f]
        %v837 = vld [vmem:[%s1 + $0x8] sm:$0x7f]
        %v838 = vld [vmem:[%s1 + $0x10] sm:$0x7f]
        %v839 = vld [vmem:[%s1 + $0x18] sm:$0x7f]
        %v840 = vld [vmem:[%s1 + $0x20] sm:$0x7f]
        %v841 = vld [vmem:[%s1 + $0x28] sm:$0x7f]
        %v842 = vld [vmem:[%s1 + $0x30] sm:$0x7f]
        %v843 = vld [vmem:[%s590] sm:$0xff]
        %v844 = vld [vmem:[%s590 + $0x8] sm:$0xff]
        %v845 = vld [vmem:[%s590 + $0x18] sm:$0xff]
        %v846 = vld [vmem:[%s590 + $0x20] sm:$0xff]
        %v847 = vld [vmem:[%s590 + $0x30] sm:$0xff]
        %v848 = vld [vmem:[%s590 + $0x38] sm:$0xff]
        %v849 = vld [vmem:[%s590 + $0x48] sm:$0xff]
        %v850 = vld [vmem:[%s590 + $0x50] sm:$0xff]
        %v851 = vld [vmem:[%s590 + $0x60] sm:$0xff]
        %v852 = vld [vmem:[%s590 + $0x68] sm:$0xff]
        %v853 = vld [vmem:[%s590 + $0x78] sm:$0xff]
        %v854 = vld [vmem:[%s590 + $0x80] sm:$0xff]
        %v855 = vld [vmem:[%s590 + $0x90] sm:$0xff]
        %v856 = vld [vmem:[%s590 + $0x98] sm:$0xff]
        %v857 = vld [vmem:[%s590 + $0xa8] sm:$0xff]
        %v858 = vld [vmem:[%s590 + $0xb0] sm:$0xff]
        %v859 = vld [vmem:[%s590 + $0xc0] sm:$0xff]
        %v860 = vld [vmem:[%s590 + $0xc8] sm:$0xff]
        %v861 = vld [vmem:[%s590 + $0xd8] sm:$0xff]
        %v862 = vld [vmem:[%s590 + $0xe0] sm:$0xff]
        %v863 = vld [vmem:[%s590 + $0xf0] sm:$0xff]
        %v864 = vld [vmem:[%s590 + $0xf8] sm:$0xff]
        %v865 = vld [vmem:[%s590 + $0x108] sm:$0xff]
        %v866 = vld [vmem:[%s590 + $0x110] sm:$0xff]
        %v867 = vld [vmem:[%s590 + $0x120] sm:$0xff]
        %v868 = vld [vmem:[%s590 + $0x128] sm:$0xff]
        %v869 = vld [vmem:[%s590 + $0x138] sm:$0xff]
        %v870 = vld [vmem:[%s590 + $0x140] sm:$0xff]
        %v871 = vld [vmem:[%s590 + $0x150] sm:$0xff]
        %v872 = vld [vmem:[%s590 + $0x158] sm:$0xff]
        %v873 = vld [vmem:[%s590 + $0x168] sm:$0xff]
        %v874 = vld [vmem:[%s590 + $0x170] sm:$0xff]
        %v875 = vld [vmem:[%s590 + $0x180] sm:$0xff]
        %v876 = vld [vmem:[%s590 + $0x188] sm:$0xff]
        %v877 = vld [vmem:[%s590 + $0x198] sm:$0xff]
        %v878 = vld [vmem:[%s590 + $0x1a0] sm:$0xff]
        %v879 = vld [vmem:[%s590 + $0x1b0] sm:$0xff]
        %v880 = vld [vmem:[%s590 + $0x1b8] sm:$0xff]
        %v881 = vld [vmem:[%s590 + $0x1c8] sm:$0xff]
        %v882 = vld [vmem:[%s590 + $0x1d0] sm:$0xff]
        %v883 = vld [vmem:[%s590 + $0x1e0] sm:$0xff]
        %v884 = vld [vmem:[%s590 + $0x1e8] sm:$0xff]
        %v885 = vld [vmem:[%s590 + $0x1f8] sm:$0xff]
        %v886 = vld [vmem:[%s590 + $0x200] sm:$0xff]
        %v887 = vlaneseq
        %v888 = vshrl.u32 %v887, 7
        %v889 = vsub.s32 0, %v888
        %v890 = vrot.slane %v836, %v889
        %v891 = vmul.f32 %v843, %v890
        %v892 = vmul.f32 %v844, %v890
        %v893 = vmul.f32 %v845, %v890
        %v894 = vmul.f32 %v846, %v890
        %v895 = vmul.f32 %v847, %v890
        %v896 = vmul.f32 %v848, %v890
        %v897 = vmul.f32 %v849, %v890
        %v898 = vmul.f32 %v850, %v890
        %v899 = vmul.f32 %v851, %v890
        %v900 = vmul.f32 %v852, %v890
        %v901 = vmul.f32 %v853, %v890
        %v902 = vmul.f32 %v854, %v890
        %v903 = vmul.f32 %v855, %v890
        %v904 = vmul.f32 %v856, %v890
        %v905 = vmul.f32 %v857, %v890
        %v906 = vmul.f32 %v858, %v890
        %v907 = vmul.f32 %v859, %v890
        %v908 = vmul.f32 %v860, %v890
        %v909 = vmul.f32 %v861, %v890
        %v910 = vmul.f32 %v862, %v890
        %v911 = vmul.f32 %v863, %v890
        %v912 = vmul.f32 %v864, %v890
        %v913 = vmul.f32 %v865, %v890
        %v914 = vmul.f32 %v866, %v890
        %v915 = vmul.f32 %v867, %v890
        %v916 = vmul.f32 %v868, %v890
        %v917 = vmul.f32 %v869, %v890
        %v918 = vmul.f32 %v870, %v890
        %v919 = vmul.f32 %v871, %v890
        %v920 = vmul.f32 %v872, %v890
        %v921 = vmul.f32 %v873, %v890
        %v922 = vmul.f32 %v874, %v890
        %v923 = vadd.f32 %v891, 0.0
        %v924 = vadd.f32 %v892, 0.0
        %v925 = vadd.f32 %v893, 0.0
        %v926 = vadd.f32 %v894, 0.0
        %v927 = vadd.f32 %v895, 0.0
        %v928 = vadd.f32 %v896, 0.0
        %v929 = vadd.f32 %v897, 0.0
        %v930 = vadd.f32 %v898, 0.0
        %v931 = vadd.f32 %v899, 0.0
        %v932 = vadd.f32 %v900, 0.0
        %v933 = vadd.f32 %v901, 0.0
        %v934 = vadd.f32 %v902, 0.0
        %v935 = vadd.f32 %v903, 0.0
        %v936 = vadd.f32 %v904, 0.0
        %v937 = vadd.f32 %v905, 0.0
        %v938 = vadd.f32 %v906, 0.0
        %v939 = vadd.f32 %v907, 0.0
        %v940 = vadd.f32 %v908, 0.0
        %v941 = vadd.f32 %v909, 0.0
        %v942 = vadd.f32 %v910, 0.0
        %v943 = vadd.f32 %v911, 0.0
        %v944 = vadd.f32 %v912, 0.0
        %v945 = vadd.f32 %v913, 0.0
        %v946 = vadd.f32 %v914, 0.0
        %v947 = vadd.f32 %v915, 0.0
        %v948 = vadd.f32 %v916, 0.0
        %v949 = vadd.f32 %v917, 0.0
        %v950 = vadd.f32 %v918, 0.0
        %v951 = vadd.f32 %v919, 0.0
        %v952 = vadd.f32 %v920, 0.0
        %v953 = vadd.f32 %v921, 0.0
        %v954 = vadd.f32 %v922, 0.0
        %v955 = vlaneseq
        %v956 = vshrl.u32 %v955, 7
        %v957 = vsub.s32 0, %v956
        %v958 = vrot.slane %v837, %v957
        %v959 = vmul.f32 %v845, %v958
        %v960 = vmul.f32 %v846, %v958
        %v961 = vmul.f32 %v847, %v958
        %v962 = vmul.f32 %v848, %v958
        %v963 = vmul.f32 %v849, %v958
        %v964 = vmul.f32 %v850, %v958
        %v965 = vmul.f32 %v851, %v958
        %v966 = vmul.f32 %v852, %v958
        %v967 = vmul.f32 %v853, %v958
        %v968 = vmul.f32 %v854, %v958
        %v969 = vmul.f32 %v855, %v958
        %v970 = vmul.f32 %v856, %v958
        %v971 = vmul.f32 %v857, %v958
        %v972 = vmul.f32 %v858, %v958
        %v973 = vmul.f32 %v859, %v958
        %v974 = vmul.f32 %v860, %v958
        %v975 = vmul.f32 %v861, %v958
        %v976 = vmul.f32 %v862, %v958
        %v977 = vmul.f32 %v863, %v958
        %v978 = vmul.f32 %v864, %v958
        %v979 = vmul.f32 %v865, %v958
        %v980 = vmul.f32 %v866, %v958
        %v981 = vmul.f32 %v867, %v958
        %v982 = vmul.f32 %v868, %v958
        %v983 = vmul.f32 %v869, %v958
        %v984 = vmul.f32 %v870, %v958
        %v985 = vmul.f32 %v871, %v958
        %v986 = vmul.f32 %v872, %v958
        %v987 = vmul.f32 %v873, %v958
        %v988 = vmul.f32 %v874, %v958
        %v989 = vmul.f32 %v875, %v958
        %v990 = vmul.f32 %v876, %v958
        %v991 = vadd.f32 %v923, %v959
        %v992 = vadd.f32 %v924, %v960
        %v993 = vadd.f32 %v925, %v961
        %v994 = vadd.f32 %v926, %v962
        %v995 = vadd.f32 %v927, %v963
        %v996 = vadd.f32 %v928, %v964
        %v997 = vadd.f32 %v929, %v965
        %v998 = vadd.f32 %v930, %v966
        %v999 = vadd.f32 %v931, %v967
        %v1000 = vadd.f32 %v932, %v968
        %v1001 = vadd.f32 %v933, %v969
        %v1002 = vadd.f32 %v934, %v970
        %v1003 = vadd.f32 %v935, %v971
        %v1004 = vadd.f32 %v936, %v972
        %v1005 = vadd.f32 %v937, %v973
        %v1006 = vadd.f32 %v938, %v974
        %v1007 = vadd.f32 %v939, %v975
        %v1008 = vadd.f32 %v940, %v976
        %v1009 = vadd.f32 %v941, %v977
        %v1010 = vadd.f32 %v942, %v978
        %v1011 = vadd.f32 %v943, %v979
        %v1012 = vadd.f32 %v944, %v980
        %v1013 = vadd.f32 %v945, %v981
        %v1014 = vadd.f32 %v946, %v982
        %v1015 = vadd.f32 %v947, %v983
        %v1016 = vadd.f32 %v948, %v984
        %v1017 = vadd.f32 %v949, %v985
        %v1018 = vadd.f32 %v950, %v986
        %v1019 = vadd.f32 %v951, %v987
        %v1020 = vadd.f32 %v952, %v988
        %v1021 = vadd.f32 %v953, %v989
        %v1022 = vadd.f32 %v954, %v990
        %v1023 = vlaneseq
        %v1024 = vshrl.u32 %v1023, 7
        %v1025 = vsub.s32 0, %v1024
        %v1026 = vrot.slane %v838, %v1025
        %v1027 = vmul.f32 %v847, %v1026
        %v1028 = vmul.f32 %v848, %v1026
        %v1029 = vmul.f32 %v849, %v1026
        %v1030 = vmul.f32 %v850, %v1026
        %v1031 = vmul.f32 %v851, %v1026
        %v1032 = vmul.f32 %v852, %v1026
        %v1033 = vmul.f32 %v853, %v1026
        %v1034 = vmul.f32 %v854, %v1026
        %v1035 = vmul.f32 %v855, %v1026
        %v1036 = vmul.f32 %v856, %v1026
        %v1037 = vmul.f32 %v857, %v1026
        %v1038 = vmul.f32 %v858, %v1026
        %v1039 = vmul.f32 %v859, %v1026
        %v1040 = vmul.f32 %v860, %v1026
        %v1041 = vmul.f32 %v861, %v1026
        %v1042 = vmul.f32 %v862, %v1026
        %v1043 = vmul.f32 %v863, %v1026
        %v1044 = vmul.f32 %v864, %v1026
        %v1045 = vmul.f32 %v865, %v1026
        %v1046 = vmul.f32 %v866, %v1026
        %v1047 = vmul.f32 %v867, %v1026
        %v1048 = vmul.f32 %v868, %v1026
        %v1049 = vmul.f32 %v869, %v1026
        %v1050 = vmul.f32 %v870, %v1026
        %v1051 = vmul.f32 %v871, %v1026
        %v1052 = vmul.f32 %v872, %v1026
        %v1053 = vmul.f32 %v873, %v1026
        %v1054 = vmul.f32 %v874, %v1026
        %v1055 = vmul.f32 %v875, %v1026
        %v1056 = vmul.f32 %v876, %v1026
        %v1057 = vmul.f32 %v877, %v1026
        %v1058 = vmul.f32 %v878, %v1026
        %v1059 = vadd.f32 %v991, %v1027
        %v1060 = vadd.f32 %v992, %v1028
        %v1061 = vadd.f32 %v993, %v1029
        %v1062 = vadd.f32 %v994, %v1030
        %v1063 = vadd.f32 %v995, %v1031
        %v1064 = vadd.f32 %v996, %v1032
        %v1065 = vadd.f32 %v997, %v1033
        %v1066 = vadd.f32 %v998, %v1034
        %v1067 = vadd.f32 %v999, %v1035
        %v1068 = vadd.f32 %v1000, %v1036
        %v1069 = vadd.f32 %v1001, %v1037
        %v1070 = vadd.f32 %v1002, %v1038
        %v1071 = vadd.f32 %v1003, %v1039
        %v1072 = vadd.f32 %v1004, %v1040
        %v1073 = vadd.f32 %v1005, %v1041
        %v1074 = vadd.f32 %v1006, %v1042
        %v1075 = vadd.f32 %v1007, %v1043
        %v1076 = vadd.f32 %v1008, %v1044
        %v1077 = vadd.f32 %v1009, %v1045
        %v1078 = vadd.f32 %v1010, %v1046
        %v1079 = vadd.f32 %v1011, %v1047
        %v1080 = vadd.f32 %v1012, %v1048
        %v1081 = vadd.f32 %v1013, %v1049
        %v1082 = vadd.f32 %v1014, %v1050
        %v1083 = vadd.f32 %v1015, %v1051
        %v1084 = vadd.f32 %v1016, %v1052
        %v1085 = vadd.f32 %v1017, %v1053
        %v1086 = vadd.f32 %v1018, %v1054
        %v1087 = vadd.f32 %v1019, %v1055
        %v1088 = vadd.f32 %v1020, %v1056
        %v1089 = vadd.f32 %v1021, %v1057
        %v1090 = vadd.f32 %v1022, %v1058
        %v1091 = vlaneseq
        %v1092 = vshrl.u32 %v1091, 7
        %v1093 = vsub.s32 0, %v1092
        %v1094 = vrot.slane %v839, %v1093
        %v1095 = vmul.f32 %v849, %v1094
        %v1096 = vmul.f32 %v850, %v1094
        %v1097 = vmul.f32 %v851, %v1094
        %v1098 = vmul.f32 %v852, %v1094
        %v1099 = vmul.f32 %v853, %v1094
        %v1100 = vmul.f32 %v854, %v1094
        %v1101 = vmul.f32 %v855, %v1094
        %v1102 = vmul.f32 %v856, %v1094
        %v1103 = vmul.f32 %v857, %v1094
        %v1104 = vmul.f32 %v858, %v1094
        %v1105 = vmul.f32 %v859, %v1094
        %v1106 = vmul.f32 %v860, %v1094
        %v1107 = vmul.f32 %v861, %v1094
        %v1108 = vmul.f32 %v862, %v1094
        %v1109 = vmul.f32 %v863, %v1094
        %v1110 = vmul.f32 %v864, %v1094
        %v1111 = vmul.f32 %v865, %v1094
        %v1112 = vmul.f32 %v866, %v1094
        %v1113 = vmul.f32 %v867, %v1094
        %v1114 = vmul.f32 %v868, %v1094
        %v1115 = vmul.f32 %v869, %v1094
        %v1116 = vmul.f32 %v870, %v1094
        %v1117 = vmul.f32 %v871, %v1094
        %v1118 = vmul.f32 %v872, %v1094
        %v1119 = vmul.f32 %v873, %v1094
        %v1120 = vmul.f32 %v874, %v1094
        %v1121 = vmul.f32 %v875, %v1094
        %v1122 = vmul.f32 %v876, %v1094
        %v1123 = vmul.f32 %v877, %v1094
        %v1124 = vmul.f32 %v878, %v1094
        %v1125 = vmul.f32 %v879, %v1094
        %v1126 = vmul.f32 %v880, %v1094
        %v1127 = vadd.f32 %v1059, %v1095
        %v1128 = vadd.f32 %v1060, %v1096
        %v1129 = vadd.f32 %v1061, %v1097
        %v1130 = vadd.f32 %v1062, %v1098
        %v1131 = vadd.f32 %v1063, %v1099
        %v1132 = vadd.f32 %v1064, %v1100
        %v1133 = vadd.f32 %v1065, %v1101
        %v1134 = vadd.f32 %v1066, %v1102
        %v1135 = vadd.f32 %v1067, %v1103
        %v1136 = vadd.f32 %v1068, %v1104
        %v1137 = vadd.f32 %v1069, %v1105
        %v1138 = vadd.f32 %v1070, %v1106
        %v1139 = vadd.f32 %v1071, %v1107
        %v1140 = vadd.f32 %v1072, %v1108
        %v1141 = vadd.f32 %v1073, %v1109
        %v1142 = vadd.f32 %v1074, %v1110
        %v1143 = vadd.f32 %v1075, %v1111
        %v1144 = vadd.f32 %v1076, %v1112
        %v1145 = vadd.f32 %v1077, %v1113
        %v1146 = vadd.f32 %v1078, %v1114
        %v1147 = vadd.f32 %v1079, %v1115
        %v1148 = vadd.f32 %v1080, %v1116
        %v1149 = vadd.f32 %v1081, %v1117
        %v1150 = vadd.f32 %v1082, %v1118
        %v1151 = vadd.f32 %v1083, %v1119
        %v1152 = vadd.f32 %v1084, %v1120
        %v1153 = vadd.f32 %v1085, %v1121
        %v1154 = vadd.f32 %v1086, %v1122
        %v1155 = vadd.f32 %v1087, %v1123
        %v1156 = vadd.f32 %v1088, %v1124
        %v1157 = vadd.f32 %v1089, %v1125
        %v1158 = vadd.f32 %v1090, %v1126
        %v1159 = vlaneseq
        %v1160 = vshrl.u32 %v1159, 7
        %v1161 = vsub.s32 0, %v1160
        %v1162 = vrot.slane %v840, %v1161
        %v1163 = vmul.f32 %v851, %v1162
        %v1164 = vmul.f32 %v852, %v1162
        %v1165 = vmul.f32 %v853, %v1162
        %v1166 = vmul.f32 %v854, %v1162
        %v1167 = vmul.f32 %v855, %v1162
        %v1168 = vmul.f32 %v856, %v1162
        %v1169 = vmul.f32 %v857, %v1162
        %v1170 = vmul.f32 %v858, %v1162
        %v1171 = vmul.f32 %v859, %v1162
        %v1172 = vmul.f32 %v860, %v1162
        %v1173 = vmul.f32 %v861, %v1162
        %v1174 = vmul.f32 %v862, %v1162
        %v1175 = vmul.f32 %v863, %v1162
        %v1176 = vmul.f32 %v864, %v1162
        %v1177 = vmul.f32 %v865, %v1162
        %v1178 = vmul.f32 %v866, %v1162
        %v1179 = vmul.f32 %v867, %v1162
        %v1180 = vmul.f32 %v868, %v1162
        %v1181 = vmul.f32 %v869, %v1162
        %v1182 = vmul.f32 %v870, %v1162
        %v1183 = vmul.f32 %v871, %v1162
        %v1184 = vmul.f32 %v872, %v1162
        %v1185 = vmul.f32 %v873, %v1162
        %v1186 = vmul.f32 %v874, %v1162
        %v1187 = vmul.f32 %v875, %v1162
        %v1188 = vmul.f32 %v876, %v1162
        %v1189 = vmul.f32 %v877, %v1162
        %v1190 = vmul.f32 %v878, %v1162
        %v1191 = vmul.f32 %v879, %v1162
        %v1192 = vmul.f32 %v880, %v1162
        %v1193 = vmul.f32 %v881, %v1162
        %v1194 = vmul.f32 %v882, %v1162
        %v1195 = vadd.f32 %v1127, %v1163
        %v1196 = vadd.f32 %v1128, %v1164
        %v1197 = vadd.f32 %v1129, %v1165
        %v1198 = vadd.f32 %v1130, %v1166
        %v1199 = vadd.f32 %v1131, %v1167
        %v1200 = vadd.f32 %v1132, %v1168
        %v1201 = vadd.f32 %v1133, %v1169
        %v1202 = vadd.f32 %v1134, %v1170
        %v1203 = vadd.f32 %v1135, %v1171
        %v1204 = vadd.f32 %v1136, %v1172
        %v1205 = vadd.f32 %v1137, %v1173
        %v1206 = vadd.f32 %v1138, %v1174
        %v1207 = vadd.f32 %v1139, %v1175
        %v1208 = vadd.f32 %v1140, %v1176
        %v1209 = vadd.f32 %v1141, %v1177
        %v1210 = vadd.f32 %v1142, %v1178
        %v1211 = vadd.f32 %v1143, %v1179
        %v1212 = vadd.f32 %v1144, %v1180
        %v1213 = vadd.f32 %v1145, %v1181
        %v1214 = vadd.f32 %v1146, %v1182
        %v1215 = vadd.f32 %v1147, %v1183
        %v1216 = vadd.f32 %v1148, %v1184
        %v1217 = vadd.f32 %v1149, %v1185
        %v1218 = vadd.f32 %v1150, %v1186
        %v1219 = vadd.f32 %v1151, %v1187
        %v1220 = vadd.f32 %v1152, %v1188
        %v1221 = vadd.f32 %v1153, %v1189
        %v1222 = vadd.f32 %v1154, %v1190
        %v1223 = vadd.f32 %v1155, %v1191
        %v1224 = vadd.f32 %v1156, %v1192
        %v1225 = vadd.f32 %v1157, %v1193
        %v1226 = vadd.f32 %v1158, %v1194
        %v1227 = vlaneseq
        %v1228 = vshrl.u32 %v1227, 7
        %v1229 = vsub.s32 0, %v1228
        %v1230 = vrot.slane %v841, %v1229
        %v1231 = vmul.f32 %v853, %v1230
        %v1232 = vmul.f32 %v854, %v1230
        %v1233 = vmul.f32 %v855, %v1230
        %v1234 = vmul.f32 %v856, %v1230
        %v1235 = vmul.f32 %v857, %v1230
        %v1236 = vmul.f32 %v858, %v1230
        %v1237 = vmul.f32 %v859, %v1230
        %v1238 = vmul.f32 %v860, %v1230
        %v1239 = vmul.f32 %v861, %v1230
        %v1240 = vmul.f32 %v862, %v1230
        %v1241 = vmul.f32 %v863, %v1230
        %v1242 = vmul.f32 %v864, %v1230
        %v1243 = vmul.f32 %v865, %v1230
        %v1244 = vmul.f32 %v866, %v1230
        %v1245 = vmul.f32 %v867, %v1230
        %v1246 = vmul.f32 %v868, %v1230
        %v1247 = vmul.f32 %v869, %v1230
        %v1248 = vmul.f32 %v870, %v1230
        %v1249 = vmul.f32 %v871, %v1230
        %v1250 = vmul.f32 %v872, %v1230
        %v1251 = vmul.f32 %v873, %v1230
        %v1252 = vmul.f32 %v874, %v1230
        %v1253 = vmul.f32 %v875, %v1230
        %v1254 = vmul.f32 %v876, %v1230
        %v1255 = vmul.f32 %v877, %v1230
        %v1256 = vmul.f32 %v878, %v1230
        %v1257 = vmul.f32 %v879, %v1230
        %v1258 = vmul.f32 %v880, %v1230
        %v1259 = vmul.f32 %v881, %v1230
        %v1260 = vmul.f32 %v882, %v1230
        %v1261 = vmul.f32 %v883, %v1230
        %v1262 = vmul.f32 %v884, %v1230
        %v1263 = vadd.f32 %v1195, %v1231
        %v1264 = vadd.f32 %v1196, %v1232
        %v1265 = vadd.f32 %v1197, %v1233
        %v1266 = vadd.f32 %v1198, %v1234
        %v1267 = vadd.f32 %v1199, %v1235
        %v1268 = vadd.f32 %v1200, %v1236
        %v1269 = vadd.f32 %v1201, %v1237
        %v1270 = vadd.f32 %v1202, %v1238
        %v1271 = vadd.f32 %v1203, %v1239
        %v1272 = vadd.f32 %v1204, %v1240
        %v1273 = vadd.f32 %v1205, %v1241
        %v1274 = vadd.f32 %v1206, %v1242
        %v1275 = vadd.f32 %v1207, %v1243
        %v1276 = vadd.f32 %v1208, %v1244
        %v1277 = vadd.f32 %v1209, %v1245
        %v1278 = vadd.f32 %v1210, %v1246
        %v1279 = vadd.f32 %v1211, %v1247
        %v1280 = vadd.f32 %v1212, %v1248
        %v1281 = vadd.f32 %v1213, %v1249
        %v1282 = vadd.f32 %v1214, %v1250
        %v1283 = vadd.f32 %v1215, %v1251
        %v1284 = vadd.f32 %v1216, %v1252
        %v1285 = vadd.f32 %v1217, %v1253
        %v1286 = vadd.f32 %v1218, %v1254
        %v1287 = vadd.f32 %v1219, %v1255
        %v1288 = vadd.f32 %v1220, %v1256
        %v1289 = vadd.f32 %v1221, %v1257
        %v1290 = vadd.f32 %v1222, %v1258
        %v1291 = vadd.f32 %v1223, %v1259
        %v1292 = vadd.f32 %v1224, %v1260
        %v1293 = vadd.f32 %v1225, %v1261
        %v1294 = vadd.f32 %v1226, %v1262
        %v1295 = vlaneseq
        %v1296 = vshrl.u32 %v1295, 7
        %v1297 = vsub.s32 0, %v1296
        %v1298 = vrot.slane %v842, %v1297
        %v1299 = vmul.f32 %v855, %v1298
        %v1300 = vmul.f32 %v856, %v1298
        %v1301 = vmul.f32 %v857, %v1298
        %v1302 = vmul.f32 %v858, %v1298
        %v1303 = vmul.f32 %v859, %v1298
        %v1304 = vmul.f32 %v860, %v1298
        %v1305 = vmul.f32 %v861, %v1298
        %v1306 = vmul.f32 %v862, %v1298
        %v1307 = vmul.f32 %v863, %v1298
        %v1308 = vmul.f32 %v864, %v1298
        %v1309 = vmul.f32 %v865, %v1298
        %v1310 = vmul.f32 %v866, %v1298
        %v1311 = vmul.f32 %v867, %v1298
        %v1312 = vmul.f32 %v868, %v1298
        %v1313 = vmul.f32 %v869, %v1298
        %v1314 = vmul.f32 %v870, %v1298
        %v1315 = vmul.f32 %v871, %v1298
        %v1316 = vmul.f32 %v872, %v1298
        %v1317 = vmul.f32 %v873, %v1298
        %v1318 = vmul.f32 %v874, %v1298
        %v1319 = vmul.f32 %v875, %v1298
        %v1320 = vmul.f32 %v876, %v1298
        %v1321 = vmul.f32 %v877, %v1298
        %v1322 = vmul.f32 %v878, %v1298
        %v1323 = vmul.f32 %v879, %v1298
        %v1324 = vmul.f32 %v880, %v1298
        %v1325 = vmul.f32 %v881, %v1298
        %v1326 = vmul.f32 %v882, %v1298
        %v1327 = vmul.f32 %v883, %v1298
        %v1328 = vmul.f32 %v884, %v1298
        %v1329 = vmul.f32 %v885, %v1298
        %v1330 = vmul.f32 %v886, %v1298
        %v1331 = vadd.f32 %v1263, %v1299
        %v1332 = vadd.f32 %v1264, %v1300
        %v1333 = vadd.f32 %v1265, %v1301
        %v1334 = vadd.f32 %v1266, %v1302
        %v1335 = vadd.f32 %v1267, %v1303
        %v1336 = vadd.f32 %v1268, %v1304
        %v1337 = vadd.f32 %v1269, %v1305
        %v1338 = vadd.f32 %v1270, %v1306
        %v1339 = vadd.f32 %v1271, %v1307
        %v1340 = vadd.f32 %v1272, %v1308
        %v1341 = vadd.f32 %v1273, %v1309
        %v1342 = vadd.f32 %v1274, %v1310
        %v1343 = vadd.f32 %v1275, %v1311
        %v1344 = vadd.f32 %v1276, %v1312
        %v1345 = vadd.f32 %v1277, %v1313
        %v1346 = vadd.f32 %v1278, %v1314
        %v1347 = vadd.f32 %v1279, %v1315
        %v1348 = vadd.f32 %v1280, %v1316
        %v1349 = vadd.f32 %v1281, %v1317
        %v1350 = vadd.f32 %v1282, %v1318
        %v1351 = vadd.f32 %v1283, %v1319
        %v1352 = vadd.f32 %v1284, %v1320
        %v1353 = vadd.f32 %v1285, %v1321
        %v1354 = vadd.f32 %v1286, %v1322
        %v1355 = vadd.f32 %v1287, %v1323
        %v1356 = vadd.f32 %v1288, %v1324
        %v1357 = vadd.f32 %v1289, %v1325
        %v1358 = vadd.f32 %v1290, %v1326
        %v1359 = vadd.f32 %v1291, %v1327
        %v1360 = vadd.f32 %v1292, %v1328
        %v1361 = vadd.f32 %v1293, %v1329
        %v1362 = vadd.f32 %v1294, %v1330
        %v1363 = vld [vmem:[%s590 + $0x1] sm:$0xff]
        %v1364 = vld [vmem:[%s590 + $0x9] sm:$0xff]
        %v1365 = vld [vmem:[%s590 + $0x19] sm:$0xff]
        %v1366 = vld [vmem:[%s590 + $0x21] sm:$0xff]
        %v1367 = vld [vmem:[%s590 + $0x31] sm:$0xff]
        %v1368 = vld [vmem:[%s590 + $0x39] sm:$0xff]
        %v1369 = vld [vmem:[%s590 + $0x49] sm:$0xff]
        %v1370 = vld [vmem:[%s590 + $0x51] sm:$0xff]
        %v1371 = vld [vmem:[%s590 + $0x61] sm:$0xff]
        %v1372 = vld [vmem:[%s590 + $0x69] sm:$0xff]
        %v1373 = vld [vmem:[%s590 + $0x79] sm:$0xff]
        %v1374 = vld [vmem:[%s590 + $0x81] sm:$0xff]
        %v1375 = vld [vmem:[%s590 + $0x91] sm:$0xff]
        %v1376 = vld [vmem:[%s590 + $0x99] sm:$0xff]
        %v1377 = vld [vmem:[%s590 + $0xa9] sm:$0xff]
        %v1378 = vld [vmem:[%s590 + $0xb1] sm:$0xff]
        %v1379 = vld [vmem:[%s590 + $0xc1] sm:$0xff]
        %v1380 = vld [vmem:[%s590 + $0xc9] sm:$0xff]
        %v1381 = vld [vmem:[%s590 + $0xd9] sm:$0xff]
        %v1382 = vld [vmem:[%s590 + $0xe1] sm:$0xff]
        %v1383 = vld [vmem:[%s590 + $0xf1] sm:$0xff]
        %v1384 = vld [vmem:[%s590 + $0xf9] sm:$0xff]
        %v1385 = vld [vmem:[%s590 + $0x109] sm:$0xff]
        %v1386 = vld [vmem:[%s590 + $0x111] sm:$0xff]
        %v1387 = vld [vmem:[%s590 + $0x121] sm:$0xff]
        %v1388 = vld [vmem:[%s590 + $0x129] sm:$0xff]
        %v1389 = vld [vmem:[%s590 + $0x139] sm:$0xff]
        %v1390 = vld [vmem:[%s590 + $0x141] sm:$0xff]
        %v1391 = vld [vmem:[%s590 + $0x151] sm:$0xff]
        %v1392 = vld [vmem:[%s590 + $0x159] sm:$0xff]
        %v1393 = vld [vmem:[%s590 + $0x169] sm:$0xff]
        %v1394 = vld [vmem:[%s590 + $0x171] sm:$0xff]
        %v1395 = vld [vmem:[%s590 + $0x181] sm:$0xff]
        %v1396 = vld [vmem:[%s590 + $0x189] sm:$0xff]
        %v1397 = vld [vmem:[%s590 + $0x199] sm:$0xff]
        %v1398 = vld [vmem:[%s590 + $0x1a1] sm:$0xff]
        %v1399 = vld [vmem:[%s590 + $0x1b1] sm:$0xff]
        %v1400 = vld [vmem:[%s590 + $0x1b9] sm:$0xff]
        %v1401 = vld [vmem:[%s590 + $0x1c9] sm:$0xff]
        %v1402 = vld [vmem:[%s590 + $0x1d1] sm:$0xff]
        %v1403 = vld [vmem:[%s590 + $0x1e1] sm:$0xff]
        %v1404 = vld [vmem:[%s590 + $0x1e9] sm:$0xff]
        %v1405 = vld [vmem:[%s590 + $0x1f9] sm:$0xff]
        %v1406 = vld [vmem:[%s590 + $0x201] sm:$0xff]
        %v1407 = vlaneseq
        %v1408 = vshrl.u32 %v1407, 7
        %v1409 = vsub.s32 1, %v1408
        %v1410 = vrot.slane %v836, %v1409
        %v1411 = vmul.f32 %v1363, %v1410
        %v1412 = vmul.f32 %v1364, %v1410
        %v1413 = vmul.f32 %v1365, %v1410
        %v1414 = vmul.f32 %v1366, %v1410
        %v1415 = vmul.f32 %v1367, %v1410
        %v1416 = vmul.f32 %v1368, %v1410
        %v1417 = vmul.f32 %v1369, %v1410
        %v1418 = vmul.f32 %v1370, %v1410
        %v1419 = vmul.f32 %v1371, %v1410
        %v1420 = vmul.f32 %v1372, %v1410
        %v1421 = vmul.f32 %v1373, %v1410
        %v1422 = vmul.f32 %v1374, %v1410
        %v1423 = vmul.f32 %v1375, %v1410
        %v1424 = vmul.f32 %v1376, %v1410
        %v1425 = vmul.f32 %v1377, %v1410
        %v1426 = vmul.f32 %v1378, %v1410
        %v1427 = vmul.f32 %v1379, %v1410
        %v1428 = vmul.f32 %v1380, %v1410
        %v1429 = vmul.f32 %v1381, %v1410
        %v1430 = vmul.f32 %v1382, %v1410
        %v1431 = vmul.f32 %v1383, %v1410
        %v1432 = vmul.f32 %v1384, %v1410
        %v1433 = vmul.f32 %v1385, %v1410
        %v1434 = vmul.f32 %v1386, %v1410
        %v1435 = vmul.f32 %v1387, %v1410
        %v1436 = vmul.f32 %v1388, %v1410
        %v1437 = vmul.f32 %v1389, %v1410
        %v1438 = vmul.f32 %v1390, %v1410
        %v1439 = vmul.f32 %v1391, %v1410
        %v1440 = vmul.f32 %v1392, %v1410
        %v1441 = vmul.f32 %v1393, %v1410
        %v1442 = vmul.f32 %v1394, %v1410
        %v1443 = vadd.f32 %v1331, %v1411
        %v1444 = vadd.f32 %v1332, %v1412
        %v1445 = vadd.f32 %v1333, %v1413
        %v1446 = vadd.f32 %v1334, %v1414
        %v1447 = vadd.f32 %v1335, %v1415
        %v1448 = vadd.f32 %v1336, %v1416
        %v1449 = vadd.f32 %v1337, %v1417
        %v1450 = vadd.f32 %v1338, %v1418
        %v1451 = vadd.f32 %v1339, %v1419
        %v1452 = vadd.f32 %v1340, %v1420
        %v1453 = vadd.f32 %v1341, %v1421
        %v1454 = vadd.f32 %v1342, %v1422
        %v1455 = vadd.f32 %v1343, %v1423
        %v1456 = vadd.f32 %v1344, %v1424
        %v1457 = vadd.f32 %v1345, %v1425
        %v1458 = vadd.f32 %v1346, %v1426
        %v1459 = vadd.f32 %v1347, %v1427
        %v1460 = vadd.f32 %v1348, %v1428
        %v1461 = vadd.f32 %v1349, %v1429
        %v1462 = vadd.f32 %v1350, %v1430
        %v1463 = vadd.f32 %v1351, %v1431
        %v1464 = vadd.f32 %v1352, %v1432
        %v1465 = vadd.f32 %v1353, %v1433
        %v1466 = vadd.f32 %v1354, %v1434
        %v1467 = vadd.f32 %v1355, %v1435
        %v1468 = vadd.f32 %v1356, %v1436
        %v1469 = vadd.f32 %v1357, %v1437
        %v1470 = vadd.f32 %v1358, %v1438
        %v1471 = vadd.f32 %v1359, %v1439
        %v1472 = vadd.f32 %v1360, %v1440
        %v1473 = vadd.f32 %v1361, %v1441
        %v1474 = vadd.f32 %v1362, %v1442
        %v1475 = vlaneseq
        %v1476 = vshrl.u32 %v1475, 7
        %v1477 = vsub.s32 1, %v1476
        %v1478 = vrot.slane %v837, %v1477
        %v1479 = vmul.f32 %v1365, %v1478
        %v1480 = vmul.f32 %v1366, %v1478
        %v1481 = vmul.f32 %v1367, %v1478
        %v1482 = vmul.f32 %v1368, %v1478
        %v1483 = vmul.f32 %v1369, %v1478
        %v1484 = vmul.f32 %v1370, %v1478
        %v1485 = vmul.f32 %v1371, %v1478
        %v1486 = vmul.f32 %v1372, %v1478
        %v1487 = vmul.f32 %v1373, %v1478
        %v1488 = vmul.f32 %v1374, %v1478
        %v1489 = vmul.f32 %v1375, %v1478
        %v1490 = vmul.f32 %v1376, %v1478
        %v1491 = vmul.f32 %v1377, %v1478
        %v1492 = vmul.f32 %v1378, %v1478
        %v1493 = vmul.f32 %v1379, %v1478
        %v1494 = vmul.f32 %v1380, %v1478
        %v1495 = vmul.f32 %v1381, %v1478
        %v1496 = vmul.f32 %v1382, %v1478
        %v1497 = vmul.f32 %v1383, %v1478
        %v1498 = vmul.f32 %v1384, %v1478
        %v1499 = vmul.f32 %v1385, %v1478
        %v1500 = vmul.f32 %v1386, %v1478
        %v1501 = vmul.f32 %v1387, %v1478
        %v1502 = vmul.f32 %v1388, %v1478
        %v1503 = vmul.f32 %v1389, %v1478
        %v1504 = vmul.f32 %v1390, %v1478
        %v1505 = vmul.f32 %v1391, %v1478
        %v1506 = vmul.f32 %v1392, %v1478
        %v1507 = vmul.f32 %v1393, %v1478
        %v1508 = vmul.f32 %v1394, %v1478
        %v1509 = vmul.f32 %v1395, %v1478
        %v1510 = vmul.f32 %v1396, %v1478
        %v1511 = vadd.f32 %v1443, %v1479
        %v1512 = vadd.f32 %v1444, %v1480
        %v1513 = vadd.f32 %v1445, %v1481
        %v1514 = vadd.f32 %v1446, %v1482
        %v1515 = vadd.f32 %v1447, %v1483
        %v1516 = vadd.f32 %v1448, %v1484
        %v1517 = vadd.f32 %v1449, %v1485
        %v1518 = vadd.f32 %v1450, %v1486
        %v1519 = vadd.f32 %v1451, %v1487
        %v1520 = vadd.f32 %v1452, %v1488
        %v1521 = vadd.f32 %v1453, %v1489
        %v1522 = vadd.f32 %v1454, %v1490
        %v1523 = vadd.f32 %v1455, %v1491
        %v1524 = vadd.f32 %v1456, %v1492
        %v1525 = vadd.f32 %v1457, %v1493
        %v1526 = vadd.f32 %v1458, %v1494
        %v1527 = vadd.f32 %v1459, %v1495
        %v1528 = vadd.f32 %v1460, %v1496
        %v1529 = vadd.f32 %v1461, %v1497
        %v1530 = vadd.f32 %v1462, %v1498
        %v1531 = vadd.f32 %v1463, %v1499
        %v1532 = vadd.f32 %v1464, %v1500
        %v1533 = vadd.f32 %v1465, %v1501
        %v1534 = vadd.f32 %v1466, %v1502
        %v1535 = vadd.f32 %v1467, %v1503
        %v1536 = vadd.f32 %v1468, %v1504
        %v1537 = vadd.f32 %v1469, %v1505
        %v1538 = vadd.f32 %v1470, %v1506
        %v1539 = vadd.f32 %v1471, %v1507
        %v1540 = vadd.f32 %v1472, %v1508
        %v1541 = vadd.f32 %v1473, %v1509
        %v1542 = vadd.f32 %v1474, %v1510
        %v1543 = vlaneseq
        %v1544 = vshrl.u32 %v1543, 7
        %v1545 = vsub.s32 1, %v1544
        %v1546 = vrot.slane %v838, %v1545
        %v1547 = vmul.f32 %v1367, %v1546
        %v1548 = vmul.f32 %v1368, %v1546
        %v1549 = vmul.f32 %v1369, %v1546
        %v1550 = vmul.f32 %v1370, %v1546
        %v1551 = vmul.f32 %v1371, %v1546
        %v1552 = vmul.f32 %v1372, %v1546
        %v1553 = vmul.f32 %v1373, %v1546
        %v1554 = vmul.f32 %v1374, %v1546
        %v1555 = vmul.f32 %v1375, %v1546
        %v1556 = vmul.f32 %v1376, %v1546
        %v1557 = vmul.f32 %v1377, %v1546
        %v1558 = vmul.f32 %v1378, %v1546
        %v1559 = vmul.f32 %v1379, %v1546
        %v1560 = vmul.f32 %v1380, %v1546
        %v1561 = vmul.f32 %v1381, %v1546
        %v1562 = vmul.f32 %v1382, %v1546
        %v1563 = vmul.f32 %v1383, %v1546
        %v1564 = vmul.f32 %v1384, %v1546
        %v1565 = vmul.f32 %v1385, %v1546
        %v1566 = vmul.f32 %v1386, %v1546
        %v1567 = vmul.f32 %v1387, %v1546
        %v1568 = vmul.f32 %v1388, %v1546
        %v1569 = vmul.f32 %v1389, %v1546
        %v1570 = vmul.f32 %v1390, %v1546
        %v1571 = vmul.f32 %v1391, %v1546
        %v1572 = vmul.f32 %v1392, %v1546
        %v1573 = vmul.f32 %v1393, %v1546
        %v1574 = vmul.f32 %v1394, %v1546
        %v1575 = vmul.f32 %v1395, %v1546
        %v1576 = vmul.f32 %v1396, %v1546
        %v1577 = vmul.f32 %v1397, %v1546
        %v1578 = vmul.f32 %v1398, %v1546
        %v1579 = vadd.f32 %v1511, %v1547
        %v1580 = vadd.f32 %v1512, %v1548
        %v1581 = vadd.f32 %v1513, %v1549
        %v1582 = vadd.f32 %v1514, %v1550
        %v1583 = vadd.f32 %v1515, %v1551
        %v1584 = vadd.f32 %v1516, %v1552
        %v1585 = vadd.f32 %v1517, %v1553
        %v1586 = vadd.f32 %v1518, %v1554
        %v1587 = vadd.f32 %v1519, %v1555
        %v1588 = vadd.f32 %v1520, %v1556
        %v1589 = vadd.f32 %v1521, %v1557
        %v1590 = vadd.f32 %v1522, %v1558
        %v1591 = vadd.f32 %v1523, %v1559
        %v1592 = vadd.f32 %v1524, %v1560
        %v1593 = vadd.f32 %v1525, %v1561
        %v1594 = vadd.f32 %v1526, %v1562
        %v1595 = vadd.f32 %v1527, %v1563
        %v1596 = vadd.f32 %v1528, %v1564
        %v1597 = vadd.f32 %v1529, %v1565
        %v1598 = vadd.f32 %v1530, %v1566
        %v1599 = vadd.f32 %v1531, %v1567
        %v1600 = vadd.f32 %v1532, %v1568
        %v1601 = vadd.f32 %v1533, %v1569
        %v1602 = vadd.f32 %v1534, %v1570
        %v1603 = vadd.f32 %v1535, %v1571
        %v1604 = vadd.f32 %v1536, %v1572
        %v1605 = vadd.f32 %v1537, %v1573
        %v1606 = vadd.f32 %v1538, %v1574
        %v1607 = vadd.f32 %v1539, %v1575
        %v1608 = vadd.f32 %v1540, %v1576
        %v1609 = vadd.f32 %v1541, %v1577
        %v1610 = vadd.f32 %v1542, %v1578
        %v1611 = vlaneseq
        %v1612 = vshrl.u32 %v1611, 7
        %v1613 = vsub.s32 1, %v1612
        %v1614 = vrot.slane %v839, %v1613
        %v1615 = vmul.f32 %v1369, %v1614
        %v1616 = vmul.f32 %v1370, %v1614
        %v1617 = vmul.f32 %v1371, %v1614
        %v1618 = vmul.f32 %v1372, %v1614
        %v1619 = vmul.f32 %v1373, %v1614
        %v1620 = vmul.f32 %v1374, %v1614
        %v1621 = vmul.f32 %v1375, %v1614
        %v1622 = vmul.f32 %v1376, %v1614
        %v1623 = vmul.f32 %v1377, %v1614
        %v1624 = vmul.f32 %v1378, %v1614
        %v1625 = vmul.f32 %v1379, %v1614
        %v1626 = vmul.f32 %v1380, %v1614
        %v1627 = vmul.f32 %v1381, %v1614
        %v1628 = vmul.f32 %v1382, %v1614
        %v1629 = vmul.f32 %v1383, %v1614
        %v1630 = vmul.f32 %v1384, %v1614
        %v1631 = vmul.f32 %v1385, %v1614
        %v1632 = vmul.f32 %v1386, %v1614
        %v1633 = vmul.f32 %v1387, %v1614
        %v1634 = vmul.f32 %v1388, %v1614
        %v1635 = vmul.f32 %v1389, %v1614
        %v1636 = vmul.f32 %v1390, %v1614
        %v1637 = vmul.f32 %v1391, %v1614
        %v1638 = vmul.f32 %v1392, %v1614
        %v1639 = vmul.f32 %v1393, %v1614
        %v1640 = vmul.f32 %v1394, %v1614
        %v1641 = vmul.f32 %v1395, %v1614
        %v1642 = vmul.f32 %v1396, %v1614
        %v1643 = vmul.f32 %v1397, %v1614
        %v1644 = vmul.f32 %v1398, %v1614
        %v1645 = vmul.f32 %v1399, %v1614
        %v1646 = vmul.f32 %v1400, %v1614
        %v1647 = vadd.f32 %v1579, %v1615
        %v1648 = vadd.f32 %v1580, %v1616
        %v1649 = vadd.f32 %v1581, %v1617
        %v1650 = vadd.f32 %v1582, %v1618
        %v1651 = vadd.f32 %v1583, %v1619
        %v1652 = vadd.f32 %v1584, %v1620
        %v1653 = vadd.f32 %v1585, %v1621
        %v1654 = vadd.f32 %v1586, %v1622
        %v1655 = vadd.f32 %v1587, %v1623
        %v1656 = vadd.f32 %v1588, %v1624
        %v1657 = vadd.f32 %v1589, %v1625
        %v1658 = vadd.f32 %v1590, %v1626
        %v1659 = vadd.f32 %v1591, %v1627
        %v1660 = vadd.f32 %v1592, %v1628
        %v1661 = vadd.f32 %v1593, %v1629
        %v1662 = vadd.f32 %v1594, %v1630
        %v1663 = vadd.f32 %v1595, %v1631
        %v1664 = vadd.f32 %v1596, %v1632
        %v1665 = vadd.f32 %v1597, %v1633
        %v1666 = vadd.f32 %v1598, %v1634
        %v1667 = vadd.f32 %v1599, %v1635
        %v1668 = vadd.f32 %v1600, %v1636
        %v1669 = vadd.f32 %v1601, %v1637
        %v1670 = vadd.f32 %v1602, %v1638
        %v1671 = vadd.f32 %v1603, %v1639
        %v1672 = vadd.f32 %v1604, %v1640
        %v1673 = vadd.f32 %v1605, %v1641
        %v1674 = vadd.f32 %v1606, %v1642
        %v1675 = vadd.f32 %v1607, %v1643
        %v1676 = vadd.f32 %v1608, %v1644
        %v1677 = vadd.f32 %v1609, %v1645
        %v1678 = vadd.f32 %v1610, %v1646
        %v1679 = vlaneseq
        %v1680 = vshrl.u32 %v1679, 7
        %v1681 = vsub.s32 1, %v1680
        %v1682 = vrot.slane %v840, %v1681
        %v1683 = vmul.f32 %v1371, %v1682
        %v1684 = vmul.f32 %v1372, %v1682
        %v1685 = vmul.f32 %v1373, %v1682
        %v1686 = vmul.f32 %v1374, %v1682
        %v1687 = vmul.f32 %v1375, %v1682
        %v1688 = vmul.f32 %v1376, %v1682
        %v1689 = vmul.f32 %v1377, %v1682
        %v1690 = vmul.f32 %v1378, %v1682
        %v1691 = vmul.f32 %v1379, %v1682
        %v1692 = vmul.f32 %v1380, %v1682
        %v1693 = vmul.f32 %v1381, %v1682
        %v1694 = vmul.f32 %v1382, %v1682
        %v1695 = vmul.f32 %v1383, %v1682
        %v1696 = vmul.f32 %v1384, %v1682
        %v1697 = vmul.f32 %v1385, %v1682
        %v1698 = vmul.f32 %v1386, %v1682
        %v1699 = vmul.f32 %v1387, %v1682
        %v1700 = vmul.f32 %v1388, %v1682
        %v1701 = vmul.f32 %v1389, %v1682
        %v1702 = vmul.f32 %v1390, %v1682
        %v1703 = vmul.f32 %v1391, %v1682
        %v1704 = vmul.f32 %v1392, %v1682
        %v1705 = vmul.f32 %v1393, %v1682
        %v1706 = vmul.f32 %v1394, %v1682
        %v1707 = vmul.f32 %v1395, %v1682
        %v1708 = vmul.f32 %v1396, %v1682
        %v1709 = vmul.f32 %v1397, %v1682
        %v1710 = vmul.f32 %v1398, %v1682
        %v1711 = vmul.f32 %v1399, %v1682
        %v1712 = vmul.f32 %v1400, %v1682
        %v1713 = vmul.f32 %v1401, %v1682
        %v1714 = vmul.f32 %v1402, %v1682
        %v1715 = vadd.f32 %v1647, %v1683
        %v1716 = vadd.f32 %v1648, %v1684
        %v1717 = vadd.f32 %v1649, %v1685
        %v1718 = vadd.f32 %v1650, %v1686
        %v1719 = vadd.f32 %v1651, %v1687
        %v1720 = vadd.f32 %v1652, %v1688
        %v1721 = vadd.f32 %v1653, %v1689
        %v1722 = vadd.f32 %v1654, %v1690
        %v1723 = vadd.f32 %v1655, %v1691
        %v1724 = vadd.f32 %v1656, %v1692
        %v1725 = vadd.f32 %v1657, %v1693
        %v1726 = vadd.f32 %v1658, %v1694
        %v1727 = vadd.f32 %v1659, %v1695
        %v1728 = vadd.f32 %v1660, %v1696
        %v1729 = vadd.f32 %v1661, %v1697
        %v1730 = vadd.f32 %v1662, %v1698
        %v1731 = vadd.f32 %v1663, %v1699
        %v1732 = vadd.f32 %v1664, %v1700
        %v1733 = vadd.f32 %v1665, %v1701
        %v1734 = vadd.f32 %v1666, %v1702
        %v1735 = vadd.f32 %v1667, %v1703
        %v1736 = vadd.f32 %v1668, %v1704
        %v1737 = vadd.f32 %v1669, %v1705
        %v1738 = vadd.f32 %v1670, %v1706
        %v1739 = vadd.f32 %v1671, %v1707
        %v1740 = vadd.f32 %v1672, %v1708
        %v1741 = vadd.f32 %v1673, %v1709
        %v1742 = vadd.f32 %v1674, %v1710
        %v1743 = vadd.f32 %v1675, %v1711
        %v1744 = vadd.f32 %v1676, %v1712
        %v1745 = vadd.f32 %v1677, %v1713
        %v1746 = vadd.f32 %v1678, %v1714
        %v1747 = vlaneseq
        %v1748 = vshrl.u32 %v1747, 7
        %v1749 = vsub.s32 1, %v1748
        %v1750 = vrot.slane %v841, %v1749
        %v1751 = vmul.f32 %v1373, %v1750
        %v1752 = vmul.f32 %v1374, %v1750
        %v1753 = vmul.f32 %v1375, %v1750
        %v1754 = vmul.f32 %v1376, %v1750
        %v1755 = vmul.f32 %v1377, %v1750
        %v1756 = vmul.f32 %v1378, %v1750
        %v1757 = vmul.f32 %v1379, %v1750
        %v1758 = vmul.f32 %v1380, %v1750
        %v1759 = vmul.f32 %v1381, %v1750
        %v1760 = vmul.f32 %v1382, %v1750
        %v1761 = vmul.f32 %v1383, %v1750
        %v1762 = vmul.f32 %v1384, %v1750
        %v1763 = vmul.f32 %v1385, %v1750
        %v1764 = vmul.f32 %v1386, %v1750
        %v1765 = vmul.f32 %v1387, %v1750
        %v1766 = vmul.f32 %v1388, %v1750
        %v1767 = vmul.f32 %v1389, %v1750
        %v1768 = vmul.f32 %v1390, %v1750
        %v1769 = vmul.f32 %v1391, %v1750
        %v1770 = vmul.f32 %v1392, %v1750
        %v1771 = vmul.f32 %v1393, %v1750
        %v1772 = vmul.f32 %v1394, %v1750
        %v1773 = vmul.f32 %v1395, %v1750
        %v1774 = vmul.f32 %v1396, %v1750
        %v1775 = vmul.f32 %v1397, %v1750
        %v1776 = vmul.f32 %v1398, %v1750
        %v1777 = vmul.f32 %v1399, %v1750
        %v1778 = vmul.f32 %v1400, %v1750
        %v1779 = vmul.f32 %v1401, %v1750
        %v1780 = vmul.f32 %v1402, %v1750
        %v1781 = vmul.f32 %v1403, %v1750
        %v1782 = vmul.f32 %v1404, %v1750
        %v1783 = vadd.f32 %v1715, %v1751
        %v1784 = vadd.f32 %v1716, %v1752
        %v1785 = vadd.f32 %v1717, %v1753
        %v1786 = vadd.f32 %v1718, %v1754
        %v1787 = vadd.f32 %v1719, %v1755
        %v1788 = vadd.f32 %v1720, %v1756
        %v1789 = vadd.f32 %v1721, %v1757
        %v1790 = vadd.f32 %v1722, %v1758
        %v1791 = vadd.f32 %v1723, %v1759
        %v1792 = vadd.f32 %v1724, %v1760
        %v1793 = vadd.f32 %v1725, %v1761
        %v1794 = vadd.f32 %v1726, %v1762
        %v1795 = vadd.f32 %v1727, %v1763
        %v1796 = vadd.f32 %v1728, %v1764
        %v1797 = vadd.f32 %v1729, %v1765
        %v1798 = vadd.f32 %v1730, %v1766
        %v1799 = vadd.f32 %v1731, %v1767
        %v1800 = vadd.f32 %v1732, %v1768
        %v1801 = vadd.f32 %v1733, %v1769
        %v1802 = vadd.f32 %v1734, %v1770
        %v1803 = vadd.f32 %v1735, %v1771
        %v1804 = vadd.f32 %v1736, %v1772
        %v1805 = vadd.f32 %v1737, %v1773
        %v1806 = vadd.f32 %v1738, %v1774
        %v1807 = vadd.f32 %v1739, %v1775
        %v1808 = vadd.f32 %v1740, %v1776
        %v1809 = vadd.f32 %v1741, %v1777
        %v1810 = vadd.f32 %v1742, %v1778
        %v1811 = vadd.f32 %v1743, %v1779
        %v1812 = vadd.f32 %v1744, %v1780
        %v1813 = vadd.f32 %v1745, %v1781
        %v1814 = vadd.f32 %v1746, %v1782
        %v1815 = vlaneseq
        %v1816 = vshrl.u32 %v1815, 7
        %v1817 = vsub.s32 1, %v1816
        %v1818 = vrot.slane %v842, %v1817
        %v1819 = vmul.f32 %v1375, %v1818
        %v1820 = vmul.f32 %v1376, %v1818
        %v1821 = vmul.f32 %v1377, %v1818
        %v1822 = vmul.f32 %v1378, %v1818
        %v1823 = vmul.f32 %v1379, %v1818
        %v1824 = vmul.f32 %v1380, %v1818
        %v1825 = vmul.f32 %v1381, %v1818
        %v1826 = vmul.f32 %v1382, %v1818
        %v1827 = vmul.f32 %v1383, %v1818
        %v1828 = vmul.f32 %v1384, %v1818
        %v1829 = vmul.f32 %v1385, %v1818
        %v1830 = vmul.f32 %v1386, %v1818
        %v1831 = vmul.f32 %v1387, %v1818
        %v1832 = vmul.f32 %v1388, %v1818
        %v1833 = vmul.f32 %v1389, %v1818
        %v1834 = vmul.f32 %v1390, %v1818
        %v1835 = vmul.f32 %v1391, %v1818
        %v1836 = vmul.f32 %v1392, %v1818
        %v1837 = vmul.f32 %v1393, %v1818
        %v1838 = vmul.f32 %v1394, %v1818
        %v1839 = vmul.f32 %v1395, %v1818
        %v1840 = vmul.f32 %v1396, %v1818
        %v1841 = vmul.f32 %v1397, %v1818
        %v1842 = vmul.f32 %v1398, %v1818
        %v1843 = vmul.f32 %v1399, %v1818
        %v1844 = vmul.f32 %v1400, %v1818
        %v1845 = vmul.f32 %v1401, %v1818
        %v1846 = vmul.f32 %v1402, %v1818
        %v1847 = vmul.f32 %v1403, %v1818
        %v1848 = vmul.f32 %v1404, %v1818
        %v1849 = vmul.f32 %v1405, %v1818
        %v1850 = vmul.f32 %v1406, %v1818
        %v1851 = vadd.f32 %v1783, %v1819
        %v1852 = vadd.f32 %v1784, %v1820
        %v1853 = vadd.f32 %v1785, %v1821
        %v1854 = vadd.f32 %v1786, %v1822
        %v1855 = vadd.f32 %v1787, %v1823
        %v1856 = vadd.f32 %v1788, %v1824
        %v1857 = vadd.f32 %v1789, %v1825
        %v1858 = vadd.f32 %v1790, %v1826
        %v1859 = vadd.f32 %v1791, %v1827
        %v1860 = vadd.f32 %v1792, %v1828
        %v1861 = vadd.f32 %v1793, %v1829
        %v1862 = vadd.f32 %v1794, %v1830
        %v1863 = vadd.f32 %v1795, %v1831
        %v1864 = vadd.f32 %v1796, %v1832
        %v1865 = vadd.f32 %v1797, %v1833
        %v1866 = vadd.f32 %v1798, %v1834
        %v1867 = vadd.f32 %v1799, %v1835
        %v1868 = vadd.f32 %v1800, %v1836
        %v1869 = vadd.f32 %v1801, %v1837
        %v1870 = vadd.f32 %v1802, %v1838
        %v1871 = vadd.f32 %v1803, %v1839
        %v1872 = vadd.f32 %v1804, %v1840
        %v1873 = vadd.f32 %v1805, %v1841
        %v1874 = vadd.f32 %v1806, %v1842
        %v1875 = vadd.f32 %v1807, %v1843
        %v1876 = vadd.f32 %v1808, %v1844
        %v1877 = vadd.f32 %v1809, %v1845
        %v1878 = vadd.f32 %v1810, %v1846
        %v1879 = vadd.f32 %v1811, %v1847
        %v1880 = vadd.f32 %v1812, %v1848
        %v1881 = vadd.f32 %v1813, %v1849
        %v1882 = vadd.f32 %v1814, %v1850
        %v1883 = vld [vmem:[%s590 + $0x2] sm:$0xff]
        %v1884 = vld [vmem:[%s590 + $0xa] sm:$0xff]
        %v1885 = vld [vmem:[%s590 + $0x1a] sm:$0xff]
        %v1886 = vld [vmem:[%s590 + $0x22] sm:$0xff]
        %v1887 = vld [vmem:[%s590 + $0x32] sm:$0xff]
        %v1888 = vld [vmem:[%s590 + $0x3a] sm:$0xff]
        %v1889 = vld [vmem:[%s590 + $0x4a] sm:$0xff]
        %v1890 = vld [vmem:[%s590 + $0x52] sm:$0xff]
        %v1891 = vld [vmem:[%s590 + $0x62] sm:$0xff]
        %v1892 = vld [vmem:[%s590 + $0x6a] sm:$0xff]
        %v1893 = vld [vmem:[%s590 + $0x7a] sm:$0xff]
        %v1894 = vld [vmem:[%s590 + $0x82] sm:$0xff]
        %v1895 = vld [vmem:[%s590 + $0x92] sm:$0xff]
        %v1896 = vld [vmem:[%s590 + $0x9a] sm:$0xff]
        %v1897 = vld [vmem:[%s590 + $0xaa] sm:$0xff]
        %v1898 = vld [vmem:[%s590 + $0xb2] sm:$0xff]
        %v1899 = vld [vmem:[%s590 + $0xc2] sm:$0xff]
        %v1900 = vld [vmem:[%s590 + $0xca] sm:$0xff]
        %v1901 = vld [vmem:[%s590 + $0xda] sm:$0xff]
        %v1902 = vld [vmem:[%s590 + $0xe2] sm:$0xff]
        %v1903 = vld [vmem:[%s590 + $0xf2] sm:$0xff]
        %v1904 = vld [vmem:[%s590 + $0xfa] sm:$0xff]
        %v1905 = vld [vmem:[%s590 + $0x10a] sm:$0xff]
        %v1906 = vld [vmem:[%s590 + $0x112] sm:$0xff]
        %v1907 = vld [vmem:[%s590 + $0x122] sm:$0xff]
        %v1908 = vld [vmem:[%s590 + $0x12a] sm:$0xff]
        %v1909 = vld [vmem:[%s590 + $0x13a] sm:$0xff]
        %v1910 = vld [vmem:[%s590 + $0x142] sm:$0xff]
        %v1911 = vld [vmem:[%s590 + $0x152] sm:$0xff]
        %v1912 = vld [vmem:[%s590 + $0x15a] sm:$0xff]
        %v1913 = vld [vmem:[%s590 + $0x16a] sm:$0xff]
        %v1914 = vld [vmem:[%s590 + $0x172] sm:$0xff]
        %v1915 = vld [vmem:[%s590 + $0x182] sm:$0xff]
        %v1916 = vld [vmem:[%s590 + $0x18a] sm:$0xff]
        %v1917 = vld [vmem:[%s590 + $0x19a] sm:$0xff]
        %v1918 = vld [vmem:[%s590 + $0x1a2] sm:$0xff]
        %v1919 = vld [vmem:[%s590 + $0x1b2] sm:$0xff]
        %v1920 = vld [vmem:[%s590 + $0x1ba] sm:$0xff]
        %v1921 = vld [vmem:[%s590 + $0x1ca] sm:$0xff]
        %v1922 = vld [vmem:[%s590 + $0x1d2] sm:$0xff]
        %v1923 = vld [vmem:[%s590 + $0x1e2] sm:$0xff]
        %v1924 = vld [vmem:[%s590 + $0x1ea] sm:$0xff]
        %v1925 = vld [vmem:[%s590 + $0x1fa] sm:$0xff]
        %v1926 = vld [vmem:[%s590 + $0x202] sm:$0xff]
        %v1927 = vlaneseq
        %v1928 = vshrl.u32 %v1927, 7
        %v1929 = vsub.s32 2, %v1928
        %v1930 = vrot.slane %v836, %v1929
        %v1931 = vmul.f32 %v1883, %v1930
        %v1932 = vmul.f32 %v1884, %v1930
        %v1933 = vmul.f32 %v1885, %v1930
        %v1934 = vmul.f32 %v1886, %v1930
        %v1935 = vmul.f32 %v1887, %v1930
        %v1936 = vmul.f32 %v1888, %v1930
        %v1937 = vmul.f32 %v1889, %v1930
        %v1938 = vmul.f32 %v1890, %v1930
        %v1939 = vmul.f32 %v1891, %v1930
        %v1940 = vmul.f32 %v1892, %v1930
        %v1941 = vmul.f32 %v1893, %v1930
        %v1942 = vmul.f32 %v1894, %v1930
        %v1943 = vmul.f32 %v1895, %v1930
        %v1944 = vmul.f32 %v1896, %v1930
        %v1945 = vmul.f32 %v1897, %v1930
        %v1946 = vmul.f32 %v1898, %v1930
        %v1947 = vmul.f32 %v1899, %v1930
        %v1948 = vmul.f32 %v1900, %v1930
        %v1949 = vmul.f32 %v1901, %v1930
        %v1950 = vmul.f32 %v1902, %v1930
        %v1951 = vmul.f32 %v1903, %v1930
        %v1952 = vmul.f32 %v1904, %v1930
        %v1953 = vmul.f32 %v1905, %v1930
        %v1954 = vmul.f32 %v1906, %v1930
        %v1955 = vmul.f32 %v1907, %v1930
        %v1956 = vmul.f32 %v1908, %v1930
        %v1957 = vmul.f32 %v1909, %v1930
        %v1958 = vmul.f32 %v1910, %v1930
        %v1959 = vmul.f32 %v1911, %v1930
        %v1960 = vmul.f32 %v1912, %v1930
        %v1961 = vmul.f32 %v1913, %v1930
        %v1962 = vmul.f32 %v1914, %v1930
        %v1963 = vadd.f32 %v1851, %v1931
        %v1964 = vadd.f32 %v1852, %v1932
        %v1965 = vadd.f32 %v1853, %v1933
        %v1966 = vadd.f32 %v1854, %v1934
        %v1967 = vadd.f32 %v1855, %v1935
        %v1968 = vadd.f32 %v1856, %v1936
        %v1969 = vadd.f32 %v1857, %v1937
        %v1970 = vadd.f32 %v1858, %v1938
        %v1971 = vadd.f32 %v1859, %v1939
        %v1972 = vadd.f32 %v1860, %v1940
        %v1973 = vadd.f32 %v1861, %v1941
        %v1974 = vadd.f32 %v1862, %v1942
        %v1975 = vadd.f32 %v1863, %v1943
        %v1976 = vadd.f32 %v1864, %v1944
        %v1977 = vadd.f32 %v1865, %v1945
        %v1978 = vadd.f32 %v1866, %v1946
        %v1979 = vadd.f32 %v1867, %v1947
        %v1980 = vadd.f32 %v1868, %v1948
        %v1981 = vadd.f32 %v1869, %v1949
        %v1982 = vadd.f32 %v1870, %v1950
        %v1983 = vadd.f32 %v1871, %v1951
        %v1984 = vadd.f32 %v1872, %v1952
        %v1985 = vadd.f32 %v1873, %v1953
        %v1986 = vadd.f32 %v1874, %v1954
        %v1987 = vadd.f32 %v1875, %v1955
        %v1988 = vadd.f32 %v1876, %v1956
        %v1989 = vadd.f32 %v1877, %v1957
        %v1990 = vadd.f32 %v1878, %v1958
        %v1991 = vadd.f32 %v1879, %v1959
        %v1992 = vadd.f32 %v1880, %v1960
        %v1993 = vadd.f32 %v1881, %v1961
        %v1994 = vadd.f32 %v1882, %v1962
        %v1995 = vlaneseq
        %v1996 = vshrl.u32 %v1995, 7
        %v1997 = vsub.s32 2, %v1996
        %v1998 = vrot.slane %v837, %v1997
        %v1999 = vmul.f32 %v1885, %v1998
        %v2000 = vmul.f32 %v1886, %v1998
        %v2001 = vmul.f32 %v1887, %v1998
        %v2002 = vmul.f32 %v1888, %v1998
        %v2003 = vmul.f32 %v1889, %v1998
        %v2004 = vmul.f32 %v1890, %v1998
        %v2005 = vmul.f32 %v1891, %v1998
        %v2006 = vmul.f32 %v1892, %v1998
        %v2007 = vmul.f32 %v1893, %v1998
        %v2008 = vmul.f32 %v1894, %v1998
        %v2009 = vmul.f32 %v1895, %v1998
        %v2010 = vmul.f32 %v1896, %v1998
        %v2011 = vmul.f32 %v1897, %v1998
        %v2012 = vmul.f32 %v1898, %v1998
        %v2013 = vmul.f32 %v1899, %v1998
        %v2014 = vmul.f32 %v1900, %v1998
        %v2015 = vmul.f32 %v1901, %v1998
        %v2016 = vmul.f32 %v1902, %v1998
        %v2017 = vmul.f32 %v1903, %v1998
        %v2018 = vmul.f32 %v1904, %v1998
        %v2019 = vmul.f32 %v1905, %v1998
        %v2020 = vmul.f32 %v1906, %v1998
        %v2021 = vmul.f32 %v1907, %v1998
        %v2022 = vmul.f32 %v1908, %v1998
        %v2023 = vmul.f32 %v1909, %v1998
        %v2024 = vmul.f32 %v1910, %v1998
        %v2025 = vmul.f32 %v1911, %v1998
        %v2026 = vmul.f32 %v1912, %v1998
        %v2027 = vmul.f32 %v1913, %v1998
        %v2028 = vmul.f32 %v1914, %v1998
        %v2029 = vmul.f32 %v1915, %v1998
        %v2030 = vmul.f32 %v1916, %v1998
        %v2031 = vadd.f32 %v1963, %v1999
        %v2032 = vadd.f32 %v1964, %v2000
        %v2033 = vadd.f32 %v1965, %v2001
        %v2034 = vadd.f32 %v1966, %v2002
        %v2035 = vadd.f32 %v1967, %v2003
        %v2036 = vadd.f32 %v1968, %v2004
        %v2037 = vadd.f32 %v1969, %v2005
        %v2038 = vadd.f32 %v1970, %v2006
        %v2039 = vadd.f32 %v1971, %v2007
        %v2040 = vadd.f32 %v1972, %v2008
        %v2041 = vadd.f32 %v1973, %v2009
        %v2042 = vadd.f32 %v1974, %v2010
        %v2043 = vadd.f32 %v1975, %v2011
        %v2044 = vadd.f32 %v1976, %v2012
        %v2045 = vadd.f32 %v1977, %v2013
        %v2046 = vadd.f32 %v1978, %v2014
        %v2047 = vadd.f32 %v1979, %v2015
        %v2048 = vadd.f32 %v1980, %v2016
        %v2049 = vadd.f32 %v1981, %v2017
        %v2050 = vadd.f32 %v1982, %v2018
        %v2051 = vadd.f32 %v1983, %v2019
        %v2052 = vadd.f32 %v1984, %v2020
        %v2053 = vadd.f32 %v1985, %v2021
        %v2054 = vadd.f32 %v1986, %v2022
        %v2055 = vadd.f32 %v1987, %v2023
        %v2056 = vadd.f32 %v1988, %v2024
        %v2057 = vadd.f32 %v1989, %v2025
        %v2058 = vadd.f32 %v1990, %v2026
        %v2059 = vadd.f32 %v1991, %v2027
        %v2060 = vadd.f32 %v1992, %v2028
        %v2061 = vadd.f32 %v1993, %v2029
        %v2062 = vadd.f32 %v1994, %v2030
        %v2063 = vlaneseq
        %v2064 = vshrl.u32 %v2063, 7
        %v2065 = vsub.s32 2, %v2064
        %v2066 = vrot.slane %v838, %v2065
        %v2067 = vmul.f32 %v1887, %v2066
        %v2068 = vmul.f32 %v1888, %v2066
        %v2069 = vmul.f32 %v1889, %v2066
        %v2070 = vmul.f32 %v1890, %v2066
        %v2071 = vmul.f32 %v1891, %v2066
        %v2072 = vmul.f32 %v1892, %v2066
        %v2073 = vmul.f32 %v1893, %v2066
        %v2074 = vmul.f32 %v1894, %v2066
        %v2075 = vmul.f32 %v1895, %v2066
        %v2076 = vmul.f32 %v1896, %v2066
        %v2077 = vmul.f32 %v1897, %v2066
        %v2078 = vmul.f32 %v1898, %v2066
        %v2079 = vmul.f32 %v1899, %v2066
        %v2080 = vmul.f32 %v1900, %v2066
        %v2081 = vmul.f32 %v1901, %v2066
        %v2082 = vmul.f32 %v1902, %v2066
        %v2083 = vmul.f32 %v1903, %v2066
        %v2084 = vmul.f32 %v1904, %v2066
        %v2085 = vmul.f32 %v1905, %v2066
        %v2086 = vmul.f32 %v1906, %v2066
        %v2087 = vmul.f32 %v1907, %v2066
        %v2088 = vmul.f32 %v1908, %v2066
        %v2089 = vmul.f32 %v1909, %v2066
        %v2090 = vmul.f32 %v1910, %v2066
        %v2091 = vmul.f32 %v1911, %v2066
        %v2092 = vmul.f32 %v1912, %v2066
        %v2093 = vmul.f32 %v1913, %v2066
        %v2094 = vmul.f32 %v1914, %v2066
        %v2095 = vmul.f32 %v1915, %v2066
        %v2096 = vmul.f32 %v1916, %v2066
        %v2097 = vmul.f32 %v1917, %v2066
        %v2098 = vmul.f32 %v1918, %v2066
        %v2099 = vadd.f32 %v2031, %v2067
        %v2100 = vadd.f32 %v2032, %v2068
        %v2101 = vadd.f32 %v2033, %v2069
        %v2102 = vadd.f32 %v2034, %v2070
        %v2103 = vadd.f32 %v2035, %v2071
        %v2104 = vadd.f32 %v2036, %v2072
        %v2105 = vadd.f32 %v2037, %v2073
        %v2106 = vadd.f32 %v2038, %v2074
        %v2107 = vadd.f32 %v2039, %v2075
        %v2108 = vadd.f32 %v2040, %v2076
        %v2109 = vadd.f32 %v2041, %v2077
        %v2110 = vadd.f32 %v2042, %v2078
        %v2111 = vadd.f32 %v2043, %v2079
        %v2112 = vadd.f32 %v2044, %v2080
        %v2113 = vadd.f32 %v2045, %v2081
        %v2114 = vadd.f32 %v2046, %v2082
        %v2115 = vadd.f32 %v2047, %v2083
        %v2116 = vadd.f32 %v2048, %v2084
        %v2117 = vadd.f32 %v2049, %v2085
        %v2118 = vadd.f32 %v2050, %v2086
        %v2119 = vadd.f32 %v2051, %v2087
        %v2120 = vadd.f32 %v2052, %v2088
        %v2121 = vadd.f32 %v2053, %v2089
        %v2122 = vadd.f32 %v2054, %v2090
        %v2123 = vadd.f32 %v2055, %v2091
        %v2124 = vadd.f32 %v2056, %v2092
        %v2125 = vadd.f32 %v2057, %v2093
        %v2126 = vadd.f32 %v2058, %v2094
        %v2127 = vadd.f32 %v2059, %v2095
        %v2128 = vadd.f32 %v2060, %v2096
        %v2129 = vadd.f32 %v2061, %v2097
        %v2130 = vadd.f32 %v2062, %v2098
        %v2131 = vlaneseq
        %v2132 = vshrl.u32 %v2131, 7
        %v2133 = vsub.s32 2, %v2132
        %v2134 = vrot.slane %v839, %v2133
        %v2135 = vmul.f32 %v1889, %v2134
        %v2136 = vmul.f32 %v1890, %v2134
        %v2137 = vmul.f32 %v1891, %v2134
        %v2138 = vmul.f32 %v1892, %v2134
        %v2139 = vmul.f32 %v1893, %v2134
        %v2140 = vmul.f32 %v1894, %v2134
        %v2141 = vmul.f32 %v1895, %v2134
        %v2142 = vmul.f32 %v1896, %v2134
        %v2143 = vmul.f32 %v1897, %v2134
        %v2144 = vmul.f32 %v1898, %v2134
        %v2145 = vmul.f32 %v1899, %v2134
        %v2146 = vmul.f32 %v1900, %v2134
        %v2147 = vmul.f32 %v1901, %v2134
        %v2148 = vmul.f32 %v1902, %v2134
        %v2149 = vmul.f32 %v1903, %v2134
        %v2150 = vmul.f32 %v1904, %v2134
        %v2151 = vmul.f32 %v1905, %v2134
        %v2152 = vmul.f32 %v1906, %v2134
        %v2153 = vmul.f32 %v1907, %v2134
        %v2154 = vmul.f32 %v1908, %v2134
        %v2155 = vmul.f32 %v1909, %v2134
        %v2156 = vmul.f32 %v1910, %v2134
        %v2157 = vmul.f32 %v1911, %v2134
        %v2158 = vmul.f32 %v1912, %v2134
        %v2159 = vmul.f32 %v1913, %v2134
        %v2160 = vmul.f32 %v1914, %v2134
        %v2161 = vmul.f32 %v1915, %v2134
        %v2162 = vmul.f32 %v1916, %v2134
        %v2163 = vmul.f32 %v1917, %v2134
        %v2164 = vmul.f32 %v1918, %v2134
        %v2165 = vmul.f32 %v1919, %v2134
        %v2166 = vmul.f32 %v1920, %v2134
        %v2167 = vadd.f32 %v2099, %v2135
        %v2168 = vadd.f32 %v2100, %v2136
        %v2169 = vadd.f32 %v2101, %v2137
        %v2170 = vadd.f32 %v2102, %v2138
        %v2171 = vadd.f32 %v2103, %v2139
        %v2172 = vadd.f32 %v2104, %v2140
        %v2173 = vadd.f32 %v2105, %v2141
        %v2174 = vadd.f32 %v2106, %v2142
        %v2175 = vadd.f32 %v2107, %v2143
        %v2176 = vadd.f32 %v2108, %v2144
        %v2177 = vadd.f32 %v2109, %v2145
        %v2178 = vadd.f32 %v2110, %v2146
        %v2179 = vadd.f32 %v2111, %v2147
        %v2180 = vadd.f32 %v2112, %v2148
        %v2181 = vadd.f32 %v2113, %v2149
        %v2182 = vadd.f32 %v2114, %v2150
        %v2183 = vadd.f32 %v2115, %v2151
        %v2184 = vadd.f32 %v2116, %v2152
        %v2185 = vadd.f32 %v2117, %v2153
        %v2186 = vadd.f32 %v2118, %v2154
        %v2187 = vadd.f32 %v2119, %v2155
        %v2188 = vadd.f32 %v2120, %v2156
        %v2189 = vadd.f32 %v2121, %v2157
        %v2190 = vadd.f32 %v2122, %v2158
        %v2191 = vadd.f32 %v2123, %v2159
        %v2192 = vadd.f32 %v2124, %v2160
        %v2193 = vadd.f32 %v2125, %v2161
        %v2194 = vadd.f32 %v2126, %v2162
        %v2195 = vadd.f32 %v2127, %v2163
        %v2196 = vadd.f32 %v2128, %v2164
        %v2197 = vadd.f32 %v2129, %v2165
        %v2198 = vadd.f32 %v2130, %v2166
        %v2199 = vlaneseq
        %v2200 = vshrl.u32 %v2199, 7
        %v2201 = vsub.s32 2, %v2200
        %v2202 = vrot.slane %v840, %v2201
        %v2203 = vmul.f32 %v1891, %v2202
        %v2204 = vmul.f32 %v1892, %v2202
        %v2205 = vmul.f32 %v1893, %v2202
        %v2206 = vmul.f32 %v1894, %v2202
        %v2207 = vmul.f32 %v1895, %v2202
        %v2208 = vmul.f32 %v1896, %v2202
        %v2209 = vmul.f32 %v1897, %v2202
        %v2210 = vmul.f32 %v1898, %v2202
        %v2211 = vmul.f32 %v1899, %v2202
        %v2212 = vmul.f32 %v1900, %v2202
        %v2213 = vmul.f32 %v1901, %v2202
        %v2214 = vmul.f32 %v1902, %v2202
        %v2215 = vmul.f32 %v1903, %v2202
        %v2216 = vmul.f32 %v1904, %v2202
        %v2217 = vmul.f32 %v1905, %v2202
        %v2218 = vmul.f32 %v1906, %v2202
        %v2219 = vmul.f32 %v1907, %v2202
        %v2220 = vmul.f32 %v1908, %v2202
        %v2221 = vmul.f32 %v1909, %v2202
        %v2222 = vmul.f32 %v1910, %v2202
        %v2223 = vmul.f32 %v1911, %v2202
        %v2224 = vmul.f32 %v1912, %v2202
        %v2225 = vmul.f32 %v1913, %v2202
        %v2226 = vmul.f32 %v1914, %v2202
        %v2227 = vmul.f32 %v1915, %v2202
        %v2228 = vmul.f32 %v1916, %v2202
        %v2229 = vmul.f32 %v1917, %v2202
        %v2230 = vmul.f32 %v1918, %v2202
        %v2231 = vmul.f32 %v1919, %v2202
        %v2232 = vmul.f32 %v1920, %v2202
        %v2233 = vmul.f32 %v1921, %v2202
        %v2234 = vmul.f32 %v1922, %v2202
        %v2235 = vadd.f32 %v2167, %v2203
        %v2236 = vadd.f32 %v2168, %v2204
        %v2237 = vadd.f32 %v2169, %v2205
        %v2238 = vadd.f32 %v2170, %v2206
        %v2239 = vadd.f32 %v2171, %v2207
        %v2240 = vadd.f32 %v2172, %v2208
        %v2241 = vadd.f32 %v2173, %v2209
        %v2242 = vadd.f32 %v2174, %v2210
        %v2243 = vadd.f32 %v2175, %v2211
        %v2244 = vadd.f32 %v2176, %v2212
        %v2245 = vadd.f32 %v2177, %v2213
        %v2246 = vadd.f32 %v2178, %v2214
        %v2247 = vadd.f32 %v2179, %v2215
        %v2248 = vadd.f32 %v2180, %v2216
        %v2249 = vadd.f32 %v2181, %v2217
        %v2250 = vadd.f32 %v2182, %v2218
        %v2251 = vadd.f32 %v2183, %v2219
        %v2252 = vadd.f32 %v2184, %v2220
        %v2253 = vadd.f32 %v2185, %v2221
        %v2254 = vadd.f32 %v2186, %v2222
        %v2255 = vadd.f32 %v2187, %v2223
        %v2256 = vadd.f32 %v2188, %v2224
        %v2257 = vadd.f32 %v2189, %v2225
        %v2258 = vadd.f32 %v2190, %v2226
        %v2259 = vadd.f32 %v2191, %v2227
        %v2260 = vadd.f32 %v2192, %v2228
        %v2261 = vadd.f32 %v2193, %v2229
        %v2262 = vadd.f32 %v2194, %v2230
        %v2263 = vadd.f32 %v2195, %v2231
        %v2264 = vadd.f32 %v2196, %v2232
        %v2265 = vadd.f32 %v2197, %v2233
        %v2266 = vadd.f32 %v2198, %v2234
        %v2267 = vlaneseq
        %v2268 = vshrl.u32 %v2267, 7
        %v2269 = vsub.s32 2, %v2268
        %v2270 = vrot.slane %v841, %v2269
        %v2271 = vmul.f32 %v1893, %v2270
        %v2272 = vmul.f32 %v1894, %v2270
        %v2273 = vmul.f32 %v1895, %v2270
        %v2274 = vmul.f32 %v1896, %v2270
        %v2275 = vmul.f32 %v1897, %v2270
        %v2276 = vmul.f32 %v1898, %v2270
        %v2277 = vmul.f32 %v1899, %v2270
        %v2278 = vmul.f32 %v1900, %v2270
        %v2279 = vmul.f32 %v1901, %v2270
        %v2280 = vmul.f32 %v1902, %v2270
        %v2281 = vmul.f32 %v1903, %v2270
        %v2282 = vmul.f32 %v1904, %v2270
        %v2283 = vmul.f32 %v1905, %v2270
        %v2284 = vmul.f32 %v1906, %v2270
        %v2285 = vmul.f32 %v1907, %v2270
        %v2286 = vmul.f32 %v1908, %v2270
        %v2287 = vmul.f32 %v1909, %v2270
        %v2288 = vmul.f32 %v1910, %v2270
        %v2289 = vmul.f32 %v1911, %v2270
        %v2290 = vmul.f32 %v1912, %v2270
        %v2291 = vmul.f32 %v1913, %v2270
        %v2292 = vmul.f32 %v1914, %v2270
        %v2293 = vmul.f32 %v1915, %v2270
        %v2294 = vmul.f32 %v1916, %v2270
        %v2295 = vmul.f32 %v1917, %v2270
        %v2296 = vmul.f32 %v1918, %v2270
        %v2297 = vmul.f32 %v1919, %v2270
        %v2298 = vmul.f32 %v1920, %v2270
        %v2299 = vmul.f32 %v1921, %v2270
        %v2300 = vmul.f32 %v1922, %v2270
        %v2301 = vmul.f32 %v1923, %v2270
        %v2302 = vmul.f32 %v1924, %v2270
        %v2303 = vadd.f32 %v2235, %v2271
        %v2304 = vadd.f32 %v2236, %v2272
        %v2305 = vadd.f32 %v2237, %v2273
        %v2306 = vadd.f32 %v2238, %v2274
        %v2307 = vadd.f32 %v2239, %v2275
        %v2308 = vadd.f32 %v2240, %v2276
        %v2309 = vadd.f32 %v2241, %v2277
        %v2310 = vadd.f32 %v2242, %v2278
        %v2311 = vadd.f32 %v2243, %v2279
        %v2312 = vadd.f32 %v2244, %v2280
        %v2313 = vadd.f32 %v2245, %v2281
        %v2314 = vadd.f32 %v2246, %v2282
        %v2315 = vadd.f32 %v2247, %v2283
        %v2316 = vadd.f32 %v2248, %v2284
        %v2317 = vadd.f32 %v2249, %v2285
        %v2318 = vadd.f32 %v2250, %v2286
        %v2319 = vadd.f32 %v2251, %v2287
        %v2320 = vadd.f32 %v2252, %v2288
        %v2321 = vadd.f32 %v2253, %v2289
        %v2322 = vadd.f32 %v2254, %v2290
        %v2323 = vadd.f32 %v2255, %v2291
        %v2324 = vadd.f32 %v2256, %v2292
        %v2325 = vadd.f32 %v2257, %v2293
        %v2326 = vadd.f32 %v2258, %v2294
        %v2327 = vadd.f32 %v2259, %v2295
        %v2328 = vadd.f32 %v2260, %v2296
        %v2329 = vadd.f32 %v2261, %v2297
        %v2330 = vadd.f32 %v2262, %v2298
        %v2331 = vadd.f32 %v2263, %v2299
        %v2332 = vadd.f32 %v2264, %v2300
        %v2333 = vadd.f32 %v2265, %v2301
        %v2334 = vadd.f32 %v2266, %v2302
        %v2335 = vlaneseq
        %v2336 = vshrl.u32 %v2335, 7
        %v2337 = vsub.s32 2, %v2336
        %v2338 = vrot.slane %v842, %v2337
        %v2339 = vmul.f32 %v1895, %v2338
        %v2340 = vmul.f32 %v1896, %v2338
        %v2341 = vmul.f32 %v1897, %v2338
        %v2342 = vmul.f32 %v1898, %v2338
        %v2343 = vmul.f32 %v1899, %v2338
        %v2344 = vmul.f32 %v1900, %v2338
        %v2345 = vmul.f32 %v1901, %v2338
        %v2346 = vmul.f32 %v1902, %v2338
        %v2347 = vmul.f32 %v1903, %v2338
        %v2348 = vmul.f32 %v1904, %v2338
        %v2349 = vmul.f32 %v1905, %v2338
        %v2350 = vmul.f32 %v1906, %v2338
        %v2351 = vmul.f32 %v1907, %v2338
        %v2352 = vmul.f32 %v1908, %v2338
        %v2353 = vmul.f32 %v1909, %v2338
        %v2354 = vmul.f32 %v1910, %v2338
        %v2355 = vmul.f32 %v1911, %v2338
        %v2356 = vmul.f32 %v1912, %v2338
        %v2357 = vmul.f32 %v1913, %v2338
        %v2358 = vmul.f32 %v1914, %v2338
        %v2359 = vmul.f32 %v1915, %v2338
        %v2360 = vmul.f32 %v1916, %v2338
        %v2361 = vmul.f32 %v1917, %v2338
        %v2362 = vmul.f32 %v1918, %v2338
        %v2363 = vmul.f32 %v1919, %v2338
        %v2364 = vmul.f32 %v1920, %v2338
        %v2365 = vmul.f32 %v1921, %v2338
        %v2366 = vmul.f32 %v1922, %v2338
        %v2367 = vmul.f32 %v1923, %v2338
        %v2368 = vmul.f32 %v1924, %v2338
        %v2369 = vmul.f32 %v1925, %v2338
        %v2370 = vmul.f32 %v1926, %v2338
        %v2371 = vadd.f32 %v2303, %v2339
        %v2372 = vadd.f32 %v2304, %v2340
        %v2373 = vadd.f32 %v2305, %v2341
        %v2374 = vadd.f32 %v2306, %v2342
        %v2375 = vadd.f32 %v2307, %v2343
        %v2376 = vadd.f32 %v2308, %v2344
        %v2377 = vadd.f32 %v2309, %v2345
        %v2378 = vadd.f32 %v2310, %v2346
        %v2379 = vadd.f32 %v2311, %v2347
        %v2380 = vadd.f32 %v2312, %v2348
        %v2381 = vadd.f32 %v2313, %v2349
        %v2382 = vadd.f32 %v2314, %v2350
        %v2383 = vadd.f32 %v2315, %v2351
        %v2384 = vadd.f32 %v2316, %v2352
        %v2385 = vadd.f32 %v2317, %v2353
        %v2386 = vadd.f32 %v2318, %v2354
        %v2387 = vadd.f32 %v2319, %v2355
        %v2388 = vadd.f32 %v2320, %v2356
        %v2389 = vadd.f32 %v2321, %v2357
        %v2390 = vadd.f32 %v2322, %v2358
        %v2391 = vadd.f32 %v2323, %v2359
        %v2392 = vadd.f32 %v2324, %v2360
        %v2393 = vadd.f32 %v2325, %v2361
        %v2394 = vadd.f32 %v2326, %v2362
        %v2395 = vadd.f32 %v2327, %v2363
        %v2396 = vadd.f32 %v2328, %v2364
        %v2397 = vadd.f32 %v2329, %v2365
        %v2398 = vadd.f32 %v2330, %v2366
        %v2399 = vadd.f32 %v2331, %v2367
        %v2400 = vadd.f32 %v2332, %v2368
        %v2401 = vadd.f32 %v2333, %v2369
        %v2402 = vadd.f32 %v2334, %v2370
        %v2403 = vld [vmem:[%s590 + $0x3] sm:$0xff]
        %v2404 = vld [vmem:[%s590 + $0xb] sm:$0xff]
        %v2405 = vld [vmem:[%s590 + $0x1b] sm:$0xff]
        %v2406 = vld [vmem:[%s590 + $0x23] sm:$0xff]
        %v2407 = vld [vmem:[%s590 + $0x33] sm:$0xff]
        %v2408 = vld [vmem:[%s590 + $0x3b] sm:$0xff]
        %v2409 = vld [vmem:[%s590 + $0x4b] sm:$0xff]
        %v2410 = vld [vmem:[%s590 + $0x53] sm:$0xff]
        %v2411 = vld [vmem:[%s590 + $0x63] sm:$0xff]
        %v2412 = vld [vmem:[%s590 + $0x6b] sm:$0xff]
        %v2413 = vld [vmem:[%s590 + $0x7b] sm:$0xff]
        %v2414 = vld [vmem:[%s590 + $0x83] sm:$0xff]
        %v2415 = vld [vmem:[%s590 + $0x93] sm:$0xff]
        %v2416 = vld [vmem:[%s590 + $0x9b] sm:$0xff]
        %v2417 = vld [vmem:[%s590 + $0xab] sm:$0xff]
        %v2418 = vld [vmem:[%s590 + $0xb3] sm:$0xff]
        %v2419 = vld [vmem:[%s590 + $0xc3] sm:$0xff]
        %v2420 = vld [vmem:[%s590 + $0xcb] sm:$0xff]
        %v2421 = vld [vmem:[%s590 + $0xdb] sm:$0xff]
        %v2422 = vld [vmem:[%s590 + $0xe3] sm:$0xff]
        %v2423 = vld [vmem:[%s590 + $0xf3] sm:$0xff]
        %v2424 = vld [vmem:[%s590 + $0xfb] sm:$0xff]
        %v2425 = vld [vmem:[%s590 + $0x10b] sm:$0xff]
        %v2426 = vld [vmem:[%s590 + $0x113] sm:$0xff]
        %v2427 = vld [vmem:[%s590 + $0x123] sm:$0xff]
        %v2428 = vld [vmem:[%s590 + $0x12b] sm:$0xff]
        %v2429 = vld [vmem:[%s590 + $0x13b] sm:$0xff]
        %v2430 = vld [vmem:[%s590 + $0x143] sm:$0xff]
        %v2431 = vld [vmem:[%s590 + $0x153] sm:$0xff]
        %v2432 = vld [vmem:[%s590 + $0x15b] sm:$0xff]
        %v2433 = vld [vmem:[%s590 + $0x16b] sm:$0xff]
        %v2434 = vld [vmem:[%s590 + $0x173] sm:$0xff]
        %v2435 = vld [vmem:[%s590 + $0x183] sm:$0xff]
        %v2436 = vld [vmem:[%s590 + $0x18b] sm:$0xff]
        %v2437 = vld [vmem:[%s590 + $0x19b] sm:$0xff]
        %v2438 = vld [vmem:[%s590 + $0x1a3] sm:$0xff]
        %v2439 = vld [vmem:[%s590 + $0x1b3] sm:$0xff]
        %v2440 = vld [vmem:[%s590 + $0x1bb] sm:$0xff]
        %v2441 = vld [vmem:[%s590 + $0x1cb] sm:$0xff]
        %v2442 = vld [vmem:[%s590 + $0x1d3] sm:$0xff]
        %v2443 = vld [vmem:[%s590 + $0x1e3] sm:$0xff]
        %v2444 = vld [vmem:[%s590 + $0x1eb] sm:$0xff]
        %v2445 = vld [vmem:[%s590 + $0x1fb] sm:$0xff]
        %v2446 = vld [vmem:[%s590 + $0x203] sm:$0xff]
        %v2447 = vlaneseq
        %v2448 = vshrl.u32 %v2447, 7
        %v2449 = vsub.s32 3, %v2448
        %v2450 = vrot.slane %v836, %v2449
        %v2451 = vmul.f32 %v2403, %v2450
        %v2452 = vmul.f32 %v2404, %v2450
        %v2453 = vmul.f32 %v2405, %v2450
        %v2454 = vmul.f32 %v2406, %v2450
        %v2455 = vmul.f32 %v2407, %v2450
        %v2456 = vmul.f32 %v2408, %v2450
        %v2457 = vmul.f32 %v2409, %v2450
        %v2458 = vmul.f32 %v2410, %v2450
        %v2459 = vmul.f32 %v2411, %v2450
        %v2460 = vmul.f32 %v2412, %v2450
        %v2461 = vmul.f32 %v2413, %v2450
        %v2462 = vmul.f32 %v2414, %v2450
        %v2463 = vmul.f32 %v2415, %v2450
        %v2464 = vmul.f32 %v2416, %v2450
        %v2465 = vmul.f32 %v2417, %v2450
        %v2466 = vmul.f32 %v2418, %v2450
        %v2467 = vmul.f32 %v2419, %v2450
        %v2468 = vmul.f32 %v2420, %v2450
        %v2469 = vmul.f32 %v2421, %v2450
        %v2470 = vmul.f32 %v2422, %v2450
        %v2471 = vmul.f32 %v2423, %v2450
        %v2472 = vmul.f32 %v2424, %v2450
        %v2473 = vmul.f32 %v2425, %v2450
        %v2474 = vmul.f32 %v2426, %v2450
        %v2475 = vmul.f32 %v2427, %v2450
        %v2476 = vmul.f32 %v2428, %v2450
        %v2477 = vmul.f32 %v2429, %v2450
        %v2478 = vmul.f32 %v2430, %v2450
        %v2479 = vmul.f32 %v2431, %v2450
        %v2480 = vmul.f32 %v2432, %v2450
        %v2481 = vmul.f32 %v2433, %v2450
        %v2482 = vmul.f32 %v2434, %v2450
        %v2483 = vadd.f32 %v2371, %v2451
        %v2484 = vadd.f32 %v2372, %v2452
        %v2485 = vadd.f32 %v2373, %v2453
        %v2486 = vadd.f32 %v2374, %v2454
        %v2487 = vadd.f32 %v2375, %v2455
        %v2488 = vadd.f32 %v2376, %v2456
        %v2489 = vadd.f32 %v2377, %v2457
        %v2490 = vadd.f32 %v2378, %v2458
        %v2491 = vadd.f32 %v2379, %v2459
        %v2492 = vadd.f32 %v2380, %v2460
        %v2493 = vadd.f32 %v2381, %v2461
        %v2494 = vadd.f32 %v2382, %v2462
        %v2495 = vadd.f32 %v2383, %v2463
        %v2496 = vadd.f32 %v2384, %v2464
        %v2497 = vadd.f32 %v2385, %v2465
        %v2498 = vadd.f32 %v2386, %v2466
        %v2499 = vadd.f32 %v2387, %v2467
        %v2500 = vadd.f32 %v2388, %v2468
        %v2501 = vadd.f32 %v2389, %v2469
        %v2502 = vadd.f32 %v2390, %v2470
        %v2503 = vadd.f32 %v2391, %v2471
        %v2504 = vadd.f32 %v2392, %v2472
        %v2505 = vadd.f32 %v2393, %v2473
        %v2506 = vadd.f32 %v2394, %v2474
        %v2507 = vadd.f32 %v2395, %v2475
        %v2508 = vadd.f32 %v2396, %v2476
        %v2509 = vadd.f32 %v2397, %v2477
        %v2510 = vadd.f32 %v2398, %v2478
        %v2511 = vadd.f32 %v2399, %v2479
        %v2512 = vadd.f32 %v2400, %v2480
        %v2513 = vadd.f32 %v2401, %v2481
        %v2514 = vadd.f32 %v2402, %v2482
        %v2515 = vlaneseq
        %v2516 = vshrl.u32 %v2515, 7
        %v2517 = vsub.s32 3, %v2516
        %v2518 = vrot.slane %v837, %v2517
        %v2519 = vmul.f32 %v2405, %v2518
        %v2520 = vmul.f32 %v2406, %v2518
        %v2521 = vmul.f32 %v2407, %v2518
        %v2522 = vmul.f32 %v2408, %v2518
        %v2523 = vmul.f32 %v2409, %v2518
        %v2524 = vmul.f32 %v2410, %v2518
        %v2525 = vmul.f32 %v2411, %v2518
        %v2526 = vmul.f32 %v2412, %v2518
        %v2527 = vmul.f32 %v2413, %v2518
        %v2528 = vmul.f32 %v2414, %v2518
        %v2529 = vmul.f32 %v2415, %v2518
        %v2530 = vmul.f32 %v2416, %v2518
        %v2531 = vmul.f32 %v2417, %v2518
        %v2532 = vmul.f32 %v2418, %v2518
        %v2533 = vmul.f32 %v2419, %v2518
        %v2534 = vmul.f32 %v2420, %v2518
        %v2535 = vmul.f32 %v2421, %v2518
        %v2536 = vmul.f32 %v2422, %v2518
        %v2537 = vmul.f32 %v2423, %v2518
        %v2538 = vmul.f32 %v2424, %v2518
        %v2539 = vmul.f32 %v2425, %v2518
        %v2540 = vmul.f32 %v2426, %v2518
        %v2541 = vmul.f32 %v2427, %v2518
        %v2542 = vmul.f32 %v2428, %v2518
        %v2543 = vmul.f32 %v2429, %v2518
        %v2544 = vmul.f32 %v2430, %v2518
        %v2545 = vmul.f32 %v2431, %v2518
        %v2546 = vmul.f32 %v2432, %v2518
        %v2547 = vmul.f32 %v2433, %v2518
        %v2548 = vmul.f32 %v2434, %v2518
        %v2549 = vmul.f32 %v2435, %v2518
        %v2550 = vmul.f32 %v2436, %v2518
        %v2551 = vadd.f32 %v2483, %v2519
        %v2552 = vadd.f32 %v2484, %v2520
        %v2553 = vadd.f32 %v2485, %v2521
        %v2554 = vadd.f32 %v2486, %v2522
        %v2555 = vadd.f32 %v2487, %v2523
        %v2556 = vadd.f32 %v2488, %v2524
        %v2557 = vadd.f32 %v2489, %v2525
        %v2558 = vadd.f32 %v2490, %v2526
        %v2559 = vadd.f32 %v2491, %v2527
        %v2560 = vadd.f32 %v2492, %v2528
        %v2561 = vadd.f32 %v2493, %v2529
        %v2562 = vadd.f32 %v2494, %v2530
        %v2563 = vadd.f32 %v2495, %v2531
        %v2564 = vadd.f32 %v2496, %v2532
        %v2565 = vadd.f32 %v2497, %v2533
        %v2566 = vadd.f32 %v2498, %v2534
        %v2567 = vadd.f32 %v2499, %v2535
        %v2568 = vadd.f32 %v2500, %v2536
        %v2569 = vadd.f32 %v2501, %v2537
        %v2570 = vadd.f32 %v2502, %v2538
        %v2571 = vadd.f32 %v2503, %v2539
        %v2572 = vadd.f32 %v2504, %v2540
        %v2573 = vadd.f32 %v2505, %v2541
        %v2574 = vadd.f32 %v2506, %v2542
        %v2575 = vadd.f32 %v2507, %v2543
        %v2576 = vadd.f32 %v2508, %v2544
        %v2577 = vadd.f32 %v2509, %v2545
        %v2578 = vadd.f32 %v2510, %v2546
        %v2579 = vadd.f32 %v2511, %v2547
        %v2580 = vadd.f32 %v2512, %v2548
        %v2581 = vadd.f32 %v2513, %v2549
        %v2582 = vadd.f32 %v2514, %v2550
        %v2583 = vlaneseq
        %v2584 = vshrl.u32 %v2583, 7
        %v2585 = vsub.s32 3, %v2584
        %v2586 = vrot.slane %v838, %v2585
        %v2587 = vmul.f32 %v2407, %v2586
        %v2588 = vmul.f32 %v2408, %v2586
        %v2589 = vmul.f32 %v2409, %v2586
        %v2590 = vmul.f32 %v2410, %v2586
        %v2591 = vmul.f32 %v2411, %v2586
        %v2592 = vmul.f32 %v2412, %v2586
        %v2593 = vmul.f32 %v2413, %v2586
        %v2594 = vmul.f32 %v2414, %v2586
        %v2595 = vmul.f32 %v2415, %v2586
        %v2596 = vmul.f32 %v2416, %v2586
        %v2597 = vmul.f32 %v2417, %v2586
        %v2598 = vmul.f32 %v2418, %v2586
        %v2599 = vmul.f32 %v2419, %v2586
        %v2600 = vmul.f32 %v2420, %v2586
        %v2601 = vmul.f32 %v2421, %v2586
        %v2602 = vmul.f32 %v2422, %v2586
        %v2603 = vmul.f32 %v2423, %v2586
        %v2604 = vmul.f32 %v2424, %v2586
        %v2605 = vmul.f32 %v2425, %v2586
        %v2606 = vmul.f32 %v2426, %v2586
        %v2607 = vmul.f32 %v2427, %v2586
        %v2608 = vmul.f32 %v2428, %v2586
        %v2609 = vmul.f32 %v2429, %v2586
        %v2610 = vmul.f32 %v2430, %v2586
        %v2611 = vmul.f32 %v2431, %v2586
        %v2612 = vmul.f32 %v2432, %v2586
        %v2613 = vmul.f32 %v2433, %v2586
        %v2614 = vmul.f32 %v2434, %v2586
        %v2615 = vmul.f32 %v2435, %v2586
        %v2616 = vmul.f32 %v2436, %v2586
        %v2617 = vmul.f32 %v2437, %v2586
        %v2618 = vmul.f32 %v2438, %v2586
        %v2619 = vadd.f32 %v2551, %v2587
        %v2620 = vadd.f32 %v2552, %v2588
        %v2621 = vadd.f32 %v2553, %v2589
        %v2622 = vadd.f32 %v2554, %v2590
        %v2623 = vadd.f32 %v2555, %v2591
        %v2624 = vadd.f32 %v2556, %v2592
        %v2625 = vadd.f32 %v2557, %v2593
        %v2626 = vadd.f32 %v2558, %v2594
        %v2627 = vadd.f32 %v2559, %v2595
        %v2628 = vadd.f32 %v2560, %v2596
        %v2629 = vadd.f32 %v2561, %v2597
        %v2630 = vadd.f32 %v2562, %v2598
        %v2631 = vadd.f32 %v2563, %v2599
        %v2632 = vadd.f32 %v2564, %v2600
        %v2633 = vadd.f32 %v2565, %v2601
        %v2634 = vadd.f32 %v2566, %v2602
        %v2635 = vadd.f32 %v2567, %v2603
        %v2636 = vadd.f32 %v2568, %v2604
        %v2637 = vadd.f32 %v2569, %v2605
        %v2638 = vadd.f32 %v2570, %v2606
        %v2639 = vadd.f32 %v2571, %v2607
        %v2640 = vadd.f32 %v2572, %v2608
        %v2641 = vadd.f32 %v2573, %v2609
        %v2642 = vadd.f32 %v2574, %v2610
        %v2643 = vadd.f32 %v2575, %v2611
        %v2644 = vadd.f32 %v2576, %v2612
        %v2645 = vadd.f32 %v2577, %v2613
        %v2646 = vadd.f32 %v2578, %v2614
        %v2647 = vadd.f32 %v2579, %v2615
        %v2648 = vadd.f32 %v2580, %v2616
        %v2649 = vadd.f32 %v2581, %v2617
        %v2650 = vadd.f32 %v2582, %v2618
        %v2651 = vlaneseq
        %v2652 = vshrl.u32 %v2651, 7
        %v2653 = vsub.s32 3, %v2652
        %v2654 = vrot.slane %v839, %v2653
        %v2655 = vmul.f32 %v2409, %v2654
        %v2656 = vmul.f32 %v2410, %v2654
        %v2657 = vmul.f32 %v2411, %v2654
        %v2658 = vmul.f32 %v2412, %v2654
        %v2659 = vmul.f32 %v2413, %v2654
        %v2660 = vmul.f32 %v2414, %v2654
        %v2661 = vmul.f32 %v2415, %v2654
        %v2662 = vmul.f32 %v2416, %v2654
        %v2663 = vmul.f32 %v2417, %v2654
        %v2664 = vmul.f32 %v2418, %v2654
        %v2665 = vmul.f32 %v2419, %v2654
        %v2666 = vmul.f32 %v2420, %v2654
        %v2667 = vmul.f32 %v2421, %v2654
        %v2668 = vmul.f32 %v2422, %v2654
        %v2669 = vmul.f32 %v2423, %v2654
        %v2670 = vmul.f32 %v2424, %v2654
        %v2671 = vmul.f32 %v2425, %v2654
        %v2672 = vmul.f32 %v2426, %v2654
        %v2673 = vmul.f32 %v2427, %v2654
        %v2674 = vmul.f32 %v2428, %v2654
        %v2675 = vmul.f32 %v2429, %v2654
        %v2676 = vmul.f32 %v2430, %v2654
        %v2677 = vmul.f32 %v2431, %v2654
        %v2678 = vmul.f32 %v2432, %v2654
        %v2679 = vmul.f32 %v2433, %v2654
        %v2680 = vmul.f32 %v2434, %v2654
        %v2681 = vmul.f32 %v2435, %v2654
        %v2682 = vmul.f32 %v2436, %v2654
        %v2683 = vmul.f32 %v2437, %v2654
        %v2684 = vmul.f32 %v2438, %v2654
        %v2685 = vmul.f32 %v2439, %v2654
        %v2686 = vmul.f32 %v2440, %v2654
        %v2687 = vadd.f32 %v2619, %v2655
        %v2688 = vadd.f32 %v2620, %v2656
        %v2689 = vadd.f32 %v2621, %v2657
        %v2690 = vadd.f32 %v2622, %v2658
        %v2691 = vadd.f32 %v2623, %v2659
        %v2692 = vadd.f32 %v2624, %v2660
        %v2693 = vadd.f32 %v2625, %v2661
        %v2694 = vadd.f32 %v2626, %v2662
        %v2695 = vadd.f32 %v2627, %v2663
        %v2696 = vadd.f32 %v2628, %v2664
        %v2697 = vadd.f32 %v2629, %v2665
        %v2698 = vadd.f32 %v2630, %v2666
        %v2699 = vadd.f32 %v2631, %v2667
        %v2700 = vadd.f32 %v2632, %v2668
        %v2701 = vadd.f32 %v2633, %v2669
        %v2702 = vadd.f32 %v2634, %v2670
        %v2703 = vadd.f32 %v2635, %v2671
        %v2704 = vadd.f32 %v2636, %v2672
        %v2705 = vadd.f32 %v2637, %v2673
        %v2706 = vadd.f32 %v2638, %v2674
        %v2707 = vadd.f32 %v2639, %v2675
        %v2708 = vadd.f32 %v2640, %v2676
        %v2709 = vadd.f32 %v2641, %v2677
        %v2710 = vadd.f32 %v2642, %v2678
        %v2711 = vadd.f32 %v2643, %v2679
        %v2712 = vadd.f32 %v2644, %v2680
        %v2713 = vadd.f32 %v2645, %v2681
        %v2714 = vadd.f32 %v2646, %v2682
        %v2715 = vadd.f32 %v2647, %v2683
        %v2716 = vadd.f32 %v2648, %v2684
        %v2717 = vadd.f32 %v2649, %v2685
        %v2718 = vadd.f32 %v2650, %v2686
        %v2719 = vlaneseq
        %v2720 = vshrl.u32 %v2719, 7
        %v2721 = vsub.s32 3, %v2720
        %v2722 = vrot.slane %v840, %v2721
        %v2723 = vmul.f32 %v2411, %v2722
        %v2724 = vmul.f32 %v2412, %v2722
        %v2725 = vmul.f32 %v2413, %v2722
        %v2726 = vmul.f32 %v2414, %v2722
        %v2727 = vmul.f32 %v2415, %v2722
        %v2728 = vmul.f32 %v2416, %v2722
        %v2729 = vmul.f32 %v2417, %v2722
        %v2730 = vmul.f32 %v2418, %v2722
        %v2731 = vmul.f32 %v2419, %v2722
        %v2732 = vmul.f32 %v2420, %v2722
        %v2733 = vmul.f32 %v2421, %v2722
        %v2734 = vmul.f32 %v2422, %v2722
        %v2735 = vmul.f32 %v2423, %v2722
        %v2736 = vmul.f32 %v2424, %v2722
        %v2737 = vmul.f32 %v2425, %v2722
        %v2738 = vmul.f32 %v2426, %v2722
        %v2739 = vmul.f32 %v2427, %v2722
        %v2740 = vmul.f32 %v2428, %v2722
        %v2741 = vmul.f32 %v2429, %v2722
        %v2742 = vmul.f32 %v2430, %v2722
        %v2743 = vmul.f32 %v2431, %v2722
        %v2744 = vmul.f32 %v2432, %v2722
        %v2745 = vmul.f32 %v2433, %v2722
        %v2746 = vmul.f32 %v2434, %v2722
        %v2747 = vmul.f32 %v2435, %v2722
        %v2748 = vmul.f32 %v2436, %v2722
        %v2749 = vmul.f32 %v2437, %v2722
        %v2750 = vmul.f32 %v2438, %v2722
        %v2751 = vmul.f32 %v2439, %v2722
        %v2752 = vmul.f32 %v2440, %v2722
        %v2753 = vmul.f32 %v2441, %v2722
        %v2754 = vmul.f32 %v2442, %v2722
        %v2755 = vadd.f32 %v2687, %v2723
        %v2756 = vadd.f32 %v2688, %v2724
        %v2757 = vadd.f32 %v2689, %v2725
        %v2758 = vadd.f32 %v2690, %v2726
        %v2759 = vadd.f32 %v2691, %v2727
        %v2760 = vadd.f32 %v2692, %v2728
        %v2761 = vadd.f32 %v2693, %v2729
        %v2762 = vadd.f32 %v2694, %v2730
        %v2763 = vadd.f32 %v2695, %v2731
        %v2764 = vadd.f32 %v2696, %v2732
        %v2765 = vadd.f32 %v2697, %v2733
        %v2766 = vadd.f32 %v2698, %v2734
        %v2767 = vadd.f32 %v2699, %v2735
        %v2768 = vadd.f32 %v2700, %v2736
        %v2769 = vadd.f32 %v2701, %v2737
        %v2770 = vadd.f32 %v2702, %v2738
        %v2771 = vadd.f32 %v2703, %v2739
        %v2772 = vadd.f32 %v2704, %v2740
        %v2773 = vadd.f32 %v2705, %v2741
        %v2774 = vadd.f32 %v2706, %v2742
        %v2775 = vadd.f32 %v2707, %v2743
        %v2776 = vadd.f32 %v2708, %v2744
        %v2777 = vadd.f32 %v2709, %v2745
        %v2778 = vadd.f32 %v2710, %v2746
        %v2779 = vadd.f32 %v2711, %v2747
        %v2780 = vadd.f32 %v2712, %v2748
        %v2781 = vadd.f32 %v2713, %v2749
        %v2782 = vadd.f32 %v2714, %v2750
        %v2783 = vadd.f32 %v2715, %v2751
        %v2784 = vadd.f32 %v2716, %v2752
        %v2785 = vadd.f32 %v2717, %v2753
        %v2786 = vadd.f32 %v2718, %v2754
        %v2787 = vlaneseq
        %v2788 = vshrl.u32 %v2787, 7
        %v2789 = vsub.s32 3, %v2788
        %v2790 = vrot.slane %v841, %v2789
        %v2791 = vmul.f32 %v2413, %v2790
        %v2792 = vmul.f32 %v2414, %v2790
        %v2793 = vmul.f32 %v2415, %v2790
        %v2794 = vmul.f32 %v2416, %v2790
        %v2795 = vmul.f32 %v2417, %v2790
        %v2796 = vmul.f32 %v2418, %v2790
        %v2797 = vmul.f32 %v2419, %v2790
        %v2798 = vmul.f32 %v2420, %v2790
        %v2799 = vmul.f32 %v2421, %v2790
        %v2800 = vmul.f32 %v2422, %v2790
        %v2801 = vmul.f32 %v2423, %v2790
        %v2802 = vmul.f32 %v2424, %v2790
        %v2803 = vmul.f32 %v2425, %v2790
        %v2804 = vmul.f32 %v2426, %v2790
        %v2805 = vmul.f32 %v2427, %v2790
        %v2806 = vmul.f32 %v2428, %v2790
        %v2807 = vmul.f32 %v2429, %v2790
        %v2808 = vmul.f32 %v2430, %v2790
        %v2809 = vmul.f32 %v2431, %v2790
        %v2810 = vmul.f32 %v2432, %v2790
        %v2811 = vmul.f32 %v2433, %v2790
        %v2812 = vmul.f32 %v2434, %v2790
        %v2813 = vmul.f32 %v2435, %v2790
        %v2814 = vmul.f32 %v2436, %v2790
        %v2815 = vmul.f32 %v2437, %v2790
        %v2816 = vmul.f32 %v2438, %v2790
        %v2817 = vmul.f32 %v2439, %v2790
        %v2818 = vmul.f32 %v2440, %v2790
        %v2819 = vmul.f32 %v2441, %v2790
        %v2820 = vmul.f32 %v2442, %v2790
        %v2821 = vmul.f32 %v2443, %v2790
        %v2822 = vmul.f32 %v2444, %v2790
        %v2823 = vadd.f32 %v2755, %v2791
        %v2824 = vadd.f32 %v2756, %v2792
        %v2825 = vadd.f32 %v2757, %v2793
        %v2826 = vadd.f32 %v2758, %v2794
        %v2827 = vadd.f32 %v2759, %v2795
        %v2828 = vadd.f32 %v2760, %v2796
        %v2829 = vadd.f32 %v2761, %v2797
        %v2830 = vadd.f32 %v2762, %v2798
        %v2831 = vadd.f32 %v2763, %v2799
        %v2832 = vadd.f32 %v2764, %v2800
        %v2833 = vadd.f32 %v2765, %v2801
        %v2834 = vadd.f32 %v2766, %v2802
        %v2835 = vadd.f32 %v2767, %v2803
        %v2836 = vadd.f32 %v2768, %v2804
        %v2837 = vadd.f32 %v2769, %v2805
        %v2838 = vadd.f32 %v2770, %v2806
        %v2839 = vadd.f32 %v2771, %v2807
        %v2840 = vadd.f32 %v2772, %v2808
        %v2841 = vadd.f32 %v2773, %v2809
        %v2842 = vadd.f32 %v2774, %v2810
        %v2843 = vadd.f32 %v2775, %v2811
        %v2844 = vadd.f32 %v2776, %v2812
        %v2845 = vadd.f32 %v2777, %v2813
        %v2846 = vadd.f32 %v2778, %v2814
        %v2847 = vadd.f32 %v2779, %v2815
        %v2848 = vadd.f32 %v2780, %v2816
        %v2849 = vadd.f32 %v2781, %v2817
        %v2850 = vadd.f32 %v2782, %v2818
        %v2851 = vadd.f32 %v2783, %v2819
        %v2852 = vadd.f32 %v2784, %v2820
        %v2853 = vadd.f32 %v2785, %v2821
        %v2854 = vadd.f32 %v2786, %v2822
        %v2855 = vlaneseq
        %v2856 = vshrl.u32 %v2855, 7
        %v2857 = vsub.s32 3, %v2856
        %v2858 = vrot.slane %v842, %v2857
        %v2859 = vmul.f32 %v2415, %v2858
        %v2860 = vmul.f32 %v2416, %v2858
        %v2861 = vmul.f32 %v2417, %v2858
        %v2862 = vmul.f32 %v2418, %v2858
        %v2863 = vmul.f32 %v2419, %v2858
        %v2864 = vmul.f32 %v2420, %v2858
        %v2865 = vmul.f32 %v2421, %v2858
        %v2866 = vmul.f32 %v2422, %v2858
        %v2867 = vmul.f32 %v2423, %v2858
        %v2868 = vmul.f32 %v2424, %v2858
        %v2869 = vmul.f32 %v2425, %v2858
        %v2870 = vmul.f32 %v2426, %v2858
        %v2871 = vmul.f32 %v2427, %v2858
        %v2872 = vmul.f32 %v2428, %v2858
        %v2873 = vmul.f32 %v2429, %v2858
        %v2874 = vmul.f32 %v2430, %v2858
        %v2875 = vmul.f32 %v2431, %v2858
        %v2876 = vmul.f32 %v2432, %v2858
        %v2877 = vmul.f32 %v2433, %v2858
        %v2878 = vmul.f32 %v2434, %v2858
        %v2879 = vmul.f32 %v2435, %v2858
        %v2880 = vmul.f32 %v2436, %v2858
        %v2881 = vmul.f32 %v2437, %v2858
        %v2882 = vmul.f32 %v2438, %v2858
        %v2883 = vmul.f32 %v2439, %v2858
        %v2884 = vmul.f32 %v2440, %v2858
        %v2885 = vmul.f32 %v2441, %v2858
        %v2886 = vmul.f32 %v2442, %v2858
        %v2887 = vmul.f32 %v2443, %v2858
        %v2888 = vmul.f32 %v2444, %v2858
        %v2889 = vmul.f32 %v2445, %v2858
        %v2890 = vmul.f32 %v2446, %v2858
        %v2891 = vadd.f32 %v2823, %v2859
        %v2892 = vadd.f32 %v2824, %v2860
        %v2893 = vadd.f32 %v2825, %v2861
        %v2894 = vadd.f32 %v2826, %v2862
        %v2895 = vadd.f32 %v2827, %v2863
        %v2896 = vadd.f32 %v2828, %v2864
        %v2897 = vadd.f32 %v2829, %v2865
        %v2898 = vadd.f32 %v2830, %v2866
        %v2899 = vadd.f32 %v2831, %v2867
        %v2900 = vadd.f32 %v2832, %v2868
        %v2901 = vadd.f32 %v2833, %v2869
        %v2902 = vadd.f32 %v2834, %v2870
        %v2903 = vadd.f32 %v2835, %v2871
        %v2904 = vadd.f32 %v2836, %v2872
        %v2905 = vadd.f32 %v2837, %v2873
        %v2906 = vadd.f32 %v2838, %v2874
        %v2907 = vadd.f32 %v2839, %v2875
        %v2908 = vadd.f32 %v2840, %v2876
        %v2909 = vadd.f32 %v2841, %v2877
        %v2910 = vadd.f32 %v2842, %v2878
        %v2911 = vadd.f32 %v2843, %v2879
        %v2912 = vadd.f32 %v2844, %v2880
        %v2913 = vadd.f32 %v2845, %v2881
        %v2914 = vadd.f32 %v2846, %v2882
        %v2915 = vadd.f32 %v2847, %v2883
        %v2916 = vadd.f32 %v2848, %v2884
        %v2917 = vadd.f32 %v2849, %v2885
        %v2918 = vadd.f32 %v2850, %v2886
        %v2919 = vadd.f32 %v2851, %v2887
        %v2920 = vadd.f32 %v2852, %v2888
        %v2921 = vadd.f32 %v2853, %v2889
        %v2922 = vadd.f32 %v2854, %v2890
        %v2923 = vld [vmem:[%s590 + $0x4] sm:$0xff]
        %v2924 = vld [vmem:[%s590 + $0xc] sm:$0xff]
        %v2925 = vld [vmem:[%s590 + $0x1c] sm:$0xff]
        %v2926 = vld [vmem:[%s590 + $0x24] sm:$0xff]
        %v2927 = vld [vmem:[%s590 + $0x34] sm:$0xff]
        %v2928 = vld [vmem:[%s590 + $0x3c] sm:$0xff]
        %v2929 = vld [vmem:[%s590 + $0x4c] sm:$0xff]
        %v2930 = vld [vmem:[%s590 + $0x54] sm:$0xff]
        %v2931 = vld [vmem:[%s590 + $0x64] sm:$0xff]
        %v2932 = vld [vmem:[%s590 + $0x6c] sm:$0xff]
        %v2933 = vld [vmem:[%s590 + $0x7c] sm:$0xff]
        %v2934 = vld [vmem:[%s590 + $0x84] sm:$0xff]
        %v2935 = vld [vmem:[%s590 + $0x94] sm:$0xff]
        %v2936 = vld [vmem:[%s590 + $0x9c] sm:$0xff]
        %v2937 = vld [vmem:[%s590 + $0xac] sm:$0xff]
        %v2938 = vld [vmem:[%s590 + $0xb4] sm:$0xff]
        %v2939 = vld [vmem:[%s590 + $0xc4] sm:$0xff]
        %v2940 = vld [vmem:[%s590 + $0xcc] sm:$0xff]
        %v2941 = vld [vmem:[%s590 + $0xdc] sm:$0xff]
        %v2942 = vld [vmem:[%s590 + $0xe4] sm:$0xff]
        %v2943 = vld [vmem:[%s590 + $0xf4] sm:$0xff]
        %v2944 = vld [vmem:[%s590 + $0xfc] sm:$0xff]
        %v2945 = vld [vmem:[%s590 + $0x10c] sm:$0xff]
        %v2946 = vld [vmem:[%s590 + $0x114] sm:$0xff]
        %v2947 = vld [vmem:[%s590 + $0x124] sm:$0xff]
        %v2948 = vld [vmem:[%s590 + $0x12c] sm:$0xff]
        %v2949 = vld [vmem:[%s590 + $0x13c] sm:$0xff]
        %v2950 = vld [vmem:[%s590 + $0x144] sm:$0xff]
        %v2951 = vld [vmem:[%s590 + $0x154] sm:$0xff]
        %v2952 = vld [vmem:[%s590 + $0x15c] sm:$0xff]
        %v2953 = vld [vmem:[%s590 + $0x16c] sm:$0xff]
        %v2954 = vld [vmem:[%s590 + $0x174] sm:$0xff]
        %v2955 = vld [vmem:[%s590 + $0x184] sm:$0xff]
        %v2956 = vld [vmem:[%s590 + $0x18c] sm:$0xff]
        %v2957 = vld [vmem:[%s590 + $0x19c] sm:$0xff]
        %v2958 = vld [vmem:[%s590 + $0x1a4] sm:$0xff]
        %v2959 = vld [vmem:[%s590 + $0x1b4] sm:$0xff]
        %v2960 = vld [vmem:[%s590 + $0x1bc] sm:$0xff]
        %v2961 = vld [vmem:[%s590 + $0x1cc] sm:$0xff]
        %v2962 = vld [vmem:[%s590 + $0x1d4] sm:$0xff]
        %v2963 = vld [vmem:[%s590 + $0x1e4] sm:$0xff]
        %v2964 = vld [vmem:[%s590 + $0x1ec] sm:$0xff]
        %v2965 = vld [vmem:[%s590 + $0x1fc] sm:$0xff]
        %v2966 = vld [vmem:[%s590 + $0x204] sm:$0xff]
        %v2967 = vlaneseq
        %v2968 = vshrl.u32 %v2967, 7
        %v2969 = vsub.s32 4, %v2968
        %v2970 = vrot.slane %v836, %v2969
        %v2971 = vmul.f32 %v2923, %v2970
        %v2972 = vmul.f32 %v2924, %v2970
        %v2973 = vmul.f32 %v2925, %v2970
        %v2974 = vmul.f32 %v2926, %v2970
        %v2975 = vmul.f32 %v2927, %v2970
        %v2976 = vmul.f32 %v2928, %v2970
        %v2977 = vmul.f32 %v2929, %v2970
        %v2978 = vmul.f32 %v2930, %v2970
        %v2979 = vmul.f32 %v2931, %v2970
        %v2980 = vmul.f32 %v2932, %v2970
        %v2981 = vmul.f32 %v2933, %v2970
        %v2982 = vmul.f32 %v2934, %v2970
        %v2983 = vmul.f32 %v2935, %v2970
        %v2984 = vmul.f32 %v2936, %v2970
        %v2985 = vmul.f32 %v2937, %v2970
        %v2986 = vmul.f32 %v2938, %v2970
        %v2987 = vmul.f32 %v2939, %v2970
        %v2988 = vmul.f32 %v2940, %v2970
        %v2989 = vmul.f32 %v2941, %v2970
        %v2990 = vmul.f32 %v2942, %v2970
        %v2991 = vmul.f32 %v2943, %v2970
        %v2992 = vmul.f32 %v2944, %v2970
        %v2993 = vmul.f32 %v2945, %v2970
        %v2994 = vmul.f32 %v2946, %v2970
        %v2995 = vmul.f32 %v2947, %v2970
        %v2996 = vmul.f32 %v2948, %v2970
        %v2997 = vmul.f32 %v2949, %v2970
        %v2998 = vmul.f32 %v2950, %v2970
        %v2999 = vmul.f32 %v2951, %v2970
        %v3000 = vmul.f32 %v2952, %v2970
        %v3001 = vmul.f32 %v2953, %v2970
        %v3002 = vmul.f32 %v2954, %v2970
        %v3003 = vadd.f32 %v2891, %v2971
        %v3004 = vadd.f32 %v2892, %v2972
        %v3005 = vadd.f32 %v2893, %v2973
        %v3006 = vadd.f32 %v2894, %v2974
        %v3007 = vadd.f32 %v2895, %v2975
        %v3008 = vadd.f32 %v2896, %v2976
        %v3009 = vadd.f32 %v2897, %v2977
        %v3010 = vadd.f32 %v2898, %v2978
        %v3011 = vadd.f32 %v2899, %v2979
        %v3012 = vadd.f32 %v2900, %v2980
        %v3013 = vadd.f32 %v2901, %v2981
        %v3014 = vadd.f32 %v2902, %v2982
        %v3015 = vadd.f32 %v2903, %v2983
        %v3016 = vadd.f32 %v2904, %v2984
        %v3017 = vadd.f32 %v2905, %v2985
        %v3018 = vadd.f32 %v2906, %v2986
        %v3019 = vadd.f32 %v2907, %v2987
        %v3020 = vadd.f32 %v2908, %v2988
        %v3021 = vadd.f32 %v2909, %v2989
        %v3022 = vadd.f32 %v2910, %v2990
        %v3023 = vadd.f32 %v2911, %v2991
        %v3024 = vadd.f32 %v2912, %v2992
        %v3025 = vadd.f32 %v2913, %v2993
        %v3026 = vadd.f32 %v2914, %v2994
        %v3027 = vadd.f32 %v2915, %v2995
        %v3028 = vadd.f32 %v2916, %v2996
        %v3029 = vadd.f32 %v2917, %v2997
        %v3030 = vadd.f32 %v2918, %v2998
        %v3031 = vadd.f32 %v2919, %v2999
        %v3032 = vadd.f32 %v2920, %v3000
        %v3033 = vadd.f32 %v2921, %v3001
        %v3034 = vadd.f32 %v2922, %v3002
        %v3035 = vlaneseq
        %v3036 = vshrl.u32 %v3035, 7
        %v3037 = vsub.s32 4, %v3036
        %v3038 = vrot.slane %v837, %v3037
        %v3039 = vmul.f32 %v2925, %v3038
        %v3040 = vmul.f32 %v2926, %v3038
        %v3041 = vmul.f32 %v2927, %v3038
        %v3042 = vmul.f32 %v2928, %v3038
        %v3043 = vmul.f32 %v2929, %v3038
        %v3044 = vmul.f32 %v2930, %v3038
        %v3045 = vmul.f32 %v2931, %v3038
        %v3046 = vmul.f32 %v2932, %v3038
        %v3047 = vmul.f32 %v2933, %v3038
        %v3048 = vmul.f32 %v2934, %v3038
        %v3049 = vmul.f32 %v2935, %v3038
        %v3050 = vmul.f32 %v2936, %v3038
        %v3051 = vmul.f32 %v2937, %v3038
        %v3052 = vmul.f32 %v2938, %v3038
        %v3053 = vmul.f32 %v2939, %v3038
        %v3054 = vmul.f32 %v2940, %v3038
        %v3055 = vmul.f32 %v2941, %v3038
        %v3056 = vmul.f32 %v2942, %v3038
        %v3057 = vmul.f32 %v2943, %v3038
        %v3058 = vmul.f32 %v2944, %v3038
        %v3059 = vmul.f32 %v2945, %v3038
        %v3060 = vmul.f32 %v2946, %v3038
        %v3061 = vmul.f32 %v2947, %v3038
        %v3062 = vmul.f32 %v2948, %v3038
        %v3063 = vmul.f32 %v2949, %v3038
        %v3064 = vmul.f32 %v2950, %v3038
        %v3065 = vmul.f32 %v2951, %v3038
        %v3066 = vmul.f32 %v2952, %v3038
        %v3067 = vmul.f32 %v2953, %v3038
        %v3068 = vmul.f32 %v2954, %v3038
        %v3069 = vmul.f32 %v2955, %v3038
        %v3070 = vmul.f32 %v2956, %v3038
        %v3071 = vadd.f32 %v3003, %v3039
        %v3072 = vadd.f32 %v3004, %v3040
        %v3073 = vadd.f32 %v3005, %v3041
        %v3074 = vadd.f32 %v3006, %v3042
        %v3075 = vadd.f32 %v3007, %v3043
        %v3076 = vadd.f32 %v3008, %v3044
        %v3077 = vadd.f32 %v3009, %v3045
        %v3078 = vadd.f32 %v3010, %v3046
        %v3079 = vadd.f32 %v3011, %v3047
        %v3080 = vadd.f32 %v3012, %v3048
        %v3081 = vadd.f32 %v3013, %v3049
        %v3082 = vadd.f32 %v3014, %v3050
        %v3083 = vadd.f32 %v3015, %v3051
        %v3084 = vadd.f32 %v3016, %v3052
        %v3085 = vadd.f32 %v3017, %v3053
        %v3086 = vadd.f32 %v3018, %v3054
        %v3087 = vadd.f32 %v3019, %v3055
        %v3088 = vadd.f32 %v3020, %v3056
        %v3089 = vadd.f32 %v3021, %v3057
        %v3090 = vadd.f32 %v3022, %v3058
        %v3091 = vadd.f32 %v3023, %v3059
        %v3092 = vadd.f32 %v3024, %v3060
        %v3093 = vadd.f32 %v3025, %v3061
        %v3094 = vadd.f32 %v3026, %v3062
        %v3095 = vadd.f32 %v3027, %v3063
        %v3096 = vadd.f32 %v3028, %v3064
        %v3097 = vadd.f32 %v3029, %v3065
        %v3098 = vadd.f32 %v3030, %v3066
        %v3099 = vadd.f32 %v3031, %v3067
        %v3100 = vadd.f32 %v3032, %v3068
        %v3101 = vadd.f32 %v3033, %v3069
        %v3102 = vadd.f32 %v3034, %v3070
        %v3103 = vlaneseq
        %v3104 = vshrl.u32 %v3103, 7
        %v3105 = vsub.s32 4, %v3104
        %v3106 = vrot.slane %v838, %v3105
        %v3107 = vmul.f32 %v2927, %v3106
        %v3108 = vmul.f32 %v2928, %v3106
        %v3109 = vmul.f32 %v2929, %v3106
        %v3110 = vmul.f32 %v2930, %v3106
        %v3111 = vmul.f32 %v2931, %v3106
        %v3112 = vmul.f32 %v2932, %v3106
        %v3113 = vmul.f32 %v2933, %v3106
        %v3114 = vmul.f32 %v2934, %v3106
        %v3115 = vmul.f32 %v2935, %v3106
        %v3116 = vmul.f32 %v2936, %v3106
        %v3117 = vmul.f32 %v2937, %v3106
        %v3118 = vmul.f32 %v2938, %v3106
        %v3119 = vmul.f32 %v2939, %v3106
        %v3120 = vmul.f32 %v2940, %v3106
        %v3121 = vmul.f32 %v2941, %v3106
        %v3122 = vmul.f32 %v2942, %v3106
        %v3123 = vmul.f32 %v2943, %v3106
        %v3124 = vmul.f32 %v2944, %v3106
        %v3125 = vmul.f32 %v2945, %v3106
        %v3126 = vmul.f32 %v2946, %v3106
        %v3127 = vmul.f32 %v2947, %v3106
        %v3128 = vmul.f32 %v2948, %v3106
        %v3129 = vmul.f32 %v2949, %v3106
        %v3130 = vmul.f32 %v2950, %v3106
        %v3131 = vmul.f32 %v2951, %v3106
        %v3132 = vmul.f32 %v2952, %v3106
        %v3133 = vmul.f32 %v2953, %v3106
        %v3134 = vmul.f32 %v2954, %v3106
        %v3135 = vmul.f32 %v2955, %v3106
        %v3136 = vmul.f32 %v2956, %v3106
        %v3137 = vmul.f32 %v2957, %v3106
        %v3138 = vmul.f32 %v2958, %v3106
        %v3139 = vadd.f32 %v3071, %v3107
        %v3140 = vadd.f32 %v3072, %v3108
        %v3141 = vadd.f32 %v3073, %v3109
        %v3142 = vadd.f32 %v3074, %v3110
        %v3143 = vadd.f32 %v3075, %v3111
        %v3144 = vadd.f32 %v3076, %v3112
        %v3145 = vadd.f32 %v3077, %v3113
        %v3146 = vadd.f32 %v3078, %v3114
        %v3147 = vadd.f32 %v3079, %v3115
        %v3148 = vadd.f32 %v3080, %v3116
        %v3149 = vadd.f32 %v3081, %v3117
        %v3150 = vadd.f32 %v3082, %v3118
        %v3151 = vadd.f32 %v3083, %v3119
        %v3152 = vadd.f32 %v3084, %v3120
        %v3153 = vadd.f32 %v3085, %v3121
        %v3154 = vadd.f32 %v3086, %v3122
        %v3155 = vadd.f32 %v3087, %v3123
        %v3156 = vadd.f32 %v3088, %v3124
        %v3157 = vadd.f32 %v3089, %v3125
        %v3158 = vadd.f32 %v3090, %v3126
        %v3159 = vadd.f32 %v3091, %v3127
        %v3160 = vadd.f32 %v3092, %v3128
        %v3161 = vadd.f32 %v3093, %v3129
        %v3162 = vadd.f32 %v3094, %v3130
        %v3163 = vadd.f32 %v3095, %v3131
        %v3164 = vadd.f32 %v3096, %v3132
        %v3165 = vadd.f32 %v3097, %v3133
        %v3166 = vadd.f32 %v3098, %v3134
        %v3167 = vadd.f32 %v3099, %v3135
        %v3168 = vadd.f32 %v3100, %v3136
        %v3169 = vadd.f32 %v3101, %v3137
        %v3170 = vadd.f32 %v3102, %v3138
        %v3171 = vlaneseq
        %v3172 = vshrl.u32 %v3171, 7
        %v3173 = vsub.s32 4, %v3172
        %v3174 = vrot.slane %v839, %v3173
        %v3175 = vmul.f32 %v2929, %v3174
        %v3176 = vmul.f32 %v2930, %v3174
        %v3177 = vmul.f32 %v2931, %v3174
        %v3178 = vmul.f32 %v2932, %v3174
        %v3179 = vmul.f32 %v2933, %v3174
        %v3180 = vmul.f32 %v2934, %v3174
        %v3181 = vmul.f32 %v2935, %v3174
        %v3182 = vmul.f32 %v2936, %v3174
        %v3183 = vmul.f32 %v2937, %v3174
        %v3184 = vmul.f32 %v2938, %v3174
        %v3185 = vmul.f32 %v2939, %v3174
        %v3186 = vmul.f32 %v2940, %v3174
        %v3187 = vmul.f32 %v2941, %v3174
        %v3188 = vmul.f32 %v2942, %v3174
        %v3189 = vmul.f32 %v2943, %v3174
        %v3190 = vmul.f32 %v2944, %v3174
        %v3191 = vmul.f32 %v2945, %v3174
        %v3192 = vmul.f32 %v2946, %v3174
        %v3193 = vmul.f32 %v2947, %v3174
        %v3194 = vmul.f32 %v2948, %v3174
        %v3195 = vmul.f32 %v2949, %v3174
        %v3196 = vmul.f32 %v2950, %v3174
        %v3197 = vmul.f32 %v2951, %v3174
        %v3198 = vmul.f32 %v2952, %v3174
        %v3199 = vmul.f32 %v2953, %v3174
        %v3200 = vmul.f32 %v2954, %v3174
        %v3201 = vmul.f32 %v2955, %v3174
        %v3202 = vmul.f32 %v2956, %v3174
        %v3203 = vmul.f32 %v2957, %v3174
        %v3204 = vmul.f32 %v2958, %v3174
        %v3205 = vmul.f32 %v2959, %v3174
        %v3206 = vmul.f32 %v2960, %v3174
        %v3207 = vadd.f32 %v3139, %v3175
        %v3208 = vadd.f32 %v3140, %v3176
        %v3209 = vadd.f32 %v3141, %v3177
        %v3210 = vadd.f32 %v3142, %v3178
        %v3211 = vadd.f32 %v3143, %v3179
        %v3212 = vadd.f32 %v3144, %v3180
        %v3213 = vadd.f32 %v3145, %v3181
        %v3214 = vadd.f32 %v3146, %v3182
        %v3215 = vadd.f32 %v3147, %v3183
        %v3216 = vadd.f32 %v3148, %v3184
        %v3217 = vadd.f32 %v3149, %v3185
        %v3218 = vadd.f32 %v3150, %v3186
        %v3219 = vadd.f32 %v3151, %v3187
        %v3220 = vadd.f32 %v3152, %v3188
        %v3221 = vadd.f32 %v3153, %v3189
        %v3222 = vadd.f32 %v3154, %v3190
        %v3223 = vadd.f32 %v3155, %v3191
        %v3224 = vadd.f32 %v3156, %v3192
        %v3225 = vadd.f32 %v3157, %v3193
        %v3226 = vadd.f32 %v3158, %v3194
        %v3227 = vadd.f32 %v3159, %v3195
        %v3228 = vadd.f32 %v3160, %v3196
        %v3229 = vadd.f32 %v3161, %v3197
        %v3230 = vadd.f32 %v3162, %v3198
        %v3231 = vadd.f32 %v3163, %v3199
        %v3232 = vadd.f32 %v3164, %v3200
        %v3233 = vadd.f32 %v3165, %v3201
        %v3234 = vadd.f32 %v3166, %v3202
        %v3235 = vadd.f32 %v3167, %v3203
        %v3236 = vadd.f32 %v3168, %v3204
        %v3237 = vadd.f32 %v3169, %v3205
        %v3238 = vadd.f32 %v3170, %v3206
        %v3239 = vlaneseq
        %v3240 = vshrl.u32 %v3239, 7
        %v3241 = vsub.s32 4, %v3240
        %v3242 = vrot.slane %v840, %v3241
        %v3243 = vmul.f32 %v2931, %v3242
        %v3244 = vmul.f32 %v2932, %v3242
        %v3245 = vmul.f32 %v2933, %v3242
        %v3246 = vmul.f32 %v2934, %v3242
        %v3247 = vmul.f32 %v2935, %v3242
        %v3248 = vmul.f32 %v2936, %v3242
        %v3249 = vmul.f32 %v2937, %v3242
        %v3250 = vmul.f32 %v2938, %v3242
        %v3251 = vmul.f32 %v2939, %v3242
        %v3252 = vmul.f32 %v2940, %v3242
        %v3253 = vmul.f32 %v2941, %v3242
        %v3254 = vmul.f32 %v2942, %v3242
        %v3255 = vmul.f32 %v2943, %v3242
        %v3256 = vmul.f32 %v2944, %v3242
        %v3257 = vmul.f32 %v2945, %v3242
        %v3258 = vmul.f32 %v2946, %v3242
        %v3259 = vmul.f32 %v2947, %v3242
        %v3260 = vmul.f32 %v2948, %v3242
        %v3261 = vmul.f32 %v2949, %v3242
        %v3262 = vmul.f32 %v2950, %v3242
        %v3263 = vmul.f32 %v2951, %v3242
        %v3264 = vmul.f32 %v2952, %v3242
        %v3265 = vmul.f32 %v2953, %v3242
        %v3266 = vmul.f32 %v2954, %v3242
        %v3267 = vmul.f32 %v2955, %v3242
        %v3268 = vmul.f32 %v2956, %v3242
        %v3269 = vmul.f32 %v2957, %v3242
        %v3270 = vmul.f32 %v2958, %v3242
        %v3271 = vmul.f32 %v2959, %v3242
        %v3272 = vmul.f32 %v2960, %v3242
        %v3273 = vmul.f32 %v2961, %v3242
        %v3274 = vmul.f32 %v2962, %v3242
        %v3275 = vadd.f32 %v3207, %v3243
        %v3276 = vadd.f32 %v3208, %v3244
        %v3277 = vadd.f32 %v3209, %v3245
        %v3278 = vadd.f32 %v3210, %v3246
        %v3279 = vadd.f32 %v3211, %v3247
        %v3280 = vadd.f32 %v3212, %v3248
        %v3281 = vadd.f32 %v3213, %v3249
        %v3282 = vadd.f32 %v3214, %v3250
        %v3283 = vadd.f32 %v3215, %v3251
        %v3284 = vadd.f32 %v3216, %v3252
        %v3285 = vadd.f32 %v3217, %v3253
        %v3286 = vadd.f32 %v3218, %v3254
        %v3287 = vadd.f32 %v3219, %v3255
        %v3288 = vadd.f32 %v3220, %v3256
        %v3289 = vadd.f32 %v3221, %v3257
        %v3290 = vadd.f32 %v3222, %v3258
        %v3291 = vadd.f32 %v3223, %v3259
        %v3292 = vadd.f32 %v3224, %v3260
        %v3293 = vadd.f32 %v3225, %v3261
        %v3294 = vadd.f32 %v3226, %v3262
        %v3295 = vadd.f32 %v3227, %v3263
        %v3296 = vadd.f32 %v3228, %v3264
        %v3297 = vadd.f32 %v3229, %v3265
        %v3298 = vadd.f32 %v3230, %v3266
        %v3299 = vadd.f32 %v3231, %v3267
        %v3300 = vadd.f32 %v3232, %v3268
        %v3301 = vadd.f32 %v3233, %v3269
        %v3302 = vadd.f32 %v3234, %v3270
        %v3303 = vadd.f32 %v3235, %v3271
        %v3304 = vadd.f32 %v3236, %v3272
        %v3305 = vadd.f32 %v3237, %v3273
        %v3306 = vadd.f32 %v3238, %v3274
        %v3307 = vlaneseq
        %v3308 = vshrl.u32 %v3307, 7
        %v3309 = vsub.s32 4, %v3308
        %v3310 = vrot.slane %v841, %v3309
        %v3311 = vmul.f32 %v2933, %v3310
        %v3312 = vmul.f32 %v2934, %v3310
        %v3313 = vmul.f32 %v2935, %v3310
        %v3314 = vmul.f32 %v2936, %v3310
        %v3315 = vmul.f32 %v2937, %v3310
        %v3316 = vmul.f32 %v2938, %v3310
        %v3317 = vmul.f32 %v2939, %v3310
        %v3318 = vmul.f32 %v2940, %v3310
        %v3319 = vmul.f32 %v2941, %v3310
        %v3320 = vmul.f32 %v2942, %v3310
        %v3321 = vmul.f32 %v2943, %v3310
        %v3322 = vmul.f32 %v2944, %v3310
        %v3323 = vmul.f32 %v2945, %v3310
        %v3324 = vmul.f32 %v2946, %v3310
        %v3325 = vmul.f32 %v2947, %v3310
        %v3326 = vmul.f32 %v2948, %v3310
        %v3327 = vmul.f32 %v2949, %v3310
        %v3328 = vmul.f32 %v2950, %v3310
        %v3329 = vmul.f32 %v2951, %v3310
        %v3330 = vmul.f32 %v2952, %v3310
        %v3331 = vmul.f32 %v2953, %v3310
        %v3332 = vmul.f32 %v2954, %v3310
        %v3333 = vmul.f32 %v2955, %v3310
        %v3334 = vmul.f32 %v2956, %v3310
        %v3335 = vmul.f32 %v2957, %v3310
        %v3336 = vmul.f32 %v2958, %v3310
        %v3337 = vmul.f32 %v2959, %v3310
        %v3338 = vmul.f32 %v2960, %v3310
        %v3339 = vmul.f32 %v2961, %v3310
        %v3340 = vmul.f32 %v2962, %v3310
        %v3341 = vmul.f32 %v2963, %v3310
        %v3342 = vmul.f32 %v2964, %v3310
        %v3343 = vadd.f32 %v3275, %v3311
        %v3344 = vadd.f32 %v3276, %v3312
        %v3345 = vadd.f32 %v3277, %v3313
        %v3346 = vadd.f32 %v3278, %v3314
        %v3347 = vadd.f32 %v3279, %v3315
        %v3348 = vadd.f32 %v3280, %v3316
        %v3349 = vadd.f32 %v3281, %v3317
        %v3350 = vadd.f32 %v3282, %v3318
        %v3351 = vadd.f32 %v3283, %v3319
        %v3352 = vadd.f32 %v3284, %v3320
        %v3353 = vadd.f32 %v3285, %v3321
        %v3354 = vadd.f32 %v3286, %v3322
        %v3355 = vadd.f32 %v3287, %v3323
        %v3356 = vadd.f32 %v3288, %v3324
        %v3357 = vadd.f32 %v3289, %v3325
        %v3358 = vadd.f32 %v3290, %v3326
        %v3359 = vadd.f32 %v3291, %v3327
        %v3360 = vadd.f32 %v3292, %v3328
        %v3361 = vadd.f32 %v3293, %v3329
        %v3362 = vadd.f32 %v3294, %v3330
        %v3363 = vadd.f32 %v3295, %v3331
        %v3364 = vadd.f32 %v3296, %v3332
        %v3365 = vadd.f32 %v3297, %v3333
        %v3366 = vadd.f32 %v3298, %v3334
        %v3367 = vadd.f32 %v3299, %v3335
        %v3368 = vadd.f32 %v3300, %v3336
        %v3369 = vadd.f32 %v3301, %v3337
        %v3370 = vadd.f32 %v3302, %v3338
        %v3371 = vadd.f32 %v3303, %v3339
        %v3372 = vadd.f32 %v3304, %v3340
        %v3373 = vadd.f32 %v3305, %v3341
        %v3374 = vadd.f32 %v3306, %v3342
        %v3375 = vlaneseq
        %v3376 = vshrl.u32 %v3375, 7
        %v3377 = vsub.s32 4, %v3376
        %v3378 = vrot.slane %v842, %v3377
        %v3379 = vmul.f32 %v2935, %v3378
        %v3380 = vmul.f32 %v2936, %v3378
        %v3381 = vmul.f32 %v2937, %v3378
        %v3382 = vmul.f32 %v2938, %v3378
        %v3383 = vmul.f32 %v2939, %v3378
        %v3384 = vmul.f32 %v2940, %v3378
        %v3385 = vmul.f32 %v2941, %v3378
        %v3386 = vmul.f32 %v2942, %v3378
        %v3387 = vmul.f32 %v2943, %v3378
        %v3388 = vmul.f32 %v2944, %v3378
        %v3389 = vmul.f32 %v2945, %v3378
        %v3390 = vmul.f32 %v2946, %v3378
        %v3391 = vmul.f32 %v2947, %v3378
        %v3392 = vmul.f32 %v2948, %v3378
        %v3393 = vmul.f32 %v2949, %v3378
        %v3394 = vmul.f32 %v2950, %v3378
        %v3395 = vmul.f32 %v2951, %v3378
        %v3396 = vmul.f32 %v2952, %v3378
        %v3397 = vmul.f32 %v2953, %v3378
        %v3398 = vmul.f32 %v2954, %v3378
        %v3399 = vmul.f32 %v2955, %v3378
        %v3400 = vmul.f32 %v2956, %v3378
        %v3401 = vmul.f32 %v2957, %v3378
        %v3402 = vmul.f32 %v2958, %v3378
        %v3403 = vmul.f32 %v2959, %v3378
        %v3404 = vmul.f32 %v2960, %v3378
        %v3405 = vmul.f32 %v2961, %v3378
        %v3406 = vmul.f32 %v2962, %v3378
        %v3407 = vmul.f32 %v2963, %v3378
        %v3408 = vmul.f32 %v2964, %v3378
        %v3409 = vmul.f32 %v2965, %v3378
        %v3410 = vmul.f32 %v2966, %v3378
        %v3411 = vadd.f32 %v3343, %v3379
        %v3412 = vadd.f32 %v3344, %v3380
        %v3413 = vadd.f32 %v3345, %v3381
        %v3414 = vadd.f32 %v3346, %v3382
        %v3415 = vadd.f32 %v3347, %v3383
        %v3416 = vadd.f32 %v3348, %v3384
        %v3417 = vadd.f32 %v3349, %v3385
        %v3418 = vadd.f32 %v3350, %v3386
        %v3419 = vadd.f32 %v3351, %v3387
        %v3420 = vadd.f32 %v3352, %v3388
        %v3421 = vadd.f32 %v3353, %v3389
        %v3422 = vadd.f32 %v3354, %v3390
        %v3423 = vadd.f32 %v3355, %v3391
        %v3424 = vadd.f32 %v3356, %v3392
        %v3425 = vadd.f32 %v3357, %v3393
        %v3426 = vadd.f32 %v3358, %v3394
        %v3427 = vadd.f32 %v3359, %v3395
        %v3428 = vadd.f32 %v3360, %v3396
        %v3429 = vadd.f32 %v3361, %v3397
        %v3430 = vadd.f32 %v3362, %v3398
        %v3431 = vadd.f32 %v3363, %v3399
        %v3432 = vadd.f32 %v3364, %v3400
        %v3433 = vadd.f32 %v3365, %v3401
        %v3434 = vadd.f32 %v3366, %v3402
        %v3435 = vadd.f32 %v3367, %v3403
        %v3436 = vadd.f32 %v3368, %v3404
        %v3437 = vadd.f32 %v3369, %v3405
        %v3438 = vadd.f32 %v3370, %v3406
        %v3439 = vadd.f32 %v3371, %v3407
        %v3440 = vadd.f32 %v3372, %v3408
        %v3441 = vadd.f32 %v3373, %v3409
        %v3442 = vadd.f32 %v3374, %v3410
        %v3443 = vld [vmem:[%s590 + $0x5] sm:$0xff]
        %v3444 = vld [vmem:[%s590 + $0xd] sm:$0xff]
        %v3445 = vld [vmem:[%s590 + $0x1d] sm:$0xff]
        %v3446 = vld [vmem:[%s590 + $0x25] sm:$0xff]
        %v3447 = vld [vmem:[%s590 + $0x35] sm:$0xff]
        %v3448 = vld [vmem:[%s590 + $0x3d] sm:$0xff]
        %v3449 = vld [vmem:[%s590 + $0x4d] sm:$0xff]
        %v3450 = vld [vmem:[%s590 + $0x55] sm:$0xff]
        %v3451 = vld [vmem:[%s590 + $0x65] sm:$0xff]
        %v3452 = vld [vmem:[%s590 + $0x6d] sm:$0xff]
        %v3453 = vld [vmem:[%s590 + $0x7d] sm:$0xff]
        %v3454 = vld [vmem:[%s590 + $0x85] sm:$0xff]
        %v3455 = vld [vmem:[%s590 + $0x95] sm:$0xff]
        %v3456 = vld [vmem:[%s590 + $0x9d] sm:$0xff]
        %v3457 = vld [vmem:[%s590 + $0xad] sm:$0xff]
        %v3458 = vld [vmem:[%s590 + $0xb5] sm:$0xff]
        %v3459 = vld [vmem:[%s590 + $0xc5] sm:$0xff]
        %v3460 = vld [vmem:[%s590 + $0xcd] sm:$0xff]
        %v3461 = vld [vmem:[%s590 + $0xdd] sm:$0xff]
        %v3462 = vld [vmem:[%s590 + $0xe5] sm:$0xff]
        %v3463 = vld [vmem:[%s590 + $0xf5] sm:$0xff]
        %v3464 = vld [vmem:[%s590 + $0xfd] sm:$0xff]
        %v3465 = vld [vmem:[%s590 + $0x10d] sm:$0xff]
        %v3466 = vld [vmem:[%s590 + $0x115] sm:$0xff]
        %v3467 = vld [vmem:[%s590 + $0x125] sm:$0xff]
        %v3468 = vld [vmem:[%s590 + $0x12d] sm:$0xff]
        %v3469 = vld [vmem:[%s590 + $0x13d] sm:$0xff]
        %v3470 = vld [vmem:[%s590 + $0x145] sm:$0xff]
        %v3471 = vld [vmem:[%s590 + $0x155] sm:$0xff]
        %v3472 = vld [vmem:[%s590 + $0x15d] sm:$0xff]
        %v3473 = vld [vmem:[%s590 + $0x16d] sm:$0xff]
        %v3474 = vld [vmem:[%s590 + $0x175] sm:$0xff]
        %v3475 = vld [vmem:[%s590 + $0x185] sm:$0xff]
        %v3476 = vld [vmem:[%s590 + $0x18d] sm:$0xff]
        %v3477 = vld [vmem:[%s590 + $0x19d] sm:$0xff]
        %v3478 = vld [vmem:[%s590 + $0x1a5] sm:$0xff]
        %v3479 = vld [vmem:[%s590 + $0x1b5] sm:$0xff]
        %v3480 = vld [vmem:[%s590 + $0x1bd] sm:$0xff]
        %v3481 = vld [vmem:[%s590 + $0x1cd] sm:$0xff]
        %v3482 = vld [vmem:[%s590 + $0x1d5] sm:$0xff]
        %v3483 = vld [vmem:[%s590 + $0x1e5] sm:$0xff]
        %v3484 = vld [vmem:[%s590 + $0x1ed] sm:$0xff]
        %v3485 = vld [vmem:[%s590 + $0x1fd] sm:$0xff]
        %v3486 = vld [vmem:[%s590 + $0x205] sm:$0xff]
        %v3487 = vlaneseq
        %v3488 = vshrl.u32 %v3487, 7
        %v3489 = vsub.s32 5, %v3488
        %v3490 = vrot.slane %v836, %v3489
        %v3491 = vmul.f32 %v3443, %v3490
        %v3492 = vmul.f32 %v3444, %v3490
        %v3493 = vmul.f32 %v3445, %v3490
        %v3494 = vmul.f32 %v3446, %v3490
        %v3495 = vmul.f32 %v3447, %v3490
        %v3496 = vmul.f32 %v3448, %v3490
        %v3497 = vmul.f32 %v3449, %v3490
        %v3498 = vmul.f32 %v3450, %v3490
        %v3499 = vmul.f32 %v3451, %v3490
        %v3500 = vmul.f32 %v3452, %v3490
        %v3501 = vmul.f32 %v3453, %v3490
        %v3502 = vmul.f32 %v3454, %v3490
        %v3503 = vmul.f32 %v3455, %v3490
        %v3504 = vmul.f32 %v3456, %v3490
        %v3505 = vmul.f32 %v3457, %v3490
        %v3506 = vmul.f32 %v3458, %v3490
        %v3507 = vmul.f32 %v3459, %v3490
        %v3508 = vmul.f32 %v3460, %v3490
        %v3509 = vmul.f32 %v3461, %v3490
        %v3510 = vmul.f32 %v3462, %v3490
        %v3511 = vmul.f32 %v3463, %v3490
        %v3512 = vmul.f32 %v3464, %v3490
        %v3513 = vmul.f32 %v3465, %v3490
        %v3514 = vmul.f32 %v3466, %v3490
        %v3515 = vmul.f32 %v3467, %v3490
        %v3516 = vmul.f32 %v3468, %v3490
        %v3517 = vmul.f32 %v3469, %v3490
        %v3518 = vmul.f32 %v3470, %v3490
        %v3519 = vmul.f32 %v3471, %v3490
        %v3520 = vmul.f32 %v3472, %v3490
        %v3521 = vmul.f32 %v3473, %v3490
        %v3522 = vmul.f32 %v3474, %v3490
        %v3523 = vadd.f32 %v3411, %v3491
        %v3524 = vadd.f32 %v3412, %v3492
        %v3525 = vadd.f32 %v3413, %v3493
        %v3526 = vadd.f32 %v3414, %v3494
        %v3527 = vadd.f32 %v3415, %v3495
        %v3528 = vadd.f32 %v3416, %v3496
        %v3529 = vadd.f32 %v3417, %v3497
        %v3530 = vadd.f32 %v3418, %v3498
        %v3531 = vadd.f32 %v3419, %v3499
        %v3532 = vadd.f32 %v3420, %v3500
        %v3533 = vadd.f32 %v3421, %v3501
        %v3534 = vadd.f32 %v3422, %v3502
        %v3535 = vadd.f32 %v3423, %v3503
        %v3536 = vadd.f32 %v3424, %v3504
        %v3537 = vadd.f32 %v3425, %v3505
        %v3538 = vadd.f32 %v3426, %v3506
        %v3539 = vadd.f32 %v3427, %v3507
        %v3540 = vadd.f32 %v3428, %v3508
        %v3541 = vadd.f32 %v3429, %v3509
        %v3542 = vadd.f32 %v3430, %v3510
        %v3543 = vadd.f32 %v3431, %v3511
        %v3544 = vadd.f32 %v3432, %v3512
        %v3545 = vadd.f32 %v3433, %v3513
        %v3546 = vadd.f32 %v3434, %v3514
        %v3547 = vadd.f32 %v3435, %v3515
        %v3548 = vadd.f32 %v3436, %v3516
        %v3549 = vadd.f32 %v3437, %v3517
        %v3550 = vadd.f32 %v3438, %v3518
        %v3551 = vadd.f32 %v3439, %v3519
        %v3552 = vadd.f32 %v3440, %v3520
        %v3553 = vadd.f32 %v3441, %v3521
        %v3554 = vadd.f32 %v3442, %v3522
        %v3555 = vlaneseq
        %v3556 = vshrl.u32 %v3555, 7
        %v3557 = vsub.s32 5, %v3556
        %v3558 = vrot.slane %v837, %v3557
        %v3559 = vmul.f32 %v3445, %v3558
        %v3560 = vmul.f32 %v3446, %v3558
        %v3561 = vmul.f32 %v3447, %v3558
        %v3562 = vmul.f32 %v3448, %v3558
        %v3563 = vmul.f32 %v3449, %v3558
        %v3564 = vmul.f32 %v3450, %v3558
        %v3565 = vmul.f32 %v3451, %v3558
        %v3566 = vmul.f32 %v3452, %v3558
        %v3567 = vmul.f32 %v3453, %v3558
        %v3568 = vmul.f32 %v3454, %v3558
        %v3569 = vmul.f32 %v3455, %v3558
        %v3570 = vmul.f32 %v3456, %v3558
        %v3571 = vmul.f32 %v3457, %v3558
        %v3572 = vmul.f32 %v3458, %v3558
        %v3573 = vmul.f32 %v3459, %v3558
        %v3574 = vmul.f32 %v3460, %v3558
        %v3575 = vmul.f32 %v3461, %v3558
        %v3576 = vmul.f32 %v3462, %v3558
        %v3577 = vmul.f32 %v3463, %v3558
        %v3578 = vmul.f32 %v3464, %v3558
        %v3579 = vmul.f32 %v3465, %v3558
        %v3580 = vmul.f32 %v3466, %v3558
        %v3581 = vmul.f32 %v3467, %v3558
        %v3582 = vmul.f32 %v3468, %v3558
        %v3583 = vmul.f32 %v3469, %v3558
        %v3584 = vmul.f32 %v3470, %v3558
        %v3585 = vmul.f32 %v3471, %v3558
        %v3586 = vmul.f32 %v3472, %v3558
        %v3587 = vmul.f32 %v3473, %v3558
        %v3588 = vmul.f32 %v3474, %v3558
        %v3589 = vmul.f32 %v3475, %v3558
        %v3590 = vmul.f32 %v3476, %v3558
        %v3591 = vadd.f32 %v3523, %v3559
        %v3592 = vadd.f32 %v3524, %v3560
        %v3593 = vadd.f32 %v3525, %v3561
        %v3594 = vadd.f32 %v3526, %v3562
        %v3595 = vadd.f32 %v3527, %v3563
        %v3596 = vadd.f32 %v3528, %v3564
        %v3597 = vadd.f32 %v3529, %v3565
        %v3598 = vadd.f32 %v3530, %v3566
        %v3599 = vadd.f32 %v3531, %v3567
        %v3600 = vadd.f32 %v3532, %v3568
        %v3601 = vadd.f32 %v3533, %v3569
        %v3602 = vadd.f32 %v3534, %v3570
        %v3603 = vadd.f32 %v3535, %v3571
        %v3604 = vadd.f32 %v3536, %v3572
        %v3605 = vadd.f32 %v3537, %v3573
        %v3606 = vadd.f32 %v3538, %v3574
        %v3607 = vadd.f32 %v3539, %v3575
        %v3608 = vadd.f32 %v3540, %v3576
        %v3609 = vadd.f32 %v3541, %v3577
        %v3610 = vadd.f32 %v3542, %v3578
        %v3611 = vadd.f32 %v3543, %v3579
        %v3612 = vadd.f32 %v3544, %v3580
        %v3613 = vadd.f32 %v3545, %v3581
        %v3614 = vadd.f32 %v3546, %v3582
        %v3615 = vadd.f32 %v3547, %v3583
        %v3616 = vadd.f32 %v3548, %v3584
        %v3617 = vadd.f32 %v3549, %v3585
        %v3618 = vadd.f32 %v3550, %v3586
        %v3619 = vadd.f32 %v3551, %v3587
        %v3620 = vadd.f32 %v3552, %v3588
        %v3621 = vadd.f32 %v3553, %v3589
        %v3622 = vadd.f32 %v3554, %v3590
        %v3623 = vlaneseq
        %v3624 = vshrl.u32 %v3623, 7
        %v3625 = vsub.s32 5, %v3624
        %v3626 = vrot.slane %v838, %v3625
        %v3627 = vmul.f32 %v3447, %v3626
        %v3628 = vmul.f32 %v3448, %v3626
        %v3629 = vmul.f32 %v3449, %v3626
        %v3630 = vmul.f32 %v3450, %v3626
        %v3631 = vmul.f32 %v3451, %v3626
        %v3632 = vmul.f32 %v3452, %v3626
        %v3633 = vmul.f32 %v3453, %v3626
        %v3634 = vmul.f32 %v3454, %v3626
        %v3635 = vmul.f32 %v3455, %v3626
        %v3636 = vmul.f32 %v3456, %v3626
        %v3637 = vmul.f32 %v3457, %v3626
        %v3638 = vmul.f32 %v3458, %v3626
        %v3639 = vmul.f32 %v3459, %v3626
        %v3640 = vmul.f32 %v3460, %v3626
        %v3641 = vmul.f32 %v3461, %v3626
        %v3642 = vmul.f32 %v3462, %v3626
        %v3643 = vmul.f32 %v3463, %v3626
        %v3644 = vmul.f32 %v3464, %v3626
        %v3645 = vmul.f32 %v3465, %v3626
        %v3646 = vmul.f32 %v3466, %v3626
        %v3647 = vmul.f32 %v3467, %v3626
        %v3648 = vmul.f32 %v3468, %v3626
        %v3649 = vmul.f32 %v3469, %v3626
        %v3650 = vmul.f32 %v3470, %v3626
        %v3651 = vmul.f32 %v3471, %v3626
        %v3652 = vmul.f32 %v3472, %v3626
        %v3653 = vmul.f32 %v3473, %v3626
        %v3654 = vmul.f32 %v3474, %v3626
        %v3655 = vmul.f32 %v3475, %v3626
        %v3656 = vmul.f32 %v3476, %v3626
        %v3657 = vmul.f32 %v3477, %v3626
        %v3658 = vmul.f32 %v3478, %v3626
        %v3659 = vadd.f32 %v3591, %v3627
        %v3660 = vadd.f32 %v3592, %v3628
        %v3661 = vadd.f32 %v3593, %v3629
        %v3662 = vadd.f32 %v3594, %v3630
        %v3663 = vadd.f32 %v3595, %v3631
        %v3664 = vadd.f32 %v3596, %v3632
        %v3665 = vadd.f32 %v3597, %v3633
        %v3666 = vadd.f32 %v3598, %v3634
        %v3667 = vadd.f32 %v3599, %v3635
        %v3668 = vadd.f32 %v3600, %v3636
        %v3669 = vadd.f32 %v3601, %v3637
        %v3670 = vadd.f32 %v3602, %v3638
        %v3671 = vadd.f32 %v3603, %v3639
        %v3672 = vadd.f32 %v3604, %v3640
        %v3673 = vadd.f32 %v3605, %v3641
        %v3674 = vadd.f32 %v3606, %v3642
        %v3675 = vadd.f32 %v3607, %v3643
        %v3676 = vadd.f32 %v3608, %v3644
        %v3677 = vadd.f32 %v3609, %v3645
        %v3678 = vadd.f32 %v3610, %v3646
        %v3679 = vadd.f32 %v3611, %v3647
        %v3680 = vadd.f32 %v3612, %v3648
        %v3681 = vadd.f32 %v3613, %v3649
        %v3682 = vadd.f32 %v3614, %v3650
        %v3683 = vadd.f32 %v3615, %v3651
        %v3684 = vadd.f32 %v3616, %v3652
        %v3685 = vadd.f32 %v3617, %v3653
        %v3686 = vadd.f32 %v3618, %v3654
        %v3687 = vadd.f32 %v3619, %v3655
        %v3688 = vadd.f32 %v3620, %v3656
        %v3689 = vadd.f32 %v3621, %v3657
        %v3690 = vadd.f32 %v3622, %v3658
        %v3691 = vlaneseq
        %v3692 = vshrl.u32 %v3691, 7
        %v3693 = vsub.s32 5, %v3692
        %v3694 = vrot.slane %v839, %v3693
        %v3695 = vmul.f32 %v3449, %v3694
        %v3696 = vmul.f32 %v3450, %v3694
        %v3697 = vmul.f32 %v3451, %v3694
        %v3698 = vmul.f32 %v3452, %v3694
        %v3699 = vmul.f32 %v3453, %v3694
        %v3700 = vmul.f32 %v3454, %v3694
        %v3701 = vmul.f32 %v3455, %v3694
        %v3702 = vmul.f32 %v3456, %v3694
        %v3703 = vmul.f32 %v3457, %v3694
        %v3704 = vmul.f32 %v3458, %v3694
        %v3705 = vmul.f32 %v3459, %v3694
        %v3706 = vmul.f32 %v3460, %v3694
        %v3707 = vmul.f32 %v3461, %v3694
        %v3708 = vmul.f32 %v3462, %v3694
        %v3709 = vmul.f32 %v3463, %v3694
        %v3710 = vmul.f32 %v3464, %v3694
        %v3711 = vmul.f32 %v3465, %v3694
        %v3712 = vmul.f32 %v3466, %v3694
        %v3713 = vmul.f32 %v3467, %v3694
        %v3714 = vmul.f32 %v3468, %v3694
        %v3715 = vmul.f32 %v3469, %v3694
        %v3716 = vmul.f32 %v3470, %v3694
        %v3717 = vmul.f32 %v3471, %v3694
        %v3718 = vmul.f32 %v3472, %v3694
        %v3719 = vmul.f32 %v3473, %v3694
        %v3720 = vmul.f32 %v3474, %v3694
        %v3721 = vmul.f32 %v3475, %v3694
        %v3722 = vmul.f32 %v3476, %v3694
        %v3723 = vmul.f32 %v3477, %v3694
        %v3724 = vmul.f32 %v3478, %v3694
        %v3725 = vmul.f32 %v3479, %v3694
        %v3726 = vmul.f32 %v3480, %v3694
        %v3727 = vadd.f32 %v3659, %v3695
        %v3728 = vadd.f32 %v3660, %v3696
        %v3729 = vadd.f32 %v3661, %v3697
        %v3730 = vadd.f32 %v3662, %v3698
        %v3731 = vadd.f32 %v3663, %v3699
        %v3732 = vadd.f32 %v3664, %v3700
        %v3733 = vadd.f32 %v3665, %v3701
        %v3734 = vadd.f32 %v3666, %v3702
        %v3735 = vadd.f32 %v3667, %v3703
        %v3736 = vadd.f32 %v3668, %v3704
        %v3737 = vadd.f32 %v3669, %v3705
        %v3738 = vadd.f32 %v3670, %v3706
        %v3739 = vadd.f32 %v3671, %v3707
        %v3740 = vadd.f32 %v3672, %v3708
        %v3741 = vadd.f32 %v3673, %v3709
        %v3742 = vadd.f32 %v3674, %v3710
        %v3743 = vadd.f32 %v3675, %v3711
        %v3744 = vadd.f32 %v3676, %v3712
        %v3745 = vadd.f32 %v3677, %v3713
        %v3746 = vadd.f32 %v3678, %v3714
        %v3747 = vadd.f32 %v3679, %v3715
        %v3748 = vadd.f32 %v3680, %v3716
        %v3749 = vadd.f32 %v3681, %v3717
        %v3750 = vadd.f32 %v3682, %v3718
        %v3751 = vadd.f32 %v3683, %v3719
        %v3752 = vadd.f32 %v3684, %v3720
        %v3753 = vadd.f32 %v3685, %v3721
        %v3754 = vadd.f32 %v3686, %v3722
        %v3755 = vadd.f32 %v3687, %v3723
        %v3756 = vadd.f32 %v3688, %v3724
        %v3757 = vadd.f32 %v3689, %v3725
        %v3758 = vadd.f32 %v3690, %v3726
        %v3759 = vlaneseq
        %v3760 = vshrl.u32 %v3759, 7
        %v3761 = vsub.s32 5, %v3760
        %v3762 = vrot.slane %v840, %v3761
        %v3763 = vmul.f32 %v3451, %v3762
        %v3764 = vmul.f32 %v3452, %v3762
        %v3765 = vmul.f32 %v3453, %v3762
        %v3766 = vmul.f32 %v3454, %v3762
        %v3767 = vmul.f32 %v3455, %v3762
        %v3768 = vmul.f32 %v3456, %v3762
        %v3769 = vmul.f32 %v3457, %v3762
        %v3770 = vmul.f32 %v3458, %v3762
        %v3771 = vmul.f32 %v3459, %v3762
        %v3772 = vmul.f32 %v3460, %v3762
        %v3773 = vmul.f32 %v3461, %v3762
        %v3774 = vmul.f32 %v3462, %v3762
        %v3775 = vmul.f32 %v3463, %v3762
        %v3776 = vmul.f32 %v3464, %v3762
        %v3777 = vmul.f32 %v3465, %v3762
        %v3778 = vmul.f32 %v3466, %v3762
        %v3779 = vmul.f32 %v3467, %v3762
        %v3780 = vmul.f32 %v3468, %v3762
        %v3781 = vmul.f32 %v3469, %v3762
        %v3782 = vmul.f32 %v3470, %v3762
        %v3783 = vmul.f32 %v3471, %v3762
        %v3784 = vmul.f32 %v3472, %v3762
        %v3785 = vmul.f32 %v3473, %v3762
        %v3786 = vmul.f32 %v3474, %v3762
        %v3787 = vmul.f32 %v3475, %v3762
        %v3788 = vmul.f32 %v3476, %v3762
        %v3789 = vmul.f32 %v3477, %v3762
        %v3790 = vmul.f32 %v3478, %v3762
        %v3791 = vmul.f32 %v3479, %v3762
        %v3792 = vmul.f32 %v3480, %v3762
        %v3793 = vmul.f32 %v3481, %v3762
        %v3794 = vmul.f32 %v3482, %v3762
        %v3795 = vadd.f32 %v3727, %v3763
        %v3796 = vadd.f32 %v3728, %v3764
        %v3797 = vadd.f32 %v3729, %v3765
        %v3798 = vadd.f32 %v3730, %v3766
        %v3799 = vadd.f32 %v3731, %v3767
        %v3800 = vadd.f32 %v3732, %v3768
        %v3801 = vadd.f32 %v3733, %v3769
        %v3802 = vadd.f32 %v3734, %v3770
        %v3803 = vadd.f32 %v3735, %v3771
        %v3804 = vadd.f32 %v3736, %v3772
        %v3805 = vadd.f32 %v3737, %v3773
        %v3806 = vadd.f32 %v3738, %v3774
        %v3807 = vadd.f32 %v3739, %v3775
        %v3808 = vadd.f32 %v3740, %v3776
        %v3809 = vadd.f32 %v3741, %v3777
        %v3810 = vadd.f32 %v3742, %v3778
        %v3811 = vadd.f32 %v3743, %v3779
        %v3812 = vadd.f32 %v3744, %v3780
        %v3813 = vadd.f32 %v3745, %v3781
        %v3814 = vadd.f32 %v3746, %v3782
        %v3815 = vadd.f32 %v3747, %v3783
        %v3816 = vadd.f32 %v3748, %v3784
        %v3817 = vadd.f32 %v3749, %v3785
        %v3818 = vadd.f32 %v3750, %v3786
        %v3819 = vadd.f32 %v3751, %v3787
        %v3820 = vadd.f32 %v3752, %v3788
        %v3821 = vadd.f32 %v3753, %v3789
        %v3822 = vadd.f32 %v3754, %v3790
        %v3823 = vadd.f32 %v3755, %v3791
        %v3824 = vadd.f32 %v3756, %v3792
        %v3825 = vadd.f32 %v3757, %v3793
        %v3826 = vadd.f32 %v3758, %v3794
        %v3827 = vlaneseq
        %v3828 = vshrl.u32 %v3827, 7
        %v3829 = vsub.s32 5, %v3828
        %v3830 = vrot.slane %v841, %v3829
        %v3831 = vmul.f32 %v3453, %v3830
        %v3832 = vmul.f32 %v3454, %v3830
        %v3833 = vmul.f32 %v3455, %v3830
        %v3834 = vmul.f32 %v3456, %v3830
        %v3835 = vmul.f32 %v3457, %v3830
        %v3836 = vmul.f32 %v3458, %v3830
        %v3837 = vmul.f32 %v3459, %v3830
        %v3838 = vmul.f32 %v3460, %v3830
        %v3839 = vmul.f32 %v3461, %v3830
        %v3840 = vmul.f32 %v3462, %v3830
        %v3841 = vmul.f32 %v3463, %v3830
        %v3842 = vmul.f32 %v3464, %v3830
        %v3843 = vmul.f32 %v3465, %v3830
        %v3844 = vmul.f32 %v3466, %v3830
        %v3845 = vmul.f32 %v3467, %v3830
        %v3846 = vmul.f32 %v3468, %v3830
        %v3847 = vmul.f32 %v3469, %v3830
        %v3848 = vmul.f32 %v3470, %v3830
        %v3849 = vmul.f32 %v3471, %v3830
        %v3850 = vmul.f32 %v3472, %v3830
        %v3851 = vmul.f32 %v3473, %v3830
        %v3852 = vmul.f32 %v3474, %v3830
        %v3853 = vmul.f32 %v3475, %v3830
        %v3854 = vmul.f32 %v3476, %v3830
        %v3855 = vmul.f32 %v3477, %v3830
        %v3856 = vmul.f32 %v3478, %v3830
        %v3857 = vmul.f32 %v3479, %v3830
        %v3858 = vmul.f32 %v3480, %v3830
        %v3859 = vmul.f32 %v3481, %v3830
        %v3860 = vmul.f32 %v3482, %v3830
        %v3861 = vmul.f32 %v3483, %v3830
        %v3862 = vmul.f32 %v3484, %v3830
        %v3863 = vadd.f32 %v3795, %v3831
        %v3864 = vadd.f32 %v3796, %v3832
        %v3865 = vadd.f32 %v3797, %v3833
        %v3866 = vadd.f32 %v3798, %v3834
        %v3867 = vadd.f32 %v3799, %v3835
        %v3868 = vadd.f32 %v3800, %v3836
        %v3869 = vadd.f32 %v3801, %v3837
        %v3870 = vadd.f32 %v3802, %v3838
        %v3871 = vadd.f32 %v3803, %v3839
        %v3872 = vadd.f32 %v3804, %v3840
        %v3873 = vadd.f32 %v3805, %v3841
        %v3874 = vadd.f32 %v3806, %v3842
        %v3875 = vadd.f32 %v3807, %v3843
        %v3876 = vadd.f32 %v3808, %v3844
        %v3877 = vadd.f32 %v3809, %v3845
        %v3878 = vadd.f32 %v3810, %v3846
        %v3879 = vadd.f32 %v3811, %v3847
        %v3880 = vadd.f32 %v3812, %v3848
        %v3881 = vadd.f32 %v3813, %v3849
        %v3882 = vadd.f32 %v3814, %v3850
        %v3883 = vadd.f32 %v3815, %v3851
        %v3884 = vadd.f32 %v3816, %v3852
        %v3885 = vadd.f32 %v3817, %v3853
        %v3886 = vadd.f32 %v3818, %v3854
        %v3887 = vadd.f32 %v3819, %v3855
        %v3888 = vadd.f32 %v3820, %v3856
        %v3889 = vadd.f32 %v3821, %v3857
        %v3890 = vadd.f32 %v3822, %v3858
        %v3891 = vadd.f32 %v3823, %v3859
        %v3892 = vadd.f32 %v3824, %v3860
        %v3893 = vadd.f32 %v3825, %v3861
        %v3894 = vadd.f32 %v3826, %v3862
        %v3895 = vlaneseq
        %v3896 = vshrl.u32 %v3895, 7
        %v3897 = vsub.s32 5, %v3896
        %v3898 = vrot.slane %v842, %v3897
        %v3899 = vmul.f32 %v3455, %v3898
        %v3900 = vmul.f32 %v3456, %v3898
        %v3901 = vmul.f32 %v3457, %v3898
        %v3902 = vmul.f32 %v3458, %v3898
        %v3903 = vmul.f32 %v3459, %v3898
        %v3904 = vmul.f32 %v3460, %v3898
        %v3905 = vmul.f32 %v3461, %v3898
        %v3906 = vmul.f32 %v3462, %v3898
        %v3907 = vmul.f32 %v3463, %v3898
        %v3908 = vmul.f32 %v3464, %v3898
        %v3909 = vmul.f32 %v3465, %v3898
        %v3910 = vmul.f32 %v3466, %v3898
        %v3911 = vmul.f32 %v3467, %v3898
        %v3912 = vmul.f32 %v3468, %v3898
        %v3913 = vmul.f32 %v3469, %v3898
        %v3914 = vmul.f32 %v3470, %v3898
        %v3915 = vmul.f32 %v3471, %v3898
        %v3916 = vmul.f32 %v3472, %v3898
        %v3917 = vmul.f32 %v3473, %v3898
        %v3918 = vmul.f32 %v3474, %v3898
        %v3919 = vmul.f32 %v3475, %v3898
        %v3920 = vmul.f32 %v3476, %v3898
        %v3921 = vmul.f32 %v3477, %v3898
        %v3922 = vmul.f32 %v3478, %v3898
        %v3923 = vmul.f32 %v3479, %v3898
        %v3924 = vmul.f32 %v3480, %v3898
        %v3925 = vmul.f32 %v3481, %v3898
        %v3926 = vmul.f32 %v3482, %v3898
        %v3927 = vmul.f32 %v3483, %v3898
        %v3928 = vmul.f32 %v3484, %v3898
        %v3929 = vmul.f32 %v3485, %v3898
        %v3930 = vmul.f32 %v3486, %v3898
        %v3931 = vadd.f32 %v3863, %v3899
        %v3932 = vadd.f32 %v3864, %v3900
        %v3933 = vadd.f32 %v3865, %v3901
        %v3934 = vadd.f32 %v3866, %v3902
        %v3935 = vadd.f32 %v3867, %v3903
        %v3936 = vadd.f32 %v3868, %v3904
        %v3937 = vadd.f32 %v3869, %v3905
        %v3938 = vadd.f32 %v3870, %v3906
        %v3939 = vadd.f32 %v3871, %v3907
        %v3940 = vadd.f32 %v3872, %v3908
        %v3941 = vadd.f32 %v3873, %v3909
        %v3942 = vadd.f32 %v3874, %v3910
        %v3943 = vadd.f32 %v3875, %v3911
        %v3944 = vadd.f32 %v3876, %v3912
        %v3945 = vadd.f32 %v3877, %v3913
        %v3946 = vadd.f32 %v3878, %v3914
        %v3947 = vadd.f32 %v3879, %v3915
        %v3948 = vadd.f32 %v3880, %v3916
        %v3949 = vadd.f32 %v3881, %v3917
        %v3950 = vadd.f32 %v3882, %v3918
        %v3951 = vadd.f32 %v3883, %v3919
        %v3952 = vadd.f32 %v3884, %v3920
        %v3953 = vadd.f32 %v3885, %v3921
        %v3954 = vadd.f32 %v3886, %v3922
        %v3955 = vadd.f32 %v3887, %v3923
        %v3956 = vadd.f32 %v3888, %v3924
        %v3957 = vadd.f32 %v3889, %v3925
        %v3958 = vadd.f32 %v3890, %v3926
        %v3959 = vadd.f32 %v3891, %v3927
        %v3960 = vadd.f32 %v3892, %v3928
        %v3961 = vadd.f32 %v3893, %v3929
        %v3962 = vadd.f32 %v3894, %v3930
        %v3963 = vld [vmem:[%s590 + $0x6] sm:$0xff]
        %v3964 = vld [vmem:[%s590 + $0xe] sm:$0xff]
        %v3965 = vld [vmem:[%s590 + $0x1e] sm:$0xff]
        %v3966 = vld [vmem:[%s590 + $0x26] sm:$0xff]
        %v3967 = vld [vmem:[%s590 + $0x36] sm:$0xff]
        %v3968 = vld [vmem:[%s590 + $0x3e] sm:$0xff]
        %v3969 = vld [vmem:[%s590 + $0x4e] sm:$0xff]
        %v3970 = vld [vmem:[%s590 + $0x56] sm:$0xff]
        %v3971 = vld [vmem:[%s590 + $0x66] sm:$0xff]
        %v3972 = vld [vmem:[%s590 + $0x6e] sm:$0xff]
        %v3973 = vld [vmem:[%s590 + $0x7e] sm:$0xff]
        %v3974 = vld [vmem:[%s590 + $0x86] sm:$0xff]
        %v3975 = vld [vmem:[%s590 + $0x96] sm:$0xff]
        %v3976 = vld [vmem:[%s590 + $0x9e] sm:$0xff]
        %v3977 = vld [vmem:[%s590 + $0xae] sm:$0xff]
        %v3978 = vld [vmem:[%s590 + $0xb6] sm:$0xff]
        %v3979 = vld [vmem:[%s590 + $0xc6] sm:$0xff]
        %v3980 = vld [vmem:[%s590 + $0xce] sm:$0xff]
        %v3981 = vld [vmem:[%s590 + $0xde] sm:$0xff]
        %v3982 = vld [vmem:[%s590 + $0xe6] sm:$0xff]
        %v3983 = vld [vmem:[%s590 + $0xf6] sm:$0xff]
        %v3984 = vld [vmem:[%s590 + $0xfe] sm:$0xff]
        %v3985 = vld [vmem:[%s590 + $0x10e] sm:$0xff]
        %v3986 = vld [vmem:[%s590 + $0x116] sm:$0xff]
        %v3987 = vld [vmem:[%s590 + $0x126] sm:$0xff]
        %v3988 = vld [vmem:[%s590 + $0x12e] sm:$0xff]
        %v3989 = vld [vmem:[%s590 + $0x13e] sm:$0xff]
        %v3990 = vld [vmem:[%s590 + $0x146] sm:$0xff]
        %v3991 = vld [vmem:[%s590 + $0x156] sm:$0xff]
        %v3992 = vld [vmem:[%s590 + $0x15e] sm:$0xff]
        %v3993 = vld [vmem:[%s590 + $0x16e] sm:$0xff]
        %v3994 = vld [vmem:[%s590 + $0x176] sm:$0xff]
        %v3995 = vld [vmem:[%s590 + $0x186] sm:$0xff]
        %v3996 = vld [vmem:[%s590 + $0x18e] sm:$0xff]
        %v3997 = vld [vmem:[%s590 + $0x19e] sm:$0xff]
        %v3998 = vld [vmem:[%s590 + $0x1a6] sm:$0xff]
        %v3999 = vld [vmem:[%s590 + $0x1b6] sm:$0xff]
        %v4000 = vld [vmem:[%s590 + $0x1be] sm:$0xff]
        %v4001 = vld [vmem:[%s590 + $0x1ce] sm:$0xff]
        %v4002 = vld [vmem:[%s590 + $0x1d6] sm:$0xff]
        %v4003 = vld [vmem:[%s590 + $0x1e6] sm:$0xff]
        %v4004 = vld [vmem:[%s590 + $0x1ee] sm:$0xff]
        %v4005 = vld [vmem:[%s590 + $0x1fe] sm:$0xff]
        %v4006 = vld [vmem:[%s590 + $0x206] sm:$0xff]
        %v4007 = vlaneseq
        %v4008 = vshrl.u32 %v4007, 7
        %v4009 = vsub.s32 6, %v4008
        %v4010 = vrot.slane %v836, %v4009
        %v4011 = vmul.f32 %v3963, %v4010
        %v4012 = vmul.f32 %v3964, %v4010
        %v4013 = vmul.f32 %v3965, %v4010
        %v4014 = vmul.f32 %v3966, %v4010
        %v4015 = vmul.f32 %v3967, %v4010
        %v4016 = vmul.f32 %v3968, %v4010
        %v4017 = vmul.f32 %v3969, %v4010
        %v4018 = vmul.f32 %v3970, %v4010
        %v4019 = vmul.f32 %v3971, %v4010
        %v4020 = vmul.f32 %v3972, %v4010
        %v4021 = vmul.f32 %v3973, %v4010
        %v4022 = vmul.f32 %v3974, %v4010
        %v4023 = vmul.f32 %v3975, %v4010
        %v4024 = vmul.f32 %v3976, %v4010
        %v4025 = vmul.f32 %v3977, %v4010
        %v4026 = vmul.f32 %v3978, %v4010
        %v4027 = vmul.f32 %v3979, %v4010
        %v4028 = vmul.f32 %v3980, %v4010
        %v4029 = vmul.f32 %v3981, %v4010
        %v4030 = vmul.f32 %v3982, %v4010
        %v4031 = vmul.f32 %v3983, %v4010
        %v4032 = vmul.f32 %v3984, %v4010
        %v4033 = vmul.f32 %v3985, %v4010
        %v4034 = vmul.f32 %v3986, %v4010
        %v4035 = vmul.f32 %v3987, %v4010
        %v4036 = vmul.f32 %v3988, %v4010
        %v4037 = vmul.f32 %v3989, %v4010
        %v4038 = vmul.f32 %v3990, %v4010
        %v4039 = vmul.f32 %v3991, %v4010
        %v4040 = vmul.f32 %v3992, %v4010
        %v4041 = vmul.f32 %v3993, %v4010
        %v4042 = vmul.f32 %v3994, %v4010
        %v4043 = vadd.f32 %v3931, %v4011
        %v4044 = vadd.f32 %v3932, %v4012
        %v4045 = vadd.f32 %v3933, %v4013
        %v4046 = vadd.f32 %v3934, %v4014
        %v4047 = vadd.f32 %v3935, %v4015
        %v4048 = vadd.f32 %v3936, %v4016
        %v4049 = vadd.f32 %v3937, %v4017
        %v4050 = vadd.f32 %v3938, %v4018
        %v4051 = vadd.f32 %v3939, %v4019
        %v4052 = vadd.f32 %v3940, %v4020
        %v4053 = vadd.f32 %v3941, %v4021
        %v4054 = vadd.f32 %v3942, %v4022
        %v4055 = vadd.f32 %v3943, %v4023
        %v4056 = vadd.f32 %v3944, %v4024
        %v4057 = vadd.f32 %v3945, %v4025
        %v4058 = vadd.f32 %v3946, %v4026
        %v4059 = vadd.f32 %v3947, %v4027
        %v4060 = vadd.f32 %v3948, %v4028
        %v4061 = vadd.f32 %v3949, %v4029
        %v4062 = vadd.f32 %v3950, %v4030
        %v4063 = vadd.f32 %v3951, %v4031
        %v4064 = vadd.f32 %v3952, %v4032
        %v4065 = vadd.f32 %v3953, %v4033
        %v4066 = vadd.f32 %v3954, %v4034
        %v4067 = vadd.f32 %v3955, %v4035
        %v4068 = vadd.f32 %v3956, %v4036
        %v4069 = vadd.f32 %v3957, %v4037
        %v4070 = vadd.f32 %v3958, %v4038
        %v4071 = vadd.f32 %v3959, %v4039
        %v4072 = vadd.f32 %v3960, %v4040
        %v4073 = vadd.f32 %v3961, %v4041
        %v4074 = vadd.f32 %v3962, %v4042
        %v4075 = vlaneseq
        %v4076 = vshrl.u32 %v4075, 7
        %v4077 = vsub.s32 6, %v4076
        %v4078 = vrot.slane %v837, %v4077
        %v4079 = vmul.f32 %v3965, %v4078
        %v4080 = vmul.f32 %v3966, %v4078
        %v4081 = vmul.f32 %v3967, %v4078
        %v4082 = vmul.f32 %v3968, %v4078
        %v4083 = vmul.f32 %v3969, %v4078
        %v4084 = vmul.f32 %v3970, %v4078
        %v4085 = vmul.f32 %v3971, %v4078
        %v4086 = vmul.f32 %v3972, %v4078
        %v4087 = vmul.f32 %v3973, %v4078
        %v4088 = vmul.f32 %v3974, %v4078
        %v4089 = vmul.f32 %v3975, %v4078
        %v4090 = vmul.f32 %v3976, %v4078
        %v4091 = vmul.f32 %v3977, %v4078
        %v4092 = vmul.f32 %v3978, %v4078
        %v4093 = vmul.f32 %v3979, %v4078
        %v4094 = vmul.f32 %v3980, %v4078
        %v4095 = vmul.f32 %v3981, %v4078
        %v4096 = vmul.f32 %v3982, %v4078
        %v4097 = vmul.f32 %v3983, %v4078
        %v4098 = vmul.f32 %v3984, %v4078
        %v4099 = vmul.f32 %v3985, %v4078
        %v4100 = vmul.f32 %v3986, %v4078
        %v4101 = vmul.f32 %v3987, %v4078
        %v4102 = vmul.f32 %v3988, %v4078
        %v4103 = vmul.f32 %v3989, %v4078
        %v4104 = vmul.f32 %v3990, %v4078
        %v4105 = vmul.f32 %v3991, %v4078
        %v4106 = vmul.f32 %v3992, %v4078
        %v4107 = vmul.f32 %v3993, %v4078
        %v4108 = vmul.f32 %v3994, %v4078
        %v4109 = vmul.f32 %v3995, %v4078
        %v4110 = vmul.f32 %v3996, %v4078
        %v4111 = vadd.f32 %v4043, %v4079
        %v4112 = vadd.f32 %v4044, %v4080
        %v4113 = vadd.f32 %v4045, %v4081
        %v4114 = vadd.f32 %v4046, %v4082
        %v4115 = vadd.f32 %v4047, %v4083
        %v4116 = vadd.f32 %v4048, %v4084
        %v4117 = vadd.f32 %v4049, %v4085
        %v4118 = vadd.f32 %v4050, %v4086
        %v4119 = vadd.f32 %v4051, %v4087
        %v4120 = vadd.f32 %v4052, %v4088
        %v4121 = vadd.f32 %v4053, %v4089
        %v4122 = vadd.f32 %v4054, %v4090
        %v4123 = vadd.f32 %v4055, %v4091
        %v4124 = vadd.f32 %v4056, %v4092
        %v4125 = vadd.f32 %v4057, %v4093
        %v4126 = vadd.f32 %v4058, %v4094
        %v4127 = vadd.f32 %v4059, %v4095
        %v4128 = vadd.f32 %v4060, %v4096
        %v4129 = vadd.f32 %v4061, %v4097
        %v4130 = vadd.f32 %v4062, %v4098
        %v4131 = vadd.f32 %v4063, %v4099
        %v4132 = vadd.f32 %v4064, %v4100
        %v4133 = vadd.f32 %v4065, %v4101
        %v4134 = vadd.f32 %v4066, %v4102
        %v4135 = vadd.f32 %v4067, %v4103
        %v4136 = vadd.f32 %v4068, %v4104
        %v4137 = vadd.f32 %v4069, %v4105
        %v4138 = vadd.f32 %v4070, %v4106
        %v4139 = vadd.f32 %v4071, %v4107
        %v4140 = vadd.f32 %v4072, %v4108
        %v4141 = vadd.f32 %v4073, %v4109
        %v4142 = vadd.f32 %v4074, %v4110
        %v4143 = vlaneseq
        %v4144 = vshrl.u32 %v4143, 7
        %v4145 = vsub.s32 6, %v4144
        %v4146 = vrot.slane %v838, %v4145
        %v4147 = vmul.f32 %v3967, %v4146
        %v4148 = vmul.f32 %v3968, %v4146
        %v4149 = vmul.f32 %v3969, %v4146
        %v4150 = vmul.f32 %v3970, %v4146
        %v4151 = vmul.f32 %v3971, %v4146
        %v4152 = vmul.f32 %v3972, %v4146
        %v4153 = vmul.f32 %v3973, %v4146
        %v4154 = vmul.f32 %v3974, %v4146
        %v4155 = vmul.f32 %v3975, %v4146
        %v4156 = vmul.f32 %v3976, %v4146
        %v4157 = vmul.f32 %v3977, %v4146
        %v4158 = vmul.f32 %v3978, %v4146
        %v4159 = vmul.f32 %v3979, %v4146
        %v4160 = vmul.f32 %v3980, %v4146
        %v4161 = vmul.f32 %v3981, %v4146
        %v4162 = vmul.f32 %v3982, %v4146
        %v4163 = vmul.f32 %v3983, %v4146
        %v4164 = vmul.f32 %v3984, %v4146
        %v4165 = vmul.f32 %v3985, %v4146
        %v4166 = vmul.f32 %v3986, %v4146
        %v4167 = vmul.f32 %v3987, %v4146
        %v4168 = vmul.f32 %v3988, %v4146
        %v4169 = vmul.f32 %v3989, %v4146
        %v4170 = vmul.f32 %v3990, %v4146
        %v4171 = vmul.f32 %v3991, %v4146
        %v4172 = vmul.f32 %v3992, %v4146
        %v4173 = vmul.f32 %v3993, %v4146
        %v4174 = vmul.f32 %v3994, %v4146
        %v4175 = vmul.f32 %v3995, %v4146
        %v4176 = vmul.f32 %v3996, %v4146
        %v4177 = vmul.f32 %v3997, %v4146
        %v4178 = vmul.f32 %v3998, %v4146
        %v4179 = vadd.f32 %v4111, %v4147
        %v4180 = vadd.f32 %v4112, %v4148
        %v4181 = vadd.f32 %v4113, %v4149
        %v4182 = vadd.f32 %v4114, %v4150
        %v4183 = vadd.f32 %v4115, %v4151
        %v4184 = vadd.f32 %v4116, %v4152
        %v4185 = vadd.f32 %v4117, %v4153
        %v4186 = vadd.f32 %v4118, %v4154
        %v4187 = vadd.f32 %v4119, %v4155
        %v4188 = vadd.f32 %v4120, %v4156
        %v4189 = vadd.f32 %v4121, %v4157
        %v4190 = vadd.f32 %v4122, %v4158
        %v4191 = vadd.f32 %v4123, %v4159
        %v4192 = vadd.f32 %v4124, %v4160
        %v4193 = vadd.f32 %v4125, %v4161
        %v4194 = vadd.f32 %v4126, %v4162
        %v4195 = vadd.f32 %v4127, %v4163
        %v4196 = vadd.f32 %v4128, %v4164
        %v4197 = vadd.f32 %v4129, %v4165
        %v4198 = vadd.f32 %v4130, %v4166
        %v4199 = vadd.f32 %v4131, %v4167
        %v4200 = vadd.f32 %v4132, %v4168
        %v4201 = vadd.f32 %v4133, %v4169
        %v4202 = vadd.f32 %v4134, %v4170
        %v4203 = vadd.f32 %v4135, %v4171
        %v4204 = vadd.f32 %v4136, %v4172
        %v4205 = vadd.f32 %v4137, %v4173
        %v4206 = vadd.f32 %v4138, %v4174
        %v4207 = vadd.f32 %v4139, %v4175
        %v4208 = vadd.f32 %v4140, %v4176
        %v4209 = vadd.f32 %v4141, %v4177
        %v4210 = vadd.f32 %v4142, %v4178
        %v4211 = vlaneseq
        %v4212 = vshrl.u32 %v4211, 7
        %v4213 = vsub.s32 6, %v4212
        %v4214 = vrot.slane %v839, %v4213
        %v4215 = vmul.f32 %v3969, %v4214
        %v4216 = vmul.f32 %v3970, %v4214
        %v4217 = vmul.f32 %v3971, %v4214
        %v4218 = vmul.f32 %v3972, %v4214
        %v4219 = vmul.f32 %v3973, %v4214
        %v4220 = vmul.f32 %v3974, %v4214
        %v4221 = vmul.f32 %v3975, %v4214
        %v4222 = vmul.f32 %v3976, %v4214
        %v4223 = vmul.f32 %v3977, %v4214
        %v4224 = vmul.f32 %v3978, %v4214
        %v4225 = vmul.f32 %v3979, %v4214
        %v4226 = vmul.f32 %v3980, %v4214
        %v4227 = vmul.f32 %v3981, %v4214
        %v4228 = vmul.f32 %v3982, %v4214
        %v4229 = vmul.f32 %v3983, %v4214
        %v4230 = vmul.f32 %v3984, %v4214
        %v4231 = vmul.f32 %v3985, %v4214
        %v4232 = vmul.f32 %v3986, %v4214
        %v4233 = vmul.f32 %v3987, %v4214
        %v4234 = vmul.f32 %v3988, %v4214
        %v4235 = vmul.f32 %v3989, %v4214
        %v4236 = vmul.f32 %v3990, %v4214
        %v4237 = vmul.f32 %v3991, %v4214
        %v4238 = vmul.f32 %v3992, %v4214
        %v4239 = vmul.f32 %v3993, %v4214
        %v4240 = vmul.f32 %v3994, %v4214
        %v4241 = vmul.f32 %v3995, %v4214
        %v4242 = vmul.f32 %v3996, %v4214
        %v4243 = vmul.f32 %v3997, %v4214
        %v4244 = vmul.f32 %v3998, %v4214
        %v4245 = vmul.f32 %v3999, %v4214
        %v4246 = vmul.f32 %v4000, %v4214
        %v4247 = vadd.f32 %v4179, %v4215
        %v4248 = vadd.f32 %v4180, %v4216
        %v4249 = vadd.f32 %v4181, %v4217
        %v4250 = vadd.f32 %v4182, %v4218
        %v4251 = vadd.f32 %v4183, %v4219
        %v4252 = vadd.f32 %v4184, %v4220
        %v4253 = vadd.f32 %v4185, %v4221
        %v4254 = vadd.f32 %v4186, %v4222
        %v4255 = vadd.f32 %v4187, %v4223
        %v4256 = vadd.f32 %v4188, %v4224
        %v4257 = vadd.f32 %v4189, %v4225
        %v4258 = vadd.f32 %v4190, %v4226
        %v4259 = vadd.f32 %v4191, %v4227
        %v4260 = vadd.f32 %v4192, %v4228
        %v4261 = vadd.f32 %v4193, %v4229
        %v4262 = vadd.f32 %v4194, %v4230
        %v4263 = vadd.f32 %v4195, %v4231
        %v4264 = vadd.f32 %v4196, %v4232
        %v4265 = vadd.f32 %v4197, %v4233
        %v4266 = vadd.f32 %v4198, %v4234
        %v4267 = vadd.f32 %v4199, %v4235
        %v4268 = vadd.f32 %v4200, %v4236
        %v4269 = vadd.f32 %v4201, %v4237
        %v4270 = vadd.f32 %v4202, %v4238
        %v4271 = vadd.f32 %v4203, %v4239
        %v4272 = vadd.f32 %v4204, %v4240
        %v4273 = vadd.f32 %v4205, %v4241
        %v4274 = vadd.f32 %v4206, %v4242
        %v4275 = vadd.f32 %v4207, %v4243
        %v4276 = vadd.f32 %v4208, %v4244
        %v4277 = vadd.f32 %v4209, %v4245
        %v4278 = vadd.f32 %v4210, %v4246
        %v4279 = vlaneseq
        %v4280 = vshrl.u32 %v4279, 7
        %v4281 = vsub.s32 6, %v4280
        %v4282 = vrot.slane %v840, %v4281
        %v4283 = vmul.f32 %v3971, %v4282
        %v4284 = vmul.f32 %v3972, %v4282
        %v4285 = vmul.f32 %v3973, %v4282
        %v4286 = vmul.f32 %v3974, %v4282
        %v4287 = vmul.f32 %v3975, %v4282
        %v4288 = vmul.f32 %v3976, %v4282
        %v4289 = vmul.f32 %v3977, %v4282
        %v4290 = vmul.f32 %v3978, %v4282
        %v4291 = vmul.f32 %v3979, %v4282
        %v4292 = vmul.f32 %v3980, %v4282
        %v4293 = vmul.f32 %v3981, %v4282
        %v4294 = vmul.f32 %v3982, %v4282
        %v4295 = vmul.f32 %v3983, %v4282
        %v4296 = vmul.f32 %v3984, %v4282
        %v4297 = vmul.f32 %v3985, %v4282
        %v4298 = vmul.f32 %v3986, %v4282
        %v4299 = vmul.f32 %v3987, %v4282
        %v4300 = vmul.f32 %v3988, %v4282
        %v4301 = vmul.f32 %v3989, %v4282
        %v4302 = vmul.f32 %v3990, %v4282
        %v4303 = vmul.f32 %v3991, %v4282
        %v4304 = vmul.f32 %v3992, %v4282
        %v4305 = vmul.f32 %v3993, %v4282
        %v4306 = vmul.f32 %v3994, %v4282
        %v4307 = vmul.f32 %v3995, %v4282
        %v4308 = vmul.f32 %v3996, %v4282
        %v4309 = vmul.f32 %v3997, %v4282
        %v4310 = vmul.f32 %v3998, %v4282
        %v4311 = vmul.f32 %v3999, %v4282
        %v4312 = vmul.f32 %v4000, %v4282
        %v4313 = vmul.f32 %v4001, %v4282
        %v4314 = vmul.f32 %v4002, %v4282
        %v4315 = vadd.f32 %v4247, %v4283
        %v4316 = vadd.f32 %v4248, %v4284
        %v4317 = vadd.f32 %v4249, %v4285
        %v4318 = vadd.f32 %v4250, %v4286
        %v4319 = vadd.f32 %v4251, %v4287
        %v4320 = vadd.f32 %v4252, %v4288
        %v4321 = vadd.f32 %v4253, %v4289
        %v4322 = vadd.f32 %v4254, %v4290
        %v4323 = vadd.f32 %v4255, %v4291
        %v4324 = vadd.f32 %v4256, %v4292
        %v4325 = vadd.f32 %v4257, %v4293
        %v4326 = vadd.f32 %v4258, %v4294
        %v4327 = vadd.f32 %v4259, %v4295
        %v4328 = vadd.f32 %v4260, %v4296
        %v4329 = vadd.f32 %v4261, %v4297
        %v4330 = vadd.f32 %v4262, %v4298
        %v4331 = vadd.f32 %v4263, %v4299
        %v4332 = vadd.f32 %v4264, %v4300
        %v4333 = vadd.f32 %v4265, %v4301
        %v4334 = vadd.f32 %v4266, %v4302
        %v4335 = vadd.f32 %v4267, %v4303
        %v4336 = vadd.f32 %v4268, %v4304
        %v4337 = vadd.f32 %v4269, %v4305
        %v4338 = vadd.f32 %v4270, %v4306
        %v4339 = vadd.f32 %v4271, %v4307
        %v4340 = vadd.f32 %v4272, %v4308
        %v4341 = vadd.f32 %v4273, %v4309
        %v4342 = vadd.f32 %v4274, %v4310
        %v4343 = vadd.f32 %v4275, %v4311
        %v4344 = vadd.f32 %v4276, %v4312
        %v4345 = vadd.f32 %v4277, %v4313
        %v4346 = vadd.f32 %v4278, %v4314
        %v4347 = vlaneseq
        %v4348 = vshrl.u32 %v4347, 7
        %v4349 = vsub.s32 6, %v4348
        %v4350 = vrot.slane %v841, %v4349
        %v4351 = vmul.f32 %v3973, %v4350
        %v4352 = vmul.f32 %v3974, %v4350
        %v4353 = vmul.f32 %v3975, %v4350
        %v4354 = vmul.f32 %v3976, %v4350
        %v4355 = vmul.f32 %v3977, %v4350
        %v4356 = vmul.f32 %v3978, %v4350
        %v4357 = vmul.f32 %v3979, %v4350
        %v4358 = vmul.f32 %v3980, %v4350
        %v4359 = vmul.f32 %v3981, %v4350
        %v4360 = vmul.f32 %v3982, %v4350
        %v4361 = vmul.f32 %v3983, %v4350
        %v4362 = vmul.f32 %v3984, %v4350
        %v4363 = vmul.f32 %v3985, %v4350
        %v4364 = vmul.f32 %v3986, %v4350
        %v4365 = vmul.f32 %v3987, %v4350
        %v4366 = vmul.f32 %v3988, %v4350
        %v4367 = vmul.f32 %v3989, %v4350
        %v4368 = vmul.f32 %v3990, %v4350
        %v4369 = vmul.f32 %v3991, %v4350
        %v4370 = vmul.f32 %v3992, %v4350
        %v4371 = vmul.f32 %v3993, %v4350
        %v4372 = vmul.f32 %v3994, %v4350
        %v4373 = vmul.f32 %v3995, %v4350
        %v4374 = vmul.f32 %v3996, %v4350
        %v4375 = vmul.f32 %v3997, %v4350
        %v4376 = vmul.f32 %v3998, %v4350
        %v4377 = vmul.f32 %v3999, %v4350
        %v4378 = vmul.f32 %v4000, %v4350
        %v4379 = vmul.f32 %v4001, %v4350
        %v4380 = vmul.f32 %v4002, %v4350
        %v4381 = vmul.f32 %v4003, %v4350
        %v4382 = vmul.f32 %v4004, %v4350
        %v4383 = vadd.f32 %v4315, %v4351
        %v4384 = vadd.f32 %v4316, %v4352
        %v4385 = vadd.f32 %v4317, %v4353
        %v4386 = vadd.f32 %v4318, %v4354
        %v4387 = vadd.f32 %v4319, %v4355
        %v4388 = vadd.f32 %v4320, %v4356
        %v4389 = vadd.f32 %v4321, %v4357
        %v4390 = vadd.f32 %v4322, %v4358
        %v4391 = vadd.f32 %v4323, %v4359
        %v4392 = vadd.f32 %v4324, %v4360
        %v4393 = vadd.f32 %v4325, %v4361
        %v4394 = vadd.f32 %v4326, %v4362
        %v4395 = vadd.f32 %v4327, %v4363
        %v4396 = vadd.f32 %v4328, %v4364
        %v4397 = vadd.f32 %v4329, %v4365
        %v4398 = vadd.f32 %v4330, %v4366
        %v4399 = vadd.f32 %v4331, %v4367
        %v4400 = vadd.f32 %v4332, %v4368
        %v4401 = vadd.f32 %v4333, %v4369
        %v4402 = vadd.f32 %v4334, %v4370
        %v4403 = vadd.f32 %v4335, %v4371
        %v4404 = vadd.f32 %v4336, %v4372
        %v4405 = vadd.f32 %v4337, %v4373
        %v4406 = vadd.f32 %v4338, %v4374
        %v4407 = vadd.f32 %v4339, %v4375
        %v4408 = vadd.f32 %v4340, %v4376
        %v4409 = vadd.f32 %v4341, %v4377
        %v4410 = vadd.f32 %v4342, %v4378
        %v4411 = vadd.f32 %v4343, %v4379
        %v4412 = vadd.f32 %v4344, %v4380
        %v4413 = vadd.f32 %v4345, %v4381
        %v4414 = vadd.f32 %v4346, %v4382
        %v4415 = vlaneseq
        %v4416 = vshrl.u32 %v4415, 7
        %v4417 = vsub.s32 6, %v4416
        %v4418 = vrot.slane %v842, %v4417
        %v4419 = vmul.f32 %v3975, %v4418
        %v4420 = vmul.f32 %v3976, %v4418
        %v4421 = vmul.f32 %v3977, %v4418
        %v4422 = vmul.f32 %v3978, %v4418
        %v4423 = vmul.f32 %v3979, %v4418
        %v4424 = vmul.f32 %v3980, %v4418
        %v4425 = vmul.f32 %v3981, %v4418
        %v4426 = vmul.f32 %v3982, %v4418
        %v4427 = vmul.f32 %v3983, %v4418
        %v4428 = vmul.f32 %v3984, %v4418
        %v4429 = vmul.f32 %v3985, %v4418
        %v4430 = vmul.f32 %v3986, %v4418
        %v4431 = vmul.f32 %v3987, %v4418
        %v4432 = vmul.f32 %v3988, %v4418
        %v4433 = vmul.f32 %v3989, %v4418
        %v4434 = vmul.f32 %v3990, %v4418
        %v4435 = vmul.f32 %v3991, %v4418
        %v4436 = vmul.f32 %v3992, %v4418
        %v4437 = vmul.f32 %v3993, %v4418
        %v4438 = vmul.f32 %v3994, %v4418
        %v4439 = vmul.f32 %v3995, %v4418
        %v4440 = vmul.f32 %v3996, %v4418
        %v4441 = vmul.f32 %v3997, %v4418
        %v4442 = vmul.f32 %v3998, %v4418
        %v4443 = vmul.f32 %v3999, %v4418
        %v4444 = vmul.f32 %v4000, %v4418
        %v4445 = vmul.f32 %v4001, %v4418
        %v4446 = vmul.f32 %v4002, %v4418
        %v4447 = vmul.f32 %v4003, %v4418
        %v4448 = vmul.f32 %v4004, %v4418
        %v4449 = vmul.f32 %v4005, %v4418
        %v4450 = vmul.f32 %v4006, %v4418
        %v4451 = vadd.f32 %v4383, %v4419
        %v4452 = vadd.f32 %v4384, %v4420
        %v4453 = vadd.f32 %v4385, %v4421
        %v4454 = vadd.f32 %v4386, %v4422
        %v4455 = vadd.f32 %v4387, %v4423
        %v4456 = vadd.f32 %v4388, %v4424
        %v4457 = vadd.f32 %v4389, %v4425
        %v4458 = vadd.f32 %v4390, %v4426
        %v4459 = vadd.f32 %v4391, %v4427
        %v4460 = vadd.f32 %v4392, %v4428
        %v4461 = vadd.f32 %v4393, %v4429
        %v4462 = vadd.f32 %v4394, %v4430
        %v4463 = vadd.f32 %v4395, %v4431
        %v4464 = vadd.f32 %v4396, %v4432
        %v4465 = vadd.f32 %v4397, %v4433
        %v4466 = vadd.f32 %v4398, %v4434
        %v4467 = vadd.f32 %v4399, %v4435
        %v4468 = vadd.f32 %v4400, %v4436
        %v4469 = vadd.f32 %v4401, %v4437
        %v4470 = vadd.f32 %v4402, %v4438
        %v4471 = vadd.f32 %v4403, %v4439
        %v4472 = vadd.f32 %v4404, %v4440
        %v4473 = vadd.f32 %v4405, %v4441
        %v4474 = vadd.f32 %v4406, %v4442
        %v4475 = vadd.f32 %v4407, %v4443
        %v4476 = vadd.f32 %v4408, %v4444
        %v4477 = vadd.f32 %v4409, %v4445
        %v4478 = vadd.f32 %v4410, %v4446
        %v4479 = vadd.f32 %v4411, %v4447
        %v4480 = vadd.f32 %v4412, %v4448
        %v4481 = vadd.f32 %v4413, %v4449
        %v4482 = vadd.f32 %v4414, %v4450
        %v4483 = vld [vmem:[%s2] sm:$0x1]
        %v4485 = vlaneseq
        %v4486 = vshrl.u32 %v4485, 7
        %v4487 = vsub.s32 0, %v4486
        %v4488 = vrot.slane %v4483, %v4487
        %v4490 = vadd.f32 %v4451, %v4488
        %v4491 = vadd.f32 %v4452, %v4488
        %v4492 = vadd.f32 %v4453, %v4488
        %v4493 = vadd.f32 %v4454, %v4488
        %v4494 = vadd.f32 %v4455, %v4488
        %v4495 = vadd.f32 %v4456, %v4488
        %v4496 = vadd.f32 %v4457, %v4488
        %v4497 = vadd.f32 %v4458, %v4488
        %v4498 = vadd.f32 %v4459, %v4488
        %v4499 = vadd.f32 %v4460, %v4488
        %v4500 = vadd.f32 %v4461, %v4488
        %v4501 = vadd.f32 %v4462, %v4488
        %v4502 = vadd.f32 %v4463, %v4488
        %v4503 = vadd.f32 %v4464, %v4488
        %v4504 = vadd.f32 %v4465, %v4488
        %v4505 = vadd.f32 %v4466, %v4488
        %v4506 = vadd.f32 %v4467, %v4488
        %v4507 = vadd.f32 %v4468, %v4488
        %v4508 = vadd.f32 %v4469, %v4488
        %v4509 = vadd.f32 %v4470, %v4488
        %v4510 = vadd.f32 %v4471, %v4488
        %v4511 = vadd.f32 %v4472, %v4488
        %v4512 = vadd.f32 %v4473, %v4488
        %v4513 = vadd.f32 %v4474, %v4488
        %v4514 = vadd.f32 %v4475, %v4488
        %v4515 = vadd.f32 %v4476, %v4488
        %v4516 = vadd.f32 %v4477, %v4488
        %v4517 = vadd.f32 %v4478, %v4488
        %v4518 = vadd.f32 %v4479, %v4488
        %v4519 = vadd.f32 %v4480, %v4488
        %v4520 = vadd.f32 %v4481, %v4488
        %v4521 = vadd.f32 %v4482, %v4488
        %4522 = vadd.xlane.f32.xlu0 %v4490
        %v4523 = vpop.xlane.xlu0 %4522
        %4524 = vadd.xlane.f32.xlu0 %v4491
        %v4525 = vpop.xlane.xlu0 %4524
        %4526 = vadd.xlane.f32.xlu0 %v4492
        %v4527 = vpop.xlane.xlu0 %4526
        %4528 = vadd.xlane.f32.xlu0 %v4493
        %v4529 = vpop.xlane.xlu0 %4528
        %4530 = vadd.xlane.f32.xlu0 %v4494
        %v4531 = vpop.xlane.xlu0 %4530
        %4532 = vadd.xlane.f32.xlu0 %v4495
        %v4533 = vpop.xlane.xlu0 %4532
        %4534 = vadd.xlane.f32.xlu0 %v4496
        %v4535 = vpop.xlane.xlu0 %4534
        %4536 = vadd.xlane.f32.xlu0 %v4497
        %v4537 = vpop.xlane.xlu0 %4536
        %4538 = vadd.xlane.f32.xlu0 %v4498
        %v4539 = vpop.xlane.xlu0 %4538
        %4540 = vadd.xlane.f32.xlu0 %v4499
        %v4541 = vpop.xlane.xlu0 %4540
        %4542 = vadd.xlane.f32.xlu0 %v4500
        %v4543 = vpop.xlane.xlu0 %4542
        %4544 = vadd.xlane.f32.xlu0 %v4501
        %v4545 = vpop.xlane.xlu0 %4544
        %4546 = vadd.xlane.f32.xlu0 %v4502
        %v4547 = vpop.xlane.xlu0 %4546
        %4548 = vadd.xlane.f32.xlu0 %v4503
        %v4549 = vpop.xlane.xlu0 %4548
        %4550 = vadd.xlane.f32.xlu0 %v4504
        %v4551 = vpop.xlane.xlu0 %4550
        %4552 = vadd.xlane.f32.xlu0 %v4505
        %v4553 = vpop.xlane.xlu0 %4552
        %4554 = vadd.xlane.f32.xlu0 %v4506
        %v4555 = vpop.xlane.xlu0 %4554
        %4556 = vadd.xlane.f32.xlu0 %v4507
        %v4557 = vpop.xlane.xlu0 %4556
        %4558 = vadd.xlane.f32.xlu0 %v4508
        %v4559 = vpop.xlane.xlu0 %4558
        %4560 = vadd.xlane.f32.xlu0 %v4509
        %v4561 = vpop.xlane.xlu0 %4560
        %4562 = vadd.xlane.f32.xlu0 %v4510
        %v4563 = vpop.xlane.xlu0 %4562
        %4564 = vadd.xlane.f32.xlu0 %v4511
        %v4565 = vpop.xlane.xlu0 %4564
        %4566 = vadd.xlane.f32.xlu0 %v4512
        %v4567 = vpop.xlane.xlu0 %4566
        %4568 = vadd.xlane.f32.xlu0 %v4513
        %v4569 = vpop.xlane.xlu0 %4568
        %4570 = vadd.xlane.f32.xlu0 %v4514
        %v4571 = vpop.xlane.xlu0 %4570
        %4572 = vadd.xlane.f32.xlu0 %v4515
        %v4573 = vpop.xlane.xlu0 %4572
        %4574 = vadd.xlane.f32.xlu0 %v4516
        %v4575 = vpop.xlane.xlu0 %4574
        %4576 = vadd.xlane.f32.xlu0 %v4517
        %v4577 = vpop.xlane.xlu0 %4576
        %4578 = vadd.xlane.f32.xlu0 %v4518
        %v4579 = vpop.xlane.xlu0 %4578
        %4580 = vadd.xlane.f32.xlu0 %v4519
        %v4581 = vpop.xlane.xlu0 %4580
        %4582 = vadd.xlane.f32.xlu0 %v4520
        %v4583 = vpop.xlane.xlu0 %4582
        %4584 = vadd.xlane.f32.xlu0 %v4521
        %v4585 = vpop.xlane.xlu0 %4584
        %v4586 = vmul.f32 %v4523, 0.03125
        %v4587 = vmul.f32 %v4525, 0.03125
        %v4588 = vmul.f32 %v4527, 0.03125
        %v4589 = vmul.f32 %v4529, 0.03125
        %v4590 = vmul.f32 %v4531, 0.03125
        %v4591 = vmul.f32 %v4533, 0.03125
        %v4592 = vmul.f32 %v4535, 0.03125
        %v4593 = vmul.f32 %v4537, 0.03125
        %v4594 = vmul.f32 %v4539, 0.03125
        %v4595 = vmul.f32 %v4541, 0.03125
        %v4596 = vmul.f32 %v4543, 0.03125
        %v4597 = vmul.f32 %v4545, 0.03125
        %v4598 = vmul.f32 %v4547, 0.03125
        %v4599 = vmul.f32 %v4549, 0.03125
        %v4600 = vmul.f32 %v4551, 0.03125
        %v4601 = vmul.f32 %v4553, 0.03125
        %v4602 = vmul.f32 %v4555, 0.03125
        %v4603 = vmul.f32 %v4557, 0.03125
        %v4604 = vmul.f32 %v4559, 0.03125
        %v4605 = vmul.f32 %v4561, 0.03125
        %v4606 = vmul.f32 %v4563, 0.03125
        %v4607 = vmul.f32 %v4565, 0.03125
        %v4608 = vmul.f32 %v4567, 0.03125
        %v4609 = vmul.f32 %v4569, 0.03125
        %v4610 = vmul.f32 %v4571, 0.03125
        %v4611 = vmul.f32 %v4573, 0.03125
        %v4612 = vmul.f32 %v4575, 0.03125
        %v4613 = vmul.f32 %v4577, 0.03125
        %v4614 = vmul.f32 %v4579, 0.03125
        %v4615 = vmul.f32 %v4581, 0.03125
        %v4616 = vmul.f32 %v4583, 0.03125
        %v4617 = vmul.f32 %v4585, 0.03125
        %v4618 = vlaneseq
        %v4619 = vand.u32 %v4618, 127
        %vm4620 = vcmp.lt.s32.totalorder %v4619, 32
        %v4621 = vsub.f32 %v4490, %v4586
        %v4622 = vsub.f32 %v4491, %v4587
        %v4623 = vsub.f32 %v4492, %v4588
        %v4624 = vsub.f32 %v4493, %v4589
        %v4625 = vsub.f32 %v4494, %v4590
        %v4626 = vsub.f32 %v4495, %v4591
        %v4627 = vsub.f32 %v4496, %v4592
        %v4628 = vsub.f32 %v4497, %v4593
        %v4629 = vsub.f32 %v4498, %v4594
        %v4630 = vsub.f32 %v4499, %v4595
        %v4631 = vsub.f32 %v4500, %v4596
        %v4632 = vsub.f32 %v4501, %v4597
        %v4633 = vsub.f32 %v4502, %v4598
        %v4634 = vsub.f32 %v4503, %v4599
        %v4635 = vsub.f32 %v4504, %v4600
        %v4636 = vsub.f32 %v4505, %v4601
        %v4637 = vsub.f32 %v4506, %v4602
        %v4638 = vsub.f32 %v4507, %v4603
        %v4639 = vsub.f32 %v4508, %v4604
        %v4640 = vsub.f32 %v4509, %v4605
        %v4641 = vsub.f32 %v4510, %v4606
        %v4642 = vsub.f32 %v4511, %v4607
        %v4643 = vsub.f32 %v4512, %v4608
        %v4644 = vsub.f32 %v4513, %v4609
        %v4645 = vsub.f32 %v4514, %v4610
        %v4646 = vsub.f32 %v4515, %v4611
        %v4647 = vsub.f32 %v4516, %v4612
        %v4648 = vsub.f32 %v4517, %v4613
        %v4649 = vsub.f32 %v4518, %v4614
        %v4650 = vsub.f32 %v4519, %v4615
        %v4651 = vsub.f32 %v4520, %v4616
        %v4652 = vsub.f32 %v4521, %v4617
        %v4653 = vsel %vm4620, 1, 0
        %vm4654 = vcmp.eq.s32.totalorder %v4653, 1
        %v4655 = vsel %vm4654, %v4621, 0.0
        %v4656 = vsel %vm4654, %v4622, 0.0
        %v4657 = vsel %vm4654, %v4623, 0.0
        %v4658 = vsel %vm4654, %v4624, 0.0
        %v4659 = vsel %vm4654, %v4625, 0.0
        %v4660 = vsel %vm4654, %v4626, 0.0
        %v4661 = vsel %vm4654, %v4627, 0.0
        %v4662 = vsel %vm4654, %v4628, 0.0
        %v4663 = vsel %vm4654, %v4629, 0.0
        %v4664 = vsel %vm4654, %v4630, 0.0
        %v4665 = vsel %vm4654, %v4631, 0.0
        %v4666 = vsel %vm4654, %v4632, 0.0
        %v4667 = vsel %vm4654, %v4633, 0.0
        %v4668 = vsel %vm4654, %v4634, 0.0
        %v4669 = vsel %vm4654, %v4635, 0.0
        %v4670 = vsel %vm4654, %v4636, 0.0
        %v4671 = vsel %vm4654, %v4637, 0.0
        %v4672 = vsel %vm4654, %v4638, 0.0
        %v4673 = vsel %vm4654, %v4639, 0.0
        %v4674 = vsel %vm4654, %v4640, 0.0
        %v4675 = vsel %vm4654, %v4641, 0.0
        %v4676 = vsel %vm4654, %v4642, 0.0
        %v4677 = vsel %vm4654, %v4643, 0.0
        %v4678 = vsel %vm4654, %v4644, 0.0
        %v4679 = vsel %vm4654, %v4645, 0.0
        %v4680 = vsel %vm4654, %v4646, 0.0
        %v4681 = vsel %vm4654, %v4647, 0.0
        %v4682 = vsel %vm4654, %v4648, 0.0
        %v4683 = vsel %vm4654, %v4649, 0.0
        %v4684 = vsel %vm4654, %v4650, 0.0
        %v4685 = vsel %vm4654, %v4651, 0.0
        %v4686 = vsel %vm4654, %v4652, 0.0
        %v4687 = vmul.f32 %v4655, %v4655
        %v4688 = vmul.f32 %v4656, %v4656
        %v4689 = vmul.f32 %v4657, %v4657
        %v4690 = vmul.f32 %v4658, %v4658
        %v4691 = vmul.f32 %v4659, %v4659
        %v4692 = vmul.f32 %v4660, %v4660
        %v4693 = vmul.f32 %v4661, %v4661
        %v4694 = vmul.f32 %v4662, %v4662
        %v4695 = vmul.f32 %v4663, %v4663
        %v4696 = vmul.f32 %v4664, %v4664
        %v4697 = vmul.f32 %v4665, %v4665
        %v4698 = vmul.f32 %v4666, %v4666
        %v4699 = vmul.f32 %v4667, %v4667
        %v4700 = vmul.f32 %v4668, %v4668
        %v4701 = vmul.f32 %v4669, %v4669
        %v4702 = vmul.f32 %v4670, %v4670
        %v4703 = vmul.f32 %v4671, %v4671
        %v4704 = vmul.f32 %v4672, %v4672
        %v4705 = vmul.f32 %v4673, %v4673
        %v4706 = vmul.f32 %v4674, %v4674
        %v4707 = vmul.f32 %v4675, %v4675
        %v4708 = vmul.f32 %v4676, %v4676
        %v4709 = vmul.f32 %v4677, %v4677
        %v4710 = vmul.f32 %v4678, %v4678
        %v4711 = vmul.f32 %v4679, %v4679
        %v4712 = vmul.f32 %v4680, %v4680
        %v4713 = vmul.f32 %v4681, %v4681
        %v4714 = vmul.f32 %v4682, %v4682
        %v4715 = vmul.f32 %v4683, %v4683
        %v4716 = vmul.f32 %v4684, %v4684
        %v4717 = vmul.f32 %v4685, %v4685
        %v4718 = vmul.f32 %v4686, %v4686
        %4719 = vadd.xlane.f32.xlu0 %v4687
        %v4720 = vpop.xlane.xlu0 %4719
        %4721 = vadd.xlane.f32.xlu0 %v4688
        %v4722 = vpop.xlane.xlu0 %4721
        %4723 = vadd.xlane.f32.xlu0 %v4689
        %v4724 = vpop.xlane.xlu0 %4723
        %4725 = vadd.xlane.f32.xlu0 %v4690
        %v4726 = vpop.xlane.xlu0 %4725
        %4727 = vadd.xlane.f32.xlu0 %v4691
        %v4728 = vpop.xlane.xlu0 %4727
        %4729 = vadd.xlane.f32.xlu0 %v4692
        %v4730 = vpop.xlane.xlu0 %4729
        %4731 = vadd.xlane.f32.xlu0 %v4693
        %v4732 = vpop.xlane.xlu0 %4731
        %4733 = vadd.xlane.f32.xlu0 %v4694
        %v4734 = vpop.xlane.xlu0 %4733
        %4735 = vadd.xlane.f32.xlu0 %v4695
        %v4736 = vpop.xlane.xlu0 %4735
        %4737 = vadd.xlane.f32.xlu0 %v4696
        %v4738 = vpop.xlane.xlu0 %4737
        %4739 = vadd.xlane.f32.xlu0 %v4697
        %v4740 = vpop.xlane.xlu0 %4739
        %4741 = vadd.xlane.f32.xlu0 %v4698
        %v4742 = vpop.xlane.xlu0 %4741
        %4743 = vadd.xlane.f32.xlu0 %v4699
        %v4744 = vpop.xlane.xlu0 %4743
        %4745 = vadd.xlane.f32.xlu0 %v4700
        %v4746 = vpop.xlane.xlu0 %4745
        %4747 = vadd.xlane.f32.xlu0 %v4701
        %v4748 = vpop.xlane.xlu0 %4747
        %4749 = vadd.xlane.f32.xlu0 %v4702
        %v4750 = vpop.xlane.xlu0 %4749
        %4751 = vadd.xlane.f32.xlu0 %v4703
        %v4752 = vpop.xlane.xlu0 %4751
        %4753 = vadd.xlane.f32.xlu0 %v4704
        %v4754 = vpop.xlane.xlu0 %4753
        %4755 = vadd.xlane.f32.xlu0 %v4705
        %v4756 = vpop.xlane.xlu0 %4755
        %4757 = vadd.xlane.f32.xlu0 %v4706
        %v4758 = vpop.xlane.xlu0 %4757
        %4759 = vadd.xlane.f32.xlu0 %v4707
        %v4760 = vpop.xlane.xlu0 %4759
        %4761 = vadd.xlane.f32.xlu0 %v4708
        %v4762 = vpop.xlane.xlu0 %4761
        %4763 = vadd.xlane.f32.xlu0 %v4709
        %v4764 = vpop.xlane.xlu0 %4763
        %4765 = vadd.xlane.f32.xlu0 %v4710
        %v4766 = vpop.xlane.xlu0 %4765
        %4767 = vadd.xlane.f32.xlu0 %v4711
        %v4768 = vpop.xlane.xlu0 %4767
        %4769 = vadd.xlane.f32.xlu0 %v4712
        %v4770 = vpop.xlane.xlu0 %4769
        %4771 = vadd.xlane.f32.xlu0 %v4713
        %v4772 = vpop.xlane.xlu0 %4771
        %4773 = vadd.xlane.f32.xlu0 %v4714
        %v4774 = vpop.xlane.xlu0 %4773
        %4775 = vadd.xlane.f32.xlu0 %v4715
        %v4776 = vpop.xlane.xlu0 %4775
        %4777 = vadd.xlane.f32.xlu0 %v4716
        %v4778 = vpop.xlane.xlu0 %4777
        %4779 = vadd.xlane.f32.xlu0 %v4717
        %v4780 = vpop.xlane.xlu0 %4779
        %4781 = vadd.xlane.f32.xlu0 %v4718
        %v4782 = vpop.xlane.xlu0 %4781
        %v4783 = vmul.f32 %v4720, 0.03125
        %v4784 = vmul.f32 %v4722, 0.03125
        %v4785 = vmul.f32 %v4724, 0.03125
        %v4786 = vmul.f32 %v4726, 0.03125
        %v4787 = vmul.f32 %v4728, 0.03125
        %v4788 = vmul.f32 %v4730, 0.03125
        %v4789 = vmul.f32 %v4732, 0.03125
        %v4790 = vmul.f32 %v4734, 0.03125
        %v4791 = vmul.f32 %v4736, 0.03125
        %v4792 = vmul.f32 %v4738, 0.03125
        %v4793 = vmul.f32 %v4740, 0.03125
        %v4794 = vmul.f32 %v4742, 0.03125
        %v4795 = vmul.f32 %v4744, 0.03125
        %v4796 = vmul.f32 %v4746, 0.03125
        %v4797 = vmul.f32 %v4748, 0.03125
        %v4798 = vmul.f32 %v4750, 0.03125
        %v4799 = vmul.f32 %v4752, 0.03125
        %v4800 = vmul.f32 %v4754, 0.03125
        %v4801 = vmul.f32 %v4756, 0.03125
        %v4802 = vmul.f32 %v4758, 0.03125
        %v4803 = vmul.f32 %v4760, 0.03125
        %v4804 = vmul.f32 %v4762, 0.03125
        %v4805 = vmul.f32 %v4764, 0.03125
        %v4806 = vmul.f32 %v4766, 0.03125
        %v4807 = vmul.f32 %v4768, 0.03125
        %v4808 = vmul.f32 %v4770, 0.03125
        %v4809 = vmul.f32 %v4772, 0.03125
        %v4810 = vmul.f32 %v4774, 0.03125
        %v4811 = vmul.f32 %v4776, 0.03125
        %v4812 = vmul.f32 %v4778, 0.03125
        %v4813 = vmul.f32 %v4780, 0.03125
        %v4814 = vmul.f32 %v4782, 0.03125
        %v4815 = vadd.f32 %v4783, 1e-06
        %v4816 = vadd.f32 %v4784, 1e-06
        %v4817 = vadd.f32 %v4785, 1e-06
        %v4818 = vadd.f32 %v4786, 1e-06
        %v4819 = vadd.f32 %v4787, 1e-06
        %v4820 = vadd.f32 %v4788, 1e-06
        %v4821 = vadd.f32 %v4789, 1e-06
        %v4822 = vadd.f32 %v4790, 1e-06
        %v4823 = vadd.f32 %v4791, 1e-06
        %v4824 = vadd.f32 %v4792, 1e-06
        %v4825 = vadd.f32 %v4793, 1e-06
        %v4826 = vadd.f32 %v4794, 1e-06
        %v4827 = vadd.f32 %v4795, 1e-06
        %v4828 = vadd.f32 %v4796, 1e-06
        %v4829 = vadd.f32 %v4797, 1e-06
        %v4830 = vadd.f32 %v4798, 1e-06
        %v4831 = vadd.f32 %v4799, 1e-06
        %v4832 = vadd.f32 %v4800, 1e-06
        %v4833 = vadd.f32 %v4801, 1e-06
        %v4834 = vadd.f32 %v4802, 1e-06
        %v4835 = vadd.f32 %v4803, 1e-06
        %v4836 = vadd.f32 %v4804, 1e-06
        %v4837 = vadd.f32 %v4805, 1e-06
        %v4838 = vadd.f32 %v4806, 1e-06
        %v4839 = vadd.f32 %v4807, 1e-06
        %v4840 = vadd.f32 %v4808, 1e-06
        %v4841 = vadd.f32 %v4809, 1e-06
        %v4842 = vadd.f32 %v4810, 1e-06
        %v4843 = vadd.f32 %v4811, 1e-06
        %v4844 = vadd.f32 %v4812, 1e-06
        %v4845 = vadd.f32 %v4813, 1e-06
        %v4846 = vadd.f32 %v4814, 1e-06
        %v4847 = vrsqrt.pop %v4815
        %v4848 = vrsqrt.pop %v4816
        %v4849 = vrsqrt.pop %v4817
        %v4850 = vrsqrt.pop %v4818
        %v4851 = vrsqrt.pop %v4819
        %v4852 = vrsqrt.pop %v4820
        %v4853 = vrsqrt.pop %v4821
        %v4854 = vrsqrt.pop %v4822
        %v4855 = vrsqrt.pop %v4823
        %v4856 = vrsqrt.pop %v4824
        %v4857 = vrsqrt.pop %v4825
        %v4858 = vrsqrt.pop %v4826
        %v4859 = vrsqrt.pop %v4827
        %v4860 = vrsqrt.pop %v4828
        %v4861 = vrsqrt.pop %v4829
        %v4862 = vrsqrt.pop %v4830
        %v4863 = vrsqrt.pop %v4831
        %v4864 = vrsqrt.pop %v4832
        %v4865 = vrsqrt.pop %v4833
        %v4866 = vrsqrt.pop %v4834
        %v4867 = vrsqrt.pop %v4835
        %v4868 = vrsqrt.pop %v4836
        %v4869 = vrsqrt.pop %v4837
        %v4870 = vrsqrt.pop %v4838
        %v4871 = vrsqrt.pop %v4839
        %v4872 = vrsqrt.pop %v4840
        %v4873 = vrsqrt.pop %v4841
        %v4874 = vrsqrt.pop %v4842
        %v4875 = vrsqrt.pop %v4843
        %v4876 = vrsqrt.pop %v4844
        %v4877 = vrsqrt.pop %v4845
        %v4878 = vrsqrt.pop %v4846
        %v4879 = vmul.f32 %v4655, %v4847
        %v4880 = vmul.f32 %v4656, %v4848
        %v4881 = vmul.f32 %v4657, %v4849
        %v4882 = vmul.f32 %v4658, %v4850
        %v4883 = vmul.f32 %v4659, %v4851
        %v4884 = vmul.f32 %v4660, %v4852
        %v4885 = vmul.f32 %v4661, %v4853
        %v4886 = vmul.f32 %v4662, %v4854
        %v4887 = vmul.f32 %v4663, %v4855
        %v4888 = vmul.f32 %v4664, %v4856
        %v4889 = vmul.f32 %v4665, %v4857
        %v4890 = vmul.f32 %v4666, %v4858
        %v4891 = vmul.f32 %v4667, %v4859
        %v4892 = vmul.f32 %v4668, %v4860
        %v4893 = vmul.f32 %v4669, %v4861
        %v4894 = vmul.f32 %v4670, %v4862
        %v4895 = vmul.f32 %v4671, %v4863
        %v4896 = vmul.f32 %v4672, %v4864
        %v4897 = vmul.f32 %v4673, %v4865
        %v4898 = vmul.f32 %v4674, %v4866
        %v4899 = vmul.f32 %v4675, %v4867
        %v4900 = vmul.f32 %v4676, %v4868
        %v4901 = vmul.f32 %v4677, %v4869
        %v4902 = vmul.f32 %v4678, %v4870
        %v4903 = vmul.f32 %v4679, %v4871
        %v4904 = vmul.f32 %v4680, %v4872
        %v4905 = vmul.f32 %v4681, %v4873
        %v4906 = vmul.f32 %v4682, %v4874
        %v4907 = vmul.f32 %v4683, %v4875
        %v4908 = vmul.f32 %v4684, %v4876
        %v4909 = vmul.f32 %v4685, %v4877
        %v4910 = vmul.f32 %v4686, %v4878
        %v4911 = vld [vmem:[%s3] sm:$0x1]
        %v4913 = vlaneseq
        %v4914 = vshrl.u32 %v4913, 7
        %v4915 = vsub.s32 0, %v4914
        %v4916 = vrot.slane %v4911, %v4915
        %v4918 = vmul.f32 %v4879, %v4916
        %v4919 = vmul.f32 %v4880, %v4916
        %v4920 = vmul.f32 %v4881, %v4916
        %v4921 = vmul.f32 %v4882, %v4916
        %v4922 = vmul.f32 %v4883, %v4916
        %v4923 = vmul.f32 %v4884, %v4916
        %v4924 = vmul.f32 %v4885, %v4916
        %v4925 = vmul.f32 %v4886, %v4916
        %v4926 = vmul.f32 %v4887, %v4916
        %v4927 = vmul.f32 %v4888, %v4916
        %v4928 = vmul.f32 %v4889, %v4916
        %v4929 = vmul.f32 %v4890, %v4916
        %v4930 = vmul.f32 %v4891, %v4916
        %v4931 = vmul.f32 %v4892, %v4916
        %v4932 = vmul.f32 %v4893, %v4916
        %v4933 = vmul.f32 %v4894, %v4916
        %v4934 = vmul.f32 %v4895, %v4916
        %v4935 = vmul.f32 %v4896, %v4916
        %v4936 = vmul.f32 %v4897, %v4916
        %v4937 = vmul.f32 %v4898, %v4916
        %v4938 = vmul.f32 %v4899, %v4916
        %v4939 = vmul.f32 %v4900, %v4916
        %v4940 = vmul.f32 %v4901, %v4916
        %v4941 = vmul.f32 %v4902, %v4916
        %v4942 = vmul.f32 %v4903, %v4916
        %v4943 = vmul.f32 %v4904, %v4916
        %v4944 = vmul.f32 %v4905, %v4916
        %v4945 = vmul.f32 %v4906, %v4916
        %v4946 = vmul.f32 %v4907, %v4916
        %v4947 = vmul.f32 %v4908, %v4916
        %v4948 = vmul.f32 %v4909, %v4916
        %v4949 = vmul.f32 %v4910, %v4916
        %v4950 = vld [vmem:[%s4] sm:$0x1]
        %v4952 = vlaneseq
        %v4953 = vshrl.u32 %v4952, 7
        %v4954 = vsub.s32 0, %v4953
        %v4955 = vrot.slane %v4950, %v4954
        %v4957 = vadd.f32 %v4918, %v4955
        %v4958 = vadd.f32 %v4919, %v4955
        %v4959 = vadd.f32 %v4920, %v4955
        %v4960 = vadd.f32 %v4921, %v4955
        %v4961 = vadd.f32 %v4922, %v4955
        %v4962 = vadd.f32 %v4923, %v4955
        %v4963 = vadd.f32 %v4924, %v4955
        %v4964 = vadd.f32 %v4925, %v4955
        %v4965 = vadd.f32 %v4926, %v4955
        %v4966 = vadd.f32 %v4927, %v4955
        %v4967 = vadd.f32 %v4928, %v4955
        %v4968 = vadd.f32 %v4929, %v4955
        %v4969 = vadd.f32 %v4930, %v4955
        %v4970 = vadd.f32 %v4931, %v4955
        %v4971 = vadd.f32 %v4932, %v4955
        %v4972 = vadd.f32 %v4933, %v4955
        %v4973 = vadd.f32 %v4934, %v4955
        %v4974 = vadd.f32 %v4935, %v4955
        %v4975 = vadd.f32 %v4936, %v4955
        %v4976 = vadd.f32 %v4937, %v4955
        %v4977 = vadd.f32 %v4938, %v4955
        %v4978 = vadd.f32 %v4939, %v4955
        %v4979 = vadd.f32 %v4940, %v4955
        %v4980 = vadd.f32 %v4941, %v4955
        %v4981 = vadd.f32 %v4942, %v4955
        %v4982 = vadd.f32 %v4943, %v4955
        %v4983 = vadd.f32 %v4944, %v4955
        %v4984 = vadd.f32 %v4945, %v4955
        %v4985 = vadd.f32 %v4946, %v4955
        %v4986 = vadd.f32 %v4947, %v4955
        %v4987 = vadd.f32 %v4948, %v4955
        %v4988 = vadd.f32 %v4949, %v4955
        %v4989 = vpack.c.bf16 %v4958, %v4957
        %v4990 = vpack.c.bf16 %v4960, %v4959
        %v4991 = vpack.c.bf16 %v4962, %v4961
        %v4992 = vpack.c.bf16 %v4964, %v4963
        %v4993 = vpack.c.bf16 %v4966, %v4965
        %v4994 = vpack.c.bf16 %v4968, %v4967
        %v4995 = vpack.c.bf16 %v4970, %v4969
        %v4996 = vpack.c.bf16 %v4972, %v4971
        %v4997 = vpack.c.bf16 %v4974, %v4973
        %v4998 = vpack.c.bf16 %v4976, %v4975
        %v4999 = vpack.c.bf16 %v4978, %v4977
        %v5000 = vpack.c.bf16 %v4980, %v4979
        %v5001 = vpack.c.bf16 %v4982, %v4981
        %v5002 = vpack.c.bf16 %v4984, %v4983
        %v5003 = vpack.c.bf16 %v4986, %v4985
        %v5004 = vpack.c.bf16 %v4988, %v4987
        %v5005 = vld [vmem:[%s5] sm:$0xf]
        %v5006 = vld [vmem:[%s5 + $0x4] sm:$0xf]
        %v5007 = vld [vmem:[%s5 + $0x8] sm:$0xf]
        %v5008 = vld [vmem:[%s5 + $0xc] sm:$0xf]
        %v5009 = vld [vmem:[%s5 + $0x10] sm:$0xf]
        %v5010 = vld [vmem:[%s5 + $0x14] sm:$0xf]
        %v5011 = vld [vmem:[%s5 + $0x18] sm:$0xf]
        %v5012 = vld [vmem:[%s5 + $0x1c] sm:$0xf]
        %v5013 = vld [vmem:[%s5 + $0x20] sm:$0xf]
        %v5014 = vld [vmem:[%s5 + $0x24] sm:$0xf]
        %v5015 = vld [vmem:[%s5 + $0x28] sm:$0xf]
        %v5016 = vld [vmem:[%s5 + $0x2c] sm:$0xf]
        %v5017 = vld [vmem:[%s5 + $0x30] sm:$0xf]
        %v5018 = vld [vmem:[%s5 + $0x34] sm:$0xf]
        %v5019 = vld [vmem:[%s5 + $0x38] sm:$0xf]
        %v5020 = vld [vmem:[%s5 + $0x3c] sm:$0xf]
        %v5021 = vld [vmem:[%s6] sm:$0x1]
        %v5023 = vlaneseq
        %v5024 = vshrl.u32 %v5023, 7
        %v5025 = vsub.s32 0, %v5024
        %v5026 = vrot.slane %v5021, %v5025
        %v5044 = vunpack.c.l.b16 %v5005
        %v5045 = vunpack.c.l.b16 %v5006
        %v5046 = vunpack.c.l.b16 %v5007
        %v5047 = vunpack.c.l.b16 %v5008
        %v5048 = vunpack.c.l.b16 %v5009
        %v5049 = vunpack.c.l.b16 %v5010
        %v5050 = vunpack.c.l.b16 %v5011
        %v5051 = vunpack.c.l.b16 %v5012
        %v5052 = vunpack.c.l.b16 %v5013
        %v5053 = vunpack.c.l.b16 %v5014
        %v5054 = vunpack.c.l.b16 %v5015
        %v5055 = vunpack.c.l.b16 %v5016
        %v5056 = vunpack.c.l.b16 %v5017
        %v5057 = vunpack.c.l.b16 %v5018
        %v5058 = vunpack.c.l.b16 %v5019
        %v5059 = vunpack.c.l.b16 %v5020
        %v5060 = vpack.c.b16 %v5045, %v5044
        %v5061 = vpack.c.b16 %v5047, %v5046
        %v5062 = vpack.c.b16 %v5049, %v5048
        %v5063 = vpack.c.b16 %v5051, %v5050
        %v5064 = vpack.c.b16 %v5053, %v5052
        %v5065 = vpack.c.b16 %v5055, %v5054
        %v5066 = vpack.c.b16 %v5057, %v5056
        %v5067 = vpack.c.b16 %v5059, %v5058
        %5076 = vmatprep.subr.bf16.mxu0 0
        %5077 = vmatpush1.bf16.msra.mxu0 %v5067
        %5078 = vmatprep.subr.bf16.mxu0 0
        %5079 = vmatpush1.bf16.msra.mxu0 %v5066
        %5080 = vmatprep.subr.bf16.mxu0 0
        %5081 = vmatpush1.bf16.msra.mxu0 %v5065
        %5082 = vmatprep.subr.bf16.mxu0 0
        %5083 = vmatpush1.bf16.msra.mxu0 %v5064
        %5084 = vmatprep.subr.bf16.mxu0 0
        %5085 = vmatpush1.bf16.msra.mxu0 %v5063
        %5086 = vmatprep.subr.bf16.mxu0 0
        %5087 = vmatpush1.bf16.msra.mxu0 %v5062
        %5088 = vmatprep.subr.bf16.mxu0 0
        %5089 = vmatpush1.bf16.msra.mxu0 %v5061
        %5090 = vmatprep.subr.bf16.mxu0 0
        %5091 = vmatpush1.bf16.msra.mxu0 %v5060
        %5092 = vmatprep.subr.bf16.mxu0 0
        %5093 = vmatpush2.bf16.msra.mxu0 0
        %5094 = vmatprep.subr.bf16.mxu0 0
        %5095 = vmatpush2.bf16.msra.mxu0 0
        %5096 = vmatprep.subr.bf16.mxu0 0
        %5097 = vmatpush2.bf16.msra.mxu0 0
        %5098 = vmatprep.subr.bf16.mxu0 0
        %5099 = vmatpush2.bf16.msra.mxu0 0
        %5100 = vmatprep.subr.bf16.mxu0 0
        %5101 = vmatpush2.bf16.msra.mxu0 0
        %5102 = vmatprep.subr.bf16.mxu0 0
        %5103 = vmatpush2.bf16.msra.mxu0 0
        %5104 = vmatprep.subr.bf16.mxu0 0
        %5105 = vmatpush2.bf16.msra.mxu0 0
        %5106 = vmatprep.subr.bf16.mxu0 0
        %5107 = vmatpush2.bf16.msra.mxu0 0
        %5108 = vmatprep.mubr.bf16.mxu0 0
        %5109 = vmatmul.mubr.bf16.gmra.mxu0 %v4989
        %v5110 = vpop.f32.mrf.mxu0
        %v5111 = vadd.f32 %v5026, %v5110
        %v5112 = vpop.f32.mrf.mxu0
        %v5113 = vpop.f32.mrf.mxu0
        %v5114 = vadd.f32 %v5026, %v5113
        %v5115 = vpop.f32.mrf.mxu0
        %5116 = vmatprep.mubr.bf16.mxu0 0
        %5117 = vmatmul.mubr.bf16.gmra.mxu0 %v4990
        %v5118 = vpop.f32.mrf.mxu0
        %v5119 = vadd.f32 %v5026, %v5118
        %v5120 = vpop.f32.mrf.mxu0
        %v5121 = vpop.f32.mrf.mxu0
        %v5122 = vadd.f32 %v5026, %v5121
        %v5123 = vpop.f32.mrf.mxu0
        %5124 = vmatprep.mubr.bf16.mxu0 0
        %5125 = vmatmul.mubr.bf16.gmra.mxu0 %v4991
        %v5126 = vpop.f32.mrf.mxu0
        %v5127 = vadd.f32 %v5026, %v5126
        %v5128 = vpop.f32.mrf.mxu0
        %v5129 = vpop.f32.mrf.mxu0
        %v5130 = vadd.f32 %v5026, %v5129
        %v5131 = vpop.f32.mrf.mxu0
        %5132 = vmatprep.mubr.bf16.mxu0 0
        %5133 = vmatmul.mubr.bf16.gmra.mxu0 %v4992
        %v5134 = vpop.f32.mrf.mxu0
        %v5135 = vadd.f32 %v5026, %v5134
        %v5136 = vpop.f32.mrf.mxu0
        %v5137 = vpop.f32.mrf.mxu0
        %v5138 = vadd.f32 %v5026, %v5137
        %v5139 = vpop.f32.mrf.mxu0
        %5140 = vmatprep.mubr.bf16.mxu0 0
        %5141 = vmatmul.mubr.bf16.gmra.mxu0 %v4993
        %v5142 = vpop.f32.mrf.mxu0
        %v5143 = vadd.f32 %v5026, %v5142
        %v5144 = vpop.f32.mrf.mxu0
        %v5145 = vpop.f32.mrf.mxu0
        %v5146 = vadd.f32 %v5026, %v5145
        %v5147 = vpop.f32.mrf.mxu0
        %5148 = vmatprep.mubr.bf16.mxu0 0
        %5149 = vmatmul.mubr.bf16.gmra.mxu0 %v4994
        %v5150 = vpop.f32.mrf.mxu0
        %v5151 = vadd.f32 %v5026, %v5150
        %v5152 = vpop.f32.mrf.mxu0
        %v5153 = vpop.f32.mrf.mxu0
        %v5154 = vadd.f32 %v5026, %v5153
        %v5155 = vpop.f32.mrf.mxu0
        %5156 = vmatprep.mubr.bf16.mxu0 0
        %5157 = vmatmul.mubr.bf16.gmra.mxu0 %v4995
        %v5158 = vpop.f32.mrf.mxu0
        %v5159 = vadd.f32 %v5026, %v5158
        %v5160 = vpop.f32.mrf.mxu0
        %v5161 = vpop.f32.mrf.mxu0
        %v5162 = vadd.f32 %v5026, %v5161
        %v5163 = vpop.f32.mrf.mxu0
        %5164 = vmatprep.mubr.bf16.mxu0 0
        %5165 = vmatmul.mubr.bf16.gmra.mxu0 %v4996
        %v5166 = vpop.f32.mrf.mxu0
        %v5167 = vadd.f32 %v5026, %v5166
        %v5168 = vpop.f32.mrf.mxu0
        %v5169 = vpop.f32.mrf.mxu0
        %v5170 = vadd.f32 %v5026, %v5169
        %v5171 = vpop.f32.mrf.mxu0
        %5172 = vmatprep.mubr.bf16.mxu0 0
        %5173 = vmatmul.mubr.bf16.gmra.mxu0 %v4997
        %v5174 = vpop.f32.mrf.mxu0
        %v5175 = vadd.f32 %v5026, %v5174
        %v5176 = vpop.f32.mrf.mxu0
        %v5177 = vpop.f32.mrf.mxu0
        %v5178 = vadd.f32 %v5026, %v5177
        %v5179 = vpop.f32.mrf.mxu0
        %5180 = vmatprep.mubr.bf16.mxu0 0
        %5181 = vmatmul.mubr.bf16.gmra.mxu0 %v4998
        %v5182 = vpop.f32.mrf.mxu0
        %v5183 = vadd.f32 %v5026, %v5182
        %v5184 = vpop.f32.mrf.mxu0
        %v5185 = vpop.f32.mrf.mxu0
        %v5186 = vadd.f32 %v5026, %v5185
        %v5187 = vpop.f32.mrf.mxu0
        %5188 = vmatprep.mubr.bf16.mxu0 0
        %5189 = vmatmul.mubr.bf16.gmra.mxu0 %v4999
        %v5190 = vpop.f32.mrf.mxu0
        %v5191 = vadd.f32 %v5026, %v5190
        %v5192 = vpop.f32.mrf.mxu0
        %v5193 = vpop.f32.mrf.mxu0
        %v5194 = vadd.f32 %v5026, %v5193
        %v5195 = vpop.f32.mrf.mxu0
        %5196 = vmatprep.mubr.bf16.mxu0 0
        %5197 = vmatmul.mubr.bf16.gmra.mxu0 %v5000
        %v5198 = vpop.f32.mrf.mxu0
        %v5199 = vadd.f32 %v5026, %v5198
        %v5200 = vpop.f32.mrf.mxu0
        %v5201 = vpop.f32.mrf.mxu0
        %v5202 = vadd.f32 %v5026, %v5201
        %v5203 = vpop.f32.mrf.mxu0
        %5204 = vmatprep.mubr.bf16.mxu0 0
        %5205 = vmatmul.mubr.bf16.gmra.mxu0 %v5001
        %v5206 = vpop.f32.mrf.mxu0
        %v5207 = vadd.f32 %v5026, %v5206
        %v5208 = vpop.f32.mrf.mxu0
        %v5209 = vpop.f32.mrf.mxu0
        %v5210 = vadd.f32 %v5026, %v5209
        %v5211 = vpop.f32.mrf.mxu0
        %5212 = vmatprep.mubr.bf16.mxu0 0
        %5213 = vmatmul.mubr.bf16.gmra.mxu0 %v5002
        %v5214 = vpop.f32.mrf.mxu0
        %v5215 = vadd.f32 %v5026, %v5214
        %v5216 = vpop.f32.mrf.mxu0
        %v5217 = vpop.f32.mrf.mxu0
        %v5218 = vadd.f32 %v5026, %v5217
        %v5219 = vpop.f32.mrf.mxu0
        %5220 = vmatprep.mubr.bf16.mxu0 0
        %5221 = vmatmul.mubr.bf16.gmra.mxu0 %v5003
        %v5222 = vpop.f32.mrf.mxu0
        %v5223 = vadd.f32 %v5026, %v5222
        %v5224 = vpop.f32.mrf.mxu0
        %v5225 = vpop.f32.mrf.mxu0
        %v5226 = vadd.f32 %v5026, %v5225
        %v5227 = vpop.f32.mrf.mxu0
        %5228 = vmatprep.mubr.bf16.mxu0 0
        %5229 = vmatmul.mubr.bf16.gmra.mxu0 %v5004
        %v5230 = vpop.f32.mrf.mxu0
        %v5231 = vadd.f32 %v5026, %v5230
        %v5232 = vpop.f32.mrf.mxu0
        %v5233 = vpop.f32.mrf.mxu0
        %v5234 = vadd.f32 %v5026, %v5233
        %v5235 = vpop.f32.mrf.mxu0
        %5236 = vdwg.mxu0
        %v5237 = vmul.f32 %v5111, 0.5
        %v5238 = vmul.f32 %v5114, 0.5
        %v5239 = vmul.f32 %v5119, 0.5
        %v5240 = vmul.f32 %v5122, 0.5
        %v5241 = vmul.f32 %v5127, 0.5
        %v5242 = vmul.f32 %v5130, 0.5
        %v5243 = vmul.f32 %v5135, 0.5
        %v5244 = vmul.f32 %v5138, 0.5
        %v5245 = vmul.f32 %v5143, 0.5
        %v5246 = vmul.f32 %v5146, 0.5
        %v5247 = vmul.f32 %v5151, 0.5
        %v5248 = vmul.f32 %v5154, 0.5
        %v5249 = vmul.f32 %v5159, 0.5
        %v5250 = vmul.f32 %v5162, 0.5
        %v5251 = vmul.f32 %v5167, 0.5
        %v5252 = vmul.f32 %v5170, 0.5
        %v5253 = vmul.f32 %v5175, 0.5
        %v5254 = vmul.f32 %v5178, 0.5
        %v5255 = vmul.f32 %v5183, 0.5
        %v5256 = vmul.f32 %v5186, 0.5
        %v5257 = vmul.f32 %v5191, 0.5
        %v5258 = vmul.f32 %v5194, 0.5
        %v5259 = vmul.f32 %v5199, 0.5
        %v5260 = vmul.f32 %v5202, 0.5
        %v5261 = vmul.f32 %v5207, 0.5
        %v5262 = vmul.f32 %v5210, 0.5
        %v5263 = vmul.f32 %v5215, 0.5
        %v5264 = vmul.f32 %v5218, 0.5
        %v5265 = vmul.f32 %v5223, 0.5
        %v5266 = vmul.f32 %v5226, 0.5
        %v5267 = vmul.f32 %v5231, 0.5
        %v5268 = vmul.f32 %v5234, 0.5
        %v5269 = vmul.f32 %v5111, %v5111
        %v5270 = vmul.f32 %v5114, %v5114
        %v5271 = vmul.f32 %v5119, %v5119
        %v5272 = vmul.f32 %v5122, %v5122
        %v5273 = vmul.f32 %v5127, %v5127
        %v5274 = vmul.f32 %v5130, %v5130
        %v5275 = vmul.f32 %v5135, %v5135
        %v5276 = vmul.f32 %v5138, %v5138
        %v5277 = vmul.f32 %v5143, %v5143
        %v5278 = vmul.f32 %v5146, %v5146
        %v5279 = vmul.f32 %v5151, %v5151
        %v5280 = vmul.f32 %v5154, %v5154
        %v5281 = vmul.f32 %v5159, %v5159
        %v5282 = vmul.f32 %v5162, %v5162
        %v5283 = vmul.f32 %v5167, %v5167
        %v5284 = vmul.f32 %v5170, %v5170
        %v5285 = vmul.f32 %v5175, %v5175
        %v5286 = vmul.f32 %v5178, %v5178
        %v5287 = vmul.f32 %v5183, %v5183
        %v5288 = vmul.f32 %v5186, %v5186
        %v5289 = vmul.f32 %v5191, %v5191
        %v5290 = vmul.f32 %v5194, %v5194
        %v5291 = vmul.f32 %v5199, %v5199
        %v5292 = vmul.f32 %v5202, %v5202
        %v5293 = vmul.f32 %v5207, %v5207
        %v5294 = vmul.f32 %v5210, %v5210
        %v5295 = vmul.f32 %v5215, %v5215
        %v5296 = vmul.f32 %v5218, %v5218
        %v5297 = vmul.f32 %v5223, %v5223
        %v5298 = vmul.f32 %v5226, %v5226
        %v5299 = vmul.f32 %v5231, %v5231
        %v5300 = vmul.f32 %v5234, %v5234
        %v5301 = vmul.f32 %v5269, %v5111
        %v5302 = vmul.f32 %v5270, %v5114
        %v5303 = vmul.f32 %v5271, %v5119
        %v5304 = vmul.f32 %v5272, %v5122
        %v5305 = vmul.f32 %v5273, %v5127
        %v5306 = vmul.f32 %v5274, %v5130
        %v5307 = vmul.f32 %v5275, %v5135
        %v5308 = vmul.f32 %v5276, %v5138
        %v5309 = vmul.f32 %v5277, %v5143
        %v5310 = vmul.f32 %v5278, %v5146
        %v5311 = vmul.f32 %v5279, %v5151
        %v5312 = vmul.f32 %v5280, %v5154
        %v5313 = vmul.f32 %v5281, %v5159
        %v5314 = vmul.f32 %v5282, %v5162
        %v5315 = vmul.f32 %v5283, %v5167
        %v5316 = vmul.f32 %v5284, %v5170
        %v5317 = vmul.f32 %v5285, %v5175
        %v5318 = vmul.f32 %v5286, %v5178
        %v5319 = vmul.f32 %v5287, %v5183
        %v5320 = vmul.f32 %v5288, %v5186
        %v5321 = vmul.f32 %v5289, %v5191
        %v5322 = vmul.f32 %v5290, %v5194
        %v5323 = vmul.f32 %v5291, %v5199
        %v5324 = vmul.f32 %v5292, %v5202
        %v5325 = vmul.f32 %v5293, %v5207
        %v5326 = vmul.f32 %v5294, %v5210
        %v5327 = vmul.f32 %v5295, %v5215
        %v5328 = vmul.f32 %v5296, %v5218
        %v5329 = vmul.f32 %v5297, %v5223
        %v5330 = vmul.f32 %v5298, %v5226
        %v5331 = vmul.f32 %v5299, %v5231
        %v5332 = vmul.f32 %v5300, %v5234
        %v5333 = vmul.f32 %v5301, 0.044715
        %v5334 = vmul.f32 %v5302, 0.044715
        %v5335 = vmul.f32 %v5303, 0.044715
        %v5336 = vmul.f32 %v5304, 0.044715
        %v5337 = vmul.f32 %v5305, 0.044715
        %v5338 = vmul.f32 %v5306, 0.044715
        %v5339 = vmul.f32 %v5307, 0.044715
        %v5340 = vmul.f32 %v5308, 0.044715
        %v5341 = vmul.f32 %v5309, 0.044715
        %v5342 = vmul.f32 %v5310, 0.044715
        %v5343 = vmul.f32 %v5311, 0.044715
        %v5344 = vmul.f32 %v5312, 0.044715
        %v5345 = vmul.f32 %v5313, 0.044715
        %v5346 = vmul.f32 %v5314, 0.044715
        %v5347 = vmul.f32 %v5315, 0.044715
        %v5348 = vmul.f32 %v5316, 0.044715
        %v5349 = vmul.f32 %v5317, 0.044715
        %v5350 = vmul.f32 %v5318, 0.044715
        %v5351 = vmul.f32 %v5319, 0.044715
        %v5352 = vmul.f32 %v5320, 0.044715
        %v5353 = vmul.f32 %v5321, 0.044715
        %v5354 = vmul.f32 %v5322, 0.044715
        %v5355 = vmul.f32 %v5323, 0.044715
        %v5356 = vmul.f32 %v5324, 0.044715
        %v5357 = vmul.f32 %v5325, 0.044715
        %v5358 = vmul.f32 %v5326, 0.044715
        %v5359 = vmul.f32 %v5327, 0.044715
        %v5360 = vmul.f32 %v5328, 0.044715
        %v5361 = vmul.f32 %v5329, 0.044715
        %v5362 = vmul.f32 %v5330, 0.044715
        %v5363 = vmul.f32 %v5331, 0.044715
        %v5364 = vmul.f32 %v5332, 0.044715
        %v5365 = vadd.f32 %v5111, %v5333
        %v5366 = vadd.f32 %v5114, %v5334
        %v5367 = vadd.f32 %v5119, %v5335
        %v5368 = vadd.f32 %v5122, %v5336
        %v5369 = vadd.f32 %v5127, %v5337
        %v5370 = vadd.f32 %v5130, %v5338
        %v5371 = vadd.f32 %v5135, %v5339
        %v5372 = vadd.f32 %v5138, %v5340
        %v5373 = vadd.f32 %v5143, %v5341
        %v5374 = vadd.f32 %v5146, %v5342
        %v5375 = vadd.f32 %v5151, %v5343
        %v5376 = vadd.f32 %v5154, %v5344
        %v5377 = vadd.f32 %v5159, %v5345
        %v5378 = vadd.f32 %v5162, %v5346
        %v5379 = vadd.f32 %v5167, %v5347
        %v5380 = vadd.f32 %v5170, %v5348
        %v5381 = vadd.f32 %v5175, %v5349
        %v5382 = vadd.f32 %v5178, %v5350
        %v5383 = vadd.f32 %v5183, %v5351
        %v5384 = vadd.f32 %v5186, %v5352
        %v5385 = vadd.f32 %v5191, %v5353
        %v5386 = vadd.f32 %v5194, %v5354
        %v5387 = vadd.f32 %v5199, %v5355
        %v5388 = vadd.f32 %v5202, %v5356
        %v5389 = vadd.f32 %v5207, %v5357
        %v5390 = vadd.f32 %v5210, %v5358
        %v5391 = vadd.f32 %v5215, %v5359
        %v5392 = vadd.f32 %v5218, %v5360
        %v5393 = vadd.f32 %v5223, %v5361
        %v5394 = vadd.f32 %v5226, %v5362
        %v5395 = vadd.f32 %v5231, %v5363
        %v5396 = vadd.f32 %v5234, %v5364
        %v5397 = vmul.f32 %v5365, 0.7978846
        %v5398 = vmul.f32 %v5366, 0.7978846
        %v5399 = vmul.f32 %v5367, 0.7978846
        %v5400 = vmul.f32 %v5368, 0.7978846
        %v5401 = vmul.f32 %v5369, 0.7978846
        %v5402 = vmul.f32 %v5370, 0.7978846
        %v5403 = vmul.f32 %v5371, 0.7978846
        %v5404 = vmul.f32 %v5372, 0.7978846
        %v5405 = vmul.f32 %v5373, 0.7978846
        %v5406 = vmul.f32 %v5374, 0.7978846
        %v5407 = vmul.f32 %v5375, 0.7978846
        %v5408 = vmul.f32 %v5376, 0.7978846
        %v5409 = vmul.f32 %v5377, 0.7978846
        %v5410 = vmul.f32 %v5378, 0.7978846
        %v5411 = vmul.f32 %v5379, 0.7978846
        %v5412 = vmul.f32 %v5380, 0.7978846
        %v5413 = vmul.f32 %v5381, 0.7978846
        %v5414 = vmul.f32 %v5382, 0.7978846
        %v5415 = vmul.f32 %v5383, 0.7978846
        %v5416 = vmul.f32 %v5384, 0.7978846
        %v5417 = vmul.f32 %v5385, 0.7978846
        %v5418 = vmul.f32 %v5386, 0.7978846
        %v5419 = vmul.f32 %v5387, 0.7978846
        %v5420 = vmul.f32 %v5388, 0.7978846
        %v5421 = vmul.f32 %v5389, 0.7978846
        %v5422 = vmul.f32 %v5390, 0.7978846
        %v5423 = vmul.f32 %v5391, 0.7978846
        %v5424 = vmul.f32 %v5392, 0.7978846
        %v5425 = vmul.f32 %v5393, 0.7978846
        %v5426 = vmul.f32 %v5394, 0.7978846
        %v5427 = vmul.f32 %v5395, 0.7978846
        %v5428 = vmul.f32 %v5396, 0.7978846
        %v5429 = vtanh.pop %v5397
        %v5430 = vtanh.pop %v5398
        %v5431 = vtanh.pop %v5399
        %v5432 = vtanh.pop %v5400
        %v5433 = vtanh.pop %v5401
        %v5434 = vtanh.pop %v5402
        %v5435 = vtanh.pop %v5403
        %v5436 = vtanh.pop %v5404
        %v5437 = vtanh.pop %v5405
        %v5438 = vtanh.pop %v5406
        %v5439 = vtanh.pop %v5407
        %v5440 = vtanh.pop %v5408
        %v5441 = vtanh.pop %v5409
        %v5442 = vtanh.pop %v5410
        %v5443 = vtanh.pop %v5411
        %v5444 = vtanh.pop %v5412
        %v5445 = vtanh.pop %v5413
        %v5446 = vtanh.pop %v5414
        %v5447 = vtanh.pop %v5415
        %v5448 = vtanh.pop %v5416
        %v5449 = vtanh.pop %v5417
        %v5450 = vtanh.pop %v5418
        %v5451 = vtanh.pop %v5419
        %v5452 = vtanh.pop %v5420
        %v5453 = vtanh.pop %v5421
        %v5454 = vtanh.pop %v5422
        %v5455 = vtanh.pop %v5423
        %v5456 = vtanh.pop %v5424
        %v5457 = vtanh.pop %v5425
        %v5458 = vtanh.pop %v5426
        %v5459 = vtanh.pop %v5427
        %v5460 = vtanh.pop %v5428
        %v5461 = vadd.f32 %v5429, 1.0
        %v5462 = vadd.f32 %v5430, 1.0
        %v5463 = vadd.f32 %v5431, 1.0
        %v5464 = vadd.f32 %v5432, 1.0
        %v5465 = vadd.f32 %v5433, 1.0
        %v5466 = vadd.f32 %v5434, 1.0
        %v5467 = vadd.f32 %v5435, 1.0
        %v5468 = vadd.f32 %v5436, 1.0
        %v5469 = vadd.f32 %v5437, 1.0
        %v5470 = vadd.f32 %v5438, 1.0
        %v5471 = vadd.f32 %v5439, 1.0
        %v5472 = vadd.f32 %v5440, 1.0
        %v5473 = vadd.f32 %v5441, 1.0
        %v5474 = vadd.f32 %v5442, 1.0
        %v5475 = vadd.f32 %v5443, 1.0
        %v5476 = vadd.f32 %v5444, 1.0
        %v5477 = vadd.f32 %v5445, 1.0
        %v5478 = vadd.f32 %v5446, 1.0
        %v5479 = vadd.f32 %v5447, 1.0
        %v5480 = vadd.f32 %v5448, 1.0
        %v5481 = vadd.f32 %v5449, 1.0
        %v5482 = vadd.f32 %v5450, 1.0
        %v5483 = vadd.f32 %v5451, 1.0
        %v5484 = vadd.f32 %v5452, 1.0
        %v5485 = vadd.f32 %v5453, 1.0
        %v5486 = vadd.f32 %v5454, 1.0
        %v5487 = vadd.f32 %v5455, 1.0
        %v5488 = vadd.f32 %v5456, 1.0
        %v5489 = vadd.f32 %v5457, 1.0
        %v5490 = vadd.f32 %v5458, 1.0
        %v5491 = vadd.f32 %v5459, 1.0
        %v5492 = vadd.f32 %v5460, 1.0
        %v5493 = vmul.f32 %v5237, %v5461
        %v5494 = vmul.f32 %v5238, %v5462
        %v5495 = vmul.f32 %v5239, %v5463
        %v5496 = vmul.f32 %v5240, %v5464
        %v5497 = vmul.f32 %v5241, %v5465
        %v5498 = vmul.f32 %v5242, %v5466
        %v5499 = vmul.f32 %v5243, %v5467
        %v5500 = vmul.f32 %v5244, %v5468
        %v5501 = vmul.f32 %v5245, %v5469
        %v5502 = vmul.f32 %v5246, %v5470
        %v5503 = vmul.f32 %v5247, %v5471
        %v5504 = vmul.f32 %v5248, %v5472
        %v5505 = vmul.f32 %v5249, %v5473
        %v5506 = vmul.f32 %v5250, %v5474
        %v5507 = vmul.f32 %v5251, %v5475
        %v5508 = vmul.f32 %v5252, %v5476
        %v5509 = vmul.f32 %v5253, %v5477
        %v5510 = vmul.f32 %v5254, %v5478
        %v5511 = vmul.f32 %v5255, %v5479
        %v5512 = vmul.f32 %v5256, %v5480
        %v5513 = vmul.f32 %v5257, %v5481
        %v5514 = vmul.f32 %v5258, %v5482
        %v5515 = vmul.f32 %v5259, %v5483
        %v5516 = vmul.f32 %v5260, %v5484
        %v5517 = vmul.f32 %v5261, %v5485
        %v5518 = vmul.f32 %v5262, %v5486
        %v5519 = vmul.f32 %v5263, %v5487
        %v5520 = vmul.f32 %v5264, %v5488
        %v5521 = vmul.f32 %v5265, %v5489
        %v5522 = vmul.f32 %v5266, %v5490
        %v5523 = vmul.f32 %v5267, %v5491
        %v5524 = vmul.f32 %v5268, %v5492
        %v5525 = vpack.c.bf16 %v5494, %v5493
        %v5526 = vpack.c.bf16 %v5496, %v5495
        %v5527 = vpack.c.bf16 %v5498, %v5497
        %v5528 = vpack.c.bf16 %v5500, %v5499
        %v5529 = vpack.c.bf16 %v5502, %v5501
        %v5530 = vpack.c.bf16 %v5504, %v5503
        %v5531 = vpack.c.bf16 %v5506, %v5505
        %v5532 = vpack.c.bf16 %v5508, %v5507
        %v5533 = vpack.c.bf16 %v5510, %v5509
        %v5534 = vpack.c.bf16 %v5512, %v5511
        %v5535 = vpack.c.bf16 %v5514, %v5513
        %v5536 = vpack.c.bf16 %v5516, %v5515
        %v5537 = vpack.c.bf16 %v5518, %v5517
        %v5538 = vpack.c.bf16 %v5520, %v5519
        %v5539 = vpack.c.bf16 %v5522, %v5521
        %v5540 = vpack.c.bf16 %v5524, %v5523
        %v5541 = vld [vmem:[%s7] sm:$0xf]
        %v5542 = vld [vmem:[%s7 + $0x4] sm:$0xf]
        %v5543 = vld [vmem:[%s7 + $0x8] sm:$0xf]
        %v5544 = vld [vmem:[%s7 + $0xc] sm:$0xf]
        %v5545 = vld [vmem:[%s7 + $0x10] sm:$0xf]
        %v5546 = vld [vmem:[%s7 + $0x14] sm:$0xf]
        %v5547 = vld [vmem:[%s7 + $0x18] sm:$0xf]
        %v5548 = vld [vmem:[%s7 + $0x1c] sm:$0xf]
        %v5549 = vld [vmem:[%s7 + $0x20] sm:$0xf]
        %v5550 = vld [vmem:[%s7 + $0x24] sm:$0xf]
        %v5551 = vld [vmem:[%s7 + $0x28] sm:$0xf]
        %v5552 = vld [vmem:[%s7 + $0x2c] sm:$0xf]
        %v5553 = vld [vmem:[%s7 + $0x30] sm:$0xf]
        %v5554 = vld [vmem:[%s7 + $0x34] sm:$0xf]
        %v5555 = vld [vmem:[%s7 + $0x38] sm:$0xf]
        %v5556 = vld [vmem:[%s7 + $0x3c] sm:$0xf]
        %v5557 = vld [vmem:[%s8] sm:$0x1]
        %v5559 = vlaneseq
        %v5560 = vshrl.u32 %v5559, 7
        %v5561 = vsub.s32 0, %v5560
        %v5562 = vrot.slane %v5557, %v5561
        %v5580 = vunpack.c.l.b16 %v5541
        %v5581 = vunpack.c.l.b16 %v5542
        %v5582 = vunpack.c.l.b16 %v5543
        %v5583 = vunpack.c.l.b16 %v5544
        %v5584 = vunpack.c.l.b16 %v5545
        %v5585 = vunpack.c.l.b16 %v5546
        %v5586 = vunpack.c.l.b16 %v5547
        %v5587 = vunpack.c.l.b16 %v5548
        %v5588 = vunpack.c.l.b16 %v5549
        %v5589 = vunpack.c.l.b16 %v5550
        %v5590 = vunpack.c.l.b16 %v5551
        %v5591 = vunpack.c.l.b16 %v5552
        %v5592 = vunpack.c.l.b16 %v5553
        %v5593 = vunpack.c.l.b16 %v5554
        %v5594 = vunpack.c.l.b16 %v5555
        %v5595 = vunpack.c.l.b16 %v5556
        %v5596 = vpack.c.b16 %v5581, %v5580
        %v5597 = vpack.c.b16 %v5583, %v5582
        %v5598 = vpack.c.b16 %v5585, %v5584
        %v5599 = vpack.c.b16 %v5587, %v5586
        %v5600 = vpack.c.b16 %v5589, %v5588
        %v5601 = vpack.c.b16 %v5591, %v5590
        %v5602 = vpack.c.b16 %v5593, %v5592
        %v5603 = vpack.c.b16 %v5595, %v5594
        %5612 = vmatprep.subr.bf16.mxu0 0
        %5613 = vmatpush1.bf16.msra.mxu0 %v5603
        %5614 = vmatprep.subr.bf16.mxu0 0
        %5615 = vmatpush1.bf16.msra.mxu0 %v5602
        %5616 = vmatprep.subr.bf16.mxu0 0
        %5617 = vmatpush1.bf16.msra.mxu0 %v5601
        %5618 = vmatprep.subr.bf16.mxu0 0
        %5619 = vmatpush1.bf16.msra.mxu0 %v5600
        %5620 = vmatprep.subr.bf16.mxu0 0
        %5621 = vmatpush1.bf16.msra.mxu0 %v5599
        %5622 = vmatprep.subr.bf16.mxu0 0
        %5623 = vmatpush1.bf16.msra.mxu0 %v5598
        %5624 = vmatprep.subr.bf16.mxu0 0
        %5625 = vmatpush1.bf16.msra.mxu0 %v5597
        %5626 = vmatprep.subr.bf16.mxu0 0
        %5627 = vmatpush1.bf16.msra.mxu0 %v5596
        %5628 = vmatprep.subr.bf16.mxu0 0
        %5629 = vmatpush2.bf16.msra.mxu0 0
        %5630 = vmatprep.subr.bf16.mxu0 0
        %5631 = vmatpush2.bf16.msra.mxu0 0
        %5632 = vmatprep.subr.bf16.mxu0 0
        %5633 = vmatpush2.bf16.msra.mxu0 0
        %5634 = vmatprep.subr.bf16.mxu0 0
        %5635 = vmatpush2.bf16.msra.mxu0 0
        %5636 = vmatprep.subr.bf16.mxu0 0
        %5637 = vmatpush2.bf16.msra.mxu0 0
        %5638 = vmatprep.subr.bf16.mxu0 0
        %5639 = vmatpush2.bf16.msra.mxu0 0
        %5640 = vmatprep.subr.bf16.mxu0 0
        %5641 = vmatpush2.bf16.msra.mxu0 0
        %5642 = vmatprep.subr.bf16.mxu0 0
        %5643 = vmatpush2.bf16.msra.mxu0 0
        %5644 = vmatprep.mubr.bf16.mxu0 0
        %5645 = vmatmul.mubr.bf16.gmra.mxu0 %v5525
        %v5646 = vpop.f32.mrf.mxu0
        %v5647 = vadd.f32 %v5562, %v5646
        %v5648 = vpop.f32.mrf.mxu0
        %v5649 = vpop.f32.mrf.mxu0
        %v5650 = vadd.f32 %v5562, %v5649
        %v5651 = vpop.f32.mrf.mxu0
        %5652 = vmatprep.mubr.bf16.mxu0 0
        %5653 = vmatmul.mubr.bf16.gmra.mxu0 %v5526
        %v5654 = vpop.f32.mrf.mxu0
        %v5655 = vadd.f32 %v5562, %v5654
        %v5656 = vpop.f32.mrf.mxu0
        %v5657 = vpop.f32.mrf.mxu0
        %v5658 = vadd.f32 %v5562, %v5657
        %v5659 = vpop.f32.mrf.mxu0
        %5660 = vmatprep.mubr.bf16.mxu0 0
        %5661 = vmatmul.mubr.bf16.gmra.mxu0 %v5527
        %v5662 = vpop.f32.mrf.mxu0
        %v5663 = vadd.f32 %v5562, %v5662
        %v5664 = vpop.f32.mrf.mxu0
        %v5665 = vpop.f32.mrf.mxu0
        %v5666 = vadd.f32 %v5562, %v5665
        %v5667 = vpop.f32.mrf.mxu0
        %5668 = vmatprep.mubr.bf16.mxu0 0
        %5669 = vmatmul.mubr.bf16.gmra.mxu0 %v5528
        %v5670 = vpop.f32.mrf.mxu0
        %v5671 = vadd.f32 %v5562, %v5670
        %v5672 = vpop.f32.mrf.mxu0
        %v5673 = vpop.f32.mrf.mxu0
        %v5674 = vadd.f32 %v5562, %v5673
        %v5675 = vpop.f32.mrf.mxu0
        %5676 = vmatprep.mubr.bf16.mxu0 0
        %5677 = vmatmul.mubr.bf16.gmra.mxu0 %v5529
        %v5678 = vpop.f32.mrf.mxu0
        %v5679 = vadd.f32 %v5562, %v5678
        %v5680 = vpop.f32.mrf.mxu0
        %v5681 = vpop.f32.mrf.mxu0
        %v5682 = vadd.f32 %v5562, %v5681
        %v5683 = vpop.f32.mrf.mxu0
        %5684 = vmatprep.mubr.bf16.mxu0 0
        %5685 = vmatmul.mubr.bf16.gmra.mxu0 %v5530
        %v5686 = vpop.f32.mrf.mxu0
        %v5687 = vadd.f32 %v5562, %v5686
        %v5688 = vpop.f32.mrf.mxu0
        %v5689 = vpop.f32.mrf.mxu0
        %v5690 = vadd.f32 %v5562, %v5689
        %v5691 = vpop.f32.mrf.mxu0
        %5692 = vmatprep.mubr.bf16.mxu0 0
        %5693 = vmatmul.mubr.bf16.gmra.mxu0 %v5531
        %v5694 = vpop.f32.mrf.mxu0
        %v5695 = vadd.f32 %v5562, %v5694
        %v5696 = vpop.f32.mrf.mxu0
        %v5697 = vpop.f32.mrf.mxu0
        %v5698 = vadd.f32 %v5562, %v5697
        %v5699 = vpop.f32.mrf.mxu0
        %5700 = vmatprep.mubr.bf16.mxu0 0
        %5701 = vmatmul.mubr.bf16.gmra.mxu0 %v5532
        %v5702 = vpop.f32.mrf.mxu0
        %v5703 = vadd.f32 %v5562, %v5702
        %v5704 = vpop.f32.mrf.mxu0
        %v5705 = vpop.f32.mrf.mxu0
        %v5706 = vadd.f32 %v5562, %v5705
        %v5707 = vpop.f32.mrf.mxu0
        %5708 = vmatprep.mubr.bf16.mxu0 0
        %5709 = vmatmul.mubr.bf16.gmra.mxu0 %v5533
        %v5710 = vpop.f32.mrf.mxu0
        %v5711 = vadd.f32 %v5562, %v5710
        %v5712 = vpop.f32.mrf.mxu0
        %v5713 = vpop.f32.mrf.mxu0
        %v5714 = vadd.f32 %v5562, %v5713
        %v5715 = vpop.f32.mrf.mxu0
        %5716 = vmatprep.mubr.bf16.mxu0 0
        %5717 = vmatmul.mubr.bf16.gmra.mxu0 %v5534
        %v5718 = vpop.f32.mrf.mxu0
        %v5719 = vadd.f32 %v5562, %v5718
        %v5720 = vpop.f32.mrf.mxu0
        %v5721 = vpop.f32.mrf.mxu0
        %v5722 = vadd.f32 %v5562, %v5721
        %v5723 = vpop.f32.mrf.mxu0
        %5724 = vmatprep.mubr.bf16.mxu0 0
        %5725 = vmatmul.mubr.bf16.gmra.mxu0 %v5535
        %v5726 = vpop.f32.mrf.mxu0
        %v5727 = vadd.f32 %v5562, %v5726
        %v5728 = vpop.f32.mrf.mxu0
        %v5729 = vpop.f32.mrf.mxu0
        %v5730 = vadd.f32 %v5562, %v5729
        %v5731 = vpop.f32.mrf.mxu0
        %5732 = vmatprep.mubr.bf16.mxu0 0
        %5733 = vmatmul.mubr.bf16.gmra.mxu0 %v5536
        %v5734 = vpop.f32.mrf.mxu0
        %v5735 = vadd.f32 %v5562, %v5734
        %v5736 = vpop.f32.mrf.mxu0
        %v5737 = vpop.f32.mrf.mxu0
        %v5738 = vadd.f32 %v5562, %v5737
        %v5739 = vpop.f32.mrf.mxu0
        %5740 = vmatprep.mubr.bf16.mxu0 0
        %5741 = vmatmul.mubr.bf16.gmra.mxu0 %v5537
        %v5742 = vpop.f32.mrf.mxu0
        %v5743 = vadd.f32 %v5562, %v5742
        %v5744 = vpop.f32.mrf.mxu0
        %v5745 = vpop.f32.mrf.mxu0
        %v5746 = vadd.f32 %v5562, %v5745
        %v5747 = vpop.f32.mrf.mxu0
        %5748 = vmatprep.mubr.bf16.mxu0 0
        %5749 = vmatmul.mubr.bf16.gmra.mxu0 %v5538
        %v5750 = vpop.f32.mrf.mxu0
        %v5751 = vadd.f32 %v5562, %v5750
        %v5752 = vpop.f32.mrf.mxu0
        %v5753 = vpop.f32.mrf.mxu0
        %v5754 = vadd.f32 %v5562, %v5753
        %v5755 = vpop.f32.mrf.mxu0
        %5756 = vmatprep.mubr.bf16.mxu0 0
        %5757 = vmatmul.mubr.bf16.gmra.mxu0 %v5539
        %v5758 = vpop.f32.mrf.mxu0
        %v5759 = vadd.f32 %v5562, %v5758
        %v5760 = vpop.f32.mrf.mxu0
        %v5761 = vpop.f32.mrf.mxu0
        %v5762 = vadd.f32 %v5562, %v5761
        %v5763 = vpop.f32.mrf.mxu0
        %5764 = vmatprep.mubr.bf16.mxu0 0
        %5765 = vmatmul.mubr.bf16.gmra.mxu0 %v5540
        %v5766 = vpop.f32.mrf.mxu0
        %v5767 = vadd.f32 %v5562, %v5766
        %v5768 = vpop.f32.mrf.mxu0
        %v5769 = vpop.f32.mrf.mxu0
        %v5770 = vadd.f32 %v5562, %v5769
        %v5771 = vpop.f32.mrf.mxu0
        %5772 = vdwg.mxu0
        %v5773 = vld [vmem:[%s9] sm:$0x1]
        %v5775 = vlaneseq
        %v5776 = vshrl.u32 %v5775, 7
        %v5777 = vsub.s32 0, %v5776
        %v5778 = vrot.slane %v5773, %v5777
        %v5780 = vmul.f32 %v5647, %v5778
        %v5781 = vmul.f32 %v5650, %v5778
        %v5782 = vmul.f32 %v5655, %v5778
        %v5783 = vmul.f32 %v5658, %v5778
        %v5784 = vmul.f32 %v5663, %v5778
        %v5785 = vmul.f32 %v5666, %v5778
        %v5786 = vmul.f32 %v5671, %v5778
        %v5787 = vmul.f32 %v5674, %v5778
        %v5788 = vmul.f32 %v5679, %v5778
        %v5789 = vmul.f32 %v5682, %v5778
        %v5790 = vmul.f32 %v5687, %v5778
        %v5791 = vmul.f32 %v5690, %v5778
        %v5792 = vmul.f32 %v5695, %v5778
        %v5793 = vmul.f32 %v5698, %v5778
        %v5794 = vmul.f32 %v5703, %v5778
        %v5795 = vmul.f32 %v5706, %v5778
        %v5796 = vmul.f32 %v5711, %v5778
        %v5797 = vmul.f32 %v5714, %v5778
        %v5798 = vmul.f32 %v5719, %v5778
        %v5799 = vmul.f32 %v5722, %v5778
        %v5800 = vmul.f32 %v5727, %v5778
        %v5801 = vmul.f32 %v5730, %v5778
        %v5802 = vmul.f32 %v5735, %v5778
        %v5803 = vmul.f32 %v5738, %v5778
        %v5804 = vmul.f32 %v5743, %v5778
        %v5805 = vmul.f32 %v5746, %v5778
        %v5806 = vmul.f32 %v5751, %v5778
        %v5807 = vmul.f32 %v5754, %v5778
        %v5808 = vmul.f32 %v5759, %v5778
        %v5809 = vmul.f32 %v5762, %v5778
        %v5810 = vmul.f32 %v5767, %v5778
        %v5811 = vmul.f32 %v5770, %v5778
        %v5812 = vadd.f32 %v2409, %v5780
        %v5813 = vadd.f32 %v2410, %v5781
        %v5814 = vadd.f32 %v2411, %v5782
        %v5815 = vadd.f32 %v2412, %v5783
        %v5816 = vadd.f32 %v2413, %v5784
        %v5817 = vadd.f32 %v2414, %v5785
        %v5818 = vadd.f32 %v2415, %v5786
        %v5819 = vadd.f32 %v2416, %v5787
        %v5820 = vadd.f32 %v2417, %v5788
        %v5821 = vadd.f32 %v2418, %v5789
        %v5822 = vadd.f32 %v2419, %v5790
        %v5823 = vadd.f32 %v2420, %v5791
        %v5824 = vadd.f32 %v2421, %v5792
        %v5825 = vadd.f32 %v2422, %v5793
        %v5826 = vadd.f32 %v2423, %v5794
        %v5827 = vadd.f32 %v2424, %v5795
        %v5828 = vadd.f32 %v2425, %v5796
        %v5829 = vadd.f32 %v2426, %v5797
        %v5830 = vadd.f32 %v2427, %v5798
        %v5831 = vadd.f32 %v2428, %v5799
        %v5832 = vadd.f32 %v2429, %v5800
        %v5833 = vadd.f32 %v2430, %v5801
        %v5834 = vadd.f32 %v2431, %v5802
        %v5835 = vadd.f32 %v2432, %v5803
        %v5836 = vadd.f32 %v2433, %v5804
        %v5837 = vadd.f32 %v2434, %v5805
        %v5838 = vadd.f32 %v2435, %v5806
        %v5839 = vadd.f32 %v2436, %v5807
        %v5840 = vadd.f32 %v2437, %v5808
        %v5841 = vadd.f32 %v2438, %v5809
        %v5842 = vadd.f32 %v2439, %v5810
        %v5843 = vadd.f32 %v2440, %v5811
        %5844 = vst [vmem:[%s334] sm:$0xff] %v5812
        %5845 = vst [vmem:[%s334 + $0x8] sm:$0xff] %v5813
        %5846 = vst [vmem:[%s334 + $0x10] sm:$0xff] %v5814
        %5847 = vst [vmem:[%s334 + $0x18] sm:$0xff] %v5815
        %5848 = vst [vmem:[%s334 + $0x20] sm:$0xff] %v5816
        %5849 = vst [vmem:[%s334 + $0x28] sm:$0xff] %v5817
        %5850 = vst [vmem:[%s334 + $0x30] sm:$0xff] %v5818
        %5851 = vst [vmem:[%s334 + $0x38] sm:$0xff] %v5819
        %5852 = vst [vmem:[%s334 + $0x40] sm:$0xff] %v5820
        %5853 = vst [vmem:[%s334 + $0x48] sm:$0xff] %v5821
        %5854 = vst [vmem:[%s334 + $0x50] sm:$0xff] %v5822
        %5855 = vst [vmem:[%s334 + $0x58] sm:$0xff] %v5823
        %5856 = vst [vmem:[%s334 + $0x60] sm:$0xff] %v5824
        %5857 = vst [vmem:[%s334 + $0x68] sm:$0xff] %v5825
        %5858 = vst [vmem:[%s334 + $0x70] sm:$0xff] %v5826
        %5859 = vst [vmem:[%s334 + $0x78] sm:$0xff] %v5827
        %5860 = vst [vmem:[%s334 + $0x80] sm:$0xff] %v5828
        %5861 = vst [vmem:[%s334 + $0x88] sm:$0xff] %v5829
        %5862 = vst [vmem:[%s334 + $0x90] sm:$0xff] %v5830
        %5863 = vst [vmem:[%s334 + $0x98] sm:$0xff] %v5831
        %5864 = vst [vmem:[%s334 + $0xa0] sm:$0xff] %v5832
        %5865 = vst [vmem:[%s334 + $0xa8] sm:$0xff] %v5833
        %5866 = vst [vmem:[%s334 + $0xb0] sm:$0xff] %v5834
        %5867 = vst [vmem:[%s334 + $0xb8] sm:$0xff] %v5835
        %5868 = vst [vmem:[%s334 + $0xc0] sm:$0xff] %v5836
        %5869 = vst [vmem:[%s334 + $0xc8] sm:$0xff] %v5837
        %5870 = vst [vmem:[%s334 + $0xd0] sm:$0xff] %v5838
        %5871 = vst [vmem:[%s334 + $0xd8] sm:$0xff] %v5839
        %5872 = vst [vmem:[%s334 + $0xe0] sm:$0xff] %v5840
        %5873 = vst [vmem:[%s334 + $0xe8] sm:$0xff] %v5841
        %5874 = vst [vmem:[%s334 + $0xf0] sm:$0xff] %v5842
        %5875 = vst [vmem:[%s334 + $0xf8] sm:$0xff] %v5843
        %s5876 = sand.u32 %s244, 1
        %s5877 = scalar_lea.sflag [#allocation5], %s5876
        %s5878 = sand.u32 %s244, 1
        %s5879 = smul.addr %s5878, 256
        %s5880 = scalar_lea.vmem [#allocation4], %s5879
        // Predicated region
        $region139: #{tpu_custom_call.1} parent=55 // pred_check
          %p5881 = pneg %p254
        $region140: #{tpu_custom_call.1} parent=55 // pred_check_branch
          %5883 = sbr.rel (%p5881) target = $region142
        $region141: #{tpu_custom_call.1} parent=55 // pred_region
          %s5884 = sadd.s32 %s30, %s31
          %s5885 = smul.u32 16, %s5884
          %s5887 = ssub.s32 4096, 4096
          %5888 = vsyncadd %s5877, %s5887
          %s5889 = smul.addr %s5885, 2
          %s5890 = smul.addr %s29, 32
          %s5891 = sadd.s32 %s5889, %s5890
          %s5892 = smul.addr %s5891, 128
          %s5893 = scalar_lea.hbm %s10, %s5892
          %s5894 = sshll.u32 %s5880, 4
          %s5895 = int_to_ptr.vmem [resolvable:$true] %s5894
          %5900 = dma.vmem_to_hbm [thread:$0]  %s5895, 4096, %s5893, %s5877, 128, 128, 8
        $region142: #{tpu_custom_call.1} parent=55 // pred_fallthru
          _
      $region56: #{tpu_custom_call.1} parent=5 // pred_fallthru
        _
      %p5901 = scmp.le.s32.totalorder 2, %s19
      // Predicated region
      $region143: #{tpu_custom_call.1} parent=5 // pred_check
        %p5902 = pneg %p5901
      $region144: #{tpu_custom_call.1} parent=5 // pred_check_branch
        %5904 = sbr.rel (%p5902) target = $region146
      $region145: #{tpu_custom_call.1} parent=5 // pred_region
        %s5905 = ssub.s32 %s19, 2
        // Predicated region
        $region147: #{tpu_custom_call.1} parent=145 // pred_check
          %p5906 = pneg %p260
        $region148: #{tpu_custom_call.1} parent=145 // pred_check_branch
          %5908 = sbr.rel (%p5906) target = $region150
        $region149: #{tpu_custom_call.1} parent=145 // pred_region
          %s5909 = sand.u32 %s245, 1
          %s5910 = scalar_lea.sflag [#allocation5], %s5909
          %s5911 = sand.u32 %s245, 1
          %s5912 = smul.addr %s5911, 256
          %s5913 = scalar_lea.vmem [#allocation4], %s5912
          %5914 = dma.done %s5910, 4096
        $region150: #{tpu_custom_call.1} parent=145 // pred_fallthru
          _
      $region146: #{tpu_custom_call.1} parent=5 // pred_fallthru
        _
    $region6: #{tpu_custom_call.1} parent=1 // loop_footer
      %s23 = sadd.s32 1, %s19
    $region7: #{tpu_custom_call.1} parent=1 // loop_footer_branch
      %18 = sbr.rel target = $region3
    $region8: #{tpu_custom_call.1} parent=1 // loop_exit
      _
    %5915 = vsyncpa [#allocation5], 1
    %s5916 = scalar_lea.sflag [#allocation5], 1
    %5917 = vsyncpa %s5916, 1
  %5918 = vsyncmov [#allocation3]
  %s5919 = vpop.sfrf %5918
  %p5920 = scmp.eq.s32.totalorder %s5919, 0
  %p5921 = pneg %p5920
  %5923 = shalt.err (%p5921)
  %s5924 = scalar_lea.sflag [#allocation3], 1
  %5925 = vsyncmov %s5924
  %s5926 = vpop.sfrf %5925
  %p5927 = scmp.eq.s32.totalorder %s5926, 0
  %p5928 = pneg %p5927
  %5930 = shalt.err (%p5928)

</llo_original>
